<compile_context>
chip_gen: v7x
topology: tpu7x:2x2x1
jax: 0.10.0
libtpu: 0.0.40
codegen_flags: <defaults>
</compile_context>

<pallas_src>
import jax
import jax.numpy as jnp
from jax import lax
from jax.experimental import pallas as pl
from jax.experimental.pallas import tpu as pltpu

# ---------------- config (small shapes consistent with Multi_gen args) ------
VOCAB = 64        # args.vocab_size
EMB = 32          # args.embedding_dim
HID = 32          # args.hidden_dim (bi-GRU output width)
HALF = HID // 2   # per-direction GRU hidden size
NUM_CLASS = 2     # args.num_class
NUM_GEN = 2       # args.num_gen  (share == 0: independent generators)
NUM_LAYERS = 1    # args.num_layers
Z_DIM = 2
B, S = 2, 8       # batch, sequence length
GH = NUM_GEN * HALF   # stacked hidden width per direction in the gen kernel
GB = NUM_GEN * B      # stacked batch in the classifier kernel
NEG = -1000000.0
# nn.Dropout is applied in inference mode (identity).
# TODO(synk): training-mode dropout RNG is not modeled.

_VMEM = pl.BlockSpec(memory_space=pltpu.MemorySpace.VMEM)


# ---------------- shared GRU cell (PyTorch gate order r, z, n) ---------------
def _gru_cell(h, gi_r, gi_z, gi_n, w_r, w_z, w_n, bhn):
    # gi_r / gi_z already contain b_ih + b_hh; gi_n contains b_ih only and
    # b_hh_n (bhn) is added inside the r-product, matching torch.nn.GRU.
    gh_r = jnp.dot(h, w_r, preferred_element_type=jnp.float32)
    gh_z = jnp.dot(h, w_z, preferred_element_type=jnp.float32)
    gh_n = jnp.dot(h, w_n, preferred_element_type=jnp.float32) + bhn
    r = jax.nn.sigmoid(gi_r + gh_r)
    z = jax.nn.sigmoid(gi_z + gh_z)
    n = jnp.tanh(gi_n + r * gh_n)
    return (1.0 - z) * n + z * h


# ---------------- Kernel 1: fused generators ---------------------------------
def _gen_kernel(xf_ref, xb_ref, wih_f_ref, wih_b_ref, bi_f_ref, bi_b_ref,
                wfr_ref, wfz_ref, wfn_ref, wbr_ref, wbz_ref, wbn_ref,
                bhnf_ref, bhnb_ref, ln_g_ref, ln_b_ref, fcw_ref, fcb_ref,
                o_ref,
                gif_r, gif_z, gif_n, gib_r, gib_z, gib_n, outf, outb):
    # Preamble: one lane-dense input projection per direction covering both
    # generators and all three gates: (S*B, EMB) @ (EMB, 3*GH).
    gi_f = jnp.dot(xf_ref[...], wih_f_ref[...],
                   preferred_element_type=jnp.float32) + bi_f_ref[...]
    gi_b = jnp.dot(xb_ref[...], wih_b_ref[...],
                   preferred_element_type=jnp.float32) + bi_b_ref[...]
    # Split per gate once (off the serial path) so the loop does no intra-vreg
    # gate extracts.
    gif_r[...] = gi_f[:, 0:GH]
    gif_z[...] = gi_f[:, GH:2 * GH]
    gif_n[...] = gi_f[:, 2 * GH:3 * GH]
    gib_r[...] = gi_b[:, 0:GH]
    gib_z[...] = gi_b[:, GH:2 * GH]
    gib_n[...] = gi_b[:, 2 * GH:3 * GH]

    wfr = wfr_ref[...]; wfz = wfz_ref[...]; wfn = wfn_ref[...]
    wbr = wbr_ref[...]; wbz = wbz_ref[...]; wbn = wbn_ref[...]
    bhnf = bhnf_ref[...]; bhnb = bhnb_ref[...]

    # Fully-unrolled serial scan; the forward and backward chains (each
    # carrying both generators via block-diagonal W_hh) interleave and hide
    # each other's MXU/EUP latency.
    h_f = jnp.zeros((B, GH), jnp.float32)
    h_b = jnp.zeros((B, GH), jnp.float32)
    for t in range(S):
        r0, r1 = t * B, (t + 1) * B
        h_f = _gru_cell(h_f, gif_r[r0:r1, :], gif_z[r0:r1, :], gif_n[r0:r1, :],
                        wfr, wfz, wfn, bhnf)
        outf[r0:r1, :] = h_f                       # original time t
        h_b = _gru_cell(h_b, gib_r[r0:r1, :], gib_z[r0:r1, :], gib_n[r0:r1, :],
                        wbr, wbz, wbn, bhnb)
        b0 = (S - 1 - t) * B
        outb[b0:b0 + B, :] = h_b                   # original time S-1-t

    # LayerNorm (over the concat [fwd|bwd] = HID features) + Linear per gen,
    # written without an explicit lane concat (split-matmul form).
    for g in range(NUM_GEN):
        c0, c1 = g * HALF, (g + 1) * HALF
        hf = outf[:, c0:c1]                        # (S*B, HALF)
        hb = outb[:, c0:c1]
        mu = (jnp.sum(hf, axis=-1, keepdims=True) +
              jnp.sum(hb, axis=-1, keepdims=True)) * (1.0 / HID)
        df = hf - mu
        db = hb - mu
        var = (jnp.sum(df * df, axis=-1, keepdims=True) +
               jnp.sum(db * db, axis=-1, keepdims=True)) * (1.0 / HID)
        inv = lax.rsqrt(var + 1e-5)
        gam = ln_g_ref[g]; bet = ln_b_ref[g]; w = fcw_ref[g]
        yf = df * inv * gam[:, 0:HALF] + bet[:, 0:HALF]
        yb = db * inv * gam[:, HALF:HID] + bet[:, HALF:HID]
        o_ref[g] = (jnp.dot(yf, w[0:HALF, :], preferred_element_type=jnp.float32) +
                    jnp.dot(yb, w[HALF:HID, :], preferred_element_type=jnp.float32) +
                    fcb_ref[g])


# ---------------- Kernel 2: fused classifier (both z's stacked on batch) ----
def _cls_kernel(xf_ref, xb_ref, m_ref, wih_f_ref, wih_b_ref, bi_f_ref, bi_b_ref,
                wfr_ref, wfz_ref, wfn_ref, wbr_ref, wbz_ref, wbn_ref,
                bhnf_ref, bhnb_ref, fcw_ref, fcb_ref,
                o_ref,
                gif_r, gif_z, gif_n, gib_r, gib_z, gib_n):
    gi_f = jnp.dot(xf_ref[...], wih_f_ref[...],
                   preferred_element_type=jnp.float32) + bi_f_ref[...]
    gi_b = jnp.dot(xb_ref[...], wih_b_ref[...],
                   preferred_element_type=jnp.float32) + bi_b_ref[...]
    gif_r[...] = gi_f[:, 0:HALF]
    gif_z[...] = gi_f[:, HALF:2 * HALF]
    gif_n[...] = gi_f[:, 2 * HALF:3 * HALF]
    gib_r[...] = gi_b[:, 0:HALF]
    gib_z[...] = gi_b[:, HALF:2 * HALF]
    gib_n[...] = gi_b[:, 2 * HALF:3 * HALF]

    wfr = wfr_ref[...]; wfz = wfz_ref[...]; wfn = wfn_ref[...]
    wbr = wbr_ref[...]; wbz = wbz_ref[...]; wbn = wbn_ref[...]
    bhnf = bhnf_ref[...]; bhnb = bhnb_ref[...]

    # Running masked max-pool over time -> no per-step hidden writeback.
    h_f = jnp.zeros((GB, HALF), jnp.float32)
    h_b = jnp.zeros((GB, HALF), jnp.float32)
    mx_f = jnp.full((GB, HALF), NEG, jnp.float32)
    mx_b = jnp.full((GB, HALF), NEG, jnp.float32)
    for t in range(S):
        r0, r1 = t * GB, (t + 1) * GB
        b0, b1 = (S - 1 - t) * GB, (S - t) * GB
        h_f = _gru_cell(h_f, gif_r[r0:r1, :], gif_z[r0:r1, :], gif_n[r0:r1, :],
                        wfr, wfz, wfn, bhnf)
        m_t = m_ref[r0:r1, :]                       # mask at original time t
        mx_f = jnp.maximum(mx_f, h_f * m_t + (1.0 - m_t) * NEG)
        h_b = _gru_cell(h_b, gib_r[r0:r1, :], gib_z[r0:r1, :], gib_n[r0:r1, :],
                        wbr, wbz, wbn, bhnb)
        m_tb = m_ref[b0:b1, :]                      # mask at original time S-1-t
        mx_b = jnp.maximum(mx_b, h_b * m_tb + (1.0 - m_tb) * NEG)

    o_ref[...] = (jnp.dot(mx_f, fcw_ref[0:HALF, :], preferred_element_type=jnp.float32) +
                  jnp.dot(mx_b, fcw_ref[HALF:HID, :], preferred_element_type=jnp.float32) +
                  fcb_ref[...])


# ---------------- weight repacking (plain JAX, runs once under jit) ----------
def _block_diag(blocks):
    if len(blocks) == 1:
        return blocks[0]
    rows = []
    for i, bi in enumerate(blocks):
        row = [bi if j == i else jnp.zeros((bi.shape[0], blocks[j].shape[1]), bi.dtype)
               for j in range(len(blocks))]
        rows.append(jnp.concatenate(row, axis=1))
    return jnp.concatenate(rows, axis=0)


def _pack_dir(gru_list, d):
    """Stack one GRU direction over a list of (independent) GRU param sets.

    Returns (wih, bi, whh_r, whh_z, whh_n, bhn):
      wih (EMB, 3*n*HALF) columns ordered [r | z | n], each gate stacked,
      bi  (1, 3*n*HALF)   b_ih + b_hh pre-added for r/z, b_ih only for n,
      whh_* (n*HALF, n*HALF) block-diagonal recurrent weights per gate,
      bhn (1, n*HALF)     b_hh of the n gate (applied inside the r product).
    """
    wih_g, bi_g = [], []
    for gate in range(3):
        cols = [p['w_ih_' + d][gate * HALF:(gate + 1) * HALF, :].T for p in gru_list]
        wih_g.append(jnp.concatenate(cols, axis=1))
        if gate < 2:
            bs = [p['b_ih_' + d][gate * HALF:(gate + 1) * HALF] +
                  p['b_hh_' + d][gate * HALF:(gate + 1) * HALF] for p in gru_list]
        else:
            bs = [p['b_ih_' + d][gate * HALF:(gate + 1) * HALF] for p in gru_list]
        bi_g.append(jnp.concatenate(bs))
    wih = jnp.concatenate(wih_g, axis=1)
    bi = jnp.concatenate(bi_g)[None, :]
    whh = [_block_diag([p['w_hh_' + d][gate * HALF:(gate + 1) * HALF, :].T
                        for p in gru_list]) for gate in range(3)]
    bhn = jnp.concatenate([p['b_hh_' + d][2 * HALF:3 * HALF] for p in gru_list])[None, :]
    return wih, bi, whh[0], whh[1], whh[2], bhn


# ---------------- kernel wrappers ---------------------------------------------
def gen_forward(emb, gens):
    """emb: (B,S,EMB) masked embedding -> list of NUM_GEN (B,S,Z_DIM) logits."""
    emb_tm = jnp.transpose(emb, (1, 0, 2))            # time-major (S,B,EMB)
    x_f = emb_tm.reshape(S * B, EMB)
    x_b = emb_tm[::-1].reshape(S * B, EMB)            # time-reversed rows
    gru_list = [g['gru'] for g in gens]
    wih_f, bi_f, wfr, wfz, wfn, bhnf = _pack_dir(gru_list, 'f')
    wih_b, bi_b, wbr, wbz, wbn, bhnb = _pack_dir(gru_list, 'b')
    ln_g = jnp.stack([g['ln_g'] for g in gens])       # (G,1,HID)
    ln_b = jnp.stack([g['ln_b'] for g in gens])
    fcw = jnp.stack([g['fc_w'] for g in gens])        # (G,HID,Z_DIM)
    fcb = jnp.stack([g['fc_b'] for g in gens])        # (G,1,Z_DIM)
    out = pl.pallas_call(
        _gen_kernel,
        out_shape=jax.ShapeDtypeStruct((NUM_GEN, S * B, Z_DIM), jnp.float32),
        in_specs=[_VMEM] * 18,
        out_specs=_VMEM,
        scratch_shapes=[pltpu.VMEM((S * B, GH), jnp.float32) for _ in range(8)],
    )(x_f, x_b, wih_f, wih_b, bi_f, bi_b, wfr, wfz, wfn, wbr, wbz, wbn,
      bhnf, bhnb, ln_g, ln_b, fcw, fcb)
    return [jnp.transpose(out[g].reshape(S, B, Z_DIM), (1, 0, 2))
            for g in range(NUM_GEN)]


def cls_forward(emb, z_list, masks_, cls_gru, fc_w, fc_b):
    """Shared classifier over all NUM_GEN rationale-masked embeddings at once."""
    cls_emb = jnp.concatenate([emb * z[:, :, 1:2] for z in z_list], axis=0)  # (GB,S,EMB)
    emb_tm = jnp.transpose(cls_emb, (1, 0, 2))        # (S,GB,EMB)
    x_f = emb_tm.reshape(S * GB, EMB)
    x_b = emb_tm[::-1].reshape(S * GB, EMB)
    m_tm = jnp.transpose(jnp.concatenate([masks_] * NUM_GEN, axis=0),
                         (1, 0, 2)).reshape(S * GB, 1)
    wih_f, bi_f, wfr, wfz, wfn, bhnf = _pack_dir([cls_gru], 'f')
    wih_b, bi_b, wbr, wbz, wbn, bhnb = _pack_dir([cls_gru], 'b')
    out = pl.pallas_call(
        _cls_kernel,
        out_shape=jax.ShapeDtypeStruct((GB, NUM_CLASS), jnp.float32),
        in_specs=[_VMEM] * 17,
        out_specs=_VMEM,
        scratch_shapes=[pltpu.VMEM((S * GB, HALF), jnp.float32) for _ in range(6)],
    )(x_f, x_b, m_tm, wih_f, wih_b, bi_f, bi_b, wfr, wfz, wfn, wbr, wbz, wbn,
      bhnf, bhnb, fc_w, fc_b)
    return [out[g * B:(g + 1) * B] for g in range(NUM_GEN)]


# ---------------- parameter init (deterministic, synthetic) ------------------
def init_gru(key):
    ks = jax.random.split(key, 8)
    s = 0.1
    return dict(
        w_ih_f=s * jax.random.normal(ks[0], (3 * HALF, EMB), jnp.float32),
        w_hh_f=s * jax.random.normal(ks[1], (3 * HALF, HALF), jnp.float32),
        b_ih_f=s * jax.random.normal(ks[2], (3 * HALF,), jnp.float32),
        b_hh_f=s * jax.random.normal(ks[3], (3 * HALF,), jnp.float32),
        w_ih_b=s * jax.random.normal(ks[4], (3 * HALF, EMB), jnp.float32),
        w_hh_b=s * jax.random.normal(ks[5], (3 * HALF, HALF), jnp.float32),
        b_ih_b=s * jax.random.normal(ks[6], (3 * HALF,), jnp.float32),
        b_hh_b=s * jax.random.normal(ks[7], (3 * HALF,), jnp.float32),
    )


def init_params(key):
    keys = jax.random.split(key, 4 + NUM_GEN)
    s = 0.1
    gens = []
    for i in range(NUM_GEN):
        gk = jax.random.split(keys[4 + i], 3)
        gens.append(dict(
            gru=init_gru(gk[0]),
            ln_g=jnp.ones((1, HID), jnp.float32),
            ln_b=jnp.zeros((1, HID), jnp.float32),
            fc_w=s * jax.random.normal(gk[1], (HID, Z_DIM), jnp.float32),
            fc_b=s * jax.random.normal(gk[2], (1, Z_DIM), jnp.float32),
        ))
    return dict(
        embedding=s * jax.random.normal(keys[0], (VOCAB, EMB), jnp.float32),
        cls_gru=init_gru(keys[1]),
        cls_fc_w=s * jax.random.normal(keys[2], (HID, NUM_CLASS), jnp.float32),
        cls_fc_b=s * jax.random.normal(keys[3], (1, NUM_CLASS), jnp.float32),
        gens=gens,
    )


# ---------------- Multi_gen.forward ------------------------------------------
@jax.jit
def multi_gen_forward(params, inputs, masks, key):
    masks_ = masks[..., None].astype(jnp.float32)                  # (B,S,1)
    # embedding gather + mask in plain JAX (XLA fuses it; no kernel launch)
    emb = jnp.take(params['embedding'], inputs, axis=0) * masks_   # (B,S,EMB)

    # fused generator kernel -> per-generator z logits
    gen_logits = gen_forward(emb, params['gens'])                  # NUM_GEN x (B,S,Z)

    # straight-through Gumbel-softmax sampling (stochastic -> plain JAX)
    z_list = []
    for g in range(NUM_GEN):
        key, sub = jax.random.split(key)
        gum = jax.random.gumbel(sub, gen_logits[g].shape, jnp.float32)
        y_soft = jax.nn.softmax(gen_logits[g] + gum, axis=-1)      # tau = 1
        y_hard = jax.nn.one_hot(jnp.argmax(y_soft, axis=-1), Z_DIM,
                                dtype=jnp.float32)
        z_list.append(y_hard + y_soft - lax.stop_gradient(y_soft))

    # fused classifier kernel on both rationale-masked embeddings at once
    cls_logits_list = cls_forward(emb, z_list, masks_, params['cls_gru'],
                                  params['cls_fc_w'], params['cls_fc_b'])
    return z_list, cls_logits_list


# ---------------- main --------------------------------------------------------
if __name__ == "__main__":
    root = jax.random.PRNGKey(0)
    pkey, ikey, mkey, skey = jax.random.split(root, 4)
    params = init_params(pkey)

    inputs = jax.random.randint(ikey, (B, S), 0, VOCAB, dtype=jnp.int32)
    masks = (jax.random.uniform(mkey, (B, S)) > 0.2).astype(jnp.float32)

    z_list, cls_logits_list = multi_gen_forward(params, inputs, masks, skey)
    jax.block_until_ready((z_list, cls_logits_list))

    assert len(z_list) == NUM_GEN and len(cls_logits_list) == NUM_GEN
    assert z_list[0].shape == (B, S, Z_DIM)
    assert cls_logits_list[0].shape == (B, NUM_CLASS)
    assert bool(jnp.all(jnp.isfinite(cls_logits_list[0])))
    assert bool(jnp.all(jnp.isfinite(z_list[0])))
    print("KERNEL_OK")
</pallas_src>

<mosaic_0001>
module attributes {stable_mosaic.version = 11 : i64} {
  func.func @_gen_kernel(%arg0: memref<16x32xf32, #tpu.memory_space<vmem>>, %arg1: memref<16x32xf32, #tpu.memory_space<vmem>>, %arg2: memref<32x96xf32, #tpu.memory_space<vmem>>, %arg3: memref<32x96xf32, #tpu.memory_space<vmem>>, %arg4: memref<1x96xf32, #tpu.memory_space<vmem>>, %arg5: memref<1x96xf32, #tpu.memory_space<vmem>>, %arg6: memref<32x32xf32, #tpu.memory_space<vmem>>, %arg7: memref<32x32xf32, #tpu.memory_space<vmem>>, %arg8: memref<32x32xf32, #tpu.memory_space<vmem>>, %arg9: memref<32x32xf32, #tpu.memory_space<vmem>>, %arg10: memref<32x32xf32, #tpu.memory_space<vmem>>, %arg11: memref<32x32xf32, #tpu.memory_space<vmem>>, %arg12: memref<1x32xf32, #tpu.memory_space<vmem>>, %arg13: memref<1x32xf32, #tpu.memory_space<vmem>>, %arg14: memref<2x1x32xf32, #tpu.memory_space<vmem>>, %arg15: memref<2x1x32xf32, #tpu.memory_space<vmem>>, %arg16: memref<2x32x2xf32, #tpu.memory_space<vmem>>, %arg17: memref<2x1x2xf32, #tpu.memory_space<vmem>>, %arg18: memref<2x16x2xf32, #tpu.memory_space<vmem>>, %arg19: memref<16x32xf32, #tpu.memory_space<vmem>>, %arg20: memref<16x32xf32, #tpu.memory_space<vmem>>, %arg21: memref<16x32xf32, #tpu.memory_space<vmem>>, %arg22: memref<16x32xf32, #tpu.memory_space<vmem>>, %arg23: memref<16x32xf32, #tpu.memory_space<vmem>>, %arg24: memref<16x32xf32, #tpu.memory_space<vmem>>, %arg25: memref<16x32xf32, #tpu.memory_space<vmem>>, %arg26: memref<16x32xf32, #tpu.memory_space<vmem>>) attributes {dimension_semantics = [], scalar_prefetch = 0 : i64, scratch_operands = 8 : i64, tpu.core_type = #tpu.core_type<tc>} {
    %c0 = arith.constant 0 : index
    %c0_0 = arith.constant 0 : index
    %0 = vector.load %arg0[%c0, %c0_0] : memref<16x32xf32, #tpu.memory_space<vmem>>, vector<16x32xf32>
    %c0_1 = arith.constant 0 : index
    %c0_2 = arith.constant 0 : index
    %1 = vector.load %arg2[%c0_1, %c0_2] : memref<32x96xf32, #tpu.memory_space<vmem>>, vector<32x96xf32>
    %cst = arith.constant dense<0.000000e+00> : vector<16x96xf32>
    %2 = tpu.matmul %0, %1, %cst {dimension_numbers = #tpu.dot_dimension_numbers<[1], [0], [0], [1], [0, 0, 1, 1], [], []>} : vector<16x32xf32>, vector<32x96xf32>, vector<16x96xf32> -> vector<16x96xf32>
    %c0_3 = arith.constant 0 : index
    %c0_4 = arith.constant 0 : index
    %3 = vector.load %arg4[%c0_3, %c0_4] : memref<1x96xf32, #tpu.memory_space<vmem>>, vector<1x96xf32>
    %4 = vector.broadcast %3 : vector<1x96xf32> to vector<16x96xf32>
    %5 = arith.addf %2, %4 : vector<16x96xf32>
    %c0_5 = arith.constant 0 : index
    %c0_6 = arith.constant 0 : index
    %6 = vector.load %arg1[%c0_5, %c0_6] : memref<16x32xf32, #tpu.memory_space<vmem>>, vector<16x32xf32>
    %c0_7 = arith.constant 0 : index
    %c0_8 = arith.constant 0 : index
    %7 = vector.load %arg3[%c0_7, %c0_8] : memref<32x96xf32, #tpu.memory_space<vmem>>, vector<32x96xf32>
    %cst_9 = arith.constant dense<0.000000e+00> : vector<16x96xf32>
    %8 = tpu.matmul %6, %7, %cst_9 {dimension_numbers = #tpu.dot_dimension_numbers<[1], [0], [0], [1], [0, 0, 1, 1], [], []>} : vector<16x32xf32>, vector<32x96xf32>, vector<16x96xf32> -> vector<16x96xf32>
    %c0_10 = arith.constant 0 : index
    %c0_11 = arith.constant 0 : index
    %9 = vector.load %arg5[%c0_10, %c0_11] : memref<1x96xf32, #tpu.memory_space<vmem>>, vector<1x96xf32>
    %10 = vector.broadcast %9 : vector<1x96xf32> to vector<16x96xf32>
    %11 = arith.addf %8, %10 : vector<16x96xf32>
    %12 = vector.extract_strided_slice %5 {offsets = [0, 0], sizes = [16, 32], strides = [1, 1]} : vector<16x96xf32> to vector<16x32xf32>
    %c0_12 = arith.constant 0 : index
    %c0_13 = arith.constant 0 : index
    %13 = vector.load %arg19[%c0_12, %c0_13] : memref<16x32xf32, #tpu.memory_space<vmem>>, vector<16x32xf32>
    tpu.vector_store %arg19[%c0_12, %c0_13], %12 {strides = array<i32>} : memref<16x32xf32, #tpu.memory_space<vmem>>, vector<16x32xf32>,
    %14 = vector.extract_strided_slice %5 {offsets = [0, 32], sizes = [16, 32], strides = [1, 1]} : vector<16x96xf32> to vector<16x32xf32>
    %c0_14 = arith.constant 0 : index
    %c0_15 = arith.constant 0 : index
    %15 = vector.load %arg20[%c0_14, %c0_15] : memref<16x32xf32, #tpu.memory_space<vmem>>, vector<16x32xf32>
    tpu.vector_store %arg20[%c0_14, %c0_15], %14 {strides = array<i32>} : memref<16x32xf32, #tpu.memory_space<vmem>>, vector<16x32xf32>,
    %16 = vector.extract_strided_slice %5 {offsets = [0, 64], sizes = [16, 32], strides = [1, 1]} : vector<16x96xf32> to vector<16x32xf32>
    %c0_16 = arith.constant 0 : index
    %c0_17 = arith.constant 0 : index
    %17 = vector.load %arg21[%c0_16, %c0_17] : memref<16x32xf32, #tpu.memory_space<vmem>>, vector<16x32xf32>
    tpu.vector_store %arg21[%c0_16, %c0_17], %16 {strides = array<i32>} : memref<16x32xf32, #tpu.memory_space<vmem>>, vector<16x32xf32>,
    %18 = vector.extract_strided_slice %11 {offsets = [0, 0], sizes = [16, 32], strides = [1, 1]} : vector<16x96xf32> to vector<16x32xf32>
    %c0_18 = arith.constant 0 : index
    %c0_19 = arith.constant 0 : index
    %19 = vector.load %arg22[%c0_18, %c0_19] : memref<16x32xf32, #tpu.memory_space<vmem>>, vector<16x32xf32>
    tpu.vector_store %arg22[%c0_18, %c0_19], %18 {strides = array<i32>} : memref<16x32xf32, #tpu.memory_space<vmem>>, vector<16x32xf32>,
    %20 = vector.extract_strided_slice %11 {offsets = [0, 32], sizes = [16, 32], strides = [1, 1]} : vector<16x96xf32> to vector<16x32xf32>
    %c0_20 = arith.constant 0 : index
    %c0_21 = arith.constant 0 : index
    %21 = vector.load %arg23[%c0_20, %c0_21] : memref<16x32xf32, #tpu.memory_space<vmem>>, vector<16x32xf32>
    tpu.vector_store %arg23[%c0_20, %c0_21], %20 {strides = array<i32>} : memref<16x32xf32, #tpu.memory_space<vmem>>, vector<16x32xf32>,
    %22 = vector.extract_strided_slice %11 {offsets = [0, 64], sizes = [16, 32], strides = [1, 1]} : vector<16x96xf32> to vector<16x32xf32>
    %c0_22 = arith.constant 0 : index
    %c0_23 = arith.constant 0 : index
    %23 = vector.load %arg24[%c0_22, %c0_23] : memref<16x32xf32, #tpu.memory_space<vmem>>, vector<16x32xf32>
    tpu.vector_store %arg24[%c0_22, %c0_23], %22 {strides = array<i32>} : memref<16x32xf32, #tpu.memory_space<vmem>>, vector<16x32xf32>,
    %c0_24 = arith.constant 0 : index
    %c0_25 = arith.constant 0 : index
    %24 = vector.load %arg6[%c0_24, %c0_25] : memref<32x32xf32, #tpu.memory_space<vmem>>, vector<32x32xf32>
    %c0_26 = arith.constant 0 : index
    %c0_27 = arith.constant 0 : index
    %25 = vector.load %arg7[%c0_26, %c0_27] : memref<32x32xf32, #tpu.memory_space<vmem>>, vector<32x32xf32>
    %c0_28 = arith.constant 0 : index
    %c0_29 = arith.constant 0 : index
    %26 = vector.load %arg8[%c0_28, %c0_29] : memref<32x32xf32, #tpu.memory_space<vmem>>, vector<32x32xf32>
    %c0_30 = arith.constant 0 : index
    %c0_31 = arith.constant 0 : index
    %27 = vector.load %arg9[%c0_30, %c0_31] : memref<32x32xf32, #tpu.memory_space<vmem>>, vector<32x32xf32>
    %c0_32 = arith.constant 0 : index
    %c0_33 = arith.constant 0 : index
    %28 = vector.load %arg10[%c0_32, %c0_33] : memref<32x32xf32, #tpu.memory_space<vmem>>, vector<32x32xf32>
    %c0_34 = arith.constant 0 : index
    %c0_35 = arith.constant 0 : index
    %29 = vector.load %arg11[%c0_34, %c0_35] : memref<32x32xf32, #tpu.memory_space<vmem>>, vector<32x32xf32>
    %c0_36 = arith.constant 0 : index
    %c0_37 = arith.constant 0 : index
    %30 = vector.load %arg12[%c0_36, %c0_37] : memref<1x32xf32, #tpu.memory_space<vmem>>, vector<1x32xf32>
    %c0_38 = arith.constant 0 : index
    %c0_39 = arith.constant 0 : index
    %31 = vector.load %arg13[%c0_38, %c0_39] : memref<1x32xf32, #tpu.memory_space<vmem>>, vector<1x32xf32>
    %cst_40 = arith.constant 0.000000e+00 : f32
    %32 = vector.broadcast %cst_40 : f32 to vector<2x32xf32>
    %cst_41 = arith.constant 0.000000e+00 : f32
    %33 = vector.broadcast %cst_41 : f32 to vector<2x32xf32>
    %c0_42 = arith.constant 0 : index
    %c0_43 = arith.constant 0 : index
    %34 = vector.load %arg19[%c0_42, %c0_43] : memref<16x32xf32, #tpu.memory_space<vmem>>, vector<2x32xf32>
    %c0_44 = arith.constant 0 : index
    %c0_45 = arith.constant 0 : index
    %35 = vector.load %arg20[%c0_44, %c0_45] : memref<16x32xf32, #tpu.memory_space<vmem>>, vector<2x32xf32>
    %c0_46 = arith.constant 0 : index
    %c0_47 = arith.constant 0 : index
    %36 = vector.load %arg21[%c0_46, %c0_47] : memref<16x32xf32, #tpu.memory_space<vmem>>, vector<2x32xf32>
    %cst_48 = arith.constant dense<0.000000e+00> : vector<2x32xf32>
    %37 = tpu.matmul %32, %24, %cst_48 {dimension_numbers = #tpu.dot_dimension_numbers<[1], [0], [0], [1], [0, 0, 1, 1], [], []>} : vector<2x32xf32>, vector<32x32xf32>, vector<2x32xf32> -> vector<2x32xf32>
    %cst_49 = arith.constant dense<0.000000e+00> : vector<2x32xf32>
    %38 = tpu.matmul %32, %25, %cst_49 {dimension_numbers = #tpu.dot_dimension_numbers<[1], [0], [0], [1], [0, 0, 1, 1], [], []>} : vector<2x32xf32>, vector<32x32xf32>, vector<2x32xf32> -> vector<2x32xf32>
    %cst_50 = arith.constant dense<0.000000e+00> : vector<2x32xf32>
    %39 = tpu.matmul %32, %26, %cst_50 {dimension_numbers = #tpu.dot_dimension_numbers<[1], [0], [0], [1], [0, 0, 1, 1], [], []>} : vector<2x32xf32>, vector<32x32xf32>, vector<2x32xf32> -> vector<2x32xf32>
    %40 = vector.broadcast %30 : vector<1x32xf32> to vector<2x32xf32>
    %41 = arith.addf %39, %40 : vector<2x32xf32>
    %42 = arith.addf %34, %37 : vector<2x32xf32>
    %43 = arith.negf %42 : vector<2x32xf32>
    %44 = math.exp %43 : vector<2x32xf32>
    %cst_51 = arith.constant 1.000000e+00 : f32
    %45 = vector.broadcast %cst_51 : f32 to vector<2x32xf32>
    %46 = arith.addf %45, %44 : vector<2x32xf32>
    %47 = arith.divf %45, %46 : vector<2x32xf32>
    %48 = arith.addf %35, %38 : vector<2x32xf32>
    %49 = arith.negf %48 : vector<2x32xf32>
    %50 = math.exp %49 : vector<2x32xf32>
    %cst_52 = arith.constant 1.000000e+00 : f32
    %51 = vector.broadcast %cst_52 : f32 to vector<2x32xf32>
    %52 = arith.addf %51, %50 : vector<2x32xf32>
    %53 = arith.divf %51, %52 : vector<2x32xf32>
    %54 = arith.mulf %47, %41 : vector<2x32xf32>
    %55 = arith.addf %36, %54 : vector<2x32xf32>
    %56 = math.tanh %55 : vector<2x32xf32>
    %cst_53 = arith.constant 1.000000e+00 : f32
    %57 = vector.broadcast %cst_53 : f32 to vector<2x32xf32>
    %58 = arith.subf %57, %53 : vector<2x32xf32>
    %59 = arith.mulf %58, %56 : vector<2x32xf32>
    %60 = arith.mulf %53, %32 : vector<2x32xf32>
    %61 = arith.addf %59, %60 : vector<2x32xf32>
    %c0_54 = arith.constant 0 : index
    %c0_55 = arith.constant 0 : index
    %62 = vector.load %arg25[%c0_54, %c0_55] : memref<16x32xf32, #tpu.memory_space<vmem>>, vector<2x32xf32>
    tpu.vector_store %arg25[%c0_54, %c0_55], %61 {strides = array<i32>} : memref<16x32xf32, #tpu.memory_space<vmem>>, vector<2x32xf32>,
    %c0_56 = arith.constant 0 : index
    %c0_57 = arith.constant 0 : index
    %63 = vector.load %arg22[%c0_56, %c0_57] : memref<16x32xf32, #tpu.memory_space<vmem>>, vector<2x32xf32>
    %c0_58 = arith.constant 0 : index
    %c0_59 = arith.constant 0 : index
    %64 = vector.load %arg23[%c0_58, %c0_59] : memref<16x32xf32, #tpu.memory_space<vmem>>, vector<2x32xf32>
    %c0_60 = arith.constant 0 : index
    %c0_61 = arith.constant 0 : index
    %65 = vector.load %arg24[%c0_60, %c0_61] : memref<16x32xf32, #tpu.memory_space<vmem>>, vector<2x32xf32>
    %cst_62 = arith.constant dense<0.000000e+00> : vector<2x32xf32>
    %66 = tpu.matmul %33, %27, %cst_62 {dimension_numbers = #tpu.dot_dimension_numbers<[1], [0], [0], [1], [0, 0, 1, 1], [], []>} : vector<2x32xf32>, vector<32x32xf32>, vector<2x32xf32> -> vector<2x32xf32>
    %cst_63 = arith.constant dense<0.000000e+00> : vector<2x32xf32>
    %67 = tpu.matmul %33, %28, %cst_63 {dimension_numbers = #tpu.dot_dimension_numbers<[1], [0], [0], [1], [0, 0, 1, 1], [], []>} : vector<2x32xf32>, vector<32x32xf32>, vector<2x32xf32> -> vector<2x32xf32>
    %cst_64 = arith.constant dense<0.000000e+00> : vector<2x32xf32>
    %68 = tpu.matmul %33, %29, %cst_64 {dimension_numbers = #tpu.dot_dimension_numbers<[1], [0], [0], [1], [0, 0, 1, 1], [], []>} : vector<2x32xf32>, vector<32x32xf32>, vector<2x32xf32> -> vector<2x32xf32>
    %69 = vector.broadcast %31 : vector<1x32xf32> to vector<2x32xf32>
    %70 = arith.addf %68, %69 : vector<2x32xf32>
    %71 = arith.addf %63, %66 : vector<2x32xf32>
    %72 = arith.negf %71 : vector<2x32xf32>
    %73 = math.exp %72 : vector<2x32xf32>
    %cst_65 = arith.constant 1.000000e+00 : f32
    %74 = vector.broadcast %cst_65 : f32 to vector<2x32xf32>
    %75 = arith.addf %74, %73 : vector<2x32xf32>
    %76 = arith.divf %74, %75 : vector<2x32xf32>
    %77 = arith.addf %64, %67 : vector<2x32xf32>
    %78 = arith.negf %77 : vector<2x32xf32>
    %79 = math.exp %78 : vector<2x32xf32>
    %cst_66 = arith.constant 1.000000e+00 : f32
    %80 = vector.broadcast %cst_66 : f32 to vector<2x32xf32>
    %81 = arith.addf %80, %79 : vector<2x32xf32>
    %82 = arith.divf %80, %81 : vector<2x32xf32>
    %83 = arith.mulf %76, %70 : vector<2x32xf32>
    %84 = arith.addf %65, %83 : vector<2x32xf32>
    %85 = math.tanh %84 : vector<2x32xf32>
    %cst_67 = arith.constant 1.000000e+00 : f32
    %86 = vector.broadcast %cst_67 : f32 to vector<2x32xf32>
    %87 = arith.subf %86, %82 : vector<2x32xf32>
    %88 = arith.mulf %87, %85 : vector<2x32xf32>
    %89 = arith.mulf %82, %33 : vector<2x32xf32>
    %90 = arith.addf %88, %89 : vector<2x32xf32>
    %c14 = arith.constant 14 : index
    %c0_68 = arith.constant 0 : index
    %91 = vector.load %arg26[%c14, %c0_68] : memref<16x32xf32, #tpu.memory_space<vmem>>, vector<2x32xf32>
    tpu.vector_store %arg26[%c14, %c0_68], %90 {strides = array<i32>} : memref<16x32xf32, #tpu.memory_space<vmem>>, vector<2x32xf32>,
    %c2 = arith.constant 2 : index
    %c0_69 = arith.constant 0 : index
    %92 = vector.load %arg19[%c2, %c0_69] : memref<16x32xf32, #tpu.memory_space<vmem>>, vector<2x32xf32>
    %c2_70 = arith.constant 2 : index
    %c0_71 = arith.constant 0 : index
    %93 = vector.load %arg20[%c2_70, %c0_71] : memref<16x32xf32, #tpu.memory_space<vmem>>, vector<2x32xf32>
    %c2_72 = arith.constant 2 : index
    %c0_73 = arith.constant 0 : index
    %94 = vector.load %arg21[%c2_72, %c0_73] : memref<16x32xf32, #tpu.memory_space<vmem>>, vector<2x32xf32>
    %cst_74 = arith.constant dense<0.000000e+00> : vector<2x32xf32>
    %95 = tpu.matmul %61, %24, %cst_74 {dimension_numbers = #tpu.dot_dimension_numbers<[1], [0], [0], [1], [0, 0, 1, 1], [], []>} : vector<2x32xf32>, vector<32x32xf32>, vector<2x32xf32> -> vector<2x32xf32>
    %cst_75 = arith.constant dense<0.000000e+00> : vector<2x32xf32>
    %96 = tpu.matmul %61, %25, %cst_75 {dimension_numbers = #tpu.dot_dimension_numbers<[1], [0], [0], [1], [0, 0, 1, 1], [], []>} : vector<2x32xf32>, vector<32x32xf32>, vector<2x32xf32> -> vector<2x32xf32>
    %cst_76 = arith.constant dense<0.000000e+00> : vector<2x32xf32>
    %97 = tpu.matmul %61, %26, %cst_76 {dimension_numbers = #tpu.dot_dimension_numbers<[1], [0], [0], [1], [0, 0, 1, 1], [], []>} : vector<2x32xf32>, vector<32x32xf32>, vector<2x32xf32> -> vector<2x32xf32>
    %98 = vector.broadcast %30 : vector<1x32xf32> to vector<2x32xf32>
    %99 = arith.addf %97, %98 : vector<2x32xf32>
    %100 = arith.addf %92, %95 : vector<2x32xf32>
    %101 = arith.negf %100 : vector<2x32xf32>
    %102 = math.exp %101 : vector<2x32xf32>
    %cst_77 = arith.constant 1.000000e+00 : f32
    %103 = vector.broadcast %cst_77 : f32 to vector<2x32xf32>
    %104 = arith.addf %103, %102 : vector<2x32xf32>
    %105 = arith.divf %103, %104 : vector<2x32xf32>
    %106 = arith.addf %93, %96 : vector<2x32xf32>
    %107 = arith.negf %106 : vector<2x32xf32>
    %108 = math.exp %107 : vector<2x32xf32>
    %cst_78 = arith.constant 1.000000e+00 : f32
    %109 = vector.broadcast %cst_78 : f32 to vector<2x32xf32>
    %110 = arith.addf %109, %108 : vector<2x32xf32>
    %111 = arith.divf %109, %110 : vector<2x32xf32>
    %112 = arith.mulf %105, %99 : vector<2x32xf32>
    %113 = arith.addf %94, %112 : vector<2x32xf32>
    %114 = math.tanh %113 : vector<2x32xf32>
    %cst_79 = arith.constant 1.000000e+00 : f32
    %115 = vector.broadcast %cst_79 : f32 to vector<2x32xf32>
    %116 = arith.subf %115, %111 : vector<2x32xf32>
    %117 = arith.mulf %116, %114 : vector<2x32xf32>
    %118 = arith.mulf %111, %61 : vector<2x32xf32>
    %119 = arith.addf %117, %118 : vector<2x32xf32>
    %c2_80 = arith.constant 2 : index
    %c0_81 = arith.constant 0 : index
    %120 = vector.load %arg25[%c2_80, %c0_81] : memref<16x32xf32, #tpu.memory_space<vmem>>, vector<2x32xf32>
    tpu.vector_store %arg25[%c2_80, %c0_81], %119 {strides = array<i32>} : memref<16x32xf32, #tpu.memory_space<vmem>>, vector<2x32xf32>,
    %c2_82 = arith.constant 2 : index
    %c0_83 = arith.constant 0 : index
    %121 = vector.load %arg22[%c2_82, %c0_83] : memref<16x32xf32, #tpu.memory_space<vmem>>, vector<2x32xf32>
    %c2_84 = arith.constant 2 : index
    %c0_85 = arith.constant 0 : index
    %122 = vector.load %arg23[%c2_84, %c0_85] : memref<16x32xf32, #tpu.memory_space<vmem>>, vector<2x32xf32>
    %c2_86 = arith.constant 2 : index
    %c0_87 = arith.constant 0 : index
    %123 = vector.load %arg24[%c2_86, %c0_87] : memref<16x32xf32, #tpu.memory_space<vmem>>, vector<2x32xf32>
    %cst_88 = arith.constant dense<0.000000e+00> : vector<2x32xf32>
    %124 = tpu.matmul %90, %27, %cst_88 {dimension_numbers = #tpu.dot_dimension_numbers<[1], [0], [0], [1], [0, 0, 1, 1], [], []>} : vector<2x32xf32>, vector<32x32xf32>, vector<2x32xf32> -> vector<2x32xf32>
    %cst_89 = arith.constant dense<0.000000e+00> : vector<2x32xf32>
    %125 = tpu.matmul %90, %28, %cst_89 {dimension_numbers = #tpu.dot_dimension_numbers<[1], [0], [0], [1], [0, 0, 1, 1], [], []>} : vector<2x32xf32>, vector<32x32xf32>, vector<2x32xf32> -> vector<2x32xf32>
    %cst_90 = arith.constant dense<0.000000e+00> : vector<2x32xf32>
    %126 = tpu.matmul %90, %29, %cst_90 {dimension_numbers = #tpu.dot_dimension_numbers<[1], [0], [0], [1], [0, 0, 1, 1], [], []>} : vector<2x32xf32>, vector<32x32xf32>, vector<2x32xf32> -> vector<2x32xf32>
    %127 = vector.broadcast %31 : vector<1x32xf32> to vector<2x32xf32>
    %128 = arith.addf %126, %127 : vector<2x32xf32>
    %129 = arith.addf %121, %124 : vector<2x32xf32>
    %130 = arith.negf %129 : vector<2x32xf32>
    %131 = math.exp %130 : vector<2x32xf32>
    %cst_91 = arith.constant 1.000000e+00 : f32
    %132 = vector.broadcast %cst_91 : f32 to vector<2x32xf32>
    %133 = arith.addf %132, %131 : vector<2x32xf32>
    %134 = arith.divf %132, %133 : vector<2x32xf32>
    %135 = arith.addf %122, %125 : vector<2x32xf32>
    %136 = arith.negf %135 : vector<2x32xf32>
    %137 = math.exp %136 : vector<2x32xf32>
    %cst_92 = arith.constant 1.000000e+00 : f32
    %138 = vector.broadcast %cst_92 : f32 to vector<2x32xf32>
    %139 = arith.addf %138, %137 : vector<2x32xf32>
    %140 = arith.divf %138, %139 : vector<2x32xf32>
    %141 = arith.mulf %134, %128 : vector<2x32xf32>
    %142 = arith.addf %123, %141 : vector<2x32xf32>
    %143 = math.tanh %142 : vector<2x32xf32>
    %cst_93 = arith.constant 1.000000e+00 : f32
    %144 = vector.broadcast %cst_93 : f32 to vector<2x32xf32>
    %145 = arith.subf %144, %140 : vector<2x32xf32>
    %146 = arith.mulf %145, %143 : vector<2x32xf32>
    %147 = arith.mulf %140, %90 : vector<2x32xf32>
    %148 = arith.addf %146, %147 : vector<2x32xf32>
    %c12 = arith.constant 12 : index
    %c0_94 = arith.constant 0 : index
    %149 = vector.load %arg26[%c12, %c0_94] : memref<16x32xf32, #tpu.memory_space<vmem>>, vector<2x32xf32>
    tpu.vector_store %arg26[%c12, %c0_94], %148 {strides = array<i32>} : memref<16x32xf32, #tpu.memory_space<vmem>>, vector<2x32xf32>,
    %c4 = arith.constant 4 : index
    %c0_95 = arith.constant 0 : index
    %150 = vector.load %arg19[%c4, %c0_95] : memref<16x32xf32, #tpu.memory_space<vmem>>, vector<2x32xf32>
    %c4_96 = arith.constant 4 : index
    %c0_97 = arith.constant 0 : index
    %151 = vector.load %arg20[%c4_96, %c0_97] : memref<16x32xf32, #tpu.memory_space<vmem>>, vector<2x32xf32>
    %c4_98 = arith.constant 4 : index
    %c0_99 = arith.constant 0 : index
    %152 = vector.load %arg21[%c4_98, %c0_99] : memref<16x32xf32, #tpu.memory_space<vmem>>, vector<2x32xf32>
    %cst_100 = arith.constant dense<0.000000e+00> : vector<2x32xf32>
    %153 = tpu.matmul %119, %24, %cst_100 {dimension_numbers = #tpu.dot_dimension_numbers<[1], [0], [0], [1], [0, 0, 1, 1], [], []>} : vector<2x32xf32>, vector<32x32xf32>, vector<2x32xf32> -> vector<2x32xf32>
    %cst_101 = arith.constant dense<0.000000e+00> : vector<2x32xf32>
    %154 = tpu.matmul %119, %25, %cst_101 {dimension_numbers = #tpu.dot_dimension_numbers<[1], [0], [0], [1], [0, 0, 1, 1], [], []>} : vector<2x32xf32>, vector<32x32xf32>, vector<2x32xf32> -> vector<2x32xf32>
    %cst_102 = arith.constant dense<0.000000e+00> : vector<2x32xf32>
    %155 = tpu.matmul %119, %26, %cst_102 {dimension_numbers = #tpu.dot_dimension_numbers<[1], [0], [0], [1], [0, 0, 1, 1], [], []>} : vector<2x32xf32>, vector<32x32xf32>, vector<2x32xf32> -> vector<2x32xf32>
    %156 = vector.broadcast %30 : vector<1x32xf32> to vector<2x32xf32>
    %157 = arith.addf %155, %156 : vector<2x32xf32>
    %158 = arith.addf %150, %153 : vector<2x32xf32>
    %159 = arith.negf %158 : vector<2x32xf32>
    %160 = math.exp %159 : vector<2x32xf32>
    %cst_103 = arith.constant 1.000000e+00 : f32
    %161 = vector.broadcast %cst_103 : f32 to vector<2x32xf32>
    %162 = arith.addf %161, %160 : vector<2x32xf32>
    %163 = arith.divf %161, %162 : vector<2x32xf32>
    %164 = arith.addf %151, %154 : vector<2x32xf32>
    %165 = arith.negf %164 : vector<2x32xf32>
    %166 = math.exp %165 : vector<2x32xf32>
    %cst_104 = arith.constant 1.000000e+00 : f32
    %167 = vector.broadcast %cst_104 : f32 to vector<2x32xf32>
    %168 = arith.addf %167, %166 : vector<2x32xf32>
    %169 = arith.divf %167, %168 : vector<2x32xf32>
    %170 = arith.mulf %163, %157 : vector<2x32xf32>
    %171 = arith.addf %152, %170 : vector<2x32xf32>
    %172 = math.tanh %171 : vector<2x32xf32>
    %cst_105 = arith.constant 1.000000e+00 : f32
    %173 = vector.broadcast %cst_105 : f32 to vector<2x32xf32>
    %174 = arith.subf %173, %169 : vector<2x32xf32>
    %175 = arith.mulf %174, %172 : vector<2x32xf32>
    %176 = arith.mulf %169, %119 : vector<2x32xf32>
    %177 = arith.addf %175, %176 : vector<2x32xf32>
    %c4_106 = arith.constant 4 : index
    %c0_107 = arith.constant 0 : index
    %178 = vector.load %arg25[%c4_106, %c0_107] : memref<16x32xf32, #tpu.memory_space<vmem>>, vector<2x32xf32>
    tpu.vector_store %arg25[%c4_106, %c0_107], %177 {strides = array<i32>} : memref<16x32xf32, #tpu.memory_space<vmem>>, vector<2x32xf32>,
    %c4_108 = arith.constant 4 : index
    %c0_109 = arith.constant 0 : index
    %179 = vector.load %arg22[%c4_108, %c0_109] : memref<16x32xf32, #tpu.memory_space<vmem>>, vector<2x32xf32>
    %c4_110 = arith.constant 4 : index
    %c0_111 = arith.constant 0 : index
    %180 = vector.load %arg23[%c4_110, %c0_111] : memref<16x32xf32, #tpu.memory_space<vmem>>, vector<2x32xf32>
    %c4_112 = arith.constant 4 : index
    %c0_113 = arith.constant 0 : index
    %181 = vector.load %arg24[%c4_112, %c0_113] : memref<16x32xf32, #tpu.memory_space<vmem>>, vector<2x32xf32>
    %cst_114 = arith.constant dense<0.000000e+00> : vector<2x32xf32>
    %182 = tpu.matmul %148, %27, %cst_114 {dimension_numbers = #tpu.dot_dimension_numbers<[1], [0], [0], [1], [0, 0, 1, 1], [], []>} : vector<2x32xf32>, vector<32x32xf32>, vector<2x32xf32> -> vector<2x32xf32>
    %cst_115 = arith.constant dense<0.000000e+00> : vector<2x32xf32>
    %183 = tpu.matmul %148, %28, %cst_115 {dimension_numbers = #tpu.dot_dimension_numbers<[1], [0], [0], [1], [0, 0, 1, 1], [], []>} : vector<2x32xf32>, vector<32x32xf32>, vector<2x32xf32> -> vector<2x32xf32>
    %cst_116 = arith.constant dense<0.000000e+00> : vector<2x32xf32>
    %184 = tpu.matmul %148, %29, %cst_116 {dimension_numbers = #tpu.dot_dimension_numbers<[1], [0], [0], [1], [0, 0, 1, 1], [], []>} : vector<2x32xf32>, vector<32x32xf32>, vector<2x32xf32> -> vector<2x32xf32>
    %185 = vector.broadcast %31 : vector<1x32xf32> to vector<2x32xf32>
    %186 = arith.addf %184, %185 : vector<2x32xf32>
    %187 = arith.addf %179, %182 : vector<2x32xf32>
    %188 = arith.negf %187 : vector<2x32xf32>
    %189 = math.exp %188 : vector<2x32xf32>
    %cst_117 = arith.constant 1.000000e+00 : f32
    %190 = vector.broadcast %cst_117 : f32 to vector<2x32xf32>
    %191 = arith.addf %190, %189 : vector<2x32xf32>
    %192 = arith.divf %190, %191 : vector<2x32xf32>
    %193 = arith.addf %180, %183 : vector<2x32xf32>
    %194 = arith.negf %193 : vector<2x32xf32>
    %195 = math.exp %194 : vector<2x32xf32>
    %cst_118 = arith.constant 1.000000e+00 : f32
    %196 = vector.broadcast %cst_118 : f32 to vector<2x32xf32>
    %197 = arith.addf %196, %195 : vector<2x32xf32>
    %198 = arith.divf %196, %197 : vector<2x32xf32>
    %199 = arith.mulf %192, %186 : vector<2x32xf32>
    %200 = arith.addf %181, %199 : vector<2x32xf32>
    %201 = math.tanh %200 : vector<2x32xf32>
    %cst_119 = arith.constant 1.000000e+00 : f32
    %202 = vector.broadcast %cst_119 : f32 to vector<2x32xf32>
    %203 = arith.subf %202, %198 : vector<2x32xf32>
    %204 = arith.mulf %203, %201 : vector<2x32xf32>
    %205 = arith.mulf %198, %148 : vector<2x32xf32>
    %206 = arith.addf %204, %205 : vector<2x32xf32>
    %c10 = arith.constant 10 : index
    %c0_120 = arith.constant 0 : index
    %207 = vector.load %arg26[%c10, %c0_120] : memref<16x32xf32, #tpu.memory_space<vmem>>, vector<2x32xf32>
    tpu.vector_store %arg26[%c10, %c0_120], %206 {strides = array<i32>} : memref<16x32xf32, #tpu.memory_space<vmem>>, vector<2x32xf32>,
    %c6 = arith.constant 6 : index
    %c0_121 = arith.constant 0 : index
    %208 = vector.load %arg19[%c6, %c0_121] : memref<16x32xf32, #tpu.memory_space<vmem>>, vector<2x32xf32>
    %c6_122 = arith.constant 6 : index
    %c0_123 = arith.constant 0 : index
    %209 = vector.load %arg20[%c6_122, %c0_123] : memref<16x32xf32, #tpu.memory_space<vmem>>, vector<2x32xf32>
    %c6_124 = arith.constant 6 : index
    %c0_125 = arith.constant 0 : index
    %210 = vector.load %arg21[%c6_124, %c0_125] : memref<16x32xf32, #tpu.memory_space<vmem>>, vector<2x32xf32>
    %cst_126 = arith.constant dense<0.000000e+00> : vector<2x32xf32>
    %211 = tpu.matmul %177, %24, %cst_126 {dimension_numbers = #tpu.dot_dimension_numbers<[1], [0], [0], [1], [0, 0, 1, 1], [], []>} : vector<2x32xf32>, vector<32x32xf32>, vector<2x32xf32> -> vector<2x32xf32>
    %cst_127 = arith.constant dense<0.000000e+00> : vector<2x32xf32>
    %212 = tpu.matmul %177, %25, %cst_127 {dimension_numbers = #tpu.dot_dimension_numbers<[1], [0], [0], [1], [0, 0, 1, 1], [], []>} : vector<2x32xf32>, vector<32x32xf32>, vector<2x32xf32> -> vector<2x32xf32>
    %cst_128 = arith.constant dense<0.000000e+00> : vector<2x32xf32>
    %213 = tpu.matmul %177, %26, %cst_128 {dimension_numbers = #tpu.dot_dimension_numbers<[1], [0], [0], [1], [0, 0, 1, 1], [], []>} : vector<2x32xf32>, vector<32x32xf32>, vector<2x32xf32> -> vector<2x32xf32>
    %214 = vector.broadcast %30 : vector<1x32xf32> to vector<2x32xf32>
    %215 = arith.addf %213, %214 : vector<2x32xf32>
    %216 = arith.addf %208, %211 : vector<2x32xf32>
    %217 = arith.negf %216 : vector<2x32xf32>
    %218 = math.exp %217 : vector<2x32xf32>
    %cst_129 = arith.constant 1.000000e+00 : f32
    %219 = vector.broadcast %cst_129 : f32 to vector<2x32xf32>
    %220 = arith.addf %219, %218 : vector<2x32xf32>
    %221 = arith.divf %219, %220 : vector<2x32xf32>
    %222 = arith.addf %209, %212 : vector<2x32xf32>
    %223 = arith.negf %222 : vector<2x32xf32>
    %224 = math.exp %223 : vector<2x32xf32>
    %cst_130 = arith.constant 1.000000e+00 : f32
    %225 = vector.broadcast %cst_130 : f32 to vector<2x32xf32>
    %226 = arith.addf %225, %224 : vector<2x32xf32>
    %227 = arith.divf %225, %226 : vector<2x32xf32>
    %228 = arith.mulf %221, %215 : vector<2x32xf32>
    %229 = arith.addf %210, %228 : vector<2x32xf32>
    %230 = math.tanh %229 : vector<2x32xf32>
    %cst_131 = arith.constant 1.000000e+00 : f32
    %231 = vector.broadcast %cst_131 : f32 to vector<2x32xf32>
    %232 = arith.subf %231, %227 : vector<2x32xf32>
    %233 = arith.mulf %232, %230 : vector<2x32xf32>
    %234 = arith.mulf %227, %177 : vector<2x32xf32>
    %235 = arith.addf %233, %234 : vector<2x32xf32>
    %c6_132 = arith.constant 6 : index
    %c0_133 = arith.constant 0 : index
    %236 = vector.load %arg25[%c6_132, %c0_133] : memref<16x32xf32, #tpu.memory_space<vmem>>, vector<2x32xf32>
    tpu.vector_store %arg25[%c6_132, %c0_133], %235 {strides = array<i32>} : memref<16x32xf32, #tpu.memory_space<vmem>>, vector<2x32xf32>,
    %c6_134 = arith.constant 6 : index
    %c0_135 = arith.constant 0 : index
    %237 = vector.load %arg22[%c6_134, %c0_135] : memref<16x32xf32, #tpu.memory_space<vmem>>, vector<2x32xf32>
    %c6_136 = arith.constant 6 : index
    %c0_137 = arith.constant 0 : index
    %238 = vector.load %arg23[%c6_136, %c0_137] : memref<16x32xf32, #tpu.memory_space<vmem>>, vector<2x32xf32>
    %c6_138 = arith.constant 6 : index
    %c0_139 = arith.constant 0 : index
    %239 = vector.load %arg24[%c6_138, %c0_139] : memref<16x32xf32, #tpu.memory_space<vmem>>, vector<2x32xf32>
    %cst_140 = arith.constant dense<0.000000e+00> : vector<2x32xf32>
    %240 = tpu.matmul %206, %27, %cst_140 {dimension_numbers = #tpu.dot_dimension_numbers<[1], [0], [0], [1], [0, 0, 1, 1], [], []>} : vector<2x32xf32>, vector<32x32xf32>, vector<2x32xf32> -> vector<2x32xf32>
    %cst_141 = arith.constant dense<0.000000e+00> : vector<2x32xf32>
    %241 = tpu.matmul %206, %28, %cst_141 {dimension_numbers = #tpu.dot_dimension_numbers<[1], [0], [0], [1], [0, 0, 1, 1], [], []>} : vector<2x32xf32>, vector<32x32xf32>, vector<2x32xf32> -> vector<2x32xf32>
    %cst_142 = arith.constant dense<0.000000e+00> : vector<2x32xf32>
    %242 = tpu.matmul %206, %29, %cst_142 {dimension_numbers = #tpu.dot_dimension_numbers<[1], [0], [0], [1], [0, 0, 1, 1], [], []>} : vector<2x32xf32>, vector<32x32xf32>, vector<2x32xf32> -> vector<2x32xf32>
    %243 = vector.broadcast %31 : vector<1x32xf32> to vector<2x32xf32>
    %244 = arith.addf %242, %243 : vector<2x32xf32>
    %245 = arith.addf %237, %240 : vector<2x32xf32>
    %246 = arith.negf %245 : vector<2x32xf32>
    %247 = math.exp %246 : vector<2x32xf32>
    %cst_143 = arith.constant 1.000000e+00 : f32
    %248 = vector.broadcast %cst_143 : f32 to vector<2x32xf32>
    %249 = arith.addf %248, %247 : vector<2x32xf32>
    %250 = arith.divf %248, %249 : vector<2x32xf32>
    %251 = arith.addf %238, %241 : vector<2x32xf32>
    %252 = arith.negf %251 : vector<2x32xf32>
    %253 = math.exp %252 : vector<2x32xf32>
    %cst_144 = arith.constant 1.000000e+00 : f32
    %254 = vector.broadcast %cst_144 : f32 to vector<2x32xf32>
    %255 = arith.addf %254, %253 : vector<2x32xf32>
    %256 = arith.divf %254, %255 : vector<2x32xf32>
    %257 = arith.mulf %250, %244 : vector<2x32xf32>
    %258 = arith.addf %239, %257 : vector<2x32xf32>
    %259 = math.tanh %258 : vector<2x32xf32>
    %cst_145 = arith.constant 1.000000e+00 : f32
    %260 = vector.broadcast %cst_145 : f32 to vector<2x32xf32>
    %261 = arith.subf %260, %256 : vector<2x32xf32>
    %262 = arith.mulf %261, %259 : vector<2x32xf32>
    %263 = arith.mulf %256, %206 : vector<2x32xf32>
    %264 = arith.addf %262, %263 : vector<2x32xf32>
    %c8 = arith.constant 8 : index
    %c0_146 = arith.constant 0 : index
    %265 = vector.load %arg26[%c8, %c0_146] : memref<16x32xf32, #tpu.memory_space<vmem>>, vector<2x32xf32>
    tpu.vector_store %arg26[%c8, %c0_146], %264 {strides = array<i32>} : memref<16x32xf32, #tpu.memory_space<vmem>>, vector<2x32xf32>,
    %c8_147 = arith.constant 8 : index
    %c0_148 = arith.constant 0 : index
    %266 = vector.load %arg19[%c8_147, %c0_148] : memref<16x32xf32, #tpu.memory_space<vmem>>, vector<2x32xf32>
    %c8_149 = arith.constant 8 : index
    %c0_150 = arith.constant 0 : index
    %267 = vector.load %arg20[%c8_149, %c0_150] : memref<16x32xf32, #tpu.memory_space<vmem>>, vector<2x32xf32>
    %c8_151 = arith.constant 8 : index
    %c0_152 = arith.constant 0 : index
    %268 = vector.load %arg21[%c8_151, %c0_152] : memref<16x32xf32, #tpu.memory_space<vmem>>, vector<2x32xf32>
    %cst_153 = arith.constant dense<0.000000e+00> : vector<2x32xf32>
    %269 = tpu.matmul %235, %24, %cst_153 {dimension_numbers = #tpu.dot_dimension_numbers<[1], [0], [0], [1], [0, 0, 1, 1], [], []>} : vector<2x32xf32>, vector<32x32xf32>, vector<2x32xf32> -> vector<2x32xf32>
    %cst_154 = arith.constant dense<0.000000e+00> : vector<2x32xf32>
    %270 = tpu.matmul %235, %25, %cst_154 {dimension_numbers = #tpu.dot_dimension_numbers<[1], [0], [0], [1], [0, 0, 1, 1], [], []>} : vector<2x32xf32>, vector<32x32xf32>, vector<2x32xf32> -> vector<2x32xf32>
    %cst_155 = arith.constant dense<0.000000e+00> : vector<2x32xf32>
    %271 = tpu.matmul %235, %26, %cst_155 {dimension_numbers = #tpu.dot_dimension_numbers<[1], [0], [0], [1], [0, 0, 1, 1], [], []>} : vector<2x32xf32>, vector<32x32xf32>, vector<2x32xf32> -> vector<2x32xf32>
    %272 = vector.broadcast %30 : vector<1x32xf32> to vector<2x32xf32>
    %273 = arith.addf %271, %272 : vector<2x32xf32>
    %274 = arith.addf %266, %269 : vector<2x32xf32>
    %275 = arith.negf %274 : vector<2x32xf32>
    %276 = math.exp %275 : vector<2x32xf32>
    %cst_156 = arith.constant 1.000000e+00 : f32
    %277 = vector.broadcast %cst_156 : f32 to vector<2x32xf32>
    %278 = arith.addf %277, %276 : vector<2x32xf32>
    %279 = arith.divf %277, %278 : vector<2x32xf32>
    %280 = arith.addf %267, %270 : vector<2x32xf32>
    %281 = arith.negf %280 : vector<2x32xf32>
    %282 = math.exp %281 : vector<2x32xf32>
    %cst_157 = arith.constant 1.000000e+00 : f32
    %283 = vector.broadcast %cst_157 : f32 to vector<2x32xf32>
    %284 = arith.addf %283, %282 : vector<2x32xf32>
    %285 = arith.divf %283, %284 : vector<2x32xf32>
    %286 = arith.mulf %279, %273 : vector<2x32xf32>
    %287 = arith.addf %268, %286 : vector<2x32xf32>
    %288 = math.tanh %287 : vector<2x32xf32>
    %cst_158 = arith.constant 1.000000e+00 : f32
    %289 = vector.broadcast %cst_158 : f32 to vector<2x32xf32>
    %290 = arith.subf %289, %285 : vector<2x32xf32>
    %291 = arith.mulf %290, %288 : vector<2x32xf32>
    %292 = arith.mulf %285, %235 : vector<2x32xf32>
    %293 = arith.addf %291, %292 : vector<2x32xf32>
    %c8_159 = arith.constant 8 : index
    %c0_160 = arith.constant 0 : index
    %294 = vector.load %arg25[%c8_159, %c0_160] : memref<16x32xf32, #tpu.memory_space<vmem>>, vector<2x32xf32>
    tpu.vector_store %arg25[%c8_159, %c0_160], %293 {strides = array<i32>} : memref<16x32xf32, #tpu.memory_space<vmem>>, vector<2x32xf32>,
    %c8_161 = arith.constant 8 : index
    %c0_162 = arith.constant 0 : index
    %295 = vector.load %arg22[%c8_161, %c0_162] : memref<16x32xf32, #tpu.memory_space<vmem>>, vector<2x32xf32>
    %c8_163 = arith.constant 8 : index
    %c0_164 = arith.constant 0 : index
    %296 = vector.load %arg23[%c8_163, %c0_164] : memref<16x32xf32, #tpu.memory_space<vmem>>, vector<2x32xf32>
    %c8_165 = arith.constant 8 : index
    %c0_166 = arith.constant 0 : index
    %297 = vector.load %arg24[%c8_165, %c0_166] : memref<16x32xf32, #tpu.memory_space<vmem>>, vector<2x32xf32>
    %cst_167 = arith.constant dense<0.000000e+00> : vector<2x32xf32>
    %298 = tpu.matmul %264, %27, %cst_167 {dimension_numbers = #tpu.dot_dimension_numbers<[1], [0], [0], [1], [0, 0, 1, 1], [], []>} : vector<2x32xf32>, vector<32x32xf32>, vector<2x32xf32> -> vector<2x32xf32>
    %cst_168 = arith.constant dense<0.000000e+00> : vector<2x32xf32>
    %299 = tpu.matmul %264, %28, %cst_168 {dimension_numbers = #tpu.dot_dimension_numbers<[1], [0], [0], [1], [0, 0, 1, 1], [], []>} : vector<2x32xf32>, vector<32x32xf32>, vector<2x32xf32> -> vector<2x32xf32>
    %cst_169 = arith.constant dense<0.000000e+00> : vector<2x32xf32>
    %300 = tpu.matmul %264, %29, %cst_169 {dimension_numbers = #tpu.dot_dimension_numbers<[1], [0], [0], [1], [0, 0, 1, 1], [], []>} : vector<2x32xf32>, vector<32x32xf32>, vector<2x32xf32> -> vector<2x32xf32>
    %301 = vector.broadcast %31 : vector<1x32xf32> to vector<2x32xf32>
    %302 = arith.addf %300, %301 : vector<2x32xf32>
    %303 = arith.addf %295, %298 : vector<2x32xf32>
    %304 = arith.negf %303 : vector<2x32xf32>
    %305 = math.exp %304 : vector<2x32xf32>
    %cst_170 = arith.constant 1.000000e+00 : f32
    %306 = vector.broadcast %cst_170 : f32 to vector<2x32xf32>
    %307 = arith.addf %306, %305 : vector<2x32xf32>
    %308 = arith.divf %306, %307 : vector<2x32xf32>
    %309 = arith.addf %296, %299 : vector<2x32xf32>
    %310 = arith.negf %309 : vector<2x32xf32>
    %311 = math.exp %310 : vector<2x32xf32>
    %cst_171 = arith.constant 1.000000e+00 : f32
    %312 = vector.broadcast %cst_171 : f32 to vector<2x32xf32>
    %313 = arith.addf %312, %311 : vector<2x32xf32>
    %314 = arith.divf %312, %313 : vector<2x32xf32>
    %315 = arith.mulf %308, %302 : vector<2x32xf32>
    %316 = arith.addf %297, %315 : vector<2x32xf32>
    %317 = math.tanh %316 : vector<2x32xf32>
    %cst_172 = arith.constant 1.000000e+00 : f32
    %318 = vector.broadcast %cst_172 : f32 to vector<2x32xf32>
    %319 = arith.subf %318, %314 : vector<2x32xf32>
    %320 = arith.mulf %319, %317 : vector<2x32xf32>
    %321 = arith.mulf %314, %264 : vector<2x32xf32>
    %322 = arith.addf %320, %321 : vector<2x32xf32>
    %c6_173 = arith.constant 6 : index
    %c0_174 = arith.constant 0 : index
    %323 = vector.load %arg26[%c6_173, %c0_174] : memref<16x32xf32, #tpu.memory_space<vmem>>, vector<2x32xf32>
    tpu.vector_store %arg26[%c6_173, %c0_174], %322 {strides = array<i32>} : memref<16x32xf32, #tpu.memory_space<vmem>>, vector<2x32xf32>,
    %c10_175 = arith.constant 10 : index
    %c0_176 = arith.constant 0 : index
    %324 = vector.load %arg19[%c10_175, %c0_176] : memref<16x32xf32, #tpu.memory_space<vmem>>, vector<2x32xf32>
    %c10_177 = arith.constant 10 : index
    %c0_178 = arith.constant 0 : index
    %325 = vector.load %arg20[%c10_177, %c0_178] : memref<16x32xf32, #tpu.memory_space<vmem>>, vector<2x32xf32>
    %c10_179 = arith.constant 10 : index
    %c0_180 = arith.constant 0 : index
    %326 = vector.load %arg21[%c10_179, %c0_180] : memref<16x32xf32, #tpu.memory_space<vmem>>, vector<2x32xf32>
    %cst_181 = arith.constant dense<0.000000e+00> : vector<2x32xf32>
    %327 = tpu.matmul %293, %24, %cst_181 {dimension_numbers = #tpu.dot_dimension_numbers<[1], [0], [0], [1], [0, 0, 1, 1], [], []>} : vector<2x32xf32>, vector<32x32xf32>, vector<2x32xf32> -> vector<2x32xf32>
    %cst_182 = arith.constant dense<0.000000e+00> : vector<2x32xf32>
    %328 = tpu.matmul %293, %25, %cst_182 {dimension_numbers = #tpu.dot_dimension_numbers<[1], [0], [0], [1], [0, 0, 1, 1], [], []>} : vector<2x32xf32>, vector<32x32xf32>, vector<2x32xf32> -> vector<2x32xf32>
    %cst_183 = arith.constant dense<0.000000e+00> : vector<2x32xf32>
    %329 = tpu.matmul %293, %26, %cst_183 {dimension_numbers = #tpu.dot_dimension_numbers<[1], [0], [0], [1], [0, 0, 1, 1], [], []>} : vector<2x32xf32>, vector<32x32xf32>, vector<2x32xf32> -> vector<2x32xf32>
    %330 = vector.broadcast %30 : vector<1x32xf32> to vector<2x32xf32>
    %331 = arith.addf %329, %330 : vector<2x32xf32>
    %332 = arith.addf %324, %327 : vector<2x32xf32>
    %333 = arith.negf %332 : vector<2x32xf32>
    %334 = math.exp %333 : vector<2x32xf32>
    %cst_184 = arith.constant 1.000000e+00 : f32
    %335 = vector.broadcast %cst_184 : f32 to vector<2x32xf32>
    %336 = arith.addf %335, %334 : vector<2x32xf32>
    %337 = arith.divf %335, %336 : vector<2x32xf32>
    %338 = arith.addf %325, %328 : vector<2x32xf32>
    %339 = arith.negf %338 : vector<2x32xf32>
    %340 = math.exp %339 : vector<2x32xf32>
    %cst_185 = arith.constant 1.000000e+00 : f32
    %341 = vector.broadcast %cst_185 : f32 to vector<2x32xf32>
    %342 = arith.addf %341, %340 : vector<2x32xf32>
    %343 = arith.divf %341, %342 : vector<2x32xf32>
    %344 = arith.mulf %337, %331 : vector<2x32xf32>
    %345 = arith.addf %326, %344 : vector<2x32xf32>
    %346 = math.tanh %345 : vector<2x32xf32>
    %cst_186 = arith.constant 1.000000e+00 : f32
    %347 = vector.broadcast %cst_186 : f32 to vector<2x32xf32>
    %348 = arith.subf %347, %343 : vector<2x32xf32>
    %349 = arith.mulf %348, %346 : vector<2x32xf32>
    %350 = arith.mulf %343, %293 : vector<2x32xf32>
    %351 = arith.addf %349, %350 : vector<2x32xf32>
    %c10_187 = arith.constant 10 : index
    %c0_188 = arith.constant 0 : index
    %352 = vector.load %arg25[%c10_187, %c0_188] : memref<16x32xf32, #tpu.memory_space<vmem>>, vector<2x32xf32>
    tpu.vector_store %arg25[%c10_187, %c0_188], %351 {strides = array<i32>} : memref<16x32xf32, #tpu.memory_space<vmem>>, vector<2x32xf32>,
    %c10_189 = arith.constant 10 : index
    %c0_190 = arith.constant 0 : index
    %353 = vector.load %arg22[%c10_189, %c0_190] : memref<16x32xf32, #tpu.memory_space<vmem>>, vector<2x32xf32>
    %c10_191 = arith.constant 10 : index
    %c0_192 = arith.constant 0 : index
    %354 = vector.load %arg23[%c10_191, %c0_192] : memref<16x32xf32, #tpu.memory_space<vmem>>, vector<2x32xf32>
    %c10_193 = arith.constant 10 : index
    %c0_194 = arith.constant 0 : index
    %355 = vector.load %arg24[%c10_193, %c0_194] : memref<16x32xf32, #tpu.memory_space<vmem>>, vector<2x32xf32>
    %cst_195 = arith.constant dense<0.000000e+00> : vector<2x32xf32>
    %356 = tpu.matmul %322, %27, %cst_195 {dimension_numbers = #tpu.dot_dimension_numbers<[1], [0], [0], [1], [0, 0, 1, 1], [], []>} : vector<2x32xf32>, vector<32x32xf32>, vector<2x32xf32> -> vector<2x32xf32>
    %cst_196 = arith.constant dense<0.000000e+00> : vector<2x32xf32>
    %357 = tpu.matmul %322, %28, %cst_196 {dimension_numbers = #tpu.dot_dimension_numbers<[1], [0], [0], [1], [0, 0, 1, 1], [], []>} : vector<2x32xf32>, vector<32x32xf32>, vector<2x32xf32> -> vector<2x32xf32>
    %cst_197 = arith.constant dense<0.000000e+00> : vector<2x32xf32>
    %358 = tpu.matmul %322, %29, %cst_197 {dimension_numbers = #tpu.dot_dimension_numbers<[1], [0], [0], [1], [0, 0, 1, 1], [], []>} : vector<2x32xf32>, vector<32x32xf32>, vector<2x32xf32> -> vector<2x32xf32>
    %359 = vector.broadcast %31 : vector<1x32xf32> to vector<2x32xf32>
    %360 = arith.addf %358, %359 : vector<2x32xf32>
    %361 = arith.addf %353, %356 : vector<2x32xf32>
    %362 = arith.negf %361 : vector<2x32xf32>
    %363 = math.exp %362 : vector<2x32xf32>
    %cst_198 = arith.constant 1.000000e+00 : f32
    %364 = vector.broadcast %cst_198 : f32 to vector<2x32xf32>
    %365 = arith.addf %364, %363 : vector<2x32xf32>
    %366 = arith.divf %364, %365 : vector<2x32xf32>
    %367 = arith.addf %354, %357 : vector<2x32xf32>
    %368 = arith.negf %367 : vector<2x32xf32>
    %369 = math.exp %368 : vector<2x32xf32>
    %cst_199 = arith.constant 1.000000e+00 : f32
    %370 = vector.broadcast %cst_199 : f32 to vector<2x32xf32>
    %371 = arith.addf %370, %369 : vector<2x32xf32>
    %372 = arith.divf %370, %371 : vector<2x32xf32>
    %373 = arith.mulf %366, %360 : vector<2x32xf32>
    %374 = arith.addf %355, %373 : vector<2x32xf32>
    %375 = math.tanh %374 : vector<2x32xf32>
    %cst_200 = arith.constant 1.000000e+00 : f32
    %376 = vector.broadcast %cst_200 : f32 to vector<2x32xf32>
    %377 = arith.subf %376, %372 : vector<2x32xf32>
    %378 = arith.mulf %377, %375 : vector<2x32xf32>
    %379 = arith.mulf %372, %322 : vector<2x32xf32>
    %380 = arith.addf %378, %379 : vector<2x32xf32>
    %c4_201 = arith.constant 4 : index
    %c0_202 = arith.constant 0 : index
    %381 = vector.load %arg26[%c4_201, %c0_202] : memref<16x32xf32, #tpu.memory_space<vmem>>, vector<2x32xf32>
    tpu.vector_store %arg26[%c4_201, %c0_202], %380 {strides = array<i32>} : memref<16x32xf32, #tpu.memory_space<vmem>>, vector<2x32xf32>,
    %c12_203 = arith.constant 12 : index
    %c0_204 = arith.constant 0 : index
    %382 = vector.load %arg19[%c12_203, %c0_204] : memref<16x32xf32, #tpu.memory_space<vmem>>, vector<2x32xf32>
    %c12_205 = arith.constant 12 : index
    %c0_206 = arith.constant 0 : index
    %383 = vector.load %arg20[%c12_205, %c0_206] : memref<16x32xf32, #tpu.memory_space<vmem>>, vector<2x32xf32>
    %c12_207 = arith.constant 12 : index
    %c0_208 = arith.constant 0 : index
    %384 = vector.load %arg21[%c12_207, %c0_208] : memref<16x32xf32, #tpu.memory_space<vmem>>, vector<2x32xf32>
    %cst_209 = arith.constant dense<0.000000e+00> : vector<2x32xf32>
    %385 = tpu.matmul %351, %24, %cst_209 {dimension_numbers = #tpu.dot_dimension_numbers<[1], [0], [0], [1], [0, 0, 1, 1], [], []>} : vector<2x32xf32>, vector<32x32xf32>, vector<2x32xf32> -> vector<2x32xf32>
    %cst_210 = arith.constant dense<0.000000e+00> : vector<2x32xf32>
    %386 = tpu.matmul %351, %25, %cst_210 {dimension_numbers = #tpu.dot_dimension_numbers<[1], [0], [0], [1], [0, 0, 1, 1], [], []>} : vector<2x32xf32>, vector<32x32xf32>, vector<2x32xf32> -> vector<2x32xf32>
    %cst_211 = arith.constant dense<0.000000e+00> : vector<2x32xf32>
    %387 = tpu.matmul %351, %26, %cst_211 {dimension_numbers = #tpu.dot_dimension_numbers<[1], [0], [0], [1], [0, 0, 1, 1], [], []>} : vector<2x32xf32>, vector<32x32xf32>, vector<2x32xf32> -> vector<2x32xf32>
    %388 = vector.broadcast %30 : vector<1x32xf32> to vector<2x32xf32>
    %389 = arith.addf %387, %388 : vector<2x32xf32>
    %390 = arith.addf %382, %385 : vector<2x32xf32>
    %391 = arith.negf %390 : vector<2x32xf32>
    %392 = math.exp %391 : vector<2x32xf32>
    %cst_212 = arith.constant 1.000000e+00 : f32
    %393 = vector.broadcast %cst_212 : f32 to vector<2x32xf32>
    %394 = arith.addf %393, %392 : vector<2x32xf32>
    %395 = arith.divf %393, %394 : vector<2x32xf32>
    %396 = arith.addf %383, %386 : vector<2x32xf32>
    %397 = arith.negf %396 : vector<2x32xf32>
    %398 = math.exp %397 : vector<2x32xf32>
    %cst_213 = arith.constant 1.000000e+00 : f32
    %399 = vector.broadcast %cst_213 : f32 to vector<2x32xf32>
    %400 = arith.addf %399, %398 : vector<2x32xf32>
    %401 = arith.divf %399, %400 : vector<2x32xf32>
    %402 = arith.mulf %395, %389 : vector<2x32xf32>
    %403 = arith.addf %384, %402 : vector<2x32xf32>
    %404 = math.tanh %403 : vector<2x32xf32>
    %cst_214 = arith.constant 1.000000e+00 : f32
    %405 = vector.broadcast %cst_214 : f32 to vector<2x32xf32>
    %406 = arith.subf %405, %401 : vector<2x32xf32>
    %407 = arith.mulf %406, %404 : vector<2x32xf32>
    %408 = arith.mulf %401, %351 : vector<2x32xf32>
    %409 = arith.addf %407, %408 : vector<2x32xf32>
    %c12_215 = arith.constant 12 : index
    %c0_216 = arith.constant 0 : index
    %410 = vector.load %arg25[%c12_215, %c0_216] : memref<16x32xf32, #tpu.memory_space<vmem>>, vector<2x32xf32>
    tpu.vector_store %arg25[%c12_215, %c0_216], %409 {strides = array<i32>} : memref<16x32xf32, #tpu.memory_space<vmem>>, vector<2x32xf32>,
    %c12_217 = arith.constant 12 : index
    %c0_218 = arith.constant 0 : index
    %411 = vector.load %arg22[%c12_217, %c0_218] : memref<16x32xf32, #tpu.memory_space<vmem>>, vector<2x32xf32>
    %c12_219 = arith.constant 12 : index
    %c0_220 = arith.constant 0 : index
    %412 = vector.load %arg23[%c12_219, %c0_220] : memref<16x32xf32, #tpu.memory_space<vmem>>, vector<2x32xf32>
    %c12_221 = arith.constant 12 : index
    %c0_222 = arith.constant 0 : index
    %413 = vector.load %arg24[%c12_221, %c0_222] : memref<16x32xf32, #tpu.memory_space<vmem>>, vector<2x32xf32>
    %cst_223 = arith.constant dense<0.000000e+00> : vector<2x32xf32>
    %414 = tpu.matmul %380, %27, %cst_223 {dimension_numbers = #tpu.dot_dimension_numbers<[1], [0], [0], [1], [0, 0, 1, 1], [], []>} : vector<2x32xf32>, vector<32x32xf32>, vector<2x32xf32> -> vector<2x32xf32>
    %cst_224 = arith.constant dense<0.000000e+00> : vector<2x32xf32>
    %415 = tpu.matmul %380, %28, %cst_224 {dimension_numbers = #tpu.dot_dimension_numbers<[1], [0], [0], [1], [0, 0, 1, 1], [], []>} : vector<2x32xf32>, vector<32x32xf32>, vector<2x32xf32> -> vector<2x32xf32>
    %cst_225 = arith.constant dense<0.000000e+00> : vector<2x32xf32>
    %416 = tpu.matmul %380, %29, %cst_225 {dimension_numbers = #tpu.dot_dimension_numbers<[1], [0], [0], [1], [0, 0, 1, 1], [], []>} : vector<2x32xf32>, vector<32x32xf32>, vector<2x32xf32> -> vector<2x32xf32>
    %417 = vector.broadcast %31 : vector<1x32xf32> to vector<2x32xf32>
    %418 = arith.addf %416, %417 : vector<2x32xf32>
    %419 = arith.addf %411, %414 : vector<2x32xf32>
    %420 = arith.negf %419 : vector<2x32xf32>
    %421 = math.exp %420 : vector<2x32xf32>
    %cst_226 = arith.constant 1.000000e+00 : f32
    %422 = vector.broadcast %cst_226 : f32 to vector<2x32xf32>
    %423 = arith.addf %422, %421 : vector<2x32xf32>
    %424 = arith.divf %422, %423 : vector<2x32xf32>
    %425 = arith.addf %412, %415 : vector<2x32xf32>
    %426 = arith.negf %425 : vector<2x32xf32>
    %427 = math.exp %426 : vector<2x32xf32>
    %cst_227 = arith.constant 1.000000e+00 : f32
    %428 = vector.broadcast %cst_227 : f32 to vector<2x32xf32>
    %429 = arith.addf %428, %427 : vector<2x32xf32>
    %430 = arith.divf %428, %429 : vector<2x32xf32>
    %431 = arith.mulf %424, %418 : vector<2x32xf32>
    %432 = arith.addf %413, %431 : vector<2x32xf32>
    %433 = math.tanh %432 : vector<2x32xf32>
    %cst_228 = arith.constant 1.000000e+00 : f32
    %434 = vector.broadcast %cst_228 : f32 to vector<2x32xf32>
    %435 = arith.subf %434, %430 : vector<2x32xf32>
    %436 = arith.mulf %435, %433 : vector<2x32xf32>
    %437 = arith.mulf %430, %380 : vector<2x32xf32>
    %438 = arith.addf %436, %437 : vector<2x32xf32>
    %c2_229 = arith.constant 2 : index
    %c0_230 = arith.constant 0 : index
    %439 = vector.load %arg26[%c2_229, %c0_230] : memref<16x32xf32, #tpu.memory_space<vmem>>, vector<2x32xf32>
    tpu.vector_store %arg26[%c2_229, %c0_230], %438 {strides = array<i32>} : memref<16x32xf32, #tpu.memory_space<vmem>>, vector<2x32xf32>,
    %c14_231 = arith.constant 14 : index
    %c0_232 = arith.constant 0 : index
    %440 = vector.load %arg19[%c14_231, %c0_232] : memref<16x32xf32, #tpu.memory_space<vmem>>, vector<2x32xf32>
    %c14_233 = arith.constant 14 : index
    %c0_234 = arith.constant 0 : index
    %441 = vector.load %arg20[%c14_233, %c0_234] : memref<16x32xf32, #tpu.memory_space<vmem>>, vector<2x32xf32>
    %c14_235 = arith.constant 14 : index
    %c0_236 = arith.constant 0 : index
    %442 = vector.load %arg21[%c14_235, %c0_236] : memref<16x32xf32, #tpu.memory_space<vmem>>, vector<2x32xf32>
    %cst_237 = arith.constant dense<0.000000e+00> : vector<2x32xf32>
    %443 = tpu.matmul %409, %24, %cst_237 {dimension_numbers = #tpu.dot_dimension_numbers<[1], [0], [0], [1], [0, 0, 1, 1], [], []>} : vector<2x32xf32>, vector<32x32xf32>, vector<2x32xf32> -> vector<2x32xf32>
    %cst_238 = arith.constant dense<0.000000e+00> : vector<2x32xf32>
    %444 = tpu.matmul %409, %25, %cst_238 {dimension_numbers = #tpu.dot_dimension_numbers<[1], [0], [0], [1], [0, 0, 1, 1], [], []>} : vector<2x32xf32>, vector<32x32xf32>, vector<2x32xf32> -> vector<2x32xf32>
    %cst_239 = arith.constant dense<0.000000e+00> : vector<2x32xf32>
    %445 = tpu.matmul %409, %26, %cst_239 {dimension_numbers = #tpu.dot_dimension_numbers<[1], [0], [0], [1], [0, 0, 1, 1], [], []>} : vector<2x32xf32>, vector<32x32xf32>, vector<2x32xf32> -> vector<2x32xf32>
    %446 = vector.broadcast %30 : vector<1x32xf32> to vector<2x32xf32>
    %447 = arith.addf %445, %446 : vector<2x32xf32>
    %448 = arith.addf %440, %443 : vector<2x32xf32>
    %449 = arith.negf %448 : vector<2x32xf32>
    %450 = math.exp %449 : vector<2x32xf32>
    %cst_240 = arith.constant 1.000000e+00 : f32
    %451 = vector.broadcast %cst_240 : f32 to vector<2x32xf32>
    %452 = arith.addf %451, %450 : vector<2x32xf32>
    %453 = arith.divf %451, %452 : vector<2x32xf32>
    %454 = arith.addf %441, %444 : vector<2x32xf32>
    %455 = arith.negf %454 : vector<2x32xf32>
    %456 = math.exp %455 : vector<2x32xf32>
    %cst_241 = arith.constant 1.000000e+00 : f32
    %457 = vector.broadcast %cst_241 : f32 to vector<2x32xf32>
    %458 = arith.addf %457, %456 : vector<2x32xf32>
    %459 = arith.divf %457, %458 : vector<2x32xf32>
    %460 = arith.mulf %453, %447 : vector<2x32xf32>
    %461 = arith.addf %442, %460 : vector<2x32xf32>
    %462 = math.tanh %461 : vector<2x32xf32>
    %cst_242 = arith.constant 1.000000e+00 : f32
    %463 = vector.broadcast %cst_242 : f32 to vector<2x32xf32>
    %464 = arith.subf %463, %459 : vector<2x32xf32>
    %465 = arith.mulf %464, %462 : vector<2x32xf32>
    %466 = arith.mulf %459, %409 : vector<2x32xf32>
    %467 = arith.addf %465, %466 : vector<2x32xf32>
    %c14_243 = arith.constant 14 : index
    %c0_244 = arith.constant 0 : index
    %468 = vector.load %arg25[%c14_243, %c0_244] : memref<16x32xf32, #tpu.memory_space<vmem>>, vector<2x32xf32>
    tpu.vector_store %arg25[%c14_243, %c0_244], %467 {strides = array<i32>} : memref<16x32xf32, #tpu.memory_space<vmem>>, vector<2x32xf32>,
    %c14_245 = arith.constant 14 : index
    %c0_246 = arith.constant 0 : index
    %469 = vector.load %arg22[%c14_245, %c0_246] : memref<16x32xf32, #tpu.memory_space<vmem>>, vector<2x32xf32>
    %c14_247 = arith.constant 14 : index
    %c0_248 = arith.constant 0 : index
    %470 = vector.load %arg23[%c14_247, %c0_248] : memref<16x32xf32, #tpu.memory_space<vmem>>, vector<2x32xf32>
    %c14_249 = arith.constant 14 : index
    %c0_250 = arith.constant 0 : index
    %471 = vector.load %arg24[%c14_249, %c0_250] : memref<16x32xf32, #tpu.memory_space<vmem>>, vector<2x32xf32>
    %cst_251 = arith.constant dense<0.000000e+00> : vector<2x32xf32>
    %472 = tpu.matmul %438, %27, %cst_251 {dimension_numbers = #tpu.dot_dimension_numbers<[1], [0], [0], [1], [0, 0, 1, 1], [], []>} : vector<2x32xf32>, vector<32x32xf32>, vector<2x32xf32> -> vector<2x32xf32>
    %cst_252 = arith.constant dense<0.000000e+00> : vector<2x32xf32>
    %473 = tpu.matmul %438, %28, %cst_252 {dimension_numbers = #tpu.dot_dimension_numbers<[1], [0], [0], [1], [0, 0, 1, 1], [], []>} : vector<2x32xf32>, vector<32x32xf32>, vector<2x32xf32> -> vector<2x32xf32>
    %cst_253 = arith.constant dense<0.000000e+00> : vector<2x32xf32>
    %474 = tpu.matmul %438, %29, %cst_253 {dimension_numbers = #tpu.dot_dimension_numbers<[1], [0], [0], [1], [0, 0, 1, 1], [], []>} : vector<2x32xf32>, vector<32x32xf32>, vector<2x32xf32> -> vector<2x32xf32>
    %475 = vector.broadcast %31 : vector<1x32xf32> to vector<2x32xf32>
    %476 = arith.addf %474, %475 : vector<2x32xf32>
    %477 = arith.addf %469, %472 : vector<2x32xf32>
    %478 = arith.negf %477 : vector<2x32xf32>
    %479 = math.exp %478 : vector<2x32xf32>
    %cst_254 = arith.constant 1.000000e+00 : f32
    %480 = vector.broadcast %cst_254 : f32 to vector<2x32xf32>
    %481 = arith.addf %480, %479 : vector<2x32xf32>
    %482 = arith.divf %480, %481 : vector<2x32xf32>
    %483 = arith.addf %470, %473 : vector<2x32xf32>
    %484 = arith.negf %483 : vector<2x32xf32>
    %485 = math.exp %484 : vector<2x32xf32>
    %cst_255 = arith.constant 1.000000e+00 : f32
    %486 = vector.broadcast %cst_255 : f32 to vector<2x32xf32>
    %487 = arith.addf %486, %485 : vector<2x32xf32>
    %488 = arith.divf %486, %487 : vector<2x32xf32>
    %489 = arith.mulf %482, %476 : vector<2x32xf32>
    %490 = arith.addf %471, %489 : vector<2x32xf32>
    %491 = math.tanh %490 : vector<2x32xf32>
    %cst_256 = arith.constant 1.000000e+00 : f32
    %492 = vector.broadcast %cst_256 : f32 to vector<2x32xf32>
    %493 = arith.subf %492, %488 : vector<2x32xf32>
    %494 = arith.mulf %493, %491 : vector<2x32xf32>
    %495 = arith.mulf %488, %438 : vector<2x32xf32>
    %496 = arith.addf %494, %495 : vector<2x32xf32>
    %c0_257 = arith.constant 0 : index
    %c0_258 = arith.constant 0 : index
    %497 = vector.load %arg26[%c0_257, %c0_258] : memref<16x32xf32, #tpu.memory_space<vmem>>, vector<2x32xf32>
    tpu.vector_store %arg26[%c0_257, %c0_258], %496 {strides = array<i32>} : memref<16x32xf32, #tpu.memory_space<vmem>>, vector<2x32xf32>,
    %c0_259 = arith.constant 0 : index
    %c0_260 = arith.constant 0 : index
    %498 = vector.load %arg25[%c0_259, %c0_260] : memref<16x32xf32, #tpu.memory_space<vmem>>, vector<16x16xf32>
    %c0_261 = arith.constant 0 : index
    %c0_262 = arith.constant 0 : index
    %499 = vector.load %arg26[%c0_261, %c0_262] : memref<16x32xf32, #tpu.memory_space<vmem>>, vector<16x16xf32>
    %cst_263 = arith.constant dense<0.000000e+00> : vector<16xf32>
    %500 = vector.multi_reduction <add>, %498, %cst_263 [1] : vector<16x16xf32> to vector<16xf32>
    %501 = vector.shape_cast %500 : vector<16xf32> to vector<16x1xf32>
    %cst_264 = arith.constant dense<0.000000e+00> : vector<16xf32>
    %502 = vector.multi_reduction <add>, %499, %cst_264 [1] : vector<16x16xf32> to vector<16xf32>
    %503 = vector.shape_cast %502 : vector<16xf32> to vector<16x1xf32>
    %504 = arith.addf %501, %503 : vector<16x1xf32>
    %cst_265 = arith.constant 3.125000e-02 : f32
    %505 = vector.broadcast %cst_265 : f32 to vector<16x1xf32>
    %506 = arith.mulf %504, %505 : vector<16x1xf32>
    %507 = vector.broadcast %506 : vector<16x1xf32> to vector<16x16xf32>
    %508 = arith.subf %498, %507 : vector<16x16xf32>
    %509 = vector.broadcast %506 : vector<16x1xf32> to vector<16x16xf32>
    %510 = arith.subf %499, %509 : vector<16x16xf32>
    %511 = arith.mulf %508, %508 : vector<16x16xf32>
    %cst_266 = arith.constant dense<0.000000e+00> : vector<16xf32>
    %512 = vector.multi_reduction <add>, %511, %cst_266 [1] : vector<16x16xf32> to vector<16xf32>
    %513 = vector.shape_cast %512 : vector<16xf32> to vector<16x1xf32>
    %514 = arith.mulf %510, %510 : vector<16x16xf32>
    %cst_267 = arith.constant dense<0.000000e+00> : vector<16xf32>
    %515 = vector.multi_reduction <add>, %514, %cst_267 [1] : vector<16x16xf32> to vector<16xf32>
    %516 = vector.shape_cast %515 : vector<16xf32> to vector<16x1xf32>
    %517 = arith.addf %513, %516 : vector<16x1xf32>
    %cst_268 = arith.constant 3.125000e-02 : f32
    %518 = vector.broadcast %cst_268 : f32 to vector<16x1xf32>
    %519 = arith.mulf %517, %518 : vector<16x1xf32>
    %cst_269 = arith.constant 9.99999974E-6 : f32
    %520 = vector.broadcast %cst_269 : f32 to vector<16x1xf32>
    %521 = arith.addf %519, %520 : vector<16x1xf32>
    %522 = math.rsqrt %521 : vector<16x1xf32>
    %c0_270 = arith.constant 0 : index
    %c0_271 = arith.constant 0 : index
    %c0_272 = arith.constant 0 : index
    %523 = vector.load %arg14[%c0_270, %c0_271, %c0_272] : memref<2x1x32xf32, #tpu.memory_space<vmem>>, vector<1x1x32xf32>
    %524 = vector.shape_cast %523 : vector<1x1x32xf32> to vector<1x32xf32>
    %c0_273 = arith.constant 0 : index
    %c0_274 = arith.constant 0 : index
    %c0_275 = arith.constant 0 : index
    %525 = vector.load %arg15[%c0_273, %c0_274, %c0_275] : memref<2x1x32xf32, #tpu.memory_space<vmem>>, vector<1x1x32xf32>
    %526 = vector.shape_cast %525 : vector<1x1x32xf32> to vector<1x32xf32>
    %c0_276 = arith.constant 0 : index
    %c0_277 = arith.constant 0 : index
    %c0_278 = arith.constant 0 : index
    %527 = vector.load %arg16[%c0_276, %c0_277, %c0_278] : memref<2x32x2xf32, #tpu.memory_space<vmem>>, vector<1x32x2xf32>
    %528 = vector.shape_cast %527 : vector<1x32x2xf32> to vector<32x2xf32>
    %529 = vector.broadcast %522 : vector<16x1xf32> to vector<16x16xf32>
    %530 = arith.mulf %508, %529 : vector<16x16xf32>
    %531 = vector.extract_strided_slice %524 {offsets = [0, 0], sizes = [1, 16], strides = [1, 1]} : vector<1x32xf32> to vector<1x16xf32>
    %532 = vector.broadcast %531 : vector<1x16xf32> to vector<16x16xf32>
    %533 = arith.mulf %530, %532 : vector<16x16xf32>
    %534 = vector.extract_strided_slice %526 {offsets = [0, 0], sizes = [1, 16], strides = [1, 1]} : vector<1x32xf32> to vector<1x16xf32>
    %535 = vector.broadcast %534 : vector<1x16xf32> to vector<16x16xf32>
    %536 = arith.addf %533, %535 : vector<16x16xf32>
    %537 = vector.broadcast %522 : vector<16x1xf32> to vector<16x16xf32>
    %538 = arith.mulf %510, %537 : vector<16x16xf32>
    %539 = vector.extract_strided_slice %524 {offsets = [0, 16], sizes = [1, 16], strides = [1, 1]} : vector<1x32xf32> to vector<1x16xf32>
    %540 = vector.broadcast %539 : vector<1x16xf32> to vector<16x16xf32>
    %541 = arith.mulf %538, %540 : vector<16x16xf32>
    %542 = vector.extract_strided_slice %526 {offsets = [0, 16], sizes = [1, 16], strides = [1, 1]} : vector<1x32xf32> to vector<1x16xf32>
    %543 = vector.broadcast %542 : vector<1x16xf32> to vector<16x16xf32>
    %544 = arith.addf %541, %543 : vector<16x16xf32>
    %545 = vector.extract_strided_slice %528 {offsets = [0, 0], sizes = [16, 2], strides = [1, 1]} : vector<32x2xf32> to vector<16x2xf32>
    %cst_279 = arith.constant dense<0.000000e+00> : vector<16x2xf32>
    %546 = tpu.matmul %536, %545, %cst_279 {dimension_numbers = #tpu.dot_dimension_numbers<[1], [0], [0], [1], [0, 0, 1, 1], [], []>} : vector<16x16xf32>, vector<16x2xf32>, vector<16x2xf32> -> vector<16x2xf32>
    %547 = vector.extract_strided_slice %528 {offsets = [16, 0], sizes = [16, 2], strides = [1, 1]} : vector<32x2xf32> to vector<16x2xf32>
    %cst_280 = arith.constant dense<0.000000e+00> : vector<16x2xf32>
    %548 = tpu.matmul %544, %547, %cst_280 {dimension_numbers = #tpu.dot_dimension_numbers<[1], [0], [0], [1], [0, 0, 1, 1], [], []>} : vector<16x16xf32>, vector<16x2xf32>, vector<16x2xf32> -> vector<16x2xf32>
    %549 = arith.addf %546, %548 : vector<16x2xf32>
    %c0_281 = arith.constant 0 : index
    %c0_282 = arith.constant 0 : index
    %c0_283 = arith.constant 0 : index
    %550 = vector.load %arg17[%c0_281, %c0_282, %c0_283] : memref<2x1x2xf32, #tpu.memory_space<vmem>>, vector<1x1x2xf32>
    %551 = vector.shape_cast %550 : vector<1x1x2xf32> to vector<1x2xf32>
    %552 = vector.broadcast %551 : vector<1x2xf32> to vector<16x2xf32>
    %553 = arith.addf %549, %552 : vector<16x2xf32>
    %c0_284 = arith.constant 0 : index
    %c0_285 = arith.constant 0 : index
    %c0_286 = arith.constant 0 : index
    %554 = vector.load %arg18[%c0_284, %c0_285, %c0_286] : memref<2x16x2xf32, #tpu.memory_space<vmem>>, vector<1x16x2xf32>
    %555 = vector.shape_cast %554 : vector<1x16x2xf32> to vector<16x2xf32>
    %556 = vector.shape_cast %553 : vector<16x2xf32> to vector<1x16x2xf32>
    tpu.vector_store %arg18[%c0_284, %c0_285, %c0_286], %556 {strides = array<i32>} : memref<2x16x2xf32, #tpu.memory_space<vmem>>, vector<1x16x2xf32>,
    %c0_287 = arith.constant 0 : index
    %c16 = arith.constant 16 : index
    %557 = vector.load %arg25[%c0_287, %c16] : memref<16x32xf32, #tpu.memory_space<vmem>>, vector<16x16xf32>
    %c0_288 = arith.constant 0 : index
    %c16_289 = arith.constant 16 : index
    %558 = vector.load %arg26[%c0_288, %c16_289] : memref<16x32xf32, #tpu.memory_space<vmem>>, vector<16x16xf32>
    %cst_290 = arith.constant dense<0.000000e+00> : vector<16xf32>
    %559 = vector.multi_reduction <add>, %557, %cst_290 [1] : vector<16x16xf32> to vector<16xf32>
    %560 = vector.shape_cast %559 : vector<16xf32> to vector<16x1xf32>
    %cst_291 = arith.constant dense<0.000000e+00> : vector<16xf32>
    %561 = vector.multi_reduction <add>, %558, %cst_291 [1] : vector<16x16xf32> to vector<16xf32>
    %562 = vector.shape_cast %561 : vector<16xf32> to vector<16x1xf32>
    %563 = arith.addf %560, %562 : vector<16x1xf32>
    %cst_292 = arith.constant 3.125000e-02 : f32
    %564 = vector.broadcast %cst_292 : f32 to vector<16x1xf32>
    %565 = arith.mulf %563, %564 : vector<16x1xf32>
    %566 = vector.broadcast %565 : vector<16x1xf32> to vector<16x16xf32>
    %567 = arith.subf %557, %566 : vector<16x16xf32>
    %568 = vector.broadcast %565 : vector<16x1xf32> to vector<16x16xf32>
    %569 = arith.subf %558, %568 : vector<16x16xf32>
    %570 = arith.mulf %567, %567 : vector<16x16xf32>
    %cst_293 = arith.constant dense<0.000000e+00> : vector<16xf32>
    %571 = vector.multi_reduction <add>, %570, %cst_293 [1] : vector<16x16xf32> to vector<16xf32>
    %572 = vector.shape_cast %571 : vector<16xf32> to vector<16x1xf32>
    %573 = arith.mulf %569, %569 : vector<16x16xf32>
    %cst_294 = arith.constant dense<0.000000e+00> : vector<16xf32>
    %574 = vector.multi_reduction <add>, %573, %cst_294 [1] : vector<16x16xf32> to vector<16xf32>
    %575 = vector.shape_cast %574 : vector<16xf32> to vector<16x1xf32>
    %576 = arith.addf %572, %575 : vector<16x1xf32>
    %cst_295 = arith.constant 3.125000e-02 : f32
    %577 = vector.broadcast %cst_295 : f32 to vector<16x1xf32>
    %578 = arith.mulf %576, %577 : vector<16x1xf32>
    %cst_296 = arith.constant 9.99999974E-6 : f32
    %579 = vector.broadcast %cst_296 : f32 to vector<16x1xf32>
    %580 = arith.addf %578, %579 : vector<16x1xf32>
    %581 = math.rsqrt %580 : vector<16x1xf32>
    %c1 = arith.constant 1 : index
    %c0_297 = arith.constant 0 : index
    %c0_298 = arith.constant 0 : index
    %582 = vector.load %arg14[%c1, %c0_297, %c0_298] : memref<2x1x32xf32, #tpu.memory_space<vmem>>, vector<1x1x32xf32>
    %583 = vector.shape_cast %582 : vector<1x1x32xf32> to vector<1x32xf32>
    %c1_299 = arith.constant 1 : index
    %c0_300 = arith.constant 0 : index
    %c0_301 = arith.constant 0 : index
    %584 = vector.load %arg15[%c1_299, %c0_300, %c0_301] : memref<2x1x32xf32, #tpu.memory_space<vmem>>, vector<1x1x32xf32>
    %585 = vector.shape_cast %584 : vector<1x1x32xf32> to vector<1x32xf32>
    %c1_302 = arith.constant 1 : index
    %c0_303 = arith.constant 0 : index
    %c0_304 = arith.constant 0 : index
    %586 = vector.load %arg16[%c1_302, %c0_303, %c0_304] : memref<2x32x2xf32, #tpu.memory_space<vmem>>, vector<1x32x2xf32>
    %587 = vector.shape_cast %586 : vector<1x32x2xf32> to vector<32x2xf32>
    %588 = vector.broadcast %581 : vector<16x1xf32> to vector<16x16xf32>
    %589 = arith.mulf %567, %588 : vector<16x16xf32>
    %590 = vector.extract_strided_slice %583 {offsets = [0, 0], sizes = [1, 16], strides = [1, 1]} : vector<1x32xf32> to vector<1x16xf32>
    %591 = vector.broadcast %590 : vector<1x16xf32> to vector<16x16xf32>
    %592 = arith.mulf %589, %591 : vector<16x16xf32>
    %593 = vector.extract_strided_slice %585 {offsets = [0, 0], sizes = [1, 16], strides = [1, 1]} : vector<1x32xf32> to vector<1x16xf32>
    %594 = vector.broadcast %593 : vector<1x16xf32> to vector<16x16xf32>
    %595 = arith.addf %592, %594 : vector<16x16xf32>
    %596 = vector.broadcast %581 : vector<16x1xf32> to vector<16x16xf32>
    %597 = arith.mulf %569, %596 : vector<16x16xf32>
    %598 = vector.extract_strided_slice %583 {offsets = [0, 16], sizes = [1, 16], strides = [1, 1]} : vector<1x32xf32> to vector<1x16xf32>
    %599 = vector.broadcast %598 : vector<1x16xf32> to vector<16x16xf32>
    %600 = arith.mulf %597, %599 : vector<16x16xf32>
    %601 = vector.extract_strided_slice %585 {offsets = [0, 16], sizes = [1, 16], strides = [1, 1]} : vector<1x32xf32> to vector<1x16xf32>
    %602 = vector.broadcast %601 : vector<1x16xf32> to vector<16x16xf32>
    %603 = arith.addf %600, %602 : vector<16x16xf32>
    %604 = vector.extract_strided_slice %587 {offsets = [0, 0], sizes = [16, 2], strides = [1, 1]} : vector<32x2xf32> to vector<16x2xf32>
    %cst_305 = arith.constant dense<0.000000e+00> : vector<16x2xf32>
    %605 = tpu.matmul %595, %604, %cst_305 {dimension_numbers = #tpu.dot_dimension_numbers<[1], [0], [0], [1], [0, 0, 1, 1], [], []>} : vector<16x16xf32>, vector<16x2xf32>, vector<16x2xf32> -> vector<16x2xf32>
    %606 = vector.extract_strided_slice %587 {offsets = [16, 0], sizes = [16, 2], strides = [1, 1]} : vector<32x2xf32> to vector<16x2xf32>
    %cst_306 = arith.constant dense<0.000000e+00> : vector<16x2xf32>
    %607 = tpu.matmul %603, %606, %cst_306 {dimension_numbers = #tpu.dot_dimension_numbers<[1], [0], [0], [1], [0, 0, 1, 1], [], []>} : vector<16x16xf32>, vector<16x2xf32>, vector<16x2xf32> -> vector<16x2xf32>
    %608 = arith.addf %605, %607 : vector<16x2xf32>
    %c1_307 = arith.constant 1 : index
    %c0_308 = arith.constant 0 : index
    %c0_309 = arith.constant 0 : index
    %609 = vector.load %arg17[%c1_307, %c0_308, %c0_309] : memref<2x1x2xf32, #tpu.memory_space<vmem>>, vector<1x1x2xf32>
    %610 = vector.shape_cast %609 : vector<1x1x2xf32> to vector<1x2xf32>
    %611 = vector.broadcast %610 : vector<1x2xf32> to vector<16x2xf32>
    %612 = arith.addf %608, %611 : vector<16x2xf32>
    %c1_310 = arith.constant 1 : index
    %c0_311 = arith.constant 0 : index
    %c0_312 = arith.constant 0 : index
    %613 = vector.load %arg18[%c1_310, %c0_311, %c0_312] : memref<2x16x2xf32, #tpu.memory_space<vmem>>, vector<1x16x2xf32>
    %614 = vector.shape_cast %613 : vector<1x16x2xf32> to vector<16x2xf32>
    %615 = vector.shape_cast %612 : vector<16x2xf32> to vector<1x16x2xf32>
    tpu.vector_store %arg18[%c1_310, %c0_311, %c0_312], %615 {strides = array<i32>} : memref<2x16x2xf32, #tpu.memory_space<vmem>>, vector<1x16x2xf32>,
    return
  }
}

module attributes {stable_mosaic.version = 11 : i64} {
  func.func @_cls_kernel(%arg0: memref<32x32xf32, #tpu.memory_space<vmem>>, %arg1: memref<32x32xf32, #tpu.memory_space<vmem>>, %arg2: memref<32x1xf32, #tpu.memory_space<vmem>>, %arg3: memref<32x48xf32, #tpu.memory_space<vmem>>, %arg4: memref<32x48xf32, #tpu.memory_space<vmem>>, %arg5: memref<1x48xf32, #tpu.memory_space<vmem>>, %arg6: memref<1x48xf32, #tpu.memory_space<vmem>>, %arg7: memref<16x16xf32, #tpu.memory_space<vmem>>, %arg8: memref<16x16xf32, #tpu.memory_space<vmem>>, %arg9: memref<16x16xf32, #tpu.memory_space<vmem>>, %arg10: memref<16x16xf32, #tpu.memory_space<vmem>>, %arg11: memref<16x16xf32, #tpu.memory_space<vmem>>, %arg12: memref<16x16xf32, #tpu.memory_space<vmem>>, %arg13: memref<1x16xf32, #tpu.memory_space<vmem>>, %arg14: memref<1x16xf32, #tpu.memory_space<vmem>>, %arg15: memref<32x2xf32, #tpu.memory_space<vmem>>, %arg16: memref<1x2xf32, #tpu.memory_space<vmem>>, %arg17: memref<4x2xf32, #tpu.memory_space<vmem>>, %arg18: memref<32x16xf32, #tpu.memory_space<vmem>>, %arg19: memref<32x16xf32, #tpu.memory_space<vmem>>, %arg20: memref<32x16xf32, #tpu.memory_space<vmem>>, %arg21: memref<32x16xf32, #tpu.memory_space<vmem>>, %arg22: memref<32x16xf32, #tpu.memory_space<vmem>>, %arg23: memref<32x16xf32, #tpu.memory_space<vmem>>) attributes {dimension_semantics = [], scalar_prefetch = 0 : i64, scratch_operands = 6 : i64, tpu.core_type = #tpu.core_type<tc>} {
    %c0 = arith.constant 0 : index
    %c0_0 = arith.constant 0 : index
    %0 = vector.load %arg0[%c0, %c0_0] : memref<32x32xf32, #tpu.memory_space<vmem>>, vector<32x32xf32>
    %c0_1 = arith.constant 0 : index
    %c0_2 = arith.constant 0 : index
    %1 = vector.load %arg3[%c0_1, %c0_2] : memref<32x48xf32, #tpu.memory_space<vmem>>, vector<32x48xf32>
    %cst = arith.constant dense<0.000000e+00> : vector<32x48xf32>
    %2 = tpu.matmul %0, %1, %cst {dimension_numbers = #tpu.dot_dimension_numbers<[1], [0], [0], [1], [0, 0, 1, 1], [], []>} : vector<32x32xf32>, vector<32x48xf32>, vector<32x48xf32> -> vector<32x48xf32>
    %c0_3 = arith.constant 0 : index
    %c0_4 = arith.constant 0 : index
    %3 = vector.load %arg5[%c0_3, %c0_4] : memref<1x48xf32, #tpu.memory_space<vmem>>, vector<1x48xf32>
    %4 = vector.broadcast %3 : vector<1x48xf32> to vector<32x48xf32>
    %5 = arith.addf %2, %4 : vector<32x48xf32>
    %c0_5 = arith.constant 0 : index
    %c0_6 = arith.constant 0 : index
    %6 = vector.load %arg1[%c0_5, %c0_6] : memref<32x32xf32, #tpu.memory_space<vmem>>, vector<32x32xf32>
    %c0_7 = arith.constant 0 : index
    %c0_8 = arith.constant 0 : index
    %7 = vector.load %arg4[%c0_7, %c0_8] : memref<32x48xf32, #tpu.memory_space<vmem>>, vector<32x48xf32>
    %cst_9 = arith.constant dense<0.000000e+00> : vector<32x48xf32>
    %8 = tpu.matmul %6, %7, %cst_9 {dimension_numbers = #tpu.dot_dimension_numbers<[1], [0], [0], [1], [0, 0, 1, 1], [], []>} : vector<32x32xf32>, vector<32x48xf32>, vector<32x48xf32> -> vector<32x48xf32>
    %c0_10 = arith.constant 0 : index
    %c0_11 = arith.constant 0 : index
    %9 = vector.load %arg6[%c0_10, %c0_11] : memref<1x48xf32, #tpu.memory_space<vmem>>, vector<1x48xf32>
    %10 = vector.broadcast %9 : vector<1x48xf32> to vector<32x48xf32>
    %11 = arith.addf %8, %10 : vector<32x48xf32>
    %12 = vector.extract_strided_slice %5 {offsets = [0, 0], sizes = [32, 16], strides = [1, 1]} : vector<32x48xf32> to vector<32x16xf32>
    %c0_12 = arith.constant 0 : index
    %c0_13 = arith.constant 0 : index
    %13 = vector.load %arg18[%c0_12, %c0_13] : memref<32x16xf32, #tpu.memory_space<vmem>>, vector<32x16xf32>
    tpu.vector_store %arg18[%c0_12, %c0_13], %12 {strides = array<i32>} : memref<32x16xf32, #tpu.memory_space<vmem>>, vector<32x16xf32>,
    %14 = vector.extract_strided_slice %5 {offsets = [0, 16], sizes = [32, 16], strides = [1, 1]} : vector<32x48xf32> to vector<32x16xf32>
    %c0_14 = arith.constant 0 : index
    %c0_15 = arith.constant 0 : index
    %15 = vector.load %arg19[%c0_14, %c0_15] : memref<32x16xf32, #tpu.memory_space<vmem>>, vector<32x16xf32>
    tpu.vector_store %arg19[%c0_14, %c0_15], %14 {strides = array<i32>} : memref<32x16xf32, #tpu.memory_space<vmem>>, vector<32x16xf32>,
    %16 = vector.extract_strided_slice %5 {offsets = [0, 32], sizes = [32, 16], strides = [1, 1]} : vector<32x48xf32> to vector<32x16xf32>
    %c0_16 = arith.constant 0 : index
    %c0_17 = arith.constant 0 : index
    %17 = vector.load %arg20[%c0_16, %c0_17] : memref<32x16xf32, #tpu.memory_space<vmem>>, vector<32x16xf32>
    tpu.vector_store %arg20[%c0_16, %c0_17], %16 {strides = array<i32>} : memref<32x16xf32, #tpu.memory_space<vmem>>, vector<32x16xf32>,
    %18 = vector.extract_strided_slice %11 {offsets = [0, 0], sizes = [32, 16], strides = [1, 1]} : vector<32x48xf32> to vector<32x16xf32>
    %c0_18 = arith.constant 0 : index
    %c0_19 = arith.constant 0 : index
    %19 = vector.load %arg21[%c0_18, %c0_19] : memref<32x16xf32, #tpu.memory_space<vmem>>, vector<32x16xf32>
    tpu.vector_store %arg21[%c0_18, %c0_19], %18 {strides = array<i32>} : memref<32x16xf32, #tpu.memory_space<vmem>>, vector<32x16xf32>,
    %20 = vector.extract_strided_slice %11 {offsets = [0, 16], sizes = [32, 16], strides = [1, 1]} : vector<32x48xf32> to vector<32x16xf32>
    %c0_20 = arith.constant 0 : index
    %c0_21 = arith.constant 0 : index
    %21 = vector.load %arg22[%c0_20, %c0_21] : memref<32x16xf32, #tpu.memory_space<vmem>>, vector<32x16xf32>
    tpu.vector_store %arg22[%c0_20, %c0_21], %20 {strides = array<i32>} : memref<32x16xf32, #tpu.memory_space<vmem>>, vector<32x16xf32>,
    %22 = vector.extract_strided_slice %11 {offsets = [0, 32], sizes = [32, 16], strides = [1, 1]} : vector<32x48xf32> to vector<32x16xf32>
    %c0_22 = arith.constant 0 : index
    %c0_23 = arith.constant 0 : index
    %23 = vector.load %arg23[%c0_22, %c0_23] : memref<32x16xf32, #tpu.memory_space<vmem>>, vector<32x16xf32>
    tpu.vector_store %arg23[%c0_22, %c0_23], %22 {strides = array<i32>} : memref<32x16xf32, #tpu.memory_space<vmem>>, vector<32x16xf32>,
    %c0_24 = arith.constant 0 : index
    %c0_25 = arith.constant 0 : index
    %24 = vector.load %arg7[%c0_24, %c0_25] : memref<16x16xf32, #tpu.memory_space<vmem>>, vector<16x16xf32>
    %c0_26 = arith.constant 0 : index
    %c0_27 = arith.constant 0 : index
    %25 = vector.load %arg8[%c0_26, %c0_27] : memref<16x16xf32, #tpu.memory_space<vmem>>, vector<16x16xf32>
    %c0_28 = arith.constant 0 : index
    %c0_29 = arith.constant 0 : index
    %26 = vector.load %arg9[%c0_28, %c0_29] : memref<16x16xf32, #tpu.memory_space<vmem>>, vector<16x16xf32>
    %c0_30 = arith.constant 0 : index
    %c0_31 = arith.constant 0 : index
    %27 = vector.load %arg10[%c0_30, %c0_31] : memref<16x16xf32, #tpu.memory_space<vmem>>, vector<16x16xf32>
    %c0_32 = arith.constant 0 : index
    %c0_33 = arith.constant 0 : index
    %28 = vector.load %arg11[%c0_32, %c0_33] : memref<16x16xf32, #tpu.memory_space<vmem>>, vector<16x16xf32>
    %c0_34 = arith.constant 0 : index
    %c0_35 = arith.constant 0 : index
    %29 = vector.load %arg12[%c0_34, %c0_35] : memref<16x16xf32, #tpu.memory_space<vmem>>, vector<16x16xf32>
    %c0_36 = arith.constant 0 : index
    %c0_37 = arith.constant 0 : index
    %30 = vector.load %arg13[%c0_36, %c0_37] : memref<1x16xf32, #tpu.memory_space<vmem>>, vector<1x16xf32>
    %c0_38 = arith.constant 0 : index
    %c0_39 = arith.constant 0 : index
    %31 = vector.load %arg14[%c0_38, %c0_39] : memref<1x16xf32, #tpu.memory_space<vmem>>, vector<1x16xf32>
    %cst_40 = arith.constant 0.000000e+00 : f32
    %32 = vector.broadcast %cst_40 : f32 to vector<4x16xf32>
    %cst_41 = arith.constant 0.000000e+00 : f32
    %33 = vector.broadcast %cst_41 : f32 to vector<4x16xf32>
    %cst_42 = arith.constant -1.000000e+06 : f32
    %34 = vector.broadcast %cst_42 : f32 to vector<4x16xf32>
    %cst_43 = arith.constant -1.000000e+06 : f32
    %35 = vector.broadcast %cst_43 : f32 to vector<4x16xf32>
    %c0_44 = arith.constant 0 : index
    %c0_45 = arith.constant 0 : index
    %36 = vector.load %arg18[%c0_44, %c0_45] : memref<32x16xf32, #tpu.memory_space<vmem>>, vector<4x16xf32>
    %c0_46 = arith.constant 0 : index
    %c0_47 = arith.constant 0 : index
    %37 = vector.load %arg19[%c0_46, %c0_47] : memref<32x16xf32, #tpu.memory_space<vmem>>, vector<4x16xf32>
    %c0_48 = arith.constant 0 : index
    %c0_49 = arith.constant 0 : index
    %38 = vector.load %arg20[%c0_48, %c0_49] : memref<32x16xf32, #tpu.memory_space<vmem>>, vector<4x16xf32>
    %cst_50 = arith.constant dense<0.000000e+00> : vector<4x16xf32>
    %39 = tpu.matmul %32, %24, %cst_50 {dimension_numbers = #tpu.dot_dimension_numbers<[1], [0], [0], [1], [0, 0, 1, 1], [], []>} : vector<4x16xf32>, vector<16x16xf32>, vector<4x16xf32> -> vector<4x16xf32>
    %cst_51 = arith.constant dense<0.000000e+00> : vector<4x16xf32>
    %40 = tpu.matmul %32, %25, %cst_51 {dimension_numbers = #tpu.dot_dimension_numbers<[1], [0], [0], [1], [0, 0, 1, 1], [], []>} : vector<4x16xf32>, vector<16x16xf32>, vector<4x16xf32> -> vector<4x16xf32>
    %cst_52 = arith.constant dense<0.000000e+00> : vector<4x16xf32>
    %41 = tpu.matmul %32, %26, %cst_52 {dimension_numbers = #tpu.dot_dimension_numbers<[1], [0], [0], [1], [0, 0, 1, 1], [], []>} : vector<4x16xf32>, vector<16x16xf32>, vector<4x16xf32> -> vector<4x16xf32>
    %42 = vector.broadcast %30 : vector<1x16xf32> to vector<4x16xf32>
    %43 = arith.addf %41, %42 : vector<4x16xf32>
    %44 = arith.addf %36, %39 : vector<4x16xf32>
    %45 = arith.negf %44 : vector<4x16xf32>
    %46 = math.exp %45 : vector<4x16xf32>
    %cst_53 = arith.constant 1.000000e+00 : f32
    %47 = vector.broadcast %cst_53 : f32 to vector<4x16xf32>
    %48 = arith.addf %47, %46 : vector<4x16xf32>
    %49 = arith.divf %47, %48 : vector<4x16xf32>
    %50 = arith.addf %37, %40 : vector<4x16xf32>
    %51 = arith.negf %50 : vector<4x16xf32>
    %52 = math.exp %51 : vector<4x16xf32>
    %cst_54 = arith.constant 1.000000e+00 : f32
    %53 = vector.broadcast %cst_54 : f32 to vector<4x16xf32>
    %54 = arith.addf %53, %52 : vector<4x16xf32>
    %55 = arith.divf %53, %54 : vector<4x16xf32>
    %56 = arith.mulf %49, %43 : vector<4x16xf32>
    %57 = arith.addf %38, %56 : vector<4x16xf32>
    %58 = math.tanh %57 : vector<4x16xf32>
    %cst_55 = arith.constant 1.000000e+00 : f32
    %59 = vector.broadcast %cst_55 : f32 to vector<4x16xf32>
    %60 = arith.subf %59, %55 : vector<4x16xf32>
    %61 = arith.mulf %60, %58 : vector<4x16xf32>
    %62 = arith.mulf %55, %32 : vector<4x16xf32>
    %63 = arith.addf %61, %62 : vector<4x16xf32>
    %c0_56 = arith.constant 0 : index
    %c0_57 = arith.constant 0 : index
    %64 = vector.load %arg2[%c0_56, %c0_57] : memref<32x1xf32, #tpu.memory_space<vmem>>, vector<4x1xf32>
    %65 = vector.broadcast %64 : vector<4x1xf32> to vector<4x16xf32>
    %66 = arith.mulf %63, %65 : vector<4x16xf32>
    %cst_58 = arith.constant 1.000000e+00 : f32
    %67 = vector.broadcast %cst_58 : f32 to vector<4x1xf32>
    %68 = arith.subf %67, %64 : vector<4x1xf32>
    %cst_59 = arith.constant -1.000000e+06 : f32
    %69 = vector.broadcast %cst_59 : f32 to vector<4x1xf32>
    %70 = arith.mulf %68, %69 : vector<4x1xf32>
    %71 = vector.broadcast %70 : vector<4x1xf32> to vector<4x16xf32>
    %72 = arith.addf %66, %71 : vector<4x16xf32>
    %73 = arith.maximumf %34, %72 : vector<4x16xf32>
    %c0_60 = arith.constant 0 : index
    %c0_61 = arith.constant 0 : index
    %74 = vector.load %arg21[%c0_60, %c0_61] : memref<32x16xf32, #tpu.memory_space<vmem>>, vector<4x16xf32>
    %c0_62 = arith.constant 0 : index
    %c0_63 = arith.constant 0 : index
    %75 = vector.load %arg22[%c0_62, %c0_63] : memref<32x16xf32, #tpu.memory_space<vmem>>, vector<4x16xf32>
    %c0_64 = arith.constant 0 : index
    %c0_65 = arith.constant 0 : index
    %76 = vector.load %arg23[%c0_64, %c0_65] : memref<32x16xf32, #tpu.memory_space<vmem>>, vector<4x16xf32>
    %cst_66 = arith.constant dense<0.000000e+00> : vector<4x16xf32>
    %77 = tpu.matmul %33, %27, %cst_66 {dimension_numbers = #tpu.dot_dimension_numbers<[1], [0], [0], [1], [0, 0, 1, 1], [], []>} : vector<4x16xf32>, vector<16x16xf32>, vector<4x16xf32> -> vector<4x16xf32>
    %cst_67 = arith.constant dense<0.000000e+00> : vector<4x16xf32>
    %78 = tpu.matmul %33, %28, %cst_67 {dimension_numbers = #tpu.dot_dimension_numbers<[1], [0], [0], [1], [0, 0, 1, 1], [], []>} : vector<4x16xf32>, vector<16x16xf32>, vector<4x16xf32> -> vector<4x16xf32>
    %cst_68 = arith.constant dense<0.000000e+00> : vector<4x16xf32>
    %79 = tpu.matmul %33, %29, %cst_68 {dimension_numbers = #tpu.dot_dimension_numbers<[1], [0], [0], [1], [0, 0, 1, 1], [], []>} : vector<4x16xf32>, vector<16x16xf32>, vector<4x16xf32> -> vector<4x16xf32>
    %80 = vector.broadcast %31 : vector<1x16xf32> to vector<4x16xf32>
    %81 = arith.addf %79, %80 : vector<4x16xf32>
    %82 = arith.addf %74, %77 : vector<4x16xf32>
    %83 = arith.negf %82 : vector<4x16xf32>
    %84 = math.exp %83 : vector<4x16xf32>
    %cst_69 = arith.constant 1.000000e+00 : f32
    %85 = vector.broadcast %cst_69 : f32 to vector<4x16xf32>
    %86 = arith.addf %85, %84 : vector<4x16xf32>
    %87 = arith.divf %85, %86 : vector<4x16xf32>
    %88 = arith.addf %75, %78 : vector<4x16xf32>
    %89 = arith.negf %88 : vector<4x16xf32>
    %90 = math.exp %89 : vector<4x16xf32>
    %cst_70 = arith.constant 1.000000e+00 : f32
    %91 = vector.broadcast %cst_70 : f32 to vector<4x16xf32>
    %92 = arith.addf %91, %90 : vector<4x16xf32>
    %93 = arith.divf %91, %92 : vector<4x16xf32>
    %94 = arith.mulf %87, %81 : vector<4x16xf32>
    %95 = arith.addf %76, %94 : vector<4x16xf32>
    %96 = math.tanh %95 : vector<4x16xf32>
    %cst_71 = arith.constant 1.000000e+00 : f32
    %97 = vector.broadcast %cst_71 : f32 to vector<4x16xf32>
    %98 = arith.subf %97, %93 : vector<4x16xf32>
    %99 = arith.mulf %98, %96 : vector<4x16xf32>
    %100 = arith.mulf %93, %33 : vector<4x16xf32>
    %101 = arith.addf %99, %100 : vector<4x16xf32>
    %c28 = arith.constant 28 : index
    %c0_72 = arith.constant 0 : index
    %102 = vector.load %arg2[%c28, %c0_72] : memref<32x1xf32, #tpu.memory_space<vmem>>, vector<4x1xf32>
    %103 = vector.broadcast %102 : vector<4x1xf32> to vector<4x16xf32>
    %104 = arith.mulf %101, %103 : vector<4x16xf32>
    %cst_73 = arith.constant 1.000000e+00 : f32
    %105 = vector.broadcast %cst_73 : f32 to vector<4x1xf32>
    %106 = arith.subf %105, %102 : vector<4x1xf32>
    %cst_74 = arith.constant -1.000000e+06 : f32
    %107 = vector.broadcast %cst_74 : f32 to vector<4x1xf32>
    %108 = arith.mulf %106, %107 : vector<4x1xf32>
    %109 = vector.broadcast %108 : vector<4x1xf32> to vector<4x16xf32>
    %110 = arith.addf %104, %109 : vector<4x16xf32>
    %111 = arith.maximumf %35, %110 : vector<4x16xf32>
    %c4 = arith.constant 4 : index
    %c0_75 = arith.constant 0 : index
    %112 = vector.load %arg18[%c4, %c0_75] : memref<32x16xf32, #tpu.memory_space<vmem>>, vector<4x16xf32>
    %c4_76 = arith.constant 4 : index
    %c0_77 = arith.constant 0 : index
    %113 = vector.load %arg19[%c4_76, %c0_77] : memref<32x16xf32, #tpu.memory_space<vmem>>, vector<4x16xf32>
    %c4_78 = arith.constant 4 : index
    %c0_79 = arith.constant 0 : index
    %114 = vector.load %arg20[%c4_78, %c0_79] : memref<32x16xf32, #tpu.memory_space<vmem>>, vector<4x16xf32>
    %cst_80 = arith.constant dense<0.000000e+00> : vector<4x16xf32>
    %115 = tpu.matmul %63, %24, %cst_80 {dimension_numbers = #tpu.dot_dimension_numbers<[1], [0], [0], [1], [0, 0, 1, 1], [], []>} : vector<4x16xf32>, vector<16x16xf32>, vector<4x16xf32> -> vector<4x16xf32>
    %cst_81 = arith.constant dense<0.000000e+00> : vector<4x16xf32>
    %116 = tpu.matmul %63, %25, %cst_81 {dimension_numbers = #tpu.dot_dimension_numbers<[1], [0], [0], [1], [0, 0, 1, 1], [], []>} : vector<4x16xf32>, vector<16x16xf32>, vector<4x16xf32> -> vector<4x16xf32>
    %cst_82 = arith.constant dense<0.000000e+00> : vector<4x16xf32>
    %117 = tpu.matmul %63, %26, %cst_82 {dimension_numbers = #tpu.dot_dimension_numbers<[1], [0], [0], [1], [0, 0, 1, 1], [], []>} : vector<4x16xf32>, vector<16x16xf32>, vector<4x16xf32> -> vector<4x16xf32>
    %118 = vector.broadcast %30 : vector<1x16xf32> to vector<4x16xf32>
    %119 = arith.addf %117, %118 : vector<4x16xf32>
    %120 = arith.addf %112, %115 : vector<4x16xf32>
    %121 = arith.negf %120 : vector<4x16xf32>
    %122 = math.exp %121 : vector<4x16xf32>
    %cst_83 = arith.constant 1.000000e+00 : f32
    %123 = vector.broadcast %cst_83 : f32 to vector<4x16xf32>
    %124 = arith.addf %123, %122 : vector<4x16xf32>
    %125 = arith.divf %123, %124 : vector<4x16xf32>
    %126 = arith.addf %113, %116 : vector<4x16xf32>
    %127 = arith.negf %126 : vector<4x16xf32>
    %128 = math.exp %127 : vector<4x16xf32>
    %cst_84 = arith.constant 1.000000e+00 : f32
    %129 = vector.broadcast %cst_84 : f32 to vector<4x16xf32>
    %130 = arith.addf %129, %128 : vector<4x16xf32>
    %131 = arith.divf %129, %130 : vector<4x16xf32>
    %132 = arith.mulf %125, %119 : vector<4x16xf32>
    %133 = arith.addf %114, %132 : vector<4x16xf32>
    %134 = math.tanh %133 : vector<4x16xf32>
    %cst_85 = arith.constant 1.000000e+00 : f32
    %135 = vector.broadcast %cst_85 : f32 to vector<4x16xf32>
    %136 = arith.subf %135, %131 : vector<4x16xf32>
    %137 = arith.mulf %136, %134 : vector<4x16xf32>
    %138 = arith.mulf %131, %63 : vector<4x16xf32>
    %139 = arith.addf %137, %138 : vector<4x16xf32>
    %c4_86 = arith.constant 4 : index
    %c0_87 = arith.constant 0 : index
    %140 = vector.load %arg2[%c4_86, %c0_87] : memref<32x1xf32, #tpu.memory_space<vmem>>, vector<4x1xf32>
    %141 = vector.broadcast %140 : vector<4x1xf32> to vector<4x16xf32>
    %142 = arith.mulf %139, %141 : vector<4x16xf32>
    %cst_88 = arith.constant 1.000000e+00 : f32
    %143 = vector.broadcast %cst_88 : f32 to vector<4x1xf32>
    %144 = arith.subf %143, %140 : vector<4x1xf32>
    %cst_89 = arith.constant -1.000000e+06 : f32
    %145 = vector.broadcast %cst_89 : f32 to vector<4x1xf32>
    %146 = arith.mulf %144, %145 : vector<4x1xf32>
    %147 = vector.broadcast %146 : vector<4x1xf32> to vector<4x16xf32>
    %148 = arith.addf %142, %147 : vector<4x16xf32>
    %149 = arith.maximumf %73, %148 : vector<4x16xf32>
    %c4_90 = arith.constant 4 : index
    %c0_91 = arith.constant 0 : index
    %150 = vector.load %arg21[%c4_90, %c0_91] : memref<32x16xf32, #tpu.memory_space<vmem>>, vector<4x16xf32>
    %c4_92 = arith.constant 4 : index
    %c0_93 = arith.constant 0 : index
    %151 = vector.load %arg22[%c4_92, %c0_93] : memref<32x16xf32, #tpu.memory_space<vmem>>, vector<4x16xf32>
    %c4_94 = arith.constant 4 : index
    %c0_95 = arith.constant 0 : index
    %152 = vector.load %arg23[%c4_94, %c0_95] : memref<32x16xf32, #tpu.memory_space<vmem>>, vector<4x16xf32>
    %cst_96 = arith.constant dense<0.000000e+00> : vector<4x16xf32>
    %153 = tpu.matmul %101, %27, %cst_96 {dimension_numbers = #tpu.dot_dimension_numbers<[1], [0], [0], [1], [0, 0, 1, 1], [], []>} : vector<4x16xf32>, vector<16x16xf32>, vector<4x16xf32> -> vector<4x16xf32>
    %cst_97 = arith.constant dense<0.000000e+00> : vector<4x16xf32>
    %154 = tpu.matmul %101, %28, %cst_97 {dimension_numbers = #tpu.dot_dimension_numbers<[1], [0], [0], [1], [0, 0, 1, 1], [], []>} : vector<4x16xf32>, vector<16x16xf32>, vector<4x16xf32> -> vector<4x16xf32>
    %cst_98 = arith.constant dense<0.000000e+00> : vector<4x16xf32>
    %155 = tpu.matmul %101, %29, %cst_98 {dimension_numbers = #tpu.dot_dimension_numbers<[1], [0], [0], [1], [0, 0, 1, 1], [], []>} : vector<4x16xf32>, vector<16x16xf32>, vector<4x16xf32> -> vector<4x16xf32>
    %156 = vector.broadcast %31 : vector<1x16xf32> to vector<4x16xf32>
    %157 = arith.addf %155, %156 : vector<4x16xf32>
    %158 = arith.addf %150, %153 : vector<4x16xf32>
    %159 = arith.negf %158 : vector<4x16xf32>
    %160 = math.exp %159 : vector<4x16xf32>
    %cst_99 = arith.constant 1.000000e+00 : f32
    %161 = vector.broadcast %cst_99 : f32 to vector<4x16xf32>
    %162 = arith.addf %161, %160 : vector<4x16xf32>
    %163 = arith.divf %161, %162 : vector<4x16xf32>
    %164 = arith.addf %151, %154 : vector<4x16xf32>
    %165 = arith.negf %164 : vector<4x16xf32>
    %166 = math.exp %165 : vector<4x16xf32>
    %cst_100 = arith.constant 1.000000e+00 : f32
    %167 = vector.broadcast %cst_100 : f32 to vector<4x16xf32>
    %168 = arith.addf %167, %166 : vector<4x16xf32>
    %169 = arith.divf %167, %168 : vector<4x16xf32>
    %170 = arith.mulf %163, %157 : vector<4x16xf32>
    %171 = arith.addf %152, %170 : vector<4x16xf32>
    %172 = math.tanh %171 : vector<4x16xf32>
    %cst_101 = arith.constant 1.000000e+00 : f32
    %173 = vector.broadcast %cst_101 : f32 to vector<4x16xf32>
    %174 = arith.subf %173, %169 : vector<4x16xf32>
    %175 = arith.mulf %174, %172 : vector<4x16xf32>
    %176 = arith.mulf %169, %101 : vector<4x16xf32>
    %177 = arith.addf %175, %176 : vector<4x16xf32>
    %c24 = arith.constant 24 : index
    %c0_102 = arith.constant 0 : index
    %178 = vector.load %arg2[%c24, %c0_102] : memref<32x1xf32, #tpu.memory_space<vmem>>, vector<4x1xf32>
    %179 = vector.broadcast %178 : vector<4x1xf32> to vector<4x16xf32>
    %180 = arith.mulf %177, %179 : vector<4x16xf32>
    %cst_103 = arith.constant 1.000000e+00 : f32
    %181 = vector.broadcast %cst_103 : f32 to vector<4x1xf32>
    %182 = arith.subf %181, %178 : vector<4x1xf32>
    %cst_104 = arith.constant -1.000000e+06 : f32
    %183 = vector.broadcast %cst_104 : f32 to vector<4x1xf32>
    %184 = arith.mulf %182, %183 : vector<4x1xf32>
    %185 = vector.broadcast %184 : vector<4x1xf32> to vector<4x16xf32>
    %186 = arith.addf %180, %185 : vector<4x16xf32>
    %187 = arith.maximumf %111, %186 : vector<4x16xf32>
    %c8 = arith.constant 8 : index
    %c0_105 = arith.constant 0 : index
    %188 = vector.load %arg18[%c8, %c0_105] : memref<32x16xf32, #tpu.memory_space<vmem>>, vector<4x16xf32>
    %c8_106 = arith.constant 8 : index
    %c0_107 = arith.constant 0 : index
    %189 = vector.load %arg19[%c8_106, %c0_107] : memref<32x16xf32, #tpu.memory_space<vmem>>, vector<4x16xf32>
    %c8_108 = arith.constant 8 : index
    %c0_109 = arith.constant 0 : index
    %190 = vector.load %arg20[%c8_108, %c0_109] : memref<32x16xf32, #tpu.memory_space<vmem>>, vector<4x16xf32>
    %cst_110 = arith.constant dense<0.000000e+00> : vector<4x16xf32>
    %191 = tpu.matmul %139, %24, %cst_110 {dimension_numbers = #tpu.dot_dimension_numbers<[1], [0], [0], [1], [0, 0, 1, 1], [], []>} : vector<4x16xf32>, vector<16x16xf32>, vector<4x16xf32> -> vector<4x16xf32>
    %cst_111 = arith.constant dense<0.000000e+00> : vector<4x16xf32>
    %192 = tpu.matmul %139, %25, %cst_111 {dimension_numbers = #tpu.dot_dimension_numbers<[1], [0], [0], [1], [0, 0, 1, 1], [], []>} : vector<4x16xf32>, vector<16x16xf32>, vector<4x16xf32> -> vector<4x16xf32>
    %cst_112 = arith.constant dense<0.000000e+00> : vector<4x16xf32>
    %193 = tpu.matmul %139, %26, %cst_112 {dimension_numbers = #tpu.dot_dimension_numbers<[1], [0], [0], [1], [0, 0, 1, 1], [], []>} : vector<4x16xf32>, vector<16x16xf32>, vector<4x16xf32> -> vector<4x16xf32>
    %194 = vector.broadcast %30 : vector<1x16xf32> to vector<4x16xf32>
    %195 = arith.addf %193, %194 : vector<4x16xf32>
    %196 = arith.addf %188, %191 : vector<4x16xf32>
    %197 = arith.negf %196 : vector<4x16xf32>
    %198 = math.exp %197 : vector<4x16xf32>
    %cst_113 = arith.constant 1.000000e+00 : f32
    %199 = vector.broadcast %cst_113 : f32 to vector<4x16xf32>
    %200 = arith.addf %199, %198 : vector<4x16xf32>
    %201 = arith.divf %199, %200 : vector<4x16xf32>
    %202 = arith.addf %189, %192 : vector<4x16xf32>
    %203 = arith.negf %202 : vector<4x16xf32>
    %204 = math.exp %203 : vector<4x16xf32>
    %cst_114 = arith.constant 1.000000e+00 : f32
    %205 = vector.broadcast %cst_114 : f32 to vector<4x16xf32>
    %206 = arith.addf %205, %204 : vector<4x16xf32>
    %207 = arith.divf %205, %206 : vector<4x16xf32>
    %208 = arith.mulf %201, %195 : vector<4x16xf32>
    %209 = arith.addf %190, %208 : vector<4x16xf32>
    %210 = math.tanh %209 : vector<4x16xf32>
    %cst_115 = arith.constant 1.000000e+00 : f32
    %211 = vector.broadcast %cst_115 : f32 to vector<4x16xf32>
    %212 = arith.subf %211, %207 : vector<4x16xf32>
    %213 = arith.mulf %212, %210 : vector<4x16xf32>
    %214 = arith.mulf %207, %139 : vector<4x16xf32>
    %215 = arith.addf %213, %214 : vector<4x16xf32>
    %c8_116 = arith.constant 8 : index
    %c0_117 = arith.constant 0 : index
    %216 = vector.load %arg2[%c8_116, %c0_117] : memref<32x1xf32, #tpu.memory_space<vmem>>, vector<4x1xf32>
    %217 = vector.broadcast %216 : vector<4x1xf32> to vector<4x16xf32>
    %218 = arith.mulf %215, %217 : vector<4x16xf32>
    %cst_118 = arith.constant 1.000000e+00 : f32
    %219 = vector.broadcast %cst_118 : f32 to vector<4x1xf32>
    %220 = arith.subf %219, %216 : vector<4x1xf32>
    %cst_119 = arith.constant -1.000000e+06 : f32
    %221 = vector.broadcast %cst_119 : f32 to vector<4x1xf32>
    %222 = arith.mulf %220, %221 : vector<4x1xf32>
    %223 = vector.broadcast %222 : vector<4x1xf32> to vector<4x16xf32>
    %224 = arith.addf %218, %223 : vector<4x16xf32>
    %225 = arith.maximumf %149, %224 : vector<4x16xf32>
    %c8_120 = arith.constant 8 : index
    %c0_121 = arith.constant 0 : index
    %226 = vector.load %arg21[%c8_120, %c0_121] : memref<32x16xf32, #tpu.memory_space<vmem>>, vector<4x16xf32>
    %c8_122 = arith.constant 8 : index
    %c0_123 = arith.constant 0 : index
    %227 = vector.load %arg22[%c8_122, %c0_123] : memref<32x16xf32, #tpu.memory_space<vmem>>, vector<4x16xf32>
    %c8_124 = arith.constant 8 : index
    %c0_125 = arith.constant 0 : index
    %228 = vector.load %arg23[%c8_124, %c0_125] : memref<32x16xf32, #tpu.memory_space<vmem>>, vector<4x16xf32>
    %cst_126 = arith.constant dense<0.000000e+00> : vector<4x16xf32>
    %229 = tpu.matmul %177, %27, %cst_126 {dimension_numbers = #tpu.dot_dimension_numbers<[1], [0], [0], [1], [0, 0, 1, 1], [], []>} : vector<4x16xf32>, vector<16x16xf32>, vector<4x16xf32> -> vector<4x16xf32>
    %cst_127 = arith.constant dense<0.000000e+00> : vector<4x16xf32>
    %230 = tpu.matmul %177, %28, %cst_127 {dimension_numbers = #tpu.dot_dimension_numbers<[1], [0], [0], [1], [0, 0, 1, 1], [], []>} : vector<4x16xf32>, vector<16x16xf32>, vector<4x16xf32> -> vector<4x16xf32>
    %cst_128 = arith.constant dense<0.000000e+00> : vector<4x16xf32>
    %231 = tpu.matmul %177, %29, %cst_128 {dimension_numbers = #tpu.dot_dimension_numbers<[1], [0], [0], [1], [0, 0, 1, 1], [], []>} : vector<4x16xf32>, vector<16x16xf32>, vector<4x16xf32> -> vector<4x16xf32>
    %232 = vector.broadcast %31 : vector<1x16xf32> to vector<4x16xf32>
    %233 = arith.addf %231, %232 : vector<4x16xf32>
    %234 = arith.addf %226, %229 : vector<4x16xf32>
    %235 = arith.negf %234 : vector<4x16xf32>
    %236 = math.exp %235 : vector<4x16xf32>
    %cst_129 = arith.constant 1.000000e+00 : f32
    %237 = vector.broadcast %cst_129 : f32 to vector<4x16xf32>
    %238 = arith.addf %237, %236 : vector<4x16xf32>
    %239 = arith.divf %237, %238 : vector<4x16xf32>
    %240 = arith.addf %227, %230 : vector<4x16xf32>
    %241 = arith.negf %240 : vector<4x16xf32>
    %242 = math.exp %241 : vector<4x16xf32>
    %cst_130 = arith.constant 1.000000e+00 : f32
    %243 = vector.broadcast %cst_130 : f32 to vector<4x16xf32>
    %244 = arith.addf %243, %242 : vector<4x16xf32>
    %245 = arith.divf %243, %244 : vector<4x16xf32>
    %246 = arith.mulf %239, %233 : vector<4x16xf32>
    %247 = arith.addf %228, %246 : vector<4x16xf32>
    %248 = math.tanh %247 : vector<4x16xf32>
    %cst_131 = arith.constant 1.000000e+00 : f32
    %249 = vector.broadcast %cst_131 : f32 to vector<4x16xf32>
    %250 = arith.subf %249, %245 : vector<4x16xf32>
    %251 = arith.mulf %250, %248 : vector<4x16xf32>
    %252 = arith.mulf %245, %177 : vector<4x16xf32>
    %253 = arith.addf %251, %252 : vector<4x16xf32>
    %c20 = arith.constant 20 : index
    %c0_132 = arith.constant 0 : index
    %254 = vector.load %arg2[%c20, %c0_132] : memref<32x1xf32, #tpu.memory_space<vmem>>, vector<4x1xf32>
    %255 = vector.broadcast %254 : vector<4x1xf32> to vector<4x16xf32>
    %256 = arith.mulf %253, %255 : vector<4x16xf32>
    %cst_133 = arith.constant 1.000000e+00 : f32
    %257 = vector.broadcast %cst_133 : f32 to vector<4x1xf32>
    %258 = arith.subf %257, %254 : vector<4x1xf32>
    %cst_134 = arith.constant -1.000000e+06 : f32
    %259 = vector.broadcast %cst_134 : f32 to vector<4x1xf32>
    %260 = arith.mulf %258, %259 : vector<4x1xf32>
    %261 = vector.broadcast %260 : vector<4x1xf32> to vector<4x16xf32>
    %262 = arith.addf %256, %261 : vector<4x16xf32>
    %263 = arith.maximumf %187, %262 : vector<4x16xf32>
    %c12 = arith.constant 12 : index
    %c0_135 = arith.constant 0 : index
    %264 = vector.load %arg18[%c12, %c0_135] : memref<32x16xf32, #tpu.memory_space<vmem>>, vector<4x16xf32>
    %c12_136 = arith.constant 12 : index
    %c0_137 = arith.constant 0 : index
    %265 = vector.load %arg19[%c12_136, %c0_137] : memref<32x16xf32, #tpu.memory_space<vmem>>, vector<4x16xf32>
    %c12_138 = arith.constant 12 : index
    %c0_139 = arith.constant 0 : index
    %266 = vector.load %arg20[%c12_138, %c0_139] : memref<32x16xf32, #tpu.memory_space<vmem>>, vector<4x16xf32>
    %cst_140 = arith.constant dense<0.000000e+00> : vector<4x16xf32>
    %267 = tpu.matmul %215, %24, %cst_140 {dimension_numbers = #tpu.dot_dimension_numbers<[1], [0], [0], [1], [0, 0, 1, 1], [], []>} : vector<4x16xf32>, vector<16x16xf32>, vector<4x16xf32> -> vector<4x16xf32>
    %cst_141 = arith.constant dense<0.000000e+00> : vector<4x16xf32>
    %268 = tpu.matmul %215, %25, %cst_141 {dimension_numbers = #tpu.dot_dimension_numbers<[1], [0], [0], [1], [0, 0, 1, 1], [], []>} : vector<4x16xf32>, vector<16x16xf32>, vector<4x16xf32> -> vector<4x16xf32>
    %cst_142 = arith.constant dense<0.000000e+00> : vector<4x16xf32>
    %269 = tpu.matmul %215, %26, %cst_142 {dimension_numbers = #tpu.dot_dimension_numbers<[1], [0], [0], [1], [0, 0, 1, 1], [], []>} : vector<4x16xf32>, vector<16x16xf32>, vector<4x16xf32> -> vector<4x16xf32>
    %270 = vector.broadcast %30 : vector<1x16xf32> to vector<4x16xf32>
    %271 = arith.addf %269, %270 : vector<4x16xf32>
    %272 = arith.addf %264, %267 : vector<4x16xf32>
    %273 = arith.negf %272 : vector<4x16xf32>
    %274 = math.exp %273 : vector<4x16xf32>
    %cst_143 = arith.constant 1.000000e+00 : f32
    %275 = vector.broadcast %cst_143 : f32 to vector<4x16xf32>
    %276 = arith.addf %275, %274 : vector<4x16xf32>
    %277 = arith.divf %275, %276 : vector<4x16xf32>
    %278 = arith.addf %265, %268 : vector<4x16xf32>
    %279 = arith.negf %278 : vector<4x16xf32>
    %280 = math.exp %279 : vector<4x16xf32>
    %cst_144 = arith.constant 1.000000e+00 : f32
    %281 = vector.broadcast %cst_144 : f32 to vector<4x16xf32>
    %282 = arith.addf %281, %280 : vector<4x16xf32>
    %283 = arith.divf %281, %282 : vector<4x16xf32>
    %284 = arith.mulf %277, %271 : vector<4x16xf32>
    %285 = arith.addf %266, %284 : vector<4x16xf32>
    %286 = math.tanh %285 : vector<4x16xf32>
    %cst_145 = arith.constant 1.000000e+00 : f32
    %287 = vector.broadcast %cst_145 : f32 to vector<4x16xf32>
    %288 = arith.subf %287, %283 : vector<4x16xf32>
    %289 = arith.mulf %288, %286 : vector<4x16xf32>
    %290 = arith.mulf %283, %215 : vector<4x16xf32>
    %291 = arith.addf %289, %290 : vector<4x16xf32>
    %c12_146 = arith.constant 12 : index
    %c0_147 = arith.constant 0 : index
    %292 = vector.load %arg2[%c12_146, %c0_147] : memref<32x1xf32, #tpu.memory_space<vmem>>, vector<4x1xf32>
    %293 = vector.broadcast %292 : vector<4x1xf32> to vector<4x16xf32>
    %294 = arith.mulf %291, %293 : vector<4x16xf32>
    %cst_148 = arith.constant 1.000000e+00 : f32
    %295 = vector.broadcast %cst_148 : f32 to vector<4x1xf32>
    %296 = arith.subf %295, %292 : vector<4x1xf32>
    %cst_149 = arith.constant -1.000000e+06 : f32
    %297 = vector.broadcast %cst_149 : f32 to vector<4x1xf32>
    %298 = arith.mulf %296, %297 : vector<4x1xf32>
    %299 = vector.broadcast %298 : vector<4x1xf32> to vector<4x16xf32>
    %300 = arith.addf %294, %299 : vector<4x16xf32>
    %301 = arith.maximumf %225, %300 : vector<4x16xf32>
    %c12_150 = arith.constant 12 : index
    %c0_151 = arith.constant 0 : index
    %302 = vector.load %arg21[%c12_150, %c0_151] : memref<32x16xf32, #tpu.memory_space<vmem>>, vector<4x16xf32>
    %c12_152 = arith.constant 12 : index
    %c0_153 = arith.constant 0 : index
    %303 = vector.load %arg22[%c12_152, %c0_153] : memref<32x16xf32, #tpu.memory_space<vmem>>, vector<4x16xf32>
    %c12_154 = arith.constant 12 : index
    %c0_155 = arith.constant 0 : index
    %304 = vector.load %arg23[%c12_154, %c0_155] : memref<32x16xf32, #tpu.memory_space<vmem>>, vector<4x16xf32>
    %cst_156 = arith.constant dense<0.000000e+00> : vector<4x16xf32>
    %305 = tpu.matmul %253, %27, %cst_156 {dimension_numbers = #tpu.dot_dimension_numbers<[1], [0], [0], [1], [0, 0, 1, 1], [], []>} : vector<4x16xf32>, vector<16x16xf32>, vector<4x16xf32> -> vector<4x16xf32>
    %cst_157 = arith.constant dense<0.000000e+00> : vector<4x16xf32>
    %306 = tpu.matmul %253, %28, %cst_157 {dimension_numbers = #tpu.dot_dimension_numbers<[1], [0], [0], [1], [0, 0, 1, 1], [], []>} : vector<4x16xf32>, vector<16x16xf32>, vector<4x16xf32> -> vector<4x16xf32>
    %cst_158 = arith.constant dense<0.000000e+00> : vector<4x16xf32>
    %307 = tpu.matmul %253, %29, %cst_158 {dimension_numbers = #tpu.dot_dimension_numbers<[1], [0], [0], [1], [0, 0, 1, 1], [], []>} : vector<4x16xf32>, vector<16x16xf32>, vector<4x16xf32> -> vector<4x16xf32>
    %308 = vector.broadcast %31 : vector<1x16xf32> to vector<4x16xf32>
    %309 = arith.addf %307, %308 : vector<4x16xf32>
    %310 = arith.addf %302, %305 : vector<4x16xf32>
    %311 = arith.negf %310 : vector<4x16xf32>
    %312 = math.exp %311 : vector<4x16xf32>
    %cst_159 = arith.constant 1.000000e+00 : f32
    %313 = vector.broadcast %cst_159 : f32 to vector<4x16xf32>
    %314 = arith.addf %313, %312 : vector<4x16xf32>
    %315 = arith.divf %313, %314 : vector<4x16xf32>
    %316 = arith.addf %303, %306 : vector<4x16xf32>
    %317 = arith.negf %316 : vector<4x16xf32>
    %318 = math.exp %317 : vector<4x16xf32>
    %cst_160 = arith.constant 1.000000e+00 : f32
    %319 = vector.broadcast %cst_160 : f32 to vector<4x16xf32>
    %320 = arith.addf %319, %318 : vector<4x16xf32>
    %321 = arith.divf %319, %320 : vector<4x16xf32>
    %322 = arith.mulf %315, %309 : vector<4x16xf32>
    %323 = arith.addf %304, %322 : vector<4x16xf32>
    %324 = math.tanh %323 : vector<4x16xf32>
    %cst_161 = arith.constant 1.000000e+00 : f32
    %325 = vector.broadcast %cst_161 : f32 to vector<4x16xf32>
    %326 = arith.subf %325, %321 : vector<4x16xf32>
    %327 = arith.mulf %326, %324 : vector<4x16xf32>
    %328 = arith.mulf %321, %253 : vector<4x16xf32>
    %329 = arith.addf %327, %328 : vector<4x16xf32>
    %c16 = arith.constant 16 : index
    %c0_162 = arith.constant 0 : index
    %330 = vector.load %arg2[%c16, %c0_162] : memref<32x1xf32, #tpu.memory_space<vmem>>, vector<4x1xf32>
    %331 = vector.broadcast %330 : vector<4x1xf32> to vector<4x16xf32>
    %332 = arith.mulf %329, %331 : vector<4x16xf32>
    %cst_163 = arith.constant 1.000000e+00 : f32
    %333 = vector.broadcast %cst_163 : f32 to vector<4x1xf32>
    %334 = arith.subf %333, %330 : vector<4x1xf32>
    %cst_164 = arith.constant -1.000000e+06 : f32
    %335 = vector.broadcast %cst_164 : f32 to vector<4x1xf32>
    %336 = arith.mulf %334, %335 : vector<4x1xf32>
    %337 = vector.broadcast %336 : vector<4x1xf32> to vector<4x16xf32>
    %338 = arith.addf %332, %337 : vector<4x16xf32>
    %339 = arith.maximumf %263, %338 : vector<4x16xf32>
    %c16_165 = arith.constant 16 : index
    %c0_166 = arith.constant 0 : index
    %340 = vector.load %arg18[%c16_165, %c0_166] : memref<32x16xf32, #tpu.memory_space<vmem>>, vector<4x16xf32>
    %c16_167 = arith.constant 16 : index
    %c0_168 = arith.constant 0 : index
    %341 = vector.load %arg19[%c16_167, %c0_168] : memref<32x16xf32, #tpu.memory_space<vmem>>, vector<4x16xf32>
    %c16_169 = arith.constant 16 : index
    %c0_170 = arith.constant 0 : index
    %342 = vector.load %arg20[%c16_169, %c0_170] : memref<32x16xf32, #tpu.memory_space<vmem>>, vector<4x16xf32>
    %cst_171 = arith.constant dense<0.000000e+00> : vector<4x16xf32>
    %343 = tpu.matmul %291, %24, %cst_171 {dimension_numbers = #tpu.dot_dimension_numbers<[1], [0], [0], [1], [0, 0, 1, 1], [], []>} : vector<4x16xf32>, vector<16x16xf32>, vector<4x16xf32> -> vector<4x16xf32>
    %cst_172 = arith.constant dense<0.000000e+00> : vector<4x16xf32>
    %344 = tpu.matmul %291, %25, %cst_172 {dimension_numbers = #tpu.dot_dimension_numbers<[1], [0], [0], [1], [0, 0, 1, 1], [], []>} : vector<4x16xf32>, vector<16x16xf32>, vector<4x16xf32> -> vector<4x16xf32>
    %cst_173 = arith.constant dense<0.000000e+00> : vector<4x16xf32>
    %345 = tpu.matmul %291, %26, %cst_173 {dimension_numbers = #tpu.dot_dimension_numbers<[1], [0], [0], [1], [0, 0, 1, 1], [], []>} : vector<4x16xf32>, vector<16x16xf32>, vector<4x16xf32> -> vector<4x16xf32>
    %346 = vector.broadcast %30 : vector<1x16xf32> to vector<4x16xf32>
    %347 = arith.addf %345, %346 : vector<4x16xf32>
    %348 = arith.addf %340, %343 : vector<4x16xf32>
    %349 = arith.negf %348 : vector<4x16xf32>
    %350 = math.exp %349 : vector<4x16xf32>
    %cst_174 = arith.constant 1.000000e+00 : f32
    %351 = vector.broadcast %cst_174 : f32 to vector<4x16xf32>
    %352 = arith.addf %351, %350 : vector<4x16xf32>
    %353 = arith.divf %351, %352 : vector<4x16xf32>
    %354 = arith.addf %341, %344 : vector<4x16xf32>
    %355 = arith.negf %354 : vector<4x16xf32>
    %356 = math.exp %355 : vector<4x16xf32>
    %cst_175 = arith.constant 1.000000e+00 : f32
    %357 = vector.broadcast %cst_175 : f32 to vector<4x16xf32>
    %358 = arith.addf %357, %356 : vector<4x16xf32>
    %359 = arith.divf %357, %358 : vector<4x16xf32>
    %360 = arith.mulf %353, %347 : vector<4x16xf32>
    %361 = arith.addf %342, %360 : vector<4x16xf32>
    %362 = math.tanh %361 : vector<4x16xf32>
    %cst_176 = arith.constant 1.000000e+00 : f32
    %363 = vector.broadcast %cst_176 : f32 to vector<4x16xf32>
    %364 = arith.subf %363, %359 : vector<4x16xf32>
    %365 = arith.mulf %364, %362 : vector<4x16xf32>
    %366 = arith.mulf %359, %291 : vector<4x16xf32>
    %367 = arith.addf %365, %366 : vector<4x16xf32>
    %c16_177 = arith.constant 16 : index
    %c0_178 = arith.constant 0 : index
    %368 = vector.load %arg2[%c16_177, %c0_178] : memref<32x1xf32, #tpu.memory_space<vmem>>, vector<4x1xf32>
    %369 = vector.broadcast %368 : vector<4x1xf32> to vector<4x16xf32>
    %370 = arith.mulf %367, %369 : vector<4x16xf32>
    %cst_179 = arith.constant 1.000000e+00 : f32
    %371 = vector.broadcast %cst_179 : f32 to vector<4x1xf32>
    %372 = arith.subf %371, %368 : vector<4x1xf32>
    %cst_180 = arith.constant -1.000000e+06 : f32
    %373 = vector.broadcast %cst_180 : f32 to vector<4x1xf32>
    %374 = arith.mulf %372, %373 : vector<4x1xf32>
    %375 = vector.broadcast %374 : vector<4x1xf32> to vector<4x16xf32>
    %376 = arith.addf %370, %375 : vector<4x16xf32>
    %377 = arith.maximumf %301, %376 : vector<4x16xf32>
    %c16_181 = arith.constant 16 : index
    %c0_182 = arith.constant 0 : index
    %378 = vector.load %arg21[%c16_181, %c0_182] : memref<32x16xf32, #tpu.memory_space<vmem>>, vector<4x16xf32>
    %c16_183 = arith.constant 16 : index
    %c0_184 = arith.constant 0 : index
    %379 = vector.load %arg22[%c16_183, %c0_184] : memref<32x16xf32, #tpu.memory_space<vmem>>, vector<4x16xf32>
    %c16_185 = arith.constant 16 : index
    %c0_186 = arith.constant 0 : index
    %380 = vector.load %arg23[%c16_185, %c0_186] : memref<32x16xf32, #tpu.memory_space<vmem>>, vector<4x16xf32>
    %cst_187 = arith.constant dense<0.000000e+00> : vector<4x16xf32>
    %381 = tpu.matmul %329, %27, %cst_187 {dimension_numbers = #tpu.dot_dimension_numbers<[1], [0], [0], [1], [0, 0, 1, 1], [], []>} : vector<4x16xf32>, vector<16x16xf32>, vector<4x16xf32> -> vector<4x16xf32>
    %cst_188 = arith.constant dense<0.000000e+00> : vector<4x16xf32>
    %382 = tpu.matmul %329, %28, %cst_188 {dimension_numbers = #tpu.dot_dimension_numbers<[1], [0], [0], [1], [0, 0, 1, 1], [], []>} : vector<4x16xf32>, vector<16x16xf32>, vector<4x16xf32> -> vector<4x16xf32>
    %cst_189 = arith.constant dense<0.000000e+00> : vector<4x16xf32>
    %383 = tpu.matmul %329, %29, %cst_189 {dimension_numbers = #tpu.dot_dimension_numbers<[1], [0], [0], [1], [0, 0, 1, 1], [], []>} : vector<4x16xf32>, vector<16x16xf32>, vector<4x16xf32> -> vector<4x16xf32>
    %384 = vector.broadcast %31 : vector<1x16xf32> to vector<4x16xf32>
    %385 = arith.addf %383, %384 : vector<4x16xf32>
    %386 = arith.addf %378, %381 : vector<4x16xf32>
    %387 = arith.negf %386 : vector<4x16xf32>
    %388 = math.exp %387 : vector<4x16xf32>
    %cst_190 = arith.constant 1.000000e+00 : f32
    %389 = vector.broadcast %cst_190 : f32 to vector<4x16xf32>
    %390 = arith.addf %389, %388 : vector<4x16xf32>
    %391 = arith.divf %389, %390 : vector<4x16xf32>
    %392 = arith.addf %379, %382 : vector<4x16xf32>
    %393 = arith.negf %392 : vector<4x16xf32>
    %394 = math.exp %393 : vector<4x16xf32>
    %cst_191 = arith.constant 1.000000e+00 : f32
    %395 = vector.broadcast %cst_191 : f32 to vector<4x16xf32>
    %396 = arith.addf %395, %394 : vector<4x16xf32>
    %397 = arith.divf %395, %396 : vector<4x16xf32>
    %398 = arith.mulf %391, %385 : vector<4x16xf32>
    %399 = arith.addf %380, %398 : vector<4x16xf32>
    %400 = math.tanh %399 : vector<4x16xf32>
    %cst_192 = arith.constant 1.000000e+00 : f32
    %401 = vector.broadcast %cst_192 : f32 to vector<4x16xf32>
    %402 = arith.subf %401, %397 : vector<4x16xf32>
    %403 = arith.mulf %402, %400 : vector<4x16xf32>
    %404 = arith.mulf %397, %329 : vector<4x16xf32>
    %405 = arith.addf %403, %404 : vector<4x16xf32>
    %c12_193 = arith.constant 12 : index
    %c0_194 = arith.constant 0 : index
    %406 = vector.load %arg2[%c12_193, %c0_194] : memref<32x1xf32, #tpu.memory_space<vmem>>, vector<4x1xf32>
    %407 = vector.broadcast %406 : vector<4x1xf32> to vector<4x16xf32>
    %408 = arith.mulf %405, %407 : vector<4x16xf32>
    %cst_195 = arith.constant 1.000000e+00 : f32
    %409 = vector.broadcast %cst_195 : f32 to vector<4x1xf32>
    %410 = arith.subf %409, %406 : vector<4x1xf32>
    %cst_196 = arith.constant -1.000000e+06 : f32
    %411 = vector.broadcast %cst_196 : f32 to vector<4x1xf32>
    %412 = arith.mulf %410, %411 : vector<4x1xf32>
    %413 = vector.broadcast %412 : vector<4x1xf32> to vector<4x16xf32>
    %414 = arith.addf %408, %413 : vector<4x16xf32>
    %415 = arith.maximumf %339, %414 : vector<4x16xf32>
    %c20_197 = arith.constant 20 : index
    %c0_198 = arith.constant 0 : index
    %416 = vector.load %arg18[%c20_197, %c0_198] : memref<32x16xf32, #tpu.memory_space<vmem>>, vector<4x16xf32>
    %c20_199 = arith.constant 20 : index
    %c0_200 = arith.constant 0 : index
    %417 = vector.load %arg19[%c20_199, %c0_200] : memref<32x16xf32, #tpu.memory_space<vmem>>, vector<4x16xf32>
    %c20_201 = arith.constant 20 : index
    %c0_202 = arith.constant 0 : index
    %418 = vector.load %arg20[%c20_201, %c0_202] : memref<32x16xf32, #tpu.memory_space<vmem>>, vector<4x16xf32>
    %cst_203 = arith.constant dense<0.000000e+00> : vector<4x16xf32>
    %419 = tpu.matmul %367, %24, %cst_203 {dimension_numbers = #tpu.dot_dimension_numbers<[1], [0], [0], [1], [0, 0, 1, 1], [], []>} : vector<4x16xf32>, vector<16x16xf32>, vector<4x16xf32> -> vector<4x16xf32>
    %cst_204 = arith.constant dense<0.000000e+00> : vector<4x16xf32>
    %420 = tpu.matmul %367, %25, %cst_204 {dimension_numbers = #tpu.dot_dimension_numbers<[1], [0], [0], [1], [0, 0, 1, 1], [], []>} : vector<4x16xf32>, vector<16x16xf32>, vector<4x16xf32> -> vector<4x16xf32>
    %cst_205 = arith.constant dense<0.000000e+00> : vector<4x16xf32>
    %421 = tpu.matmul %367, %26, %cst_205 {dimension_numbers = #tpu.dot_dimension_numbers<[1], [0], [0], [1], [0, 0, 1, 1], [], []>} : vector<4x16xf32>, vector<16x16xf32>, vector<4x16xf32> -> vector<4x16xf32>
    %422 = vector.broadcast %30 : vector<1x16xf32> to vector<4x16xf32>
    %423 = arith.addf %421, %422 : vector<4x16xf32>
    %424 = arith.addf %416, %419 : vector<4x16xf32>
    %425 = arith.negf %424 : vector<4x16xf32>
    %426 = math.exp %425 : vector<4x16xf32>
    %cst_206 = arith.constant 1.000000e+00 : f32
    %427 = vector.broadcast %cst_206 : f32 to vector<4x16xf32>
    %428 = arith.addf %427, %426 : vector<4x16xf32>
    %429 = arith.divf %427, %428 : vector<4x16xf32>
    %430 = arith.addf %417, %420 : vector<4x16xf32>
    %431 = arith.negf %430 : vector<4x16xf32>
    %432 = math.exp %431 : vector<4x16xf32>
    %cst_207 = arith.constant 1.000000e+00 : f32
    %433 = vector.broadcast %cst_207 : f32 to vector<4x16xf32>
    %434 = arith.addf %433, %432 : vector<4x16xf32>
    %435 = arith.divf %433, %434 : vector<4x16xf32>
    %436 = arith.mulf %429, %423 : vector<4x16xf32>
    %437 = arith.addf %418, %436 : vector<4x16xf32>
    %438 = math.tanh %437 : vector<4x16xf32>
    %cst_208 = arith.constant 1.000000e+00 : f32
    %439 = vector.broadcast %cst_208 : f32 to vector<4x16xf32>
    %440 = arith.subf %439, %435 : vector<4x16xf32>
    %441 = arith.mulf %440, %438 : vector<4x16xf32>
    %442 = arith.mulf %435, %367 : vector<4x16xf32>
    %443 = arith.addf %441, %442 : vector<4x16xf32>
    %c20_209 = arith.constant 20 : index
    %c0_210 = arith.constant 0 : index
    %444 = vector.load %arg2[%c20_209, %c0_210] : memref<32x1xf32, #tpu.memory_space<vmem>>, vector<4x1xf32>
    %445 = vector.broadcast %444 : vector<4x1xf32> to vector<4x16xf32>
    %446 = arith.mulf %443, %445 : vector<4x16xf32>
    %cst_211 = arith.constant 1.000000e+00 : f32
    %447 = vector.broadcast %cst_211 : f32 to vector<4x1xf32>
    %448 = arith.subf %447, %444 : vector<4x1xf32>
    %cst_212 = arith.constant -1.000000e+06 : f32
    %449 = vector.broadcast %cst_212 : f32 to vector<4x1xf32>
    %450 = arith.mulf %448, %449 : vector<4x1xf32>
    %451 = vector.broadcast %450 : vector<4x1xf32> to vector<4x16xf32>
    %452 = arith.addf %446, %451 : vector<4x16xf32>
    %453 = arith.maximumf %377, %452 : vector<4x16xf32>
    %c20_213 = arith.constant 20 : index
    %c0_214 = arith.constant 0 : index
    %454 = vector.load %arg21[%c20_213, %c0_214] : memref<32x16xf32, #tpu.memory_space<vmem>>, vector<4x16xf32>
    %c20_215 = arith.constant 20 : index
    %c0_216 = arith.constant 0 : index
    %455 = vector.load %arg22[%c20_215, %c0_216] : memref<32x16xf32, #tpu.memory_space<vmem>>, vector<4x16xf32>
    %c20_217 = arith.constant 20 : index
    %c0_218 = arith.constant 0 : index
    %456 = vector.load %arg23[%c20_217, %c0_218] : memref<32x16xf32, #tpu.memory_space<vmem>>, vector<4x16xf32>
    %cst_219 = arith.constant dense<0.000000e+00> : vector<4x16xf32>
    %457 = tpu.matmul %405, %27, %cst_219 {dimension_numbers = #tpu.dot_dimension_numbers<[1], [0], [0], [1], [0, 0, 1, 1], [], []>} : vector<4x16xf32>, vector<16x16xf32>, vector<4x16xf32> -> vector<4x16xf32>
    %cst_220 = arith.constant dense<0.000000e+00> : vector<4x16xf32>
    %458 = tpu.matmul %405, %28, %cst_220 {dimension_numbers = #tpu.dot_dimension_numbers<[1], [0], [0], [1], [0, 0, 1, 1], [], []>} : vector<4x16xf32>, vector<16x16xf32>, vector<4x16xf32> -> vector<4x16xf32>
    %cst_221 = arith.constant dense<0.000000e+00> : vector<4x16xf32>
    %459 = tpu.matmul %405, %29, %cst_221 {dimension_numbers = #tpu.dot_dimension_numbers<[1], [0], [0], [1], [0, 0, 1, 1], [], []>} : vector<4x16xf32>, vector<16x16xf32>, vector<4x16xf32> -> vector<4x16xf32>
    %460 = vector.broadcast %31 : vector<1x16xf32> to vector<4x16xf32>
    %461 = arith.addf %459, %460 : vector<4x16xf32>
    %462 = arith.addf %454, %457 : vector<4x16xf32>
    %463 = arith.negf %462 : vector<4x16xf32>
    %464 = math.exp %463 : vector<4x16xf32>
    %cst_222 = arith.constant 1.000000e+00 : f32
    %465 = vector.broadcast %cst_222 : f32 to vector<4x16xf32>
    %466 = arith.addf %465, %464 : vector<4x16xf32>
    %467 = arith.divf %465, %466 : vector<4x16xf32>
    %468 = arith.addf %455, %458 : vector<4x16xf32>
    %469 = arith.negf %468 : vector<4x16xf32>
    %470 = math.exp %469 : vector<4x16xf32>
    %cst_223 = arith.constant 1.000000e+00 : f32
    %471 = vector.broadcast %cst_223 : f32 to vector<4x16xf32>
    %472 = arith.addf %471, %470 : vector<4x16xf32>
    %473 = arith.divf %471, %472 : vector<4x16xf32>
    %474 = arith.mulf %467, %461 : vector<4x16xf32>
    %475 = arith.addf %456, %474 : vector<4x16xf32>
    %476 = math.tanh %475 : vector<4x16xf32>
    %cst_224 = arith.constant 1.000000e+00 : f32
    %477 = vector.broadcast %cst_224 : f32 to vector<4x16xf32>
    %478 = arith.subf %477, %473 : vector<4x16xf32>
    %479 = arith.mulf %478, %476 : vector<4x16xf32>
    %480 = arith.mulf %473, %405 : vector<4x16xf32>
    %481 = arith.addf %479, %480 : vector<4x16xf32>
    %c8_225 = arith.constant 8 : index
    %c0_226 = arith.constant 0 : index
    %482 = vector.load %arg2[%c8_225, %c0_226] : memref<32x1xf32, #tpu.memory_space<vmem>>, vector<4x1xf32>
    %483 = vector.broadcast %482 : vector<4x1xf32> to vector<4x16xf32>
    %484 = arith.mulf %481, %483 : vector<4x16xf32>
    %cst_227 = arith.constant 1.000000e+00 : f32
    %485 = vector.broadcast %cst_227 : f32 to vector<4x1xf32>
    %486 = arith.subf %485, %482 : vector<4x1xf32>
    %cst_228 = arith.constant -1.000000e+06 : f32
    %487 = vector.broadcast %cst_228 : f32 to vector<4x1xf32>
    %488 = arith.mulf %486, %487 : vector<4x1xf32>
    %489 = vector.broadcast %488 : vector<4x1xf32> to vector<4x16xf32>
    %490 = arith.addf %484, %489 : vector<4x16xf32>
    %491 = arith.maximumf %415, %490 : vector<4x16xf32>
    %c24_229 = arith.constant 24 : index
    %c0_230 = arith.constant 0 : index
    %492 = vector.load %arg18[%c24_229, %c0_230] : memref<32x16xf32, #tpu.memory_space<vmem>>, vector<4x16xf32>
    %c24_231 = arith.constant 24 : index
    %c0_232 = arith.constant 0 : index
    %493 = vector.load %arg19[%c24_231, %c0_232] : memref<32x16xf32, #tpu.memory_space<vmem>>, vector<4x16xf32>
    %c24_233 = arith.constant 24 : index
    %c0_234 = arith.constant 0 : index
    %494 = vector.load %arg20[%c24_233, %c0_234] : memref<32x16xf32, #tpu.memory_space<vmem>>, vector<4x16xf32>
    %cst_235 = arith.constant dense<0.000000e+00> : vector<4x16xf32>
    %495 = tpu.matmul %443, %24, %cst_235 {dimension_numbers = #tpu.dot_dimension_numbers<[1], [0], [0], [1], [0, 0, 1, 1], [], []>} : vector<4x16xf32>, vector<16x16xf32>, vector<4x16xf32> -> vector<4x16xf32>
    %cst_236 = arith.constant dense<0.000000e+00> : vector<4x16xf32>
    %496 = tpu.matmul %443, %25, %cst_236 {dimension_numbers = #tpu.dot_dimension_numbers<[1], [0], [0], [1], [0, 0, 1, 1], [], []>} : vector<4x16xf32>, vector<16x16xf32>, vector<4x16xf32> -> vector<4x16xf32>
    %cst_237 = arith.constant dense<0.000000e+00> : vector<4x16xf32>
    %497 = tpu.matmul %443, %26, %cst_237 {dimension_numbers = #tpu.dot_dimension_numbers<[1], [0], [0], [1], [0, 0, 1, 1], [], []>} : vector<4x16xf32>, vector<16x16xf32>, vector<4x16xf32> -> vector<4x16xf32>
    %498 = vector.broadcast %30 : vector<1x16xf32> to vector<4x16xf32>
    %499 = arith.addf %497, %498 : vector<4x16xf32>
    %500 = arith.addf %492, %495 : vector<4x16xf32>
    %501 = arith.negf %500 : vector<4x16xf32>
    %502 = math.exp %501 : vector<4x16xf32>
    %cst_238 = arith.constant 1.000000e+00 : f32
    %503 = vector.broadcast %cst_238 : f32 to vector<4x16xf32>
    %504 = arith.addf %503, %502 : vector<4x16xf32>
    %505 = arith.divf %503, %504 : vector<4x16xf32>
    %506 = arith.addf %493, %496 : vector<4x16xf32>
    %507 = arith.negf %506 : vector<4x16xf32>
    %508 = math.exp %507 : vector<4x16xf32>
    %cst_239 = arith.constant 1.000000e+00 : f32
    %509 = vector.broadcast %cst_239 : f32 to vector<4x16xf32>
    %510 = arith.addf %509, %508 : vector<4x16xf32>
    %511 = arith.divf %509, %510 : vector<4x16xf32>
    %512 = arith.mulf %505, %499 : vector<4x16xf32>
    %513 = arith.addf %494, %512 : vector<4x16xf32>
    %514 = math.tanh %513 : vector<4x16xf32>
    %cst_240 = arith.constant 1.000000e+00 : f32
    %515 = vector.broadcast %cst_240 : f32 to vector<4x16xf32>
    %516 = arith.subf %515, %511 : vector<4x16xf32>
    %517 = arith.mulf %516, %514 : vector<4x16xf32>
    %518 = arith.mulf %511, %443 : vector<4x16xf32>
    %519 = arith.addf %517, %518 : vector<4x16xf32>
    %c24_241 = arith.constant 24 : index
    %c0_242 = arith.constant 0 : index
    %520 = vector.load %arg2[%c24_241, %c0_242] : memref<32x1xf32, #tpu.memory_space<vmem>>, vector<4x1xf32>
    %521 = vector.broadcast %520 : vector<4x1xf32> to vector<4x16xf32>
    %522 = arith.mulf %519, %521 : vector<4x16xf32>
    %cst_243 = arith.constant 1.000000e+00 : f32
    %523 = vector.broadcast %cst_243 : f32 to vector<4x1xf32>
    %524 = arith.subf %523, %520 : vector<4x1xf32>
    %cst_244 = arith.constant -1.000000e+06 : f32
    %525 = vector.broadcast %cst_244 : f32 to vector<4x1xf32>
    %526 = arith.mulf %524, %525 : vector<4x1xf32>
    %527 = vector.broadcast %526 : vector<4x1xf32> to vector<4x16xf32>
    %528 = arith.addf %522, %527 : vector<4x16xf32>
    %529 = arith.maximumf %453, %528 : vector<4x16xf32>
    %c24_245 = arith.constant 24 : index
    %c0_246 = arith.constant 0 : index
    %530 = vector.load %arg21[%c24_245, %c0_246] : memref<32x16xf32, #tpu.memory_space<vmem>>, vector<4x16xf32>
    %c24_247 = arith.constant 24 : index
    %c0_248 = arith.constant 0 : index
    %531 = vector.load %arg22[%c24_247, %c0_248] : memref<32x16xf32, #tpu.memory_space<vmem>>, vector<4x16xf32>
    %c24_249 = arith.constant 24 : index
    %c0_250 = arith.constant 0 : index
    %532 = vector.load %arg23[%c24_249, %c0_250] : memref<32x16xf32, #tpu.memory_space<vmem>>, vector<4x16xf32>
    %cst_251 = arith.constant dense<0.000000e+00> : vector<4x16xf32>
    %533 = tpu.matmul %481, %27, %cst_251 {dimension_numbers = #tpu.dot_dimension_numbers<[1], [0], [0], [1], [0, 0, 1, 1], [], []>} : vector<4x16xf32>, vector<16x16xf32>, vector<4x16xf32> -> vector<4x16xf32>
    %cst_252 = arith.constant dense<0.000000e+00> : vector<4x16xf32>
    %534 = tpu.matmul %481, %28, %cst_252 {dimension_numbers = #tpu.dot_dimension_numbers<[1], [0], [0], [1], [0, 0, 1, 1], [], []>} : vector<4x16xf32>, vector<16x16xf32>, vector<4x16xf32> -> vector<4x16xf32>
    %cst_253 = arith.constant dense<0.000000e+00> : vector<4x16xf32>
    %535 = tpu.matmul %481, %29, %cst_253 {dimension_numbers = #tpu.dot_dimension_numbers<[1], [0], [0], [1], [0, 0, 1, 1], [], []>} : vector<4x16xf32>, vector<16x16xf32>, vector<4x16xf32> -> vector<4x16xf32>
    %536 = vector.broadcast %31 : vector<1x16xf32> to vector<4x16xf32>
    %537 = arith.addf %535, %536 : vector<4x16xf32>
    %538 = arith.addf %530, %533 : vector<4x16xf32>
    %539 = arith.negf %538 : vector<4x16xf32>
    %540 = math.exp %539 : vector<4x16xf32>
    %cst_254 = arith.constant 1.000000e+00 : f32
    %541 = vector.broadcast %cst_254 : f32 to vector<4x16xf32>
    %542 = arith.addf %541, %540 : vector<4x16xf32>
    %543 = arith.divf %541, %542 : vector<4x16xf32>
    %544 = arith.addf %531, %534 : vector<4x16xf32>
    %545 = arith.negf %544 : vector<4x16xf32>
    %546 = math.exp %545 : vector<4x16xf32>
    %cst_255 = arith.constant 1.000000e+00 : f32
    %547 = vector.broadcast %cst_255 : f32 to vector<4x16xf32>
    %548 = arith.addf %547, %546 : vector<4x16xf32>
    %549 = arith.divf %547, %548 : vector<4x16xf32>
    %550 = arith.mulf %543, %537 : vector<4x16xf32>
    %551 = arith.addf %532, %550 : vector<4x16xf32>
    %552 = math.tanh %551 : vector<4x16xf32>
    %cst_256 = arith.constant 1.000000e+00 : f32
    %553 = vector.broadcast %cst_256 : f32 to vector<4x16xf32>
    %554 = arith.subf %553, %549 : vector<4x16xf32>
    %555 = arith.mulf %554, %552 : vector<4x16xf32>
    %556 = arith.mulf %549, %481 : vector<4x16xf32>
    %557 = arith.addf %555, %556 : vector<4x16xf32>
    %c4_257 = arith.constant 4 : index
    %c0_258 = arith.constant 0 : index
    %558 = vector.load %arg2[%c4_257, %c0_258] : memref<32x1xf32, #tpu.memory_space<vmem>>, vector<4x1xf32>
    %559 = vector.broadcast %558 : vector<4x1xf32> to vector<4x16xf32>
    %560 = arith.mulf %557, %559 : vector<4x16xf32>
    %cst_259 = arith.constant 1.000000e+00 : f32
    %561 = vector.broadcast %cst_259 : f32 to vector<4x1xf32>
    %562 = arith.subf %561, %558 : vector<4x1xf32>
    %cst_260 = arith.constant -1.000000e+06 : f32
    %563 = vector.broadcast %cst_260 : f32 to vector<4x1xf32>
    %564 = arith.mulf %562, %563 : vector<4x1xf32>
    %565 = vector.broadcast %564 : vector<4x1xf32> to vector<4x16xf32>
    %566 = arith.addf %560, %565 : vector<4x16xf32>
    %567 = arith.maximumf %491, %566 : vector<4x16xf32>
    %c28_261 = arith.constant 28 : index
    %c0_262 = arith.constant 0 : index
    %568 = vector.load %arg18[%c28_261, %c0_262] : memref<32x16xf32, #tpu.memory_space<vmem>>, vector<4x16xf32>
    %c28_263 = arith.constant 28 : index
    %c0_264 = arith.constant 0 : index
    %569 = vector.load %arg19[%c28_263, %c0_264] : memref<32x16xf32, #tpu.memory_space<vmem>>, vector<4x16xf32>
    %c28_265 = arith.constant 28 : index
    %c0_266 = arith.constant 0 : index
    %570 = vector.load %arg20[%c28_265, %c0_266] : memref<32x16xf32, #tpu.memory_space<vmem>>, vector<4x16xf32>
    %cst_267 = arith.constant dense<0.000000e+00> : vector<4x16xf32>
    %571 = tpu.matmul %519, %24, %cst_267 {dimension_numbers = #tpu.dot_dimension_numbers<[1], [0], [0], [1], [0, 0, 1, 1], [], []>} : vector<4x16xf32>, vector<16x16xf32>, vector<4x16xf32> -> vector<4x16xf32>
    %cst_268 = arith.constant dense<0.000000e+00> : vector<4x16xf32>
    %572 = tpu.matmul %519, %25, %cst_268 {dimension_numbers = #tpu.dot_dimension_numbers<[1], [0], [0], [1], [0, 0, 1, 1], [], []>} : vector<4x16xf32>, vector<16x16xf32>, vector<4x16xf32> -> vector<4x16xf32>
    %cst_269 = arith.constant dense<0.000000e+00> : vector<4x16xf32>
    %573 = tpu.matmul %519, %26, %cst_269 {dimension_numbers = #tpu.dot_dimension_numbers<[1], [0], [0], [1], [0, 0, 1, 1], [], []>} : vector<4x16xf32>, vector<16x16xf32>, vector<4x16xf32> -> vector<4x16xf32>
    %574 = vector.broadcast %30 : vector<1x16xf32> to vector<4x16xf32>
    %575 = arith.addf %573, %574 : vector<4x16xf32>
    %576 = arith.addf %568, %571 : vector<4x16xf32>
    %577 = arith.negf %576 : vector<4x16xf32>
    %578 = math.exp %577 : vector<4x16xf32>
    %cst_270 = arith.constant 1.000000e+00 : f32
    %579 = vector.broadcast %cst_270 : f32 to vector<4x16xf32>
    %580 = arith.addf %579, %578 : vector<4x16xf32>
    %581 = arith.divf %579, %580 : vector<4x16xf32>
    %582 = arith.addf %569, %572 : vector<4x16xf32>
    %583 = arith.negf %582 : vector<4x16xf32>
    %584 = math.exp %583 : vector<4x16xf32>
    %cst_271 = arith.constant 1.000000e+00 : f32
    %585 = vector.broadcast %cst_271 : f32 to vector<4x16xf32>
    %586 = arith.addf %585, %584 : vector<4x16xf32>
    %587 = arith.divf %585, %586 : vector<4x16xf32>
    %588 = arith.mulf %581, %575 : vector<4x16xf32>
    %589 = arith.addf %570, %588 : vector<4x16xf32>
    %590 = math.tanh %589 : vector<4x16xf32>
    %cst_272 = arith.constant 1.000000e+00 : f32
    %591 = vector.broadcast %cst_272 : f32 to vector<4x16xf32>
    %592 = arith.subf %591, %587 : vector<4x16xf32>
    %593 = arith.mulf %592, %590 : vector<4x16xf32>
    %594 = arith.mulf %587, %519 : vector<4x16xf32>
    %595 = arith.addf %593, %594 : vector<4x16xf32>
    %c28_273 = arith.constant 28 : index
    %c0_274 = arith.constant 0 : index
    %596 = vector.load %arg2[%c28_273, %c0_274] : memref<32x1xf32, #tpu.memory_space<vmem>>, vector<4x1xf32>
    %597 = vector.broadcast %596 : vector<4x1xf32> to vector<4x16xf32>
    %598 = arith.mulf %595, %597 : vector<4x16xf32>
    %cst_275 = arith.constant 1.000000e+00 : f32
    %599 = vector.broadcast %cst_275 : f32 to vector<4x1xf32>
    %600 = arith.subf %599, %596 : vector<4x1xf32>
    %cst_276 = arith.constant -1.000000e+06 : f32
    %601 = vector.broadcast %cst_276 : f32 to vector<4x1xf32>
    %602 = arith.mulf %600, %601 : vector<4x1xf32>
    %603 = vector.broadcast %602 : vector<4x1xf32> to vector<4x16xf32>
    %604 = arith.addf %598, %603 : vector<4x16xf32>
    %605 = arith.maximumf %529, %604 : vector<4x16xf32>
    %c28_277 = arith.constant 28 : index
    %c0_278 = arith.constant 0 : index
    %606 = vector.load %arg21[%c28_277, %c0_278] : memref<32x16xf32, #tpu.memory_space<vmem>>, vector<4x16xf32>
    %c28_279 = arith.constant 28 : index
    %c0_280 = arith.constant 0 : index
    %607 = vector.load %arg22[%c28_279, %c0_280] : memref<32x16xf32, #tpu.memory_space<vmem>>, vector<4x16xf32>
    %c28_281 = arith.constant 28 : index
    %c0_282 = arith.constant 0 : index
    %608 = vector.load %arg23[%c28_281, %c0_282] : memref<32x16xf32, #tpu.memory_space<vmem>>, vector<4x16xf32>
    %cst_283 = arith.constant dense<0.000000e+00> : vector<4x16xf32>
    %609 = tpu.matmul %557, %27, %cst_283 {dimension_numbers = #tpu.dot_dimension_numbers<[1], [0], [0], [1], [0, 0, 1, 1], [], []>} : vector<4x16xf32>, vector<16x16xf32>, vector<4x16xf32> -> vector<4x16xf32>
    %cst_284 = arith.constant dense<0.000000e+00> : vector<4x16xf32>
    %610 = tpu.matmul %557, %28, %cst_284 {dimension_numbers = #tpu.dot_dimension_numbers<[1], [0], [0], [1], [0, 0, 1, 1], [], []>} : vector<4x16xf32>, vector<16x16xf32>, vector<4x16xf32> -> vector<4x16xf32>
    %cst_285 = arith.constant dense<0.000000e+00> : vector<4x16xf32>
    %611 = tpu.matmul %557, %29, %cst_285 {dimension_numbers = #tpu.dot_dimension_numbers<[1], [0], [0], [1], [0, 0, 1, 1], [], []>} : vector<4x16xf32>, vector<16x16xf32>, vector<4x16xf32> -> vector<4x16xf32>
    %612 = vector.broadcast %31 : vector<1x16xf32> to vector<4x16xf32>
    %613 = arith.addf %611, %612 : vector<4x16xf32>
    %614 = arith.addf %606, %609 : vector<4x16xf32>
    %615 = arith.negf %614 : vector<4x16xf32>
    %616 = math.exp %615 : vector<4x16xf32>
    %cst_286 = arith.constant 1.000000e+00 : f32
    %617 = vector.broadcast %cst_286 : f32 to vector<4x16xf32>
    %618 = arith.addf %617, %616 : vector<4x16xf32>
    %619 = arith.divf %617, %618 : vector<4x16xf32>
    %620 = arith.addf %607, %610 : vector<4x16xf32>
    %621 = arith.negf %620 : vector<4x16xf32>
    %622 = math.exp %621 : vector<4x16xf32>
    %cst_287 = arith.constant 1.000000e+00 : f32
    %623 = vector.broadcast %cst_287 : f32 to vector<4x16xf32>
    %624 = arith.addf %623, %622 : vector<4x16xf32>
    %625 = arith.divf %623, %624 : vector<4x16xf32>
    %626 = arith.mulf %619, %613 : vector<4x16xf32>
    %627 = arith.addf %608, %626 : vector<4x16xf32>
    %628 = math.tanh %627 : vector<4x16xf32>
    %cst_288 = arith.constant 1.000000e+00 : f32
    %629 = vector.broadcast %cst_288 : f32 to vector<4x16xf32>
    %630 = arith.subf %629, %625 : vector<4x16xf32>
    %631 = arith.mulf %630, %628 : vector<4x16xf32>
    %632 = arith.mulf %625, %557 : vector<4x16xf32>
    %633 = arith.addf %631, %632 : vector<4x16xf32>
    %c0_289 = arith.constant 0 : index
    %c0_290 = arith.constant 0 : index
    %634 = vector.load %arg2[%c0_289, %c0_290] : memref<32x1xf32, #tpu.memory_space<vmem>>, vector<4x1xf32>
    %635 = vector.broadcast %634 : vector<4x1xf32> to vector<4x16xf32>
    %636 = arith.mulf %633, %635 : vector<4x16xf32>
    %cst_291 = arith.constant 1.000000e+00 : f32
    %637 = vector.broadcast %cst_291 : f32 to vector<4x1xf32>
    %638 = arith.subf %637, %634 : vector<4x1xf32>
    %cst_292 = arith.constant -1.000000e+06 : f32
    %639 = vector.broadcast %cst_292 : f32 to vector<4x1xf32>
    %640 = arith.mulf %638, %639 : vector<4x1xf32>
    %641 = vector.broadcast %640 : vector<4x1xf32> to vector<4x16xf32>
    %642 = arith.addf %636, %641 : vector<4x16xf32>
    %643 = arith.maximumf %567, %642 : vector<4x16xf32>
    %c0_293 = arith.constant 0 : index
    %c0_294 = arith.constant 0 : index
    %644 = vector.load %arg15[%c0_293, %c0_294] : memref<32x2xf32, #tpu.memory_space<vmem>>, vector<16x2xf32>
    %cst_295 = arith.constant dense<0.000000e+00> : vector<4x2xf32>
    %645 = tpu.matmul %605, %644, %cst_295 {dimension_numbers = #tpu.dot_dimension_numbers<[1], [0], [0], [1], [0, 0, 1, 1], [], []>} : vector<4x16xf32>, vector<16x2xf32>, vector<4x2xf32> -> vector<4x2xf32>
    %c16_296 = arith.constant 16 : index
    %c0_297 = arith.constant 0 : index
    %646 = vector.load %arg15[%c16_296, %c0_297] : memref<32x2xf32, #tpu.memory_space<vmem>>, vector<16x2xf32>
    %cst_298 = arith.constant dense<0.000000e+00> : vector<4x2xf32>
    %647 = tpu.matmul %643, %646, %cst_298 {dimension_numbers = #tpu.dot_dimension_numbers<[1], [0], [0], [1], [0, 0, 1, 1], [], []>} : vector<4x16xf32>, vector<16x2xf32>, vector<4x2xf32> -> vector<4x2xf32>
    %648 = arith.addf %645, %647 : vector<4x2xf32>
    %c0_299 = arith.constant 0 : index
    %c0_300 = arith.constant 0 : index
    %649 = vector.load %arg16[%c0_299, %c0_300] : memref<1x2xf32, #tpu.memory_space<vmem>>, vector<1x2xf32>
    %650 = vector.broadcast %649 : vector<1x2xf32> to vector<4x2xf32>
    %651 = arith.addf %648, %650 : vector<4x2xf32>
    %c0_301 = arith.constant 0 : index
    %c0_302 = arith.constant 0 : index
    %652 = vector.load %arg17[%c0_301, %c0_302] : memref<4x2xf32, #tpu.memory_space<vmem>>, vector<4x2xf32>
    tpu.vector_store %arg17[%c0_301, %c0_302], %651 {strides = array<i32>} : memref<4x2xf32, #tpu.memory_space<vmem>>, vector<4x2xf32>,
    return
  }
}

</mosaic_0001>

<llo_original>
// kernel: multi_gen_forward.3
$region0: #{multi_gen_forward.3}
  #allocation0 [shape = 'u32[]', space=smem, size = 0x4, offset = 0x4, fixed_abs, tag = 'smem constant byte address 0x4 - core index']
  #allocation1 [shape = 'u32[144,128]{1,0:T(1,128)}', space=vmem, size = 0x12000, scoped, tag = 'internal scratch']
  #allocation2 [shape = 'f32[32,16]{1,0:T(8,128)}', space=vmem, size = 0x4000, scoped, tag = 'scratch operand']
  #allocation3 [shape = 'f32[32,16]{1,0:T(8,128)}', space=vmem, size = 0x4000, scoped, tag = 'scratch operand']
  #allocation4 [shape = 'f32[32,16]{1,0:T(8,128)}', space=vmem, size = 0x4000, scoped, tag = 'scratch operand']
  #allocation5 [shape = 'f32[32,16]{1,0:T(8,128)}', space=vmem, size = 0x4000, scoped, tag = 'scratch operand']
  #allocation6 [shape = 'f32[32,16]{1,0:T(8,128)}', space=vmem, size = 0x4000, scoped, tag = 'scratch operand']
  #allocation7 [shape = 'f32[32,16]{1,0:T(8,128)}', space=vmem, size = 0x4000, scoped, tag = 'scratch operand']
  %s0 = inlined_call_operand.vmem [shape: f32[32,32], index: 0, kind: input, shape index: {}]
  %s1 = inlined_call_operand.vmem [shape: f32[32,32], index: 1, kind: input, shape index: {}]
  %s2 = inlined_call_operand.vmem [shape: f32[32,1], index: 2, kind: input, shape index: {}]
  %s3 = inlined_call_operand.vmem [shape: f32[32,48], index: 3, kind: input, shape index: {}]
  %s4 = inlined_call_operand.vmem [shape: f32[32,48], index: 4, kind: input, shape index: {}]
  %s5 = inlined_call_operand.vmem [shape: f32[1,48], index: 5, kind: input, shape index: {}]
  %s6 = inlined_call_operand.vmem [shape: f32[1,48], index: 6, kind: input, shape index: {}]
  %s7 = inlined_call_operand.vmem [shape: f32[16,16], index: 7, kind: input, shape index: {}]
  %s8 = inlined_call_operand.vmem [shape: f32[16,16], index: 8, kind: input, shape index: {}]
  %s9 = inlined_call_operand.vmem [shape: f32[16,16], index: 9, kind: input, shape index: {}]
  %s10 = inlined_call_operand.vmem [shape: f32[16,16], index: 10, kind: input, shape index: {}]
  %s11 = inlined_call_operand.vmem [shape: f32[16,16], index: 11, kind: input, shape index: {}]
  %s12 = inlined_call_operand.vmem [shape: f32[16,16], index: 12, kind: input, shape index: {}]
  %s13 = inlined_call_operand.vmem [shape: f32[1,16], index: 13, kind: input, shape index: {}]
  %s14 = inlined_call_operand.vmem [shape: f32[1,16], index: 14, kind: input, shape index: {}]
  %s15 = inlined_call_operand.vmem [shape: f32[32,2], index: 15, kind: input, shape index: {}]
  %s16 = inlined_call_operand.vmem [shape: f32[1,2], index: 16, kind: input, shape index: {}]
  %s17 = inlined_call_operand.vmem [shape: f32[4,2], index: 17, kind: output, shape index: {}]
  %s18 = sld [smem:[#allocation0]]
  $region78: #{multi_gen_forward.3} parent=0
    _
  %s20 = ssub.s32 1, %s18
  %s21 = scalar_select 0, %s20, %s18
  // Predicated region
  $region2: #{multi_gen_forward.3} parent=0 // pred_check
    _
  $region3: #{multi_gen_forward.3} parent=0 // pred_check_branch
    %23 = sbr.rel (0) target = $region5
  $region4: #{multi_gen_forward.3} parent=0 // pred_region
    _
  $region5: #{multi_gen_forward.3} parent=0 // pred_fallthru
    _
  // Predicated region
  $region6: #{multi_gen_forward.3} parent=0 // pred_check
    _
  $region7: #{multi_gen_forward.3} parent=0 // pred_check_branch
    %25 = sbr.rel (0) target = $region9
  $region8: #{multi_gen_forward.3} parent=0 // pred_region
    _
  $region9: #{multi_gen_forward.3} parent=0 // pred_fallthru
    _
  // Predicated region
  $region10: #{multi_gen_forward.3} parent=0 // pred_check
    _
  $region11: #{multi_gen_forward.3} parent=0 // pred_check_branch
    %27 = sbr.rel (0) target = $region13
  $region12: #{multi_gen_forward.3} parent=0 // pred_region
    _
  $region13: #{multi_gen_forward.3} parent=0 // pred_fallthru
    _
  // Predicated region
  $region14: #{multi_gen_forward.3} parent=0 // pred_check
    _
  $region15: #{multi_gen_forward.3} parent=0 // pred_check_branch
    %29 = sbr.rel (0) target = $region17
  $region16: #{multi_gen_forward.3} parent=0 // pred_region
    _
  $region17: #{multi_gen_forward.3} parent=0 // pred_fallthru
    _
  // Predicated region
  $region18: #{multi_gen_forward.3} parent=0 // pred_check
    _
  $region19: #{multi_gen_forward.3} parent=0 // pred_check_branch
    %31 = sbr.rel (0) target = $region21
  $region20: #{multi_gen_forward.3} parent=0 // pred_region
    _
  $region21: #{multi_gen_forward.3} parent=0 // pred_fallthru
    _
  // Predicated region
  $region22: #{multi_gen_forward.3} parent=0 // pred_check
    _
  $region23: #{multi_gen_forward.3} parent=0 // pred_check_branch
    %33 = sbr.rel (0) target = $region25
  $region24: #{multi_gen_forward.3} parent=0 // pred_region
    _
  $region25: #{multi_gen_forward.3} parent=0 // pred_fallthru
    _
  // Predicated region
  $region26: #{multi_gen_forward.3} parent=0 // pred_check
    _
  $region27: #{multi_gen_forward.3} parent=0 // pred_check_branch
    %35 = sbr.rel (0) target = $region29
  $region28: #{multi_gen_forward.3} parent=0 // pred_region
    _
  $region29: #{multi_gen_forward.3} parent=0 // pred_fallthru
    _
  // Predicated region
  $region30: #{multi_gen_forward.3} parent=0 // pred_check
    _
  $region31: #{multi_gen_forward.3} parent=0 // pred_check_branch
    %37 = sbr.rel (0) target = $region33
  $region32: #{multi_gen_forward.3} parent=0 // pred_region
    _
  $region33: #{multi_gen_forward.3} parent=0 // pred_fallthru
    _
  // Predicated region
  $region34: #{multi_gen_forward.3} parent=0 // pred_check
    _
  $region35: #{multi_gen_forward.3} parent=0 // pred_check_branch
    %39 = sbr.rel (0) target = $region37
  $region36: #{multi_gen_forward.3} parent=0 // pred_region
    _
  $region37: #{multi_gen_forward.3} parent=0 // pred_fallthru
    _
  // Predicated region
  $region38: #{multi_gen_forward.3} parent=0 // pred_check
    _
  $region39: #{multi_gen_forward.3} parent=0 // pred_check_branch
    %41 = sbr.rel (0) target = $region41
  $region40: #{multi_gen_forward.3} parent=0 // pred_region
    _
  $region41: #{multi_gen_forward.3} parent=0 // pred_fallthru
    _
  // Predicated region
  $region42: #{multi_gen_forward.3} parent=0 // pred_check
    _
  $region43: #{multi_gen_forward.3} parent=0 // pred_check_branch
    %43 = sbr.rel (0) target = $region45
  $region44: #{multi_gen_forward.3} parent=0 // pred_region
    _
  $region45: #{multi_gen_forward.3} parent=0 // pred_fallthru
    _
  // Predicated region
  $region46: #{multi_gen_forward.3} parent=0 // pred_check
    _
  $region47: #{multi_gen_forward.3} parent=0 // pred_check_branch
    %45 = sbr.rel (0) target = $region49
  $region48: #{multi_gen_forward.3} parent=0 // pred_region
    _
  $region49: #{multi_gen_forward.3} parent=0 // pred_fallthru
    _
  // Predicated region
  $region50: #{multi_gen_forward.3} parent=0 // pred_check
    _
  $region51: #{multi_gen_forward.3} parent=0 // pred_check_branch
    %47 = sbr.rel (0) target = $region53
  $region52: #{multi_gen_forward.3} parent=0 // pred_region
    _
  $region53: #{multi_gen_forward.3} parent=0 // pred_fallthru
    _
  // Predicated region
  $region54: #{multi_gen_forward.3} parent=0 // pred_check
    _
  $region55: #{multi_gen_forward.3} parent=0 // pred_check_branch
    %49 = sbr.rel (0) target = $region57
  $region56: #{multi_gen_forward.3} parent=0 // pred_region
    _
  $region57: #{multi_gen_forward.3} parent=0 // pred_fallthru
    _
  // Predicated region
  $region58: #{multi_gen_forward.3} parent=0 // pred_check
    _
  $region59: #{multi_gen_forward.3} parent=0 // pred_check_branch
    %51 = sbr.rel (0) target = $region61
  $region60: #{multi_gen_forward.3} parent=0 // pred_region
    _
  $region61: #{multi_gen_forward.3} parent=0 // pred_fallthru
    _
  // Predicated region
  $region62: #{multi_gen_forward.3} parent=0 // pred_check
    _
  $region63: #{multi_gen_forward.3} parent=0 // pred_check_branch
    %53 = sbr.rel (0) target = $region65
  $region64: #{multi_gen_forward.3} parent=0 // pred_region
    _
  $region65: #{multi_gen_forward.3} parent=0 // pred_fallthru
    _
  // Predicated region
  $region66: #{multi_gen_forward.3} parent=0 // pred_check
    _
  $region67: #{multi_gen_forward.3} parent=0 // pred_check_branch
    %55 = sbr.rel (0) target = $region69
  $region68: #{multi_gen_forward.3} parent=0 // pred_region
    _
  $region69: #{multi_gen_forward.3} parent=0 // pred_fallthru
    _
  %v56 = vld [vmem:[%s0] sm:$0xff]
  %v57 = vld [vmem:[%s0 + $0x8] sm:$0xff]
  %v58 = vld [vmem:[%s0 + $0x10] sm:$0xff]
  %v59 = vld [vmem:[%s0 + $0x18] sm:$0xff]
  %v60 = vld [vmem:[%s3] sm:$0xff]
  %v61 = vld [vmem:[%s3 + $0x8] sm:$0xff]
  %v62 = vld [vmem:[%s3 + $0x10] sm:$0xff]
  %v63 = vld [vmem:[%s3 + $0x18] sm:$0xff]
  %v64 = vld [vmem:[%s5] sm:$0x1]
  %v66 = vlaneseq
  %v67 = vshrl.u32 %v66, 7
  %v68 = vsub.s32 0, %v67
  %v69 = vrot.slane %v64, %v68
  %vm71 = vcmask 261120
  %v73 = vsel %vm71, %v56, 0
  %v76 = vsel %vm71, %v57, 0
  %v79 = vsel %vm71, %v58, 0
  %v82 = vsel %vm71, %v59, 0
  %84 = vmatprep.subr.mxu0 0.0
  %85 = vmatpush1.msra.mxu0 %v60
  %86 = vmatprep.subr.mxu0 0.0
  %87 = vmatpush1.msra.mxu0 %v61
  %88 = vmatprep.subr.mxu0 0.0
  %89 = vmatpush1.msra.mxu0 %v62
  %90 = vmatprep.subr.mxu0 0.0
  %91 = vmatpush1.msra.mxu0 %v63
  %92 = vmatprep.subr.mxu0 0.0
  %93 = vmatpush1.msra.mxu0 0.0
  %94 = vmatprep.subr.mxu0 0.0
  %95 = vmatpush1.msra.mxu0 0.0
  %96 = vmatprep.subr.mxu0 0.0
  %97 = vmatpush1.msra.mxu0 0.0
  %98 = vmatprep.subr.mxu0 0.0
  %99 = vmatpush1.msra.mxu0 0.0
  %100 = vmatprep.subr.mxu0 0.0
  %101 = vmatpush1.msra.mxu0 0.0
  %102 = vmatprep.subr.mxu0 0.0
  %103 = vmatpush1.msra.mxu0 0.0
  %104 = vmatprep.subr.mxu0 0.0
  %105 = vmatpush1.msra.mxu0 0.0
  %106 = vmatprep.subr.mxu0 0.0
  %107 = vmatpush1.msra.mxu0 0.0
  %108 = vmatprep.subr.mxu0 0.0
  %109 = vmatpush1.msra.mxu0 0.0
  %110 = vmatprep.subr.mxu0 0.0
  %111 = vmatpush1.msra.mxu0 0.0
  %112 = vmatprep.subr.mxu0 0.0
  %113 = vmatpush1.msra.mxu0 0.0
  %114 = vmatprep.subr.mxu0 0.0
  %115 = vmatpush1.msra.mxu0 0.0
  %116 = vmatprep.subr.mxu0 0.0
  %117 = vmatpush1.msra.mxu0 0.0
  %118 = vmatprep.subr.mxu0 0.0
  %119 = vmatpush1.msra.mxu0 0.0
  %120 = vmatprep.subr.mxu0 0.0
  %121 = vmatpush1.msra.mxu0 0.0
  %122 = vmatprep.subr.mxu0 0.0
  %123 = vmatpush1.msra.mxu0 0.0
  %124 = vmatprep.subr.mxu0 0.0
  %125 = vmatpush1.msra.mxu0 0.0
  %126 = vmatprep.subr.mxu0 0.0
  %127 = vmatpush1.msra.mxu0 0.0
  %128 = vmatprep.subr.mxu0 0.0
  %129 = vmatpush1.msra.mxu0 0.0
  %130 = vmatprep.subr.mxu0 0.0
  %131 = vmatpush1.msra.mxu0 0.0
  %132 = vmatprep.subr.mxu0 0.0
  %133 = vmatpush1.msra.mxu0 0.0
  %134 = vmatprep.subr.mxu0 0.0
  %135 = vmatpush1.msra.mxu0 0.0
  %136 = vmatprep.subr.mxu0 0.0
  %137 = vmatpush1.msra.mxu0 0.0
  %138 = vmatprep.subr.mxu0 0.0
  %139 = vmatpush1.msra.mxu0 0.0
  %140 = vmatprep.subr.mxu0 0.0
  %141 = vmatpush1.msra.mxu0 0.0
  %142 = vmatprep.subr.mxu0 0.0
  %143 = vmatpush1.msra.mxu0 0.0
  %144 = vmatprep.subr.mxu0 0.0
  %145 = vmatpush1.msra.mxu0 0.0
  %146 = vmatprep.subr.mxu0 0.0
  %147 = vmatpush1.msra.mxu0 0.0
  %148 = vmatprep.mubr.f32.mxu0 0.0
  %149 = vmatmul.mubr.f32.gmra.mrb[0].mxu0 %v73
  %v150 = vpop.f32.mrb[0].mxu0
  %v151 = vadd.f32 %v69, %v150
  %v152 = vpop.f32.mrb[0].mxu0
  %153 = vmatprep.mubr.f32.mxu0 0.0
  %154 = vmatmul.mubr.f32.gmra.mrb[0].mxu0 %v76
  %v155 = vpop.f32.mrb[0].mxu0
  %v156 = vadd.f32 %v69, %v155
  %v157 = vpop.f32.mrb[0].mxu0
  %158 = vmatprep.mubr.f32.mxu0 0.0
  %159 = vmatmul.mubr.f32.gmra.mrb[0].mxu0 %v79
  %v160 = vpop.f32.mrb[0].mxu0
  %v161 = vadd.f32 %v69, %v160
  %v162 = vpop.f32.mrb[0].mxu0
  %163 = vmatprep.mubr.f32.mxu0 0.0
  %164 = vmatmul.mubr.f32.gmra.mrb[0].mxu0 %v82
  %v165 = vpop.f32.mrb[0].mxu0
  %v166 = vadd.f32 %v69, %v165
  %v167 = vpop.f32.mrb[0].mxu0
  %168 = vdwg.mxu0
  %v169 = vld [vmem:[%s1] sm:$0xff]
  %v170 = vld [vmem:[%s1 + $0x8] sm:$0xff]
  %v171 = vld [vmem:[%s1 + $0x10] sm:$0xff]
  %v172 = vld [vmem:[%s1 + $0x18] sm:$0xff]
  %v173 = vld [vmem:[%s4] sm:$0xff]
  %v174 = vld [vmem:[%s4 + $0x8] sm:$0xff]
  %v175 = vld [vmem:[%s4 + $0x10] sm:$0xff]
  %v176 = vld [vmem:[%s4 + $0x18] sm:$0xff]
  %v177 = vld [vmem:[%s6] sm:$0x1]
  %v179 = vlaneseq
  %v180 = vshrl.u32 %v179, 7
  %v181 = vsub.s32 0, %v180
  %v182 = vrot.slane %v177, %v181
  %v185 = vsel %vm71, %v169, 0
  %v188 = vsel %vm71, %v170, 0
  %v191 = vsel %vm71, %v171, 0
  %v194 = vsel %vm71, %v172, 0
  %196 = vmatprep.subr.mxu0 0.0
  %197 = vmatpush1.msra.mxu0 %v173
  %198 = vmatprep.subr.mxu0 0.0
  %199 = vmatpush1.msra.mxu0 %v174
  %200 = vmatprep.subr.mxu0 0.0
  %201 = vmatpush1.msra.mxu0 %v175
  %202 = vmatprep.subr.mxu0 0.0
  %203 = vmatpush1.msra.mxu0 %v176
  %204 = vmatprep.subr.mxu0 0.0
  %205 = vmatpush1.msra.mxu0 0.0
  %206 = vmatprep.subr.mxu0 0.0
  %207 = vmatpush1.msra.mxu0 0.0
  %208 = vmatprep.subr.mxu0 0.0
  %209 = vmatpush1.msra.mxu0 0.0
  %210 = vmatprep.subr.mxu0 0.0
  %211 = vmatpush1.msra.mxu0 0.0
  %212 = vmatprep.subr.mxu0 0.0
  %213 = vmatpush1.msra.mxu0 0.0
  %214 = vmatprep.subr.mxu0 0.0
  %215 = vmatpush1.msra.mxu0 0.0
  %216 = vmatprep.subr.mxu0 0.0
  %217 = vmatpush1.msra.mxu0 0.0
  %218 = vmatprep.subr.mxu0 0.0
  %219 = vmatpush1.msra.mxu0 0.0
  %220 = vmatprep.subr.mxu0 0.0
  %221 = vmatpush1.msra.mxu0 0.0
  %222 = vmatprep.subr.mxu0 0.0
  %223 = vmatpush1.msra.mxu0 0.0
  %224 = vmatprep.subr.mxu0 0.0
  %225 = vmatpush1.msra.mxu0 0.0
  %226 = vmatprep.subr.mxu0 0.0
  %227 = vmatpush1.msra.mxu0 0.0
  %228 = vmatprep.subr.mxu0 0.0
  %229 = vmatpush1.msra.mxu0 0.0
  %230 = vmatprep.subr.mxu0 0.0
  %231 = vmatpush1.msra.mxu0 0.0
  %232 = vmatprep.subr.mxu0 0.0
  %233 = vmatpush1.msra.mxu0 0.0
  %234 = vmatprep.subr.mxu0 0.0
  %235 = vmatpush1.msra.mxu0 0.0
  %236 = vmatprep.subr.mxu0 0.0
  %237 = vmatpush1.msra.mxu0 0.0
  %238 = vmatprep.subr.mxu0 0.0
  %239 = vmatpush1.msra.mxu0 0.0
  %240 = vmatprep.subr.mxu0 0.0
  %241 = vmatpush1.msra.mxu0 0.0
  %242 = vmatprep.subr.mxu0 0.0
  %243 = vmatpush1.msra.mxu0 0.0
  %244 = vmatprep.subr.mxu0 0.0
  %245 = vmatpush1.msra.mxu0 0.0
  %246 = vmatprep.subr.mxu0 0.0
  %247 = vmatpush1.msra.mxu0 0.0
  %248 = vmatprep.subr.mxu0 0.0
  %249 = vmatpush1.msra.mxu0 0.0
  %250 = vmatprep.subr.mxu0 0.0
  %251 = vmatpush1.msra.mxu0 0.0
  %252 = vmatprep.subr.mxu0 0.0
  %253 = vmatpush1.msra.mxu0 0.0
  %254 = vmatprep.subr.mxu0 0.0
  %255 = vmatpush1.msra.mxu0 0.0
  %256 = vmatprep.subr.mxu0 0.0
  %257 = vmatpush1.msra.mxu0 0.0
  %258 = vmatprep.subr.mxu0 0.0
  %259 = vmatpush1.msra.mxu0 0.0
  %260 = vmatprep.mubr.f32.mxu0 0.0
  %261 = vmatmul.mubr.f32.gmra.mrb[0].mxu0 %v185
  %v262 = vpop.f32.mrb[0].mxu0
  %v263 = vadd.f32 %v182, %v262
  %v264 = vpop.f32.mrb[0].mxu0
  %265 = vmatprep.mubr.f32.mxu0 0.0
  %266 = vmatmul.mubr.f32.gmra.mrb[0].mxu0 %v188
  %v267 = vpop.f32.mrb[0].mxu0
  %v268 = vadd.f32 %v182, %v267
  %v269 = vpop.f32.mrb[0].mxu0
  %270 = vmatprep.mubr.f32.mxu0 0.0
  %271 = vmatmul.mubr.f32.gmra.mrb[0].mxu0 %v191
  %v272 = vpop.f32.mrb[0].mxu0
  %v273 = vadd.f32 %v182, %v272
  %v274 = vpop.f32.mrb[0].mxu0
  %275 = vmatprep.mubr.f32.mxu0 0.0
  %276 = vmatmul.mubr.f32.gmra.mrb[0].mxu0 %v194
  %v277 = vpop.f32.mrb[0].mxu0
  %v278 = vadd.f32 %v182, %v277
  %v279 = vpop.f32.mrb[0].mxu0
  %280 = vdwg.mxu0
  %vm281 = vcmask 130048
  %282 = vst.msk [vmem:[#allocation2] sm:$0xff] %vm281, %v151
  %283 = vst.msk [vmem:[#allocation2 + $0x8] sm:$0xff] %vm281, %v156
  %284 = vst.msk [vmem:[#allocation2 + $0x10] sm:$0xff] %vm281, %v161
  %285 = vst.msk [vmem:[#allocation2 + $0x18] sm:$0xff] %vm281, %v166
  %290 = vrot.lane.b32.xlu0 %v151, 112
  %v291 = vpop.permute.xlu0 %290
  %292 = vrot.lane.b32.xlu0 %v156, 112
  %v293 = vpop.permute.xlu0 %292
  %294 = vrot.lane.b32.xlu0 %v161, 112
  %v295 = vpop.permute.xlu0 %294
  %296 = vrot.lane.b32.xlu0 %v166, 112
  %v297 = vpop.permute.xlu0 %296
  %302 = vst.msk [vmem:[#allocation3] sm:$0xff] %vm281, %v291
  %303 = vst.msk [vmem:[#allocation3 + $0x8] sm:$0xff] %vm281, %v293
  %304 = vst.msk [vmem:[#allocation3 + $0x10] sm:$0xff] %vm281, %v295
  %305 = vst.msk [vmem:[#allocation3 + $0x18] sm:$0xff] %vm281, %v297
  %306 = vrot.lane.b32.xlu0 %v151, 96
  %v307 = vpop.permute.xlu0 %306
  %308 = vrot.lane.b32.xlu0 %v156, 96
  %v309 = vpop.permute.xlu0 %308
  %310 = vrot.lane.b32.xlu0 %v161, 96
  %v311 = vpop.permute.xlu0 %310
  %312 = vrot.lane.b32.xlu0 %v166, 96
  %v313 = vpop.permute.xlu0 %312
  %318 = vst.msk [vmem:[#allocation4] sm:$0xff] %vm281, %v307
  %319 = vst.msk [vmem:[#allocation4 + $0x8] sm:$0xff] %vm281, %v309
  %320 = vst.msk [vmem:[#allocation4 + $0x10] sm:$0xff] %vm281, %v311
  %321 = vst.msk [vmem:[#allocation4 + $0x18] sm:$0xff] %vm281, %v313
  %322 = vst.msk [vmem:[#allocation5] sm:$0xff] %vm281, %v263
  %323 = vst.msk [vmem:[#allocation5 + $0x8] sm:$0xff] %vm281, %v268
  %324 = vst.msk [vmem:[#allocation5 + $0x10] sm:$0xff] %vm281, %v273
  %325 = vst.msk [vmem:[#allocation5 + $0x18] sm:$0xff] %vm281, %v278
  %330 = vrot.lane.b32.xlu0 %v263, 112
  %v331 = vpop.permute.xlu0 %330
  %332 = vrot.lane.b32.xlu0 %v268, 112
  %v333 = vpop.permute.xlu0 %332
  %334 = vrot.lane.b32.xlu0 %v273, 112
  %v335 = vpop.permute.xlu0 %334
  %336 = vrot.lane.b32.xlu0 %v278, 112
  %v337 = vpop.permute.xlu0 %336
  %342 = vst.msk [vmem:[#allocation6] sm:$0xff] %vm281, %v331
  %343 = vst.msk [vmem:[#allocation6 + $0x8] sm:$0xff] %vm281, %v333
  %344 = vst.msk [vmem:[#allocation6 + $0x10] sm:$0xff] %vm281, %v335
  %345 = vst.msk [vmem:[#allocation6 + $0x18] sm:$0xff] %vm281, %v337
  %346 = vrot.lane.b32.xlu0 %v263, 96
  %v347 = vpop.permute.xlu0 %346
  %348 = vrot.lane.b32.xlu0 %v268, 96
  %v349 = vpop.permute.xlu0 %348
  %350 = vrot.lane.b32.xlu0 %v273, 96
  %v351 = vpop.permute.xlu0 %350
  %352 = vrot.lane.b32.xlu0 %v278, 96
  %v353 = vpop.permute.xlu0 %352
  %358 = vst.msk [vmem:[#allocation7] sm:$0xff] %vm281, %v347
  %359 = vst.msk [vmem:[#allocation7 + $0x8] sm:$0xff] %vm281, %v349
  %360 = vst.msk [vmem:[#allocation7 + $0x10] sm:$0xff] %vm281, %v351
  %361 = vst.msk [vmem:[#allocation7 + $0x18] sm:$0xff] %vm281, %v353
  %v362 = vld [vmem:[%s7] sm:$0xff]
  %v363 = vld [vmem:[%s7 + $0x8] sm:$0xff]
  %v364 = vld [vmem:[%s8] sm:$0xff]
  %v365 = vld [vmem:[%s8 + $0x8] sm:$0xff]
  %v366 = vld [vmem:[%s9] sm:$0xff]
  %v367 = vld [vmem:[%s9 + $0x8] sm:$0xff]
  %v368 = vld [vmem:[%s10] sm:$0xff]
  %v369 = vld [vmem:[%s10 + $0x8] sm:$0xff]
  %v370 = vld [vmem:[%s11] sm:$0xff]
  %v371 = vld [vmem:[%s11 + $0x8] sm:$0xff]
  %v372 = vld [vmem:[%s12] sm:$0xff]
  %v373 = vld [vmem:[%s12 + $0x8] sm:$0xff]
  %v374 = vld [vmem:[%s13] sm:$0x1]
  %v375 = vld [vmem:[%s14] sm:$0x1]
  %v376 = vld [vmem:[#allocation2] sm:$0xf]
  %v377 = vld [vmem:[#allocation3] sm:$0xf]
  %v378 = vld [vmem:[#allocation4] sm:$0xf]
  %v380 = vsel %vm281, 0.0, 0
  %382 = vmatprep.subr.mxu0 0.0
  %383 = vmatpush1.msra.mxu0 %v362
  %384 = vmatprep.subr.mxu0 0.0
  %385 = vmatpush1.msra.mxu0 %v363
  %386 = vmatprep.subr.mxu0 0.0
  %387 = vmatpush1.msra.mxu0 0.0
  %388 = vmatprep.subr.mxu0 0.0
  %389 = vmatpush1.msra.mxu0 0.0
  %390 = vmatprep.subr.mxu0 0.0
  %391 = vmatpush1.msra.mxu0 0.0
  %392 = vmatprep.subr.mxu0 0.0
  %393 = vmatpush1.msra.mxu0 0.0
  %394 = vmatprep.subr.mxu0 0.0
  %395 = vmatpush1.msra.mxu0 0.0
  %396 = vmatprep.subr.mxu0 0.0
  %397 = vmatpush1.msra.mxu0 0.0
  %398 = vmatprep.subr.mxu0 0.0
  %399 = vmatpush1.msra.mxu0 0.0
  %400 = vmatprep.subr.mxu0 0.0
  %401 = vmatpush1.msra.mxu0 0.0
  %402 = vmatprep.subr.mxu0 0.0
  %403 = vmatpush1.msra.mxu0 0.0
  %404 = vmatprep.subr.mxu0 0.0
  %405 = vmatpush1.msra.mxu0 0.0
  %406 = vmatprep.subr.mxu0 0.0
  %407 = vmatpush1.msra.mxu0 0.0
  %408 = vmatprep.subr.mxu0 0.0
  %409 = vmatpush1.msra.mxu0 0.0
  %410 = vmatprep.subr.mxu0 0.0
  %411 = vmatpush1.msra.mxu0 0.0
  %412 = vmatprep.subr.mxu0 0.0
  %413 = vmatpush1.msra.mxu0 0.0
  %414 = vmatprep.subr.mxu0 0.0
  %415 = vmatpush1.msra.mxu0 0.0
  %416 = vmatprep.subr.mxu0 0.0
  %417 = vmatpush1.msra.mxu0 0.0
  %418 = vmatprep.subr.mxu0 0.0
  %419 = vmatpush1.msra.mxu0 0.0
  %420 = vmatprep.subr.mxu0 0.0
  %421 = vmatpush1.msra.mxu0 0.0
  %422 = vmatprep.subr.mxu0 0.0
  %423 = vmatpush1.msra.mxu0 0.0
  %424 = vmatprep.subr.mxu0 0.0
  %425 = vmatpush1.msra.mxu0 0.0
  %426 = vmatprep.subr.mxu0 0.0
  %427 = vmatpush1.msra.mxu0 0.0
  %428 = vmatprep.subr.mxu0 0.0
  %429 = vmatpush1.msra.mxu0 0.0
  %430 = vmatprep.subr.mxu0 0.0
  %431 = vmatpush1.msra.mxu0 0.0
  %432 = vmatprep.subr.mxu0 0.0
  %433 = vmatpush1.msra.mxu0 0.0
  %434 = vmatprep.subr.mxu0 0.0
  %435 = vmatpush1.msra.mxu0 0.0
  %436 = vmatprep.subr.mxu0 0.0
  %437 = vmatpush1.msra.mxu0 0.0
  %438 = vmatprep.subr.mxu0 0.0
  %439 = vmatpush1.msra.mxu0 0.0
  %440 = vmatprep.subr.mxu0 0.0
  %441 = vmatpush1.msra.mxu0 0.0
  %442 = vmatprep.subr.mxu0 0.0
  %443 = vmatpush1.msra.mxu0 0.0
  %444 = vmatprep.subr.mxu0 0.0
  %445 = vmatpush1.msra.mxu0 0.0
  %446 = vmatprep.mubr.f32.mxu0 0.0
  %447 = vmatmul.mubr.f32.gmra.mrb[0].mxu0 %v380
  %v448 = vpop.f32.mrb[0].mxu0
  %v449 = vadd.f32 0.0, %v448
  %v450 = vpop.f32.mrb[0].mxu0
  %451 = vdwg.mxu0
  %452 = vmatprep.subr.mxu0 0.0
  %453 = vmatpush1.msra.mxu0 %v364
  %454 = vmatprep.subr.mxu0 0.0
  %455 = vmatpush1.msra.mxu0 %v365
  %456 = vmatprep.subr.mxu0 0.0
  %457 = vmatpush1.msra.mxu0 0.0
  %458 = vmatprep.subr.mxu0 0.0
  %459 = vmatpush1.msra.mxu0 0.0
  %460 = vmatprep.subr.mxu0 0.0
  %461 = vmatpush1.msra.mxu0 0.0
  %462 = vmatprep.subr.mxu0 0.0
  %463 = vmatpush1.msra.mxu0 0.0
  %464 = vmatprep.subr.mxu0 0.0
  %465 = vmatpush1.msra.mxu0 0.0
  %466 = vmatprep.subr.mxu0 0.0
  %467 = vmatpush1.msra.mxu0 0.0
  %468 = vmatprep.subr.mxu0 0.0
  %469 = vmatpush1.msra.mxu0 0.0
  %470 = vmatprep.subr.mxu0 0.0
  %471 = vmatpush1.msra.mxu0 0.0
  %472 = vmatprep.subr.mxu0 0.0
  %473 = vmatpush1.msra.mxu0 0.0
  %474 = vmatprep.subr.mxu0 0.0
  %475 = vmatpush1.msra.mxu0 0.0
  %476 = vmatprep.subr.mxu0 0.0
  %477 = vmatpush1.msra.mxu0 0.0
  %478 = vmatprep.subr.mxu0 0.0
  %479 = vmatpush1.msra.mxu0 0.0
  %480 = vmatprep.subr.mxu0 0.0
  %481 = vmatpush1.msra.mxu0 0.0
  %482 = vmatprep.subr.mxu0 0.0
  %483 = vmatpush1.msra.mxu0 0.0
  %484 = vmatprep.subr.mxu0 0.0
  %485 = vmatpush1.msra.mxu0 0.0
  %486 = vmatprep.subr.mxu0 0.0
  %487 = vmatpush1.msra.mxu0 0.0
  %488 = vmatprep.subr.mxu0 0.0
  %489 = vmatpush1.msra.mxu0 0.0
  %490 = vmatprep.subr.mxu0 0.0
  %491 = vmatpush1.msra.mxu0 0.0
  %492 = vmatprep.subr.mxu0 0.0
  %493 = vmatpush1.msra.mxu0 0.0
  %494 = vmatprep.subr.mxu0 0.0
  %495 = vmatpush1.msra.mxu0 0.0
  %496 = vmatprep.subr.mxu0 0.0
  %497 = vmatpush1.msra.mxu0 0.0
  %498 = vmatprep.subr.mxu0 0.0
  %499 = vmatpush1.msra.mxu0 0.0
  %500 = vmatprep.subr.mxu0 0.0
  %501 = vmatpush1.msra.mxu0 0.0
  %502 = vmatprep.subr.mxu0 0.0
  %503 = vmatpush1.msra.mxu0 0.0
  %504 = vmatprep.subr.mxu0 0.0
  %505 = vmatpush1.msra.mxu0 0.0
  %506 = vmatprep.subr.mxu0 0.0
  %507 = vmatpush1.msra.mxu0 0.0
  %508 = vmatprep.subr.mxu0 0.0
  %509 = vmatpush1.msra.mxu0 0.0
  %510 = vmatprep.subr.mxu0 0.0
  %511 = vmatpush1.msra.mxu0 0.0
  %512 = vmatprep.subr.mxu0 0.0
  %513 = vmatpush1.msra.mxu0 0.0
  %514 = vmatprep.subr.mxu0 0.0
  %515 = vmatpush1.msra.mxu0 0.0
  %516 = vmatprep.mubr.f32.mxu0 0.0
  %517 = vmatmul.mubr.f32.gmra.mrb[0].mxu0 %v380
  %v518 = vpop.f32.mrb[0].mxu0
  %v519 = vadd.f32 0.0, %v518
  %v520 = vpop.f32.mrb[0].mxu0
  %521 = vdwg.mxu0
  %v523 = vlaneseq
  %v524 = vshrl.u32 %v523, 7
  %v525 = vsub.s32 0, %v524
  %v526 = vrot.slane %v374, %v525
  %528 = vmatprep.subr.mxu0 0.0
  %529 = vmatpush1.msra.mxu0 %v366
  %530 = vmatprep.subr.mxu0 0.0
  %531 = vmatpush1.msra.mxu0 %v367
  %532 = vmatprep.subr.mxu0 0.0
  %533 = vmatpush1.msra.mxu0 0.0
  %534 = vmatprep.subr.mxu0 0.0
  %535 = vmatpush1.msra.mxu0 0.0
  %536 = vmatprep.subr.mxu0 0.0
  %537 = vmatpush1.msra.mxu0 0.0
  %538 = vmatprep.subr.mxu0 0.0
  %539 = vmatpush1.msra.mxu0 0.0
  %540 = vmatprep.subr.mxu0 0.0
  %541 = vmatpush1.msra.mxu0 0.0
  %542 = vmatprep.subr.mxu0 0.0
  %543 = vmatpush1.msra.mxu0 0.0
  %544 = vmatprep.subr.mxu0 0.0
  %545 = vmatpush1.msra.mxu0 0.0
  %546 = vmatprep.subr.mxu0 0.0
  %547 = vmatpush1.msra.mxu0 0.0
  %548 = vmatprep.subr.mxu0 0.0
  %549 = vmatpush1.msra.mxu0 0.0
  %550 = vmatprep.subr.mxu0 0.0
  %551 = vmatpush1.msra.mxu0 0.0
  %552 = vmatprep.subr.mxu0 0.0
  %553 = vmatpush1.msra.mxu0 0.0
  %554 = vmatprep.subr.mxu0 0.0
  %555 = vmatpush1.msra.mxu0 0.0
  %556 = vmatprep.subr.mxu0 0.0
  %557 = vmatpush1.msra.mxu0 0.0
  %558 = vmatprep.subr.mxu0 0.0
  %559 = vmatpush1.msra.mxu0 0.0
  %560 = vmatprep.subr.mxu0 0.0
  %561 = vmatpush1.msra.mxu0 0.0
  %562 = vmatprep.subr.mxu0 0.0
  %563 = vmatpush1.msra.mxu0 0.0
  %564 = vmatprep.subr.mxu0 0.0
  %565 = vmatpush1.msra.mxu0 0.0
  %566 = vmatprep.subr.mxu0 0.0
  %567 = vmatpush1.msra.mxu0 0.0
  %568 = vmatprep.subr.mxu0 0.0
  %569 = vmatpush1.msra.mxu0 0.0
  %570 = vmatprep.subr.mxu0 0.0
  %571 = vmatpush1.msra.mxu0 0.0
  %572 = vmatprep.subr.mxu0 0.0
  %573 = vmatpush1.msra.mxu0 0.0
  %574 = vmatprep.subr.mxu0 0.0
  %575 = vmatpush1.msra.mxu0 0.0
  %576 = vmatprep.subr.mxu0 0.0
  %577 = vmatpush1.msra.mxu0 0.0
  %578 = vmatprep.subr.mxu0 0.0
  %579 = vmatpush1.msra.mxu0 0.0
  %580 = vmatprep.subr.mxu0 0.0
  %581 = vmatpush1.msra.mxu0 0.0
  %582 = vmatprep.subr.mxu0 0.0
  %583 = vmatpush1.msra.mxu0 0.0
  %584 = vmatprep.subr.mxu0 0.0
  %585 = vmatpush1.msra.mxu0 0.0
  %586 = vmatprep.subr.mxu0 0.0
  %587 = vmatpush1.msra.mxu0 0.0
  %588 = vmatprep.subr.mxu0 0.0
  %589 = vmatpush1.msra.mxu0 0.0
  %590 = vmatprep.subr.mxu0 0.0
  %591 = vmatpush1.msra.mxu0 0.0
  %592 = vmatprep.mubr.f32.mxu0 0.0
  %593 = vmatmul.mubr.f32.gmra.mrb[0].mxu0 %v380
  %v594 = vpop.f32.mrb[0].mxu0
  %v595 = vadd.f32 %v526, %v594
  %v596 = vpop.f32.mrb[0].mxu0
  %597 = vdwg.mxu0
  %v598 = vadd.f32 %v376, %v449
  %v599 = vxor.u32 %v598, 2147483648
  %v600 = vmul.f32 %v599, 1.442695
  %v601 = vpow.pop %v600
  %v602 = vadd.f32 %v601, 1.0
  %v603 = vrcp.pop %v602
  %v604 = vmul.f32 1.0, %v603
  %v605 = vadd.f32 %v377, %v519
  %v606 = vxor.u32 %v605, 2147483648
  %v607 = vmul.f32 %v606, 1.442695
  %v608 = vpow.pop %v607
  %v609 = vadd.f32 %v608, 1.0
  %v610 = vrcp.pop %v609
  %v611 = vmul.f32 1.0, %v610
  %v612 = vmul.f32 %v604, %v595
  %v613 = vadd.f32 %v378, %v612
  %v614 = vtanh.pop %v613
  %v615 = vsub.f32 1.0, %v611
  %v616 = vmul.f32 %v615, %v614
  %v617 = vmul.f32 %v611, 0.0
  %v618 = vadd.f32 %v616, %v617
  %v619 = vld [vmem:[%s2] sm:$0xf]
  %621 = vset.pattern.permute.xlu0 0
  %622 = vperm.xlu0 %621, %v619
  %v623 = vpop.permute.xlu0 %622
  %v625 = vmul.f32 %v618, %v623
  %v626 = vsub.f32 1.0, %v619
  %v627 = vmul.f32 %v626, -1000000.0
  %629 = vset.pattern.permute.xlu0 0
  %630 = vperm.xlu0 %629, %v627
  %v631 = vpop.permute.xlu0 %630
  %v633 = vadd.f32 %v625, %v631
  %v634 = vmax.f32 %v633, -1000000.0
  %v635 = vld [vmem:[#allocation5] sm:$0xf]
  %v636 = vld [vmem:[#allocation6] sm:$0xf]
  %v637 = vld [vmem:[#allocation7] sm:$0xf]
  %638 = vmatprep.subr.mxu0 0.0
  %639 = vmatpush1.msra.mxu0 %v368
  %640 = vmatprep.subr.mxu0 0.0
  %641 = vmatpush1.msra.mxu0 %v369
  %642 = vmatprep.subr.mxu0 0.0
  %643 = vmatpush1.msra.mxu0 0.0
  %644 = vmatprep.subr.mxu0 0.0
  %645 = vmatpush1.msra.mxu0 0.0
  %646 = vmatprep.subr.mxu0 0.0
  %647 = vmatpush1.msra.mxu0 0.0
  %648 = vmatprep.subr.mxu0 0.0
  %649 = vmatpush1.msra.mxu0 0.0
  %650 = vmatprep.subr.mxu0 0.0
  %651 = vmatpush1.msra.mxu0 0.0
  %652 = vmatprep.subr.mxu0 0.0
  %653 = vmatpush1.msra.mxu0 0.0
  %654 = vmatprep.subr.mxu0 0.0
  %655 = vmatpush1.msra.mxu0 0.0
  %656 = vmatprep.subr.mxu0 0.0
  %657 = vmatpush1.msra.mxu0 0.0
  %658 = vmatprep.subr.mxu0 0.0
  %659 = vmatpush1.msra.mxu0 0.0
  %660 = vmatprep.subr.mxu0 0.0
  %661 = vmatpush1.msra.mxu0 0.0
  %662 = vmatprep.subr.mxu0 0.0
  %663 = vmatpush1.msra.mxu0 0.0
  %664 = vmatprep.subr.mxu0 0.0
  %665 = vmatpush1.msra.mxu0 0.0
  %666 = vmatprep.subr.mxu0 0.0
  %667 = vmatpush1.msra.mxu0 0.0
  %668 = vmatprep.subr.mxu0 0.0
  %669 = vmatpush1.msra.mxu0 0.0
  %670 = vmatprep.subr.mxu0 0.0
  %671 = vmatpush1.msra.mxu0 0.0
  %672 = vmatprep.subr.mxu0 0.0
  %673 = vmatpush1.msra.mxu0 0.0
  %674 = vmatprep.subr.mxu0 0.0
  %675 = vmatpush1.msra.mxu0 0.0
  %676 = vmatprep.subr.mxu0 0.0
  %677 = vmatpush1.msra.mxu0 0.0
  %678 = vmatprep.subr.mxu0 0.0
  %679 = vmatpush1.msra.mxu0 0.0
  %680 = vmatprep.subr.mxu0 0.0
  %681 = vmatpush1.msra.mxu0 0.0
  %682 = vmatprep.subr.mxu0 0.0
  %683 = vmatpush1.msra.mxu0 0.0
  %684 = vmatprep.subr.mxu0 0.0
  %685 = vmatpush1.msra.mxu0 0.0
  %686 = vmatprep.subr.mxu0 0.0
  %687 = vmatpush1.msra.mxu0 0.0
  %688 = vmatprep.subr.mxu0 0.0
  %689 = vmatpush1.msra.mxu0 0.0
  %690 = vmatprep.subr.mxu0 0.0
  %691 = vmatpush1.msra.mxu0 0.0
  %692 = vmatprep.subr.mxu0 0.0
  %693 = vmatpush1.msra.mxu0 0.0
  %694 = vmatprep.subr.mxu0 0.0
  %695 = vmatpush1.msra.mxu0 0.0
  %696 = vmatprep.subr.mxu0 0.0
  %697 = vmatpush1.msra.mxu0 0.0
  %698 = vmatprep.subr.mxu0 0.0
  %699 = vmatpush1.msra.mxu0 0.0
  %700 = vmatprep.subr.mxu0 0.0
  %701 = vmatpush1.msra.mxu0 0.0
  %702 = vmatprep.mubr.f32.mxu0 0.0
  %703 = vmatmul.mubr.f32.gmra.mrb[0].mxu0 %v380
  %v704 = vpop.f32.mrb[0].mxu0
  %v705 = vadd.f32 0.0, %v704
  %v706 = vpop.f32.mrb[0].mxu0
  %707 = vdwg.mxu0
  %708 = vmatprep.subr.mxu0 0.0
  %709 = vmatpush1.msra.mxu0 %v370
  %710 = vmatprep.subr.mxu0 0.0
  %711 = vmatpush1.msra.mxu0 %v371
  %712 = vmatprep.subr.mxu0 0.0
  %713 = vmatpush1.msra.mxu0 0.0
  %714 = vmatprep.subr.mxu0 0.0
  %715 = vmatpush1.msra.mxu0 0.0
  %716 = vmatprep.subr.mxu0 0.0
  %717 = vmatpush1.msra.mxu0 0.0
  %718 = vmatprep.subr.mxu0 0.0
  %719 = vmatpush1.msra.mxu0 0.0
  %720 = vmatprep.subr.mxu0 0.0
  %721 = vmatpush1.msra.mxu0 0.0
  %722 = vmatprep.subr.mxu0 0.0
  %723 = vmatpush1.msra.mxu0 0.0
  %724 = vmatprep.subr.mxu0 0.0
  %725 = vmatpush1.msra.mxu0 0.0
  %726 = vmatprep.subr.mxu0 0.0
  %727 = vmatpush1.msra.mxu0 0.0
  %728 = vmatprep.subr.mxu0 0.0
  %729 = vmatpush1.msra.mxu0 0.0
  %730 = vmatprep.subr.mxu0 0.0
  %731 = vmatpush1.msra.mxu0 0.0
  %732 = vmatprep.subr.mxu0 0.0
  %733 = vmatpush1.msra.mxu0 0.0
  %734 = vmatprep.subr.mxu0 0.0
  %735 = vmatpush1.msra.mxu0 0.0
  %736 = vmatprep.subr.mxu0 0.0
  %737 = vmatpush1.msra.mxu0 0.0
  %738 = vmatprep.subr.mxu0 0.0
  %739 = vmatpush1.msra.mxu0 0.0
  %740 = vmatprep.subr.mxu0 0.0
  %741 = vmatpush1.msra.mxu0 0.0
  %742 = vmatprep.subr.mxu0 0.0
  %743 = vmatpush1.msra.mxu0 0.0
  %744 = vmatprep.subr.mxu0 0.0
  %745 = vmatpush1.msra.mxu0 0.0
  %746 = vmatprep.subr.mxu0 0.0
  %747 = vmatpush1.msra.mxu0 0.0
  %748 = vmatprep.subr.mxu0 0.0
  %749 = vmatpush1.msra.mxu0 0.0
  %750 = vmatprep.subr.mxu0 0.0
  %751 = vmatpush1.msra.mxu0 0.0
  %752 = vmatprep.subr.mxu0 0.0
  %753 = vmatpush1.msra.mxu0 0.0
  %754 = vmatprep.subr.mxu0 0.0
  %755 = vmatpush1.msra.mxu0 0.0
  %756 = vmatprep.subr.mxu0 0.0
  %757 = vmatpush1.msra.mxu0 0.0
  %758 = vmatprep.subr.mxu0 0.0
  %759 = vmatpush1.msra.mxu0 0.0
  %760 = vmatprep.subr.mxu0 0.0
  %761 = vmatpush1.msra.mxu0 0.0
  %762 = vmatprep.subr.mxu0 0.0
  %763 = vmatpush1.msra.mxu0 0.0
  %764 = vmatprep.subr.mxu0 0.0
  %765 = vmatpush1.msra.mxu0 0.0
  %766 = vmatprep.subr.mxu0 0.0
  %767 = vmatpush1.msra.mxu0 0.0
  %768 = vmatprep.subr.mxu0 0.0
  %769 = vmatpush1.msra.mxu0 0.0
  %770 = vmatprep.subr.mxu0 0.0
  %771 = vmatpush1.msra.mxu0 0.0
  %772 = vmatprep.mubr.f32.mxu0 0.0
  %773 = vmatmul.mubr.f32.gmra.mrb[0].mxu0 %v380
  %v774 = vpop.f32.mrb[0].mxu0
  %v775 = vadd.f32 0.0, %v774
  %v776 = vpop.f32.mrb[0].mxu0
  %777 = vdwg.mxu0
  %v779 = vlaneseq
  %v780 = vshrl.u32 %v779, 7
  %v781 = vsub.s32 0, %v780
  %v782 = vrot.slane %v375, %v781
  %784 = vmatprep.subr.mxu0 0.0
  %785 = vmatpush1.msra.mxu0 %v372
  %786 = vmatprep.subr.mxu0 0.0
  %787 = vmatpush1.msra.mxu0 %v373
  %788 = vmatprep.subr.mxu0 0.0
  %789 = vmatpush1.msra.mxu0 0.0
  %790 = vmatprep.subr.mxu0 0.0
  %791 = vmatpush1.msra.mxu0 0.0
  %792 = vmatprep.subr.mxu0 0.0
  %793 = vmatpush1.msra.mxu0 0.0
  %794 = vmatprep.subr.mxu0 0.0
  %795 = vmatpush1.msra.mxu0 0.0
  %796 = vmatprep.subr.mxu0 0.0
  %797 = vmatpush1.msra.mxu0 0.0
  %798 = vmatprep.subr.mxu0 0.0
  %799 = vmatpush1.msra.mxu0 0.0
  %800 = vmatprep.subr.mxu0 0.0
  %801 = vmatpush1.msra.mxu0 0.0
  %802 = vmatprep.subr.mxu0 0.0
  %803 = vmatpush1.msra.mxu0 0.0
  %804 = vmatprep.subr.mxu0 0.0
  %805 = vmatpush1.msra.mxu0 0.0
  %806 = vmatprep.subr.mxu0 0.0
  %807 = vmatpush1.msra.mxu0 0.0
  %808 = vmatprep.subr.mxu0 0.0
  %809 = vmatpush1.msra.mxu0 0.0
  %810 = vmatprep.subr.mxu0 0.0
  %811 = vmatpush1.msra.mxu0 0.0
  %812 = vmatprep.subr.mxu0 0.0
  %813 = vmatpush1.msra.mxu0 0.0
  %814 = vmatprep.subr.mxu0 0.0
  %815 = vmatpush1.msra.mxu0 0.0
  %816 = vmatprep.subr.mxu0 0.0
  %817 = vmatpush1.msra.mxu0 0.0
  %818 = vmatprep.subr.mxu0 0.0
  %819 = vmatpush1.msra.mxu0 0.0
  %820 = vmatprep.subr.mxu0 0.0
  %821 = vmatpush1.msra.mxu0 0.0
  %822 = vmatprep.subr.mxu0 0.0
  %823 = vmatpush1.msra.mxu0 0.0
  %824 = vmatprep.subr.mxu0 0.0
  %825 = vmatpush1.msra.mxu0 0.0
  %826 = vmatprep.subr.mxu0 0.0
  %827 = vmatpush1.msra.mxu0 0.0
  %828 = vmatprep.subr.mxu0 0.0
  %829 = vmatpush1.msra.mxu0 0.0
  %830 = vmatprep.subr.mxu0 0.0
  %831 = vmatpush1.msra.mxu0 0.0
  %832 = vmatprep.subr.mxu0 0.0
  %833 = vmatpush1.msra.mxu0 0.0
  %834 = vmatprep.subr.mxu0 0.0
  %835 = vmatpush1.msra.mxu0 0.0
  %836 = vmatprep.subr.mxu0 0.0
  %837 = vmatpush1.msra.mxu0 0.0
  %838 = vmatprep.subr.mxu0 0.0
  %839 = vmatpush1.msra.mxu0 0.0
  %840 = vmatprep.subr.mxu0 0.0
  %841 = vmatpush1.msra.mxu0 0.0
  %842 = vmatprep.subr.mxu0 0.0
  %843 = vmatpush1.msra.mxu0 0.0
  %844 = vmatprep.subr.mxu0 0.0
  %845 = vmatpush1.msra.mxu0 0.0
  %846 = vmatprep.subr.mxu0 0.0
  %847 = vmatpush1.msra.mxu0 0.0
  %848 = vmatprep.mubr.f32.mxu0 0.0
  %849 = vmatmul.mubr.f32.gmra.mrb[0].mxu0 %v380
  %v850 = vpop.f32.mrb[0].mxu0
  %v851 = vadd.f32 %v782, %v850
  %v852 = vpop.f32.mrb[0].mxu0
  %853 = vdwg.mxu0
  %v854 = vadd.f32 %v635, %v705
  %v855 = vxor.u32 %v854, 2147483648
  %v856 = vmul.f32 %v855, 1.442695
  %v857 = vpow.pop %v856
  %v858 = vadd.f32 %v857, 1.0
  %v859 = vrcp.pop %v858
  %v860 = vmul.f32 1.0, %v859
  %v861 = vadd.f32 %v636, %v775
  %v862 = vxor.u32 %v861, 2147483648
  %v863 = vmul.f32 %v862, 1.442695
  %v864 = vpow.pop %v863
  %v865 = vadd.f32 %v864, 1.0
  %v866 = vrcp.pop %v865
  %v867 = vmul.f32 1.0, %v866
  %v868 = vmul.f32 %v860, %v851
  %v869 = vadd.f32 %v637, %v868
  %v870 = vtanh.pop %v869
  %v871 = vsub.f32 1.0, %v867
  %v872 = vmul.f32 %v871, %v870
  %v873 = vmul.f32 %v867, 0.0
  %v874 = vadd.f32 %v872, %v873
  %v875 = vld [vmem:[%s2 + $0x1c] sm:$0xf]
  %877 = vset.pattern.permute.xlu0 0
  %878 = vperm.xlu0 %877, %v875
  %v879 = vpop.permute.xlu0 %878
  %v881 = vmul.f32 %v874, %v879
  %v882 = vsub.f32 1.0, %v875
  %v883 = vmul.f32 %v882, -1000000.0
  %885 = vset.pattern.permute.xlu0 0
  %886 = vperm.xlu0 %885, %v883
  %v887 = vpop.permute.xlu0 %886
  %v889 = vadd.f32 %v881, %v887
  %v890 = vmax.f32 %v889, -1000000.0
  %v891 = vld [vmem:[#allocation2 + $0x4] sm:$0xf]
  %v892 = vld [vmem:[#allocation3 + $0x4] sm:$0xf]
  %v893 = vld [vmem:[#allocation4 + $0x4] sm:$0xf]
  %v895 = vsel %vm281, %v618, 0
  %897 = vmatprep.subr.mxu0 0.0
  %898 = vmatpush1.msra.mxu0 %v362
  %899 = vmatprep.subr.mxu0 0.0
  %900 = vmatpush1.msra.mxu0 %v363
  %901 = vmatprep.subr.mxu0 0.0
  %902 = vmatpush1.msra.mxu0 0.0
  %903 = vmatprep.subr.mxu0 0.0
  %904 = vmatpush1.msra.mxu0 0.0
  %905 = vmatprep.subr.mxu0 0.0
  %906 = vmatpush1.msra.mxu0 0.0
  %907 = vmatprep.subr.mxu0 0.0
  %908 = vmatpush1.msra.mxu0 0.0
  %909 = vmatprep.subr.mxu0 0.0
  %910 = vmatpush1.msra.mxu0 0.0
  %911 = vmatprep.subr.mxu0 0.0
  %912 = vmatpush1.msra.mxu0 0.0
  %913 = vmatprep.subr.mxu0 0.0
  %914 = vmatpush1.msra.mxu0 0.0
  %915 = vmatprep.subr.mxu0 0.0
  %916 = vmatpush1.msra.mxu0 0.0
  %917 = vmatprep.subr.mxu0 0.0
  %918 = vmatpush1.msra.mxu0 0.0
  %919 = vmatprep.subr.mxu0 0.0
  %920 = vmatpush1.msra.mxu0 0.0
  %921 = vmatprep.subr.mxu0 0.0
  %922 = vmatpush1.msra.mxu0 0.0
  %923 = vmatprep.subr.mxu0 0.0
  %924 = vmatpush1.msra.mxu0 0.0
  %925 = vmatprep.subr.mxu0 0.0
  %926 = vmatpush1.msra.mxu0 0.0
  %927 = vmatprep.subr.mxu0 0.0
  %928 = vmatpush1.msra.mxu0 0.0
  %929 = vmatprep.subr.mxu0 0.0
  %930 = vmatpush1.msra.mxu0 0.0
  %931 = vmatprep.subr.mxu0 0.0
  %932 = vmatpush1.msra.mxu0 0.0
  %933 = vmatprep.subr.mxu0 0.0
  %934 = vmatpush1.msra.mxu0 0.0
  %935 = vmatprep.subr.mxu0 0.0
  %936 = vmatpush1.msra.mxu0 0.0
  %937 = vmatprep.subr.mxu0 0.0
  %938 = vmatpush1.msra.mxu0 0.0
  %939 = vmatprep.subr.mxu0 0.0
  %940 = vmatpush1.msra.mxu0 0.0
  %941 = vmatprep.subr.mxu0 0.0
  %942 = vmatpush1.msra.mxu0 0.0
  %943 = vmatprep.subr.mxu0 0.0
  %944 = vmatpush1.msra.mxu0 0.0
  %945 = vmatprep.subr.mxu0 0.0
  %946 = vmatpush1.msra.mxu0 0.0
  %947 = vmatprep.subr.mxu0 0.0
  %948 = vmatpush1.msra.mxu0 0.0
  %949 = vmatprep.subr.mxu0 0.0
  %950 = vmatpush1.msra.mxu0 0.0
  %951 = vmatprep.subr.mxu0 0.0
  %952 = vmatpush1.msra.mxu0 0.0
  %953 = vmatprep.subr.mxu0 0.0
  %954 = vmatpush1.msra.mxu0 0.0
  %955 = vmatprep.subr.mxu0 0.0
  %956 = vmatpush1.msra.mxu0 0.0
  %957 = vmatprep.subr.mxu0 0.0
  %958 = vmatpush1.msra.mxu0 0.0
  %959 = vmatprep.subr.mxu0 0.0
  %960 = vmatpush1.msra.mxu0 0.0
  %961 = vmatprep.mubr.f32.mxu0 0.0
  %962 = vmatmul.mubr.f32.gmra.mrb[0].mxu0 %v895
  %v963 = vpop.f32.mrb[0].mxu0
  %v964 = vadd.f32 0.0, %v963
  %v965 = vpop.f32.mrb[0].mxu0
  %966 = vdwg.mxu0
  %967 = vmatprep.subr.mxu0 0.0
  %968 = vmatpush1.msra.mxu0 %v364
  %969 = vmatprep.subr.mxu0 0.0
  %970 = vmatpush1.msra.mxu0 %v365
  %971 = vmatprep.subr.mxu0 0.0
  %972 = vmatpush1.msra.mxu0 0.0
  %973 = vmatprep.subr.mxu0 0.0
  %974 = vmatpush1.msra.mxu0 0.0
  %975 = vmatprep.subr.mxu0 0.0
  %976 = vmatpush1.msra.mxu0 0.0
  %977 = vmatprep.subr.mxu0 0.0
  %978 = vmatpush1.msra.mxu0 0.0
  %979 = vmatprep.subr.mxu0 0.0
  %980 = vmatpush1.msra.mxu0 0.0
  %981 = vmatprep.subr.mxu0 0.0
  %982 = vmatpush1.msra.mxu0 0.0
  %983 = vmatprep.subr.mxu0 0.0
  %984 = vmatpush1.msra.mxu0 0.0
  %985 = vmatprep.subr.mxu0 0.0
  %986 = vmatpush1.msra.mxu0 0.0
  %987 = vmatprep.subr.mxu0 0.0
  %988 = vmatpush1.msra.mxu0 0.0
  %989 = vmatprep.subr.mxu0 0.0
  %990 = vmatpush1.msra.mxu0 0.0
  %991 = vmatprep.subr.mxu0 0.0
  %992 = vmatpush1.msra.mxu0 0.0
  %993 = vmatprep.subr.mxu0 0.0
  %994 = vmatpush1.msra.mxu0 0.0
  %995 = vmatprep.subr.mxu0 0.0
  %996 = vmatpush1.msra.mxu0 0.0
  %997 = vmatprep.subr.mxu0 0.0
  %998 = vmatpush1.msra.mxu0 0.0
  %999 = vmatprep.subr.mxu0 0.0
  %1000 = vmatpush1.msra.mxu0 0.0
  %1001 = vmatprep.subr.mxu0 0.0
  %1002 = vmatpush1.msra.mxu0 0.0
  %1003 = vmatprep.subr.mxu0 0.0
  %1004 = vmatpush1.msra.mxu0 0.0
  %1005 = vmatprep.subr.mxu0 0.0
  %1006 = vmatpush1.msra.mxu0 0.0
  %1007 = vmatprep.subr.mxu0 0.0
  %1008 = vmatpush1.msra.mxu0 0.0
  %1009 = vmatprep.subr.mxu0 0.0
  %1010 = vmatpush1.msra.mxu0 0.0
  %1011 = vmatprep.subr.mxu0 0.0
  %1012 = vmatpush1.msra.mxu0 0.0
  %1013 = vmatprep.subr.mxu0 0.0
  %1014 = vmatpush1.msra.mxu0 0.0
  %1015 = vmatprep.subr.mxu0 0.0
  %1016 = vmatpush1.msra.mxu0 0.0
  %1017 = vmatprep.subr.mxu0 0.0
  %1018 = vmatpush1.msra.mxu0 0.0
  %1019 = vmatprep.subr.mxu0 0.0
  %1020 = vmatpush1.msra.mxu0 0.0
  %1021 = vmatprep.subr.mxu0 0.0
  %1022 = vmatpush1.msra.mxu0 0.0
  %1023 = vmatprep.subr.mxu0 0.0
  %1024 = vmatpush1.msra.mxu0 0.0
  %1025 = vmatprep.subr.mxu0 0.0
  %1026 = vmatpush1.msra.mxu0 0.0
  %1027 = vmatprep.subr.mxu0 0.0
  %1028 = vmatpush1.msra.mxu0 0.0
  %1029 = vmatprep.subr.mxu0 0.0
  %1030 = vmatpush1.msra.mxu0 0.0
  %1031 = vmatprep.mubr.f32.mxu0 0.0
  %1032 = vmatmul.mubr.f32.gmra.mrb[0].mxu0 %v895
  %v1033 = vpop.f32.mrb[0].mxu0
  %v1034 = vadd.f32 0.0, %v1033
  %v1035 = vpop.f32.mrb[0].mxu0
  %1036 = vdwg.mxu0
  %1037 = vmatprep.subr.mxu0 0.0
  %1038 = vmatpush1.msra.mxu0 %v366
  %1039 = vmatprep.subr.mxu0 0.0
  %1040 = vmatpush1.msra.mxu0 %v367
  %1041 = vmatprep.subr.mxu0 0.0
  %1042 = vmatpush1.msra.mxu0 0.0
  %1043 = vmatprep.subr.mxu0 0.0
  %1044 = vmatpush1.msra.mxu0 0.0
  %1045 = vmatprep.subr.mxu0 0.0
  %1046 = vmatpush1.msra.mxu0 0.0
  %1047 = vmatprep.subr.mxu0 0.0
  %1048 = vmatpush1.msra.mxu0 0.0
  %1049 = vmatprep.subr.mxu0 0.0
  %1050 = vmatpush1.msra.mxu0 0.0
  %1051 = vmatprep.subr.mxu0 0.0
  %1052 = vmatpush1.msra.mxu0 0.0
  %1053 = vmatprep.subr.mxu0 0.0
  %1054 = vmatpush1.msra.mxu0 0.0
  %1055 = vmatprep.subr.mxu0 0.0
  %1056 = vmatpush1.msra.mxu0 0.0
  %1057 = vmatprep.subr.mxu0 0.0
  %1058 = vmatpush1.msra.mxu0 0.0
  %1059 = vmatprep.subr.mxu0 0.0
  %1060 = vmatpush1.msra.mxu0 0.0
  %1061 = vmatprep.subr.mxu0 0.0
  %1062 = vmatpush1.msra.mxu0 0.0
  %1063 = vmatprep.subr.mxu0 0.0
  %1064 = vmatpush1.msra.mxu0 0.0
  %1065 = vmatprep.subr.mxu0 0.0
  %1066 = vmatpush1.msra.mxu0 0.0
  %1067 = vmatprep.subr.mxu0 0.0
  %1068 = vmatpush1.msra.mxu0 0.0
  %1069 = vmatprep.subr.mxu0 0.0
  %1070 = vmatpush1.msra.mxu0 0.0
  %1071 = vmatprep.subr.mxu0 0.0
  %1072 = vmatpush1.msra.mxu0 0.0
  %1073 = vmatprep.subr.mxu0 0.0
  %1074 = vmatpush1.msra.mxu0 0.0
  %1075 = vmatprep.subr.mxu0 0.0
  %1076 = vmatpush1.msra.mxu0 0.0
  %1077 = vmatprep.subr.mxu0 0.0
  %1078 = vmatpush1.msra.mxu0 0.0
  %1079 = vmatprep.subr.mxu0 0.0
  %1080 = vmatpush1.msra.mxu0 0.0
  %1081 = vmatprep.subr.mxu0 0.0
  %1082 = vmatpush1.msra.mxu0 0.0
  %1083 = vmatprep.subr.mxu0 0.0
  %1084 = vmatpush1.msra.mxu0 0.0
  %1085 = vmatprep.subr.mxu0 0.0
  %1086 = vmatpush1.msra.mxu0 0.0
  %1087 = vmatprep.subr.mxu0 0.0
  %1088 = vmatpush1.msra.mxu0 0.0
  %1089 = vmatprep.subr.mxu0 0.0
  %1090 = vmatpush1.msra.mxu0 0.0
  %1091 = vmatprep.subr.mxu0 0.0
  %1092 = vmatpush1.msra.mxu0 0.0
  %1093 = vmatprep.subr.mxu0 0.0
  %1094 = vmatpush1.msra.mxu0 0.0
  %1095 = vmatprep.subr.mxu0 0.0
  %1096 = vmatpush1.msra.mxu0 0.0
  %1097 = vmatprep.subr.mxu0 0.0
  %1098 = vmatpush1.msra.mxu0 0.0
  %1099 = vmatprep.subr.mxu0 0.0
  %1100 = vmatpush1.msra.mxu0 0.0
  %1101 = vmatprep.mubr.f32.mxu0 0.0
  %1102 = vmatmul.mubr.f32.gmra.mrb[0].mxu0 %v895
  %v1103 = vpop.f32.mrb[0].mxu0
  %v1104 = vadd.f32 %v526, %v1103
  %v1105 = vpop.f32.mrb[0].mxu0
  %1106 = vdwg.mxu0
  %v1107 = vadd.f32 %v891, %v964
  %v1108 = vxor.u32 %v1107, 2147483648
  %v1109 = vmul.f32 %v1108, 1.442695
  %v1110 = vpow.pop %v1109
  %v1111 = vadd.f32 %v1110, 1.0
  %v1112 = vrcp.pop %v1111
  %v1113 = vmul.f32 1.0, %v1112
  %v1114 = vadd.f32 %v892, %v1034
  %v1115 = vxor.u32 %v1114, 2147483648
  %v1116 = vmul.f32 %v1115, 1.442695
  %v1117 = vpow.pop %v1116
  %v1118 = vadd.f32 %v1117, 1.0
  %v1119 = vrcp.pop %v1118
  %v1120 = vmul.f32 1.0, %v1119
  %v1121 = vmul.f32 %v1113, %v1104
  %v1122 = vadd.f32 %v893, %v1121
  %v1123 = vtanh.pop %v1122
  %v1124 = vsub.f32 1.0, %v1120
  %v1125 = vmul.f32 %v1124, %v1123
  %v1126 = vmul.f32 %v1120, %v618
  %v1127 = vadd.f32 %v1125, %v1126
  %v1128 = vld [vmem:[%s2 + $0x4] sm:$0xf]
  %1130 = vset.pattern.permute.xlu0 0
  %1131 = vperm.xlu0 %1130, %v1128
  %v1132 = vpop.permute.xlu0 %1131
  %v1134 = vmul.f32 %v1127, %v1132
  %v1135 = vsub.f32 1.0, %v1128
  %v1136 = vmul.f32 %v1135, -1000000.0
  %1138 = vset.pattern.permute.xlu0 0
  %1139 = vperm.xlu0 %1138, %v1136
  %v1140 = vpop.permute.xlu0 %1139
  %v1142 = vadd.f32 %v1134, %v1140
  %v1143 = vmax.f32 %v634, %v1142
  %v1144 = vld [vmem:[#allocation5 + $0x4] sm:$0xf]
  %v1145 = vld [vmem:[#allocation6 + $0x4] sm:$0xf]
  %v1146 = vld [vmem:[#allocation7 + $0x4] sm:$0xf]
  %v1148 = vsel %vm281, %v874, 0
  %1150 = vmatprep.subr.mxu0 0.0
  %1151 = vmatpush1.msra.mxu0 %v368
  %1152 = vmatprep.subr.mxu0 0.0
  %1153 = vmatpush1.msra.mxu0 %v369
  %1154 = vmatprep.subr.mxu0 0.0
  %1155 = vmatpush1.msra.mxu0 0.0
  %1156 = vmatprep.subr.mxu0 0.0
  %1157 = vmatpush1.msra.mxu0 0.0
  %1158 = vmatprep.subr.mxu0 0.0
  %1159 = vmatpush1.msra.mxu0 0.0
  %1160 = vmatprep.subr.mxu0 0.0
  %1161 = vmatpush1.msra.mxu0 0.0
  %1162 = vmatprep.subr.mxu0 0.0
  %1163 = vmatpush1.msra.mxu0 0.0
  %1164 = vmatprep.subr.mxu0 0.0
  %1165 = vmatpush1.msra.mxu0 0.0
  %1166 = vmatprep.subr.mxu0 0.0
  %1167 = vmatpush1.msra.mxu0 0.0
  %1168 = vmatprep.subr.mxu0 0.0
  %1169 = vmatpush1.msra.mxu0 0.0
  %1170 = vmatprep.subr.mxu0 0.0
  %1171 = vmatpush1.msra.mxu0 0.0
  %1172 = vmatprep.subr.mxu0 0.0
  %1173 = vmatpush1.msra.mxu0 0.0
  %1174 = vmatprep.subr.mxu0 0.0
  %1175 = vmatpush1.msra.mxu0 0.0
  %1176 = vmatprep.subr.mxu0 0.0
  %1177 = vmatpush1.msra.mxu0 0.0
  %1178 = vmatprep.subr.mxu0 0.0
  %1179 = vmatpush1.msra.mxu0 0.0
  %1180 = vmatprep.subr.mxu0 0.0
  %1181 = vmatpush1.msra.mxu0 0.0
  %1182 = vmatprep.subr.mxu0 0.0
  %1183 = vmatpush1.msra.mxu0 0.0
  %1184 = vmatprep.subr.mxu0 0.0
  %1185 = vmatpush1.msra.mxu0 0.0
  %1186 = vmatprep.subr.mxu0 0.0
  %1187 = vmatpush1.msra.mxu0 0.0
  %1188 = vmatprep.subr.mxu0 0.0
  %1189 = vmatpush1.msra.mxu0 0.0
  %1190 = vmatprep.subr.mxu0 0.0
  %1191 = vmatpush1.msra.mxu0 0.0
  %1192 = vmatprep.subr.mxu0 0.0
  %1193 = vmatpush1.msra.mxu0 0.0
  %1194 = vmatprep.subr.mxu0 0.0
  %1195 = vmatpush1.msra.mxu0 0.0
  %1196 = vmatprep.subr.mxu0 0.0
  %1197 = vmatpush1.msra.mxu0 0.0
  %1198 = vmatprep.subr.mxu0 0.0
  %1199 = vmatpush1.msra.mxu0 0.0
  %1200 = vmatprep.subr.mxu0 0.0
  %1201 = vmatpush1.msra.mxu0 0.0
  %1202 = vmatprep.subr.mxu0 0.0
  %1203 = vmatpush1.msra.mxu0 0.0
  %1204 = vmatprep.subr.mxu0 0.0
  %1205 = vmatpush1.msra.mxu0 0.0
  %1206 = vmatprep.subr.mxu0 0.0
  %1207 = vmatpush1.msra.mxu0 0.0
  %1208 = vmatprep.subr.mxu0 0.0
  %1209 = vmatpush1.msra.mxu0 0.0
  %1210 = vmatprep.subr.mxu0 0.0
  %1211 = vmatpush1.msra.mxu0 0.0
  %1212 = vmatprep.subr.mxu0 0.0
  %1213 = vmatpush1.msra.mxu0 0.0
  %1214 = vmatprep.mubr.f32.mxu0 0.0
  %1215 = vmatmul.mubr.f32.gmra.mrb[0].mxu0 %v1148
  %v1216 = vpop.f32.mrb[0].mxu0
  %v1217 = vadd.f32 0.0, %v1216
  %v1218 = vpop.f32.mrb[0].mxu0
  %1219 = vdwg.mxu0
  %1220 = vmatprep.subr.mxu0 0.0
  %1221 = vmatpush1.msra.mxu0 %v370
  %1222 = vmatprep.subr.mxu0 0.0
  %1223 = vmatpush1.msra.mxu0 %v371
  %1224 = vmatprep.subr.mxu0 0.0
  %1225 = vmatpush1.msra.mxu0 0.0
  %1226 = vmatprep.subr.mxu0 0.0
  %1227 = vmatpush1.msra.mxu0 0.0
  %1228 = vmatprep.subr.mxu0 0.0
  %1229 = vmatpush1.msra.mxu0 0.0
  %1230 = vmatprep.subr.mxu0 0.0
  %1231 = vmatpush1.msra.mxu0 0.0
  %1232 = vmatprep.subr.mxu0 0.0
  %1233 = vmatpush1.msra.mxu0 0.0
  %1234 = vmatprep.subr.mxu0 0.0
  %1235 = vmatpush1.msra.mxu0 0.0
  %1236 = vmatprep.subr.mxu0 0.0
  %1237 = vmatpush1.msra.mxu0 0.0
  %1238 = vmatprep.subr.mxu0 0.0
  %1239 = vmatpush1.msra.mxu0 0.0
  %1240 = vmatprep.subr.mxu0 0.0
  %1241 = vmatpush1.msra.mxu0 0.0
  %1242 = vmatprep.subr.mxu0 0.0
  %1243 = vmatpush1.msra.mxu0 0.0
  %1244 = vmatprep.subr.mxu0 0.0
  %1245 = vmatpush1.msra.mxu0 0.0
  %1246 = vmatprep.subr.mxu0 0.0
  %1247 = vmatpush1.msra.mxu0 0.0
  %1248 = vmatprep.subr.mxu0 0.0
  %1249 = vmatpush1.msra.mxu0 0.0
  %1250 = vmatprep.subr.mxu0 0.0
  %1251 = vmatpush1.msra.mxu0 0.0
  %1252 = vmatprep.subr.mxu0 0.0
  %1253 = vmatpush1.msra.mxu0 0.0
  %1254 = vmatprep.subr.mxu0 0.0
  %1255 = vmatpush1.msra.mxu0 0.0
  %1256 = vmatprep.subr.mxu0 0.0
  %1257 = vmatpush1.msra.mxu0 0.0
  %1258 = vmatprep.subr.mxu0 0.0
  %1259 = vmatpush1.msra.mxu0 0.0
  %1260 = vmatprep.subr.mxu0 0.0
  %1261 = vmatpush1.msra.mxu0 0.0
  %1262 = vmatprep.subr.mxu0 0.0
  %1263 = vmatpush1.msra.mxu0 0.0
  %1264 = vmatprep.subr.mxu0 0.0
  %1265 = vmatpush1.msra.mxu0 0.0
  %1266 = vmatprep.subr.mxu0 0.0
  %1267 = vmatpush1.msra.mxu0 0.0
  %1268 = vmatprep.subr.mxu0 0.0
  %1269 = vmatpush1.msra.mxu0 0.0
  %1270 = vmatprep.subr.mxu0 0.0
  %1271 = vmatpush1.msra.mxu0 0.0
  %1272 = vmatprep.subr.mxu0 0.0
  %1273 = vmatpush1.msra.mxu0 0.0
  %1274 = vmatprep.subr.mxu0 0.0
  %1275 = vmatpush1.msra.mxu0 0.0
  %1276 = vmatprep.subr.mxu0 0.0
  %1277 = vmatpush1.msra.mxu0 0.0
  %1278 = vmatprep.subr.mxu0 0.0
  %1279 = vmatpush1.msra.mxu0 0.0
  %1280 = vmatprep.subr.mxu0 0.0
  %1281 = vmatpush1.msra.mxu0 0.0
  %1282 = vmatprep.subr.mxu0 0.0
  %1283 = vmatpush1.msra.mxu0 0.0
  %1284 = vmatprep.mubr.f32.mxu0 0.0
  %1285 = vmatmul.mubr.f32.gmra.mrb[0].mxu0 %v1148
  %v1286 = vpop.f32.mrb[0].mxu0
  %v1287 = vadd.f32 0.0, %v1286
  %v1288 = vpop.f32.mrb[0].mxu0
  %1289 = vdwg.mxu0
  %1290 = vmatprep.subr.mxu0 0.0
  %1291 = vmatpush1.msra.mxu0 %v372
  %1292 = vmatprep.subr.mxu0 0.0
  %1293 = vmatpush1.msra.mxu0 %v373
  %1294 = vmatprep.subr.mxu0 0.0
  %1295 = vmatpush1.msra.mxu0 0.0
  %1296 = vmatprep.subr.mxu0 0.0
  %1297 = vmatpush1.msra.mxu0 0.0
  %1298 = vmatprep.subr.mxu0 0.0
  %1299 = vmatpush1.msra.mxu0 0.0
  %1300 = vmatprep.subr.mxu0 0.0
  %1301 = vmatpush1.msra.mxu0 0.0
  %1302 = vmatprep.subr.mxu0 0.0
  %1303 = vmatpush1.msra.mxu0 0.0
  %1304 = vmatprep.subr.mxu0 0.0
  %1305 = vmatpush1.msra.mxu0 0.0
  %1306 = vmatprep.subr.mxu0 0.0
  %1307 = vmatpush1.msra.mxu0 0.0
  %1308 = vmatprep.subr.mxu0 0.0
  %1309 = vmatpush1.msra.mxu0 0.0
  %1310 = vmatprep.subr.mxu0 0.0
  %1311 = vmatpush1.msra.mxu0 0.0
  %1312 = vmatprep.subr.mxu0 0.0
  %1313 = vmatpush1.msra.mxu0 0.0
  %1314 = vmatprep.subr.mxu0 0.0
  %1315 = vmatpush1.msra.mxu0 0.0
  %1316 = vmatprep.subr.mxu0 0.0
  %1317 = vmatpush1.msra.mxu0 0.0
  %1318 = vmatprep.subr.mxu0 0.0
  %1319 = vmatpush1.msra.mxu0 0.0
  %1320 = vmatprep.subr.mxu0 0.0
  %1321 = vmatpush1.msra.mxu0 0.0
  %1322 = vmatprep.subr.mxu0 0.0
  %1323 = vmatpush1.msra.mxu0 0.0
  %1324 = vmatprep.subr.mxu0 0.0
  %1325 = vmatpush1.msra.mxu0 0.0
  %1326 = vmatprep.subr.mxu0 0.0
  %1327 = vmatpush1.msra.mxu0 0.0
  %1328 = vmatprep.subr.mxu0 0.0
  %1329 = vmatpush1.msra.mxu0 0.0
  %1330 = vmatprep.subr.mxu0 0.0
  %1331 = vmatpush1.msra.mxu0 0.0
  %1332 = vmatprep.subr.mxu0 0.0
  %1333 = vmatpush1.msra.mxu0 0.0
  %1334 = vmatprep.subr.mxu0 0.0
  %1335 = vmatpush1.msra.mxu0 0.0
  %1336 = vmatprep.subr.mxu0 0.0
  %1337 = vmatpush1.msra.mxu0 0.0
  %1338 = vmatprep.subr.mxu0 0.0
  %1339 = vmatpush1.msra.mxu0 0.0
  %1340 = vmatprep.subr.mxu0 0.0
  %1341 = vmatpush1.msra.mxu0 0.0
  %1342 = vmatprep.subr.mxu0 0.0
  %1343 = vmatpush1.msra.mxu0 0.0
  %1344 = vmatprep.subr.mxu0 0.0
  %1345 = vmatpush1.msra.mxu0 0.0
  %1346 = vmatprep.subr.mxu0 0.0
  %1347 = vmatpush1.msra.mxu0 0.0
  %1348 = vmatprep.subr.mxu0 0.0
  %1349 = vmatpush1.msra.mxu0 0.0
  %1350 = vmatprep.subr.mxu0 0.0
  %1351 = vmatpush1.msra.mxu0 0.0
  %1352 = vmatprep.subr.mxu0 0.0
  %1353 = vmatpush1.msra.mxu0 0.0
  %1354 = vmatprep.mubr.f32.mxu0 0.0
  %1355 = vmatmul.mubr.f32.gmra.mrb[0].mxu0 %v1148
  %v1356 = vpop.f32.mrb[0].mxu0
  %v1357 = vadd.f32 %v782, %v1356
  %v1358 = vpop.f32.mrb[0].mxu0
  %1359 = vdwg.mxu0
  %v1360 = vadd.f32 %v1144, %v1217
  %v1361 = vxor.u32 %v1360, 2147483648
  %v1362 = vmul.f32 %v1361, 1.442695
  %v1363 = vpow.pop %v1362
  %v1364 = vadd.f32 %v1363, 1.0
  %v1365 = vrcp.pop %v1364
  %v1366 = vmul.f32 1.0, %v1365
  %v1367 = vadd.f32 %v1145, %v1287
  %v1368 = vxor.u32 %v1367, 2147483648
  %v1369 = vmul.f32 %v1368, 1.442695
  %v1370 = vpow.pop %v1369
  %v1371 = vadd.f32 %v1370, 1.0
  %v1372 = vrcp.pop %v1371
  %v1373 = vmul.f32 1.0, %v1372
  %v1374 = vmul.f32 %v1366, %v1357
  %v1375 = vadd.f32 %v1146, %v1374
  %v1376 = vtanh.pop %v1375
  %v1377 = vsub.f32 1.0, %v1373
  %v1378 = vmul.f32 %v1377, %v1376
  %v1379 = vmul.f32 %v1373, %v874
  %v1380 = vadd.f32 %v1378, %v1379
  %v1381 = vld [vmem:[%s2 + $0x18] sm:$0xf]
  %1383 = vset.pattern.permute.xlu0 0
  %1384 = vperm.xlu0 %1383, %v1381
  %v1385 = vpop.permute.xlu0 %1384
  %v1387 = vmul.f32 %v1380, %v1385
  %v1388 = vsub.f32 1.0, %v1381
  %v1389 = vmul.f32 %v1388, -1000000.0
  %1391 = vset.pattern.permute.xlu0 0
  %1392 = vperm.xlu0 %1391, %v1389
  %v1393 = vpop.permute.xlu0 %1392
  %v1395 = vadd.f32 %v1387, %v1393
  %v1396 = vmax.f32 %v890, %v1395
  %v1397 = vld [vmem:[#allocation2 + $0x8] sm:$0xf]
  %v1398 = vld [vmem:[#allocation3 + $0x8] sm:$0xf]
  %v1399 = vld [vmem:[#allocation4 + $0x8] sm:$0xf]
  %v1401 = vsel %vm281, %v1127, 0
  %1403 = vmatprep.subr.mxu0 0.0
  %1404 = vmatpush1.msra.mxu0 %v362
  %1405 = vmatprep.subr.mxu0 0.0
  %1406 = vmatpush1.msra.mxu0 %v363
  %1407 = vmatprep.subr.mxu0 0.0
  %1408 = vmatpush1.msra.mxu0 0.0
  %1409 = vmatprep.subr.mxu0 0.0
  %1410 = vmatpush1.msra.mxu0 0.0
  %1411 = vmatprep.subr.mxu0 0.0
  %1412 = vmatpush1.msra.mxu0 0.0
  %1413 = vmatprep.subr.mxu0 0.0
  %1414 = vmatpush1.msra.mxu0 0.0
  %1415 = vmatprep.subr.mxu0 0.0
  %1416 = vmatpush1.msra.mxu0 0.0
  %1417 = vmatprep.subr.mxu0 0.0
  %1418 = vmatpush1.msra.mxu0 0.0
  %1419 = vmatprep.subr.mxu0 0.0
  %1420 = vmatpush1.msra.mxu0 0.0
  %1421 = vmatprep.subr.mxu0 0.0
  %1422 = vmatpush1.msra.mxu0 0.0
  %1423 = vmatprep.subr.mxu0 0.0
  %1424 = vmatpush1.msra.mxu0 0.0
  %1425 = vmatprep.subr.mxu0 0.0
  %1426 = vmatpush1.msra.mxu0 0.0
  %1427 = vmatprep.subr.mxu0 0.0
  %1428 = vmatpush1.msra.mxu0 0.0
  %1429 = vmatprep.subr.mxu0 0.0
  %1430 = vmatpush1.msra.mxu0 0.0
  %1431 = vmatprep.subr.mxu0 0.0
  %1432 = vmatpush1.msra.mxu0 0.0
  %1433 = vmatprep.subr.mxu0 0.0
  %1434 = vmatpush1.msra.mxu0 0.0
  %1435 = vmatprep.subr.mxu0 0.0
  %1436 = vmatpush1.msra.mxu0 0.0
  %1437 = vmatprep.subr.mxu0 0.0
  %1438 = vmatpush1.msra.mxu0 0.0
  %1439 = vmatprep.subr.mxu0 0.0
  %1440 = vmatpush1.msra.mxu0 0.0
  %1441 = vmatprep.subr.mxu0 0.0
  %1442 = vmatpush1.msra.mxu0 0.0
  %1443 = vmatprep.subr.mxu0 0.0
  %1444 = vmatpush1.msra.mxu0 0.0
  %1445 = vmatprep.subr.mxu0 0.0
  %1446 = vmatpush1.msra.mxu0 0.0
  %1447 = vmatprep.subr.mxu0 0.0
  %1448 = vmatpush1.msra.mxu0 0.0
  %1449 = vmatprep.subr.mxu0 0.0
  %1450 = vmatpush1.msra.mxu0 0.0
  %1451 = vmatprep.subr.mxu0 0.0
  %1452 = vmatpush1.msra.mxu0 0.0
  %1453 = vmatprep.subr.mxu0 0.0
  %1454 = vmatpush1.msra.mxu0 0.0
  %1455 = vmatprep.subr.mxu0 0.0
  %1456 = vmatpush1.msra.mxu0 0.0
  %1457 = vmatprep.subr.mxu0 0.0
  %1458 = vmatpush1.msra.mxu0 0.0
  %1459 = vmatprep.subr.mxu0 0.0
  %1460 = vmatpush1.msra.mxu0 0.0
  %1461 = vmatprep.subr.mxu0 0.0
  %1462 = vmatpush1.msra.mxu0 0.0
  %1463 = vmatprep.subr.mxu0 0.0
  %1464 = vmatpush1.msra.mxu0 0.0
  %1465 = vmatprep.subr.mxu0 0.0
  %1466 = vmatpush1.msra.mxu0 0.0
  %1467 = vmatprep.mubr.f32.mxu0 0.0
  %1468 = vmatmul.mubr.f32.gmra.mrb[0].mxu0 %v1401
  %v1469 = vpop.f32.mrb[0].mxu0
  %v1470 = vadd.f32 0.0, %v1469
  %v1471 = vpop.f32.mrb[0].mxu0
  %1472 = vdwg.mxu0
  %1473 = vmatprep.subr.mxu0 0.0
  %1474 = vmatpush1.msra.mxu0 %v364
  %1475 = vmatprep.subr.mxu0 0.0
  %1476 = vmatpush1.msra.mxu0 %v365
  %1477 = vmatprep.subr.mxu0 0.0
  %1478 = vmatpush1.msra.mxu0 0.0
  %1479 = vmatprep.subr.mxu0 0.0
  %1480 = vmatpush1.msra.mxu0 0.0
  %1481 = vmatprep.subr.mxu0 0.0
  %1482 = vmatpush1.msra.mxu0 0.0
  %1483 = vmatprep.subr.mxu0 0.0
  %1484 = vmatpush1.msra.mxu0 0.0
  %1485 = vmatprep.subr.mxu0 0.0
  %1486 = vmatpush1.msra.mxu0 0.0
  %1487 = vmatprep.subr.mxu0 0.0
  %1488 = vmatpush1.msra.mxu0 0.0
  %1489 = vmatprep.subr.mxu0 0.0
  %1490 = vmatpush1.msra.mxu0 0.0
  %1491 = vmatprep.subr.mxu0 0.0
  %1492 = vmatpush1.msra.mxu0 0.0
  %1493 = vmatprep.subr.mxu0 0.0
  %1494 = vmatpush1.msra.mxu0 0.0
  %1495 = vmatprep.subr.mxu0 0.0
  %1496 = vmatpush1.msra.mxu0 0.0
  %1497 = vmatprep.subr.mxu0 0.0
  %1498 = vmatpush1.msra.mxu0 0.0
  %1499 = vmatprep.subr.mxu0 0.0
  %1500 = vmatpush1.msra.mxu0 0.0
  %1501 = vmatprep.subr.mxu0 0.0
  %1502 = vmatpush1.msra.mxu0 0.0
  %1503 = vmatprep.subr.mxu0 0.0
  %1504 = vmatpush1.msra.mxu0 0.0
  %1505 = vmatprep.subr.mxu0 0.0
  %1506 = vmatpush1.msra.mxu0 0.0
  %1507 = vmatprep.subr.mxu0 0.0
  %1508 = vmatpush1.msra.mxu0 0.0
  %1509 = vmatprep.subr.mxu0 0.0
  %1510 = vmatpush1.msra.mxu0 0.0
  %1511 = vmatprep.subr.mxu0 0.0
  %1512 = vmatpush1.msra.mxu0 0.0
  %1513 = vmatprep.subr.mxu0 0.0
  %1514 = vmatpush1.msra.mxu0 0.0
  %1515 = vmatprep.subr.mxu0 0.0
  %1516 = vmatpush1.msra.mxu0 0.0
  %1517 = vmatprep.subr.mxu0 0.0
  %1518 = vmatpush1.msra.mxu0 0.0
  %1519 = vmatprep.subr.mxu0 0.0
  %1520 = vmatpush1.msra.mxu0 0.0
  %1521 = vmatprep.subr.mxu0 0.0
  %1522 = vmatpush1.msra.mxu0 0.0
  %1523 = vmatprep.subr.mxu0 0.0
  %1524 = vmatpush1.msra.mxu0 0.0
  %1525 = vmatprep.subr.mxu0 0.0
  %1526 = vmatpush1.msra.mxu0 0.0
  %1527 = vmatprep.subr.mxu0 0.0
  %1528 = vmatpush1.msra.mxu0 0.0
  %1529 = vmatprep.subr.mxu0 0.0
  %1530 = vmatpush1.msra.mxu0 0.0
  %1531 = vmatprep.subr.mxu0 0.0
  %1532 = vmatpush1.msra.mxu0 0.0
  %1533 = vmatprep.subr.mxu0 0.0
  %1534 = vmatpush1.msra.mxu0 0.0
  %1535 = vmatprep.subr.mxu0 0.0
  %1536 = vmatpush1.msra.mxu0 0.0
  %1537 = vmatprep.mubr.f32.mxu0 0.0
  %1538 = vmatmul.mubr.f32.gmra.mrb[0].mxu0 %v1401
  %v1539 = vpop.f32.mrb[0].mxu0
  %v1540 = vadd.f32 0.0, %v1539
  %v1541 = vpop.f32.mrb[0].mxu0
  %1542 = vdwg.mxu0
  %1543 = vmatprep.subr.mxu0 0.0
  %1544 = vmatpush1.msra.mxu0 %v366
  %1545 = vmatprep.subr.mxu0 0.0
  %1546 = vmatpush1.msra.mxu0 %v367
  %1547 = vmatprep.subr.mxu0 0.0
  %1548 = vmatpush1.msra.mxu0 0.0
  %1549 = vmatprep.subr.mxu0 0.0
  %1550 = vmatpush1.msra.mxu0 0.0
  %1551 = vmatprep.subr.mxu0 0.0
  %1552 = vmatpush1.msra.mxu0 0.0
  %1553 = vmatprep.subr.mxu0 0.0
  %1554 = vmatpush1.msra.mxu0 0.0
  %1555 = vmatprep.subr.mxu0 0.0
  %1556 = vmatpush1.msra.mxu0 0.0
  %1557 = vmatprep.subr.mxu0 0.0
  %1558 = vmatpush1.msra.mxu0 0.0
  %1559 = vmatprep.subr.mxu0 0.0
  %1560 = vmatpush1.msra.mxu0 0.0
  %1561 = vmatprep.subr.mxu0 0.0
  %1562 = vmatpush1.msra.mxu0 0.0
  %1563 = vmatprep.subr.mxu0 0.0
  %1564 = vmatpush1.msra.mxu0 0.0
  %1565 = vmatprep.subr.mxu0 0.0
  %1566 = vmatpush1.msra.mxu0 0.0
  %1567 = vmatprep.subr.mxu0 0.0
  %1568 = vmatpush1.msra.mxu0 0.0
  %1569 = vmatprep.subr.mxu0 0.0
  %1570 = vmatpush1.msra.mxu0 0.0
  %1571 = vmatprep.subr.mxu0 0.0
  %1572 = vmatpush1.msra.mxu0 0.0
  %1573 = vmatprep.subr.mxu0 0.0
  %1574 = vmatpush1.msra.mxu0 0.0
  %1575 = vmatprep.subr.mxu0 0.0
  %1576 = vmatpush1.msra.mxu0 0.0
  %1577 = vmatprep.subr.mxu0 0.0
  %1578 = vmatpush1.msra.mxu0 0.0
  %1579 = vmatprep.subr.mxu0 0.0
  %1580 = vmatpush1.msra.mxu0 0.0
  %1581 = vmatprep.subr.mxu0 0.0
  %1582 = vmatpush1.msra.mxu0 0.0
  %1583 = vmatprep.subr.mxu0 0.0
  %1584 = vmatpush1.msra.mxu0 0.0
  %1585 = vmatprep.subr.mxu0 0.0
  %1586 = vmatpush1.msra.mxu0 0.0
  %1587 = vmatprep.subr.mxu0 0.0
  %1588 = vmatpush1.msra.mxu0 0.0
  %1589 = vmatprep.subr.mxu0 0.0
  %1590 = vmatpush1.msra.mxu0 0.0
  %1591 = vmatprep.subr.mxu0 0.0
  %1592 = vmatpush1.msra.mxu0 0.0
  %1593 = vmatprep.subr.mxu0 0.0
  %1594 = vmatpush1.msra.mxu0 0.0
  %1595 = vmatprep.subr.mxu0 0.0
  %1596 = vmatpush1.msra.mxu0 0.0
  %1597 = vmatprep.subr.mxu0 0.0
  %1598 = vmatpush1.msra.mxu0 0.0
  %1599 = vmatprep.subr.mxu0 0.0
  %1600 = vmatpush1.msra.mxu0 0.0
  %1601 = vmatprep.subr.mxu0 0.0
  %1602 = vmatpush1.msra.mxu0 0.0
  %1603 = vmatprep.subr.mxu0 0.0
  %1604 = vmatpush1.msra.mxu0 0.0
  %1605 = vmatprep.subr.mxu0 0.0
  %1606 = vmatpush1.msra.mxu0 0.0
  %1607 = vmatprep.mubr.f32.mxu0 0.0
  %1608 = vmatmul.mubr.f32.gmra.mrb[0].mxu0 %v1401
  %v1609 = vpop.f32.mrb[0].mxu0
  %v1610 = vadd.f32 %v526, %v1609
  %v1611 = vpop.f32.mrb[0].mxu0
  %1612 = vdwg.mxu0
  %v1613 = vadd.f32 %v1397, %v1470
  %v1614 = vxor.u32 %v1613, 2147483648
  %v1615 = vmul.f32 %v1614, 1.442695
  %v1616 = vpow.pop %v1615
  %v1617 = vadd.f32 %v1616, 1.0
  %v1618 = vrcp.pop %v1617
  %v1619 = vmul.f32 1.0, %v1618
  %v1620 = vadd.f32 %v1398, %v1540
  %v1621 = vxor.u32 %v1620, 2147483648
  %v1622 = vmul.f32 %v1621, 1.442695
  %v1623 = vpow.pop %v1622
  %v1624 = vadd.f32 %v1623, 1.0
  %v1625 = vrcp.pop %v1624
  %v1626 = vmul.f32 1.0, %v1625
  %v1627 = vmul.f32 %v1619, %v1610
  %v1628 = vadd.f32 %v1399, %v1627
  %v1629 = vtanh.pop %v1628
  %v1630 = vsub.f32 1.0, %v1626
  %v1631 = vmul.f32 %v1630, %v1629
  %v1632 = vmul.f32 %v1626, %v1127
  %v1633 = vadd.f32 %v1631, %v1632
  %v1634 = vld [vmem:[%s2 + $0x8] sm:$0xf]
  %1636 = vset.pattern.permute.xlu0 0
  %1637 = vperm.xlu0 %1636, %v1634
  %v1638 = vpop.permute.xlu0 %1637
  %v1640 = vmul.f32 %v1633, %v1638
  %v1641 = vsub.f32 1.0, %v1634
  %v1642 = vmul.f32 %v1641, -1000000.0
  %1644 = vset.pattern.permute.xlu0 0
  %1645 = vperm.xlu0 %1644, %v1642
  %v1646 = vpop.permute.xlu0 %1645
  %v1648 = vadd.f32 %v1640, %v1646
  %v1649 = vmax.f32 %v1143, %v1648
  %v1650 = vld [vmem:[#allocation5 + $0x8] sm:$0xf]
  %v1651 = vld [vmem:[#allocation6 + $0x8] sm:$0xf]
  %v1652 = vld [vmem:[#allocation7 + $0x8] sm:$0xf]
  %v1654 = vsel %vm281, %v1380, 0
  %1656 = vmatprep.subr.mxu0 0.0
  %1657 = vmatpush1.msra.mxu0 %v368
  %1658 = vmatprep.subr.mxu0 0.0
  %1659 = vmatpush1.msra.mxu0 %v369
  %1660 = vmatprep.subr.mxu0 0.0
  %1661 = vmatpush1.msra.mxu0 0.0
  %1662 = vmatprep.subr.mxu0 0.0
  %1663 = vmatpush1.msra.mxu0 0.0
  %1664 = vmatprep.subr.mxu0 0.0
  %1665 = vmatpush1.msra.mxu0 0.0
  %1666 = vmatprep.subr.mxu0 0.0
  %1667 = vmatpush1.msra.mxu0 0.0
  %1668 = vmatprep.subr.mxu0 0.0
  %1669 = vmatpush1.msra.mxu0 0.0
  %1670 = vmatprep.subr.mxu0 0.0
  %1671 = vmatpush1.msra.mxu0 0.0
  %1672 = vmatprep.subr.mxu0 0.0
  %1673 = vmatpush1.msra.mxu0 0.0
  %1674 = vmatprep.subr.mxu0 0.0
  %1675 = vmatpush1.msra.mxu0 0.0
  %1676 = vmatprep.subr.mxu0 0.0
  %1677 = vmatpush1.msra.mxu0 0.0
  %1678 = vmatprep.subr.mxu0 0.0
  %1679 = vmatpush1.msra.mxu0 0.0
  %1680 = vmatprep.subr.mxu0 0.0
  %1681 = vmatpush1.msra.mxu0 0.0
  %1682 = vmatprep.subr.mxu0 0.0
  %1683 = vmatpush1.msra.mxu0 0.0
  %1684 = vmatprep.subr.mxu0 0.0
  %1685 = vmatpush1.msra.mxu0 0.0
  %1686 = vmatprep.subr.mxu0 0.0
  %1687 = vmatpush1.msra.mxu0 0.0
  %1688 = vmatprep.subr.mxu0 0.0
  %1689 = vmatpush1.msra.mxu0 0.0
  %1690 = vmatprep.subr.mxu0 0.0
  %1691 = vmatpush1.msra.mxu0 0.0
  %1692 = vmatprep.subr.mxu0 0.0
  %1693 = vmatpush1.msra.mxu0 0.0
  %1694 = vmatprep.subr.mxu0 0.0
  %1695 = vmatpush1.msra.mxu0 0.0
  %1696 = vmatprep.subr.mxu0 0.0
  %1697 = vmatpush1.msra.mxu0 0.0
  %1698 = vmatprep.subr.mxu0 0.0
  %1699 = vmatpush1.msra.mxu0 0.0
  %1700 = vmatprep.subr.mxu0 0.0
  %1701 = vmatpush1.msra.mxu0 0.0
  %1702 = vmatprep.subr.mxu0 0.0
  %1703 = vmatpush1.msra.mxu0 0.0
  %1704 = vmatprep.subr.mxu0 0.0
  %1705 = vmatpush1.msra.mxu0 0.0
  %1706 = vmatprep.subr.mxu0 0.0
  %1707 = vmatpush1.msra.mxu0 0.0
  %1708 = vmatprep.subr.mxu0 0.0
  %1709 = vmatpush1.msra.mxu0 0.0
  %1710 = vmatprep.subr.mxu0 0.0
  %1711 = vmatpush1.msra.mxu0 0.0
  %1712 = vmatprep.subr.mxu0 0.0
  %1713 = vmatpush1.msra.mxu0 0.0
  %1714 = vmatprep.subr.mxu0 0.0
  %1715 = vmatpush1.msra.mxu0 0.0
  %1716 = vmatprep.subr.mxu0 0.0
  %1717 = vmatpush1.msra.mxu0 0.0
  %1718 = vmatprep.subr.mxu0 0.0
  %1719 = vmatpush1.msra.mxu0 0.0
  %1720 = vmatprep.mubr.f32.mxu0 0.0
  %1721 = vmatmul.mubr.f32.gmra.mrb[0].mxu0 %v1654
  %v1722 = vpop.f32.mrb[0].mxu0
  %v1723 = vadd.f32 0.0, %v1722
  %v1724 = vpop.f32.mrb[0].mxu0
  %1725 = vdwg.mxu0
  %1726 = vmatprep.subr.mxu0 0.0
  %1727 = vmatpush1.msra.mxu0 %v370
  %1728 = vmatprep.subr.mxu0 0.0
  %1729 = vmatpush1.msra.mxu0 %v371
  %1730 = vmatprep.subr.mxu0 0.0
  %1731 = vmatpush1.msra.mxu0 0.0
  %1732 = vmatprep.subr.mxu0 0.0
  %1733 = vmatpush1.msra.mxu0 0.0
  %1734 = vmatprep.subr.mxu0 0.0
  %1735 = vmatpush1.msra.mxu0 0.0
  %1736 = vmatprep.subr.mxu0 0.0
  %1737 = vmatpush1.msra.mxu0 0.0
  %1738 = vmatprep.subr.mxu0 0.0
  %1739 = vmatpush1.msra.mxu0 0.0
  %1740 = vmatprep.subr.mxu0 0.0
  %1741 = vmatpush1.msra.mxu0 0.0
  %1742 = vmatprep.subr.mxu0 0.0
  %1743 = vmatpush1.msra.mxu0 0.0
  %1744 = vmatprep.subr.mxu0 0.0
  %1745 = vmatpush1.msra.mxu0 0.0
  %1746 = vmatprep.subr.mxu0 0.0
  %1747 = vmatpush1.msra.mxu0 0.0
  %1748 = vmatprep.subr.mxu0 0.0
  %1749 = vmatpush1.msra.mxu0 0.0
  %1750 = vmatprep.subr.mxu0 0.0
  %1751 = vmatpush1.msra.mxu0 0.0
  %1752 = vmatprep.subr.mxu0 0.0
  %1753 = vmatpush1.msra.mxu0 0.0
  %1754 = vmatprep.subr.mxu0 0.0
  %1755 = vmatpush1.msra.mxu0 0.0
  %1756 = vmatprep.subr.mxu0 0.0
  %1757 = vmatpush1.msra.mxu0 0.0
  %1758 = vmatprep.subr.mxu0 0.0
  %1759 = vmatpush1.msra.mxu0 0.0
  %1760 = vmatprep.subr.mxu0 0.0
  %1761 = vmatpush1.msra.mxu0 0.0
  %1762 = vmatprep.subr.mxu0 0.0
  %1763 = vmatpush1.msra.mxu0 0.0
  %1764 = vmatprep.subr.mxu0 0.0
  %1765 = vmatpush1.msra.mxu0 0.0
  %1766 = vmatprep.subr.mxu0 0.0
  %1767 = vmatpush1.msra.mxu0 0.0
  %1768 = vmatprep.subr.mxu0 0.0
  %1769 = vmatpush1.msra.mxu0 0.0
  %1770 = vmatprep.subr.mxu0 0.0
  %1771 = vmatpush1.msra.mxu0 0.0
  %1772 = vmatprep.subr.mxu0 0.0
  %1773 = vmatpush1.msra.mxu0 0.0
  %1774 = vmatprep.subr.mxu0 0.0
  %1775 = vmatpush1.msra.mxu0 0.0
  %1776 = vmatprep.subr.mxu0 0.0
  %1777 = vmatpush1.msra.mxu0 0.0
  %1778 = vmatprep.subr.mxu0 0.0
  %1779 = vmatpush1.msra.mxu0 0.0
  %1780 = vmatprep.subr.mxu0 0.0
  %1781 = vmatpush1.msra.mxu0 0.0
  %1782 = vmatprep.subr.mxu0 0.0
  %1783 = vmatpush1.msra.mxu0 0.0
  %1784 = vmatprep.subr.mxu0 0.0
  %1785 = vmatpush1.msra.mxu0 0.0
  %1786 = vmatprep.subr.mxu0 0.0
  %1787 = vmatpush1.msra.mxu0 0.0
  %1788 = vmatprep.subr.mxu0 0.0
  %1789 = vmatpush1.msra.mxu0 0.0
  %1790 = vmatprep.mubr.f32.mxu0 0.0
  %1791 = vmatmul.mubr.f32.gmra.mrb[0].mxu0 %v1654
  %v1792 = vpop.f32.mrb[0].mxu0
  %v1793 = vadd.f32 0.0, %v1792
  %v1794 = vpop.f32.mrb[0].mxu0
  %1795 = vdwg.mxu0
  %1796 = vmatprep.subr.mxu0 0.0
  %1797 = vmatpush1.msra.mxu0 %v372
  %1798 = vmatprep.subr.mxu0 0.0
  %1799 = vmatpush1.msra.mxu0 %v373
  %1800 = vmatprep.subr.mxu0 0.0
  %1801 = vmatpush1.msra.mxu0 0.0
  %1802 = vmatprep.subr.mxu0 0.0
  %1803 = vmatpush1.msra.mxu0 0.0
  %1804 = vmatprep.subr.mxu0 0.0
  %1805 = vmatpush1.msra.mxu0 0.0
  %1806 = vmatprep.subr.mxu0 0.0
  %1807 = vmatpush1.msra.mxu0 0.0
  %1808 = vmatprep.subr.mxu0 0.0
  %1809 = vmatpush1.msra.mxu0 0.0
  %1810 = vmatprep.subr.mxu0 0.0
  %1811 = vmatpush1.msra.mxu0 0.0
  %1812 = vmatprep.subr.mxu0 0.0
  %1813 = vmatpush1.msra.mxu0 0.0
  %1814 = vmatprep.subr.mxu0 0.0
  %1815 = vmatpush1.msra.mxu0 0.0
  %1816 = vmatprep.subr.mxu0 0.0
  %1817 = vmatpush1.msra.mxu0 0.0
  %1818 = vmatprep.subr.mxu0 0.0
  %1819 = vmatpush1.msra.mxu0 0.0
  %1820 = vmatprep.subr.mxu0 0.0
  %1821 = vmatpush1.msra.mxu0 0.0
  %1822 = vmatprep.subr.mxu0 0.0
  %1823 = vmatpush1.msra.mxu0 0.0
  %1824 = vmatprep.subr.mxu0 0.0
  %1825 = vmatpush1.msra.mxu0 0.0
  %1826 = vmatprep.subr.mxu0 0.0
  %1827 = vmatpush1.msra.mxu0 0.0
  %1828 = vmatprep.subr.mxu0 0.0
  %1829 = vmatpush1.msra.mxu0 0.0
  %1830 = vmatprep.subr.mxu0 0.0
  %1831 = vmatpush1.msra.mxu0 0.0
  %1832 = vmatprep.subr.mxu0 0.0
  %1833 = vmatpush1.msra.mxu0 0.0
  %1834 = vmatprep.subr.mxu0 0.0
  %1835 = vmatpush1.msra.mxu0 0.0
  %1836 = vmatprep.subr.mxu0 0.0
  %1837 = vmatpush1.msra.mxu0 0.0
  %1838 = vmatprep.subr.mxu0 0.0
  %1839 = vmatpush1.msra.mxu0 0.0
  %1840 = vmatprep.subr.mxu0 0.0
  %1841 = vmatpush1.msra.mxu0 0.0
  %1842 = vmatprep.subr.mxu0 0.0
  %1843 = vmatpush1.msra.mxu0 0.0
  %1844 = vmatprep.subr.mxu0 0.0
  %1845 = vmatpush1.msra.mxu0 0.0
  %1846 = vmatprep.subr.mxu0 0.0
  %1847 = vmatpush1.msra.mxu0 0.0
  %1848 = vmatprep.subr.mxu0 0.0
  %1849 = vmatpush1.msra.mxu0 0.0
  %1850 = vmatprep.subr.mxu0 0.0
  %1851 = vmatpush1.msra.mxu0 0.0
  %1852 = vmatprep.subr.mxu0 0.0
  %1853 = vmatpush1.msra.mxu0 0.0
  %1854 = vmatprep.subr.mxu0 0.0
  %1855 = vmatpush1.msra.mxu0 0.0
  %1856 = vmatprep.subr.mxu0 0.0
  %1857 = vmatpush1.msra.mxu0 0.0
  %1858 = vmatprep.subr.mxu0 0.0
  %1859 = vmatpush1.msra.mxu0 0.0
  %1860 = vmatprep.mubr.f32.mxu0 0.0
  %1861 = vmatmul.mubr.f32.gmra.mrb[0].mxu0 %v1654
  %v1862 = vpop.f32.mrb[0].mxu0
  %v1863 = vadd.f32 %v782, %v1862
  %v1864 = vpop.f32.mrb[0].mxu0
  %1865 = vdwg.mxu0
  %v1866 = vadd.f32 %v1650, %v1723
  %v1867 = vxor.u32 %v1866, 2147483648
  %v1868 = vmul.f32 %v1867, 1.442695
  %v1869 = vpow.pop %v1868
  %v1870 = vadd.f32 %v1869, 1.0
  %v1871 = vrcp.pop %v1870
  %v1872 = vmul.f32 1.0, %v1871
  %v1873 = vadd.f32 %v1651, %v1793
  %v1874 = vxor.u32 %v1873, 2147483648
  %v1875 = vmul.f32 %v1874, 1.442695
  %v1876 = vpow.pop %v1875
  %v1877 = vadd.f32 %v1876, 1.0
  %v1878 = vrcp.pop %v1877
  %v1879 = vmul.f32 1.0, %v1878
  %v1880 = vmul.f32 %v1872, %v1863
  %v1881 = vadd.f32 %v1652, %v1880
  %v1882 = vtanh.pop %v1881
  %v1883 = vsub.f32 1.0, %v1879
  %v1884 = vmul.f32 %v1883, %v1882
  %v1885 = vmul.f32 %v1879, %v1380
  %v1886 = vadd.f32 %v1884, %v1885
  %v1887 = vld [vmem:[%s2 + $0x14] sm:$0xf]
  %1889 = vset.pattern.permute.xlu0 0
  %1890 = vperm.xlu0 %1889, %v1887
  %v1891 = vpop.permute.xlu0 %1890
  %v1893 = vmul.f32 %v1886, %v1891
  %v1894 = vsub.f32 1.0, %v1887
  %v1895 = vmul.f32 %v1894, -1000000.0
  %1897 = vset.pattern.permute.xlu0 0
  %1898 = vperm.xlu0 %1897, %v1895
  %v1899 = vpop.permute.xlu0 %1898
  %v1901 = vadd.f32 %v1893, %v1899
  %v1902 = vmax.f32 %v1396, %v1901
  %v1903 = vld [vmem:[#allocation2 + $0xc] sm:$0xf]
  %v1904 = vld [vmem:[#allocation3 + $0xc] sm:$0xf]
  %v1905 = vld [vmem:[#allocation4 + $0xc] sm:$0xf]
  %v1907 = vsel %vm281, %v1633, 0
  %1909 = vmatprep.subr.mxu0 0.0
  %1910 = vmatpush1.msra.mxu0 %v362
  %1911 = vmatprep.subr.mxu0 0.0
  %1912 = vmatpush1.msra.mxu0 %v363
  %1913 = vmatprep.subr.mxu0 0.0
  %1914 = vmatpush1.msra.mxu0 0.0
  %1915 = vmatprep.subr.mxu0 0.0
  %1916 = vmatpush1.msra.mxu0 0.0
  %1917 = vmatprep.subr.mxu0 0.0
  %1918 = vmatpush1.msra.mxu0 0.0
  %1919 = vmatprep.subr.mxu0 0.0
  %1920 = vmatpush1.msra.mxu0 0.0
  %1921 = vmatprep.subr.mxu0 0.0
  %1922 = vmatpush1.msra.mxu0 0.0
  %1923 = vmatprep.subr.mxu0 0.0
  %1924 = vmatpush1.msra.mxu0 0.0
  %1925 = vmatprep.subr.mxu0 0.0
  %1926 = vmatpush1.msra.mxu0 0.0
  %1927 = vmatprep.subr.mxu0 0.0
  %1928 = vmatpush1.msra.mxu0 0.0
  %1929 = vmatprep.subr.mxu0 0.0
  %1930 = vmatpush1.msra.mxu0 0.0
  %1931 = vmatprep.subr.mxu0 0.0
  %1932 = vmatpush1.msra.mxu0 0.0
  %1933 = vmatprep.subr.mxu0 0.0
  %1934 = vmatpush1.msra.mxu0 0.0
  %1935 = vmatprep.subr.mxu0 0.0
  %1936 = vmatpush1.msra.mxu0 0.0
  %1937 = vmatprep.subr.mxu0 0.0
  %1938 = vmatpush1.msra.mxu0 0.0
  %1939 = vmatprep.subr.mxu0 0.0
  %1940 = vmatpush1.msra.mxu0 0.0
  %1941 = vmatprep.subr.mxu0 0.0
  %1942 = vmatpush1.msra.mxu0 0.0
  %1943 = vmatprep.subr.mxu0 0.0
  %1944 = vmatpush1.msra.mxu0 0.0
  %1945 = vmatprep.subr.mxu0 0.0
  %1946 = vmatpush1.msra.mxu0 0.0
  %1947 = vmatprep.subr.mxu0 0.0
  %1948 = vmatpush1.msra.mxu0 0.0
  %1949 = vmatprep.subr.mxu0 0.0
  %1950 = vmatpush1.msra.mxu0 0.0
  %1951 = vmatprep.subr.mxu0 0.0
  %1952 = vmatpush1.msra.mxu0 0.0
  %1953 = vmatprep.subr.mxu0 0.0
  %1954 = vmatpush1.msra.mxu0 0.0
  %1955 = vmatprep.subr.mxu0 0.0
  %1956 = vmatpush1.msra.mxu0 0.0
  %1957 = vmatprep.subr.mxu0 0.0
  %1958 = vmatpush1.msra.mxu0 0.0
  %1959 = vmatprep.subr.mxu0 0.0
  %1960 = vmatpush1.msra.mxu0 0.0
  %1961 = vmatprep.subr.mxu0 0.0
  %1962 = vmatpush1.msra.mxu0 0.0
  %1963 = vmatprep.subr.mxu0 0.0
  %1964 = vmatpush1.msra.mxu0 0.0
  %1965 = vmatprep.subr.mxu0 0.0
  %1966 = vmatpush1.msra.mxu0 0.0
  %1967 = vmatprep.subr.mxu0 0.0
  %1968 = vmatpush1.msra.mxu0 0.0
  %1969 = vmatprep.subr.mxu0 0.0
  %1970 = vmatpush1.msra.mxu0 0.0
  %1971 = vmatprep.subr.mxu0 0.0
  %1972 = vmatpush1.msra.mxu0 0.0
  %1973 = vmatprep.mubr.f32.mxu0 0.0
  %1974 = vmatmul.mubr.f32.gmra.mrb[0].mxu0 %v1907
  %v1975 = vpop.f32.mrb[0].mxu0
  %v1976 = vadd.f32 0.0, %v1975
  %v1977 = vpop.f32.mrb[0].mxu0
  %1978 = vdwg.mxu0
  %1979 = vmatprep.subr.mxu0 0.0
  %1980 = vmatpush1.msra.mxu0 %v364
  %1981 = vmatprep.subr.mxu0 0.0
  %1982 = vmatpush1.msra.mxu0 %v365
  %1983 = vmatprep.subr.mxu0 0.0
  %1984 = vmatpush1.msra.mxu0 0.0
  %1985 = vmatprep.subr.mxu0 0.0
  %1986 = vmatpush1.msra.mxu0 0.0
  %1987 = vmatprep.subr.mxu0 0.0
  %1988 = vmatpush1.msra.mxu0 0.0
  %1989 = vmatprep.subr.mxu0 0.0
  %1990 = vmatpush1.msra.mxu0 0.0
  %1991 = vmatprep.subr.mxu0 0.0
  %1992 = vmatpush1.msra.mxu0 0.0
  %1993 = vmatprep.subr.mxu0 0.0
  %1994 = vmatpush1.msra.mxu0 0.0
  %1995 = vmatprep.subr.mxu0 0.0
  %1996 = vmatpush1.msra.mxu0 0.0
  %1997 = vmatprep.subr.mxu0 0.0
  %1998 = vmatpush1.msra.mxu0 0.0
  %1999 = vmatprep.subr.mxu0 0.0
  %2000 = vmatpush1.msra.mxu0 0.0
  %2001 = vmatprep.subr.mxu0 0.0
  %2002 = vmatpush1.msra.mxu0 0.0
  %2003 = vmatprep.subr.mxu0 0.0
  %2004 = vmatpush1.msra.mxu0 0.0
  %2005 = vmatprep.subr.mxu0 0.0
  %2006 = vmatpush1.msra.mxu0 0.0
  %2007 = vmatprep.subr.mxu0 0.0
  %2008 = vmatpush1.msra.mxu0 0.0
  %2009 = vmatprep.subr.mxu0 0.0
  %2010 = vmatpush1.msra.mxu0 0.0
  %2011 = vmatprep.subr.mxu0 0.0
  %2012 = vmatpush1.msra.mxu0 0.0
  %2013 = vmatprep.subr.mxu0 0.0
  %2014 = vmatpush1.msra.mxu0 0.0
  %2015 = vmatprep.subr.mxu0 0.0
  %2016 = vmatpush1.msra.mxu0 0.0
  %2017 = vmatprep.subr.mxu0 0.0
  %2018 = vmatpush1.msra.mxu0 0.0
  %2019 = vmatprep.subr.mxu0 0.0
  %2020 = vmatpush1.msra.mxu0 0.0
  %2021 = vmatprep.subr.mxu0 0.0
  %2022 = vmatpush1.msra.mxu0 0.0
  %2023 = vmatprep.subr.mxu0 0.0
  %2024 = vmatpush1.msra.mxu0 0.0
  %2025 = vmatprep.subr.mxu0 0.0
  %2026 = vmatpush1.msra.mxu0 0.0
  %2027 = vmatprep.subr.mxu0 0.0
  %2028 = vmatpush1.msra.mxu0 0.0
  %2029 = vmatprep.subr.mxu0 0.0
  %2030 = vmatpush1.msra.mxu0 0.0
  %2031 = vmatprep.subr.mxu0 0.0
  %2032 = vmatpush1.msra.mxu0 0.0
  %2033 = vmatprep.subr.mxu0 0.0
  %2034 = vmatpush1.msra.mxu0 0.0
  %2035 = vmatprep.subr.mxu0 0.0
  %2036 = vmatpush1.msra.mxu0 0.0
  %2037 = vmatprep.subr.mxu0 0.0
  %2038 = vmatpush1.msra.mxu0 0.0
  %2039 = vmatprep.subr.mxu0 0.0
  %2040 = vmatpush1.msra.mxu0 0.0
  %2041 = vmatprep.subr.mxu0 0.0
  %2042 = vmatpush1.msra.mxu0 0.0
  %2043 = vmatprep.mubr.f32.mxu0 0.0
  %2044 = vmatmul.mubr.f32.gmra.mrb[0].mxu0 %v1907
  %v2045 = vpop.f32.mrb[0].mxu0
  %v2046 = vadd.f32 0.0, %v2045
  %v2047 = vpop.f32.mrb[0].mxu0
  %2048 = vdwg.mxu0
  %2049 = vmatprep.subr.mxu0 0.0
  %2050 = vmatpush1.msra.mxu0 %v366
  %2051 = vmatprep.subr.mxu0 0.0
  %2052 = vmatpush1.msra.mxu0 %v367
  %2053 = vmatprep.subr.mxu0 0.0
  %2054 = vmatpush1.msra.mxu0 0.0
  %2055 = vmatprep.subr.mxu0 0.0
  %2056 = vmatpush1.msra.mxu0 0.0
  %2057 = vmatprep.subr.mxu0 0.0
  %2058 = vmatpush1.msra.mxu0 0.0
  %2059 = vmatprep.subr.mxu0 0.0
  %2060 = vmatpush1.msra.mxu0 0.0
  %2061 = vmatprep.subr.mxu0 0.0
  %2062 = vmatpush1.msra.mxu0 0.0
  %2063 = vmatprep.subr.mxu0 0.0
  %2064 = vmatpush1.msra.mxu0 0.0
  %2065 = vmatprep.subr.mxu0 0.0
  %2066 = vmatpush1.msra.mxu0 0.0
  %2067 = vmatprep.subr.mxu0 0.0
  %2068 = vmatpush1.msra.mxu0 0.0
  %2069 = vmatprep.subr.mxu0 0.0
  %2070 = vmatpush1.msra.mxu0 0.0
  %2071 = vmatprep.subr.mxu0 0.0
  %2072 = vmatpush1.msra.mxu0 0.0
  %2073 = vmatprep.subr.mxu0 0.0
  %2074 = vmatpush1.msra.mxu0 0.0
  %2075 = vmatprep.subr.mxu0 0.0
  %2076 = vmatpush1.msra.mxu0 0.0
  %2077 = vmatprep.subr.mxu0 0.0
  %2078 = vmatpush1.msra.mxu0 0.0
  %2079 = vmatprep.subr.mxu0 0.0
  %2080 = vmatpush1.msra.mxu0 0.0
  %2081 = vmatprep.subr.mxu0 0.0
  %2082 = vmatpush1.msra.mxu0 0.0
  %2083 = vmatprep.subr.mxu0 0.0
  %2084 = vmatpush1.msra.mxu0 0.0
  %2085 = vmatprep.subr.mxu0 0.0
  %2086 = vmatpush1.msra.mxu0 0.0
  %2087 = vmatprep.subr.mxu0 0.0
  %2088 = vmatpush1.msra.mxu0 0.0
  %2089 = vmatprep.subr.mxu0 0.0
  %2090 = vmatpush1.msra.mxu0 0.0
  %2091 = vmatprep.subr.mxu0 0.0
  %2092 = vmatpush1.msra.mxu0 0.0
  %2093 = vmatprep.subr.mxu0 0.0
  %2094 = vmatpush1.msra.mxu0 0.0
  %2095 = vmatprep.subr.mxu0 0.0
  %2096 = vmatpush1.msra.mxu0 0.0
  %2097 = vmatprep.subr.mxu0 0.0
  %2098 = vmatpush1.msra.mxu0 0.0
  %2099 = vmatprep.subr.mxu0 0.0
  %2100 = vmatpush1.msra.mxu0 0.0
  %2101 = vmatprep.subr.mxu0 0.0
  %2102 = vmatpush1.msra.mxu0 0.0
  %2103 = vmatprep.subr.mxu0 0.0
  %2104 = vmatpush1.msra.mxu0 0.0
  %2105 = vmatprep.subr.mxu0 0.0
  %2106 = vmatpush1.msra.mxu0 0.0
  %2107 = vmatprep.subr.mxu0 0.0
  %2108 = vmatpush1.msra.mxu0 0.0
  %2109 = vmatprep.subr.mxu0 0.0
  %2110 = vmatpush1.msra.mxu0 0.0
  %2111 = vmatprep.subr.mxu0 0.0
  %2112 = vmatpush1.msra.mxu0 0.0
  %2113 = vmatprep.mubr.f32.mxu0 0.0
  %2114 = vmatmul.mubr.f32.gmra.mrb[0].mxu0 %v1907
  %v2115 = vpop.f32.mrb[0].mxu0
  %v2116 = vadd.f32 %v526, %v2115
  %v2117 = vpop.f32.mrb[0].mxu0
  %2118 = vdwg.mxu0
  %v2119 = vadd.f32 %v1903, %v1976
  %v2120 = vxor.u32 %v2119, 2147483648
  %v2121 = vmul.f32 %v2120, 1.442695
  %v2122 = vpow.pop %v2121
  %v2123 = vadd.f32 %v2122, 1.0
  %v2124 = vrcp.pop %v2123
  %v2125 = vmul.f32 1.0, %v2124
  %v2126 = vadd.f32 %v1904, %v2046
  %v2127 = vxor.u32 %v2126, 2147483648
  %v2128 = vmul.f32 %v2127, 1.442695
  %v2129 = vpow.pop %v2128
  %v2130 = vadd.f32 %v2129, 1.0
  %v2131 = vrcp.pop %v2130
  %v2132 = vmul.f32 1.0, %v2131
  %v2133 = vmul.f32 %v2125, %v2116
  %v2134 = vadd.f32 %v1905, %v2133
  %v2135 = vtanh.pop %v2134
  %v2136 = vsub.f32 1.0, %v2132
  %v2137 = vmul.f32 %v2136, %v2135
  %v2138 = vmul.f32 %v2132, %v1633
  %v2139 = vadd.f32 %v2137, %v2138
  %v2140 = vld [vmem:[%s2 + $0xc] sm:$0xf]
  %2142 = vset.pattern.permute.xlu0 0
  %2143 = vperm.xlu0 %2142, %v2140
  %v2144 = vpop.permute.xlu0 %2143
  %v2146 = vmul.f32 %v2139, %v2144
  %v2147 = vsub.f32 1.0, %v2140
  %v2148 = vmul.f32 %v2147, -1000000.0
  %2150 = vset.pattern.permute.xlu0 0
  %2151 = vperm.xlu0 %2150, %v2148
  %v2152 = vpop.permute.xlu0 %2151
  %v2154 = vadd.f32 %v2146, %v2152
  %v2155 = vmax.f32 %v1649, %v2154
  %v2156 = vld [vmem:[#allocation5 + $0xc] sm:$0xf]
  %v2157 = vld [vmem:[#allocation6 + $0xc] sm:$0xf]
  %v2158 = vld [vmem:[#allocation7 + $0xc] sm:$0xf]
  %v2160 = vsel %vm281, %v1886, 0
  %2162 = vmatprep.subr.mxu0 0.0
  %2163 = vmatpush1.msra.mxu0 %v368
  %2164 = vmatprep.subr.mxu0 0.0
  %2165 = vmatpush1.msra.mxu0 %v369
  %2166 = vmatprep.subr.mxu0 0.0
  %2167 = vmatpush1.msra.mxu0 0.0
  %2168 = vmatprep.subr.mxu0 0.0
  %2169 = vmatpush1.msra.mxu0 0.0
  %2170 = vmatprep.subr.mxu0 0.0
  %2171 = vmatpush1.msra.mxu0 0.0
  %2172 = vmatprep.subr.mxu0 0.0
  %2173 = vmatpush1.msra.mxu0 0.0
  %2174 = vmatprep.subr.mxu0 0.0
  %2175 = vmatpush1.msra.mxu0 0.0
  %2176 = vmatprep.subr.mxu0 0.0
  %2177 = vmatpush1.msra.mxu0 0.0
  %2178 = vmatprep.subr.mxu0 0.0
  %2179 = vmatpush1.msra.mxu0 0.0
  %2180 = vmatprep.subr.mxu0 0.0
  %2181 = vmatpush1.msra.mxu0 0.0
  %2182 = vmatprep.subr.mxu0 0.0
  %2183 = vmatpush1.msra.mxu0 0.0
  %2184 = vmatprep.subr.mxu0 0.0
  %2185 = vmatpush1.msra.mxu0 0.0
  %2186 = vmatprep.subr.mxu0 0.0
  %2187 = vmatpush1.msra.mxu0 0.0
  %2188 = vmatprep.subr.mxu0 0.0
  %2189 = vmatpush1.msra.mxu0 0.0
  %2190 = vmatprep.subr.mxu0 0.0
  %2191 = vmatpush1.msra.mxu0 0.0
  %2192 = vmatprep.subr.mxu0 0.0
  %2193 = vmatpush1.msra.mxu0 0.0
  %2194 = vmatprep.subr.mxu0 0.0
  %2195 = vmatpush1.msra.mxu0 0.0
  %2196 = vmatprep.subr.mxu0 0.0
  %2197 = vmatpush1.msra.mxu0 0.0
  %2198 = vmatprep.subr.mxu0 0.0
  %2199 = vmatpush1.msra.mxu0 0.0
  %2200 = vmatprep.subr.mxu0 0.0
  %2201 = vmatpush1.msra.mxu0 0.0
  %2202 = vmatprep.subr.mxu0 0.0
  %2203 = vmatpush1.msra.mxu0 0.0
  %2204 = vmatprep.subr.mxu0 0.0
  %2205 = vmatpush1.msra.mxu0 0.0
  %2206 = vmatprep.subr.mxu0 0.0
  %2207 = vmatpush1.msra.mxu0 0.0
  %2208 = vmatprep.subr.mxu0 0.0
  %2209 = vmatpush1.msra.mxu0 0.0
  %2210 = vmatprep.subr.mxu0 0.0
  %2211 = vmatpush1.msra.mxu0 0.0
  %2212 = vmatprep.subr.mxu0 0.0
  %2213 = vmatpush1.msra.mxu0 0.0
  %2214 = vmatprep.subr.mxu0 0.0
  %2215 = vmatpush1.msra.mxu0 0.0
  %2216 = vmatprep.subr.mxu0 0.0
  %2217 = vmatpush1.msra.mxu0 0.0
  %2218 = vmatprep.subr.mxu0 0.0
  %2219 = vmatpush1.msra.mxu0 0.0
  %2220 = vmatprep.subr.mxu0 0.0
  %2221 = vmatpush1.msra.mxu0 0.0
  %2222 = vmatprep.subr.mxu0 0.0
  %2223 = vmatpush1.msra.mxu0 0.0
  %2224 = vmatprep.subr.mxu0 0.0
  %2225 = vmatpush1.msra.mxu0 0.0
  %2226 = vmatprep.mubr.f32.mxu0 0.0
  %2227 = vmatmul.mubr.f32.gmra.mrb[0].mxu0 %v2160
  %v2228 = vpop.f32.mrb[0].mxu0
  %v2229 = vadd.f32 0.0, %v2228
  %v2230 = vpop.f32.mrb[0].mxu0
  %2231 = vdwg.mxu0
  %2232 = vmatprep.subr.mxu0 0.0
  %2233 = vmatpush1.msra.mxu0 %v370
  %2234 = vmatprep.subr.mxu0 0.0
  %2235 = vmatpush1.msra.mxu0 %v371
  %2236 = vmatprep.subr.mxu0 0.0
  %2237 = vmatpush1.msra.mxu0 0.0
  %2238 = vmatprep.subr.mxu0 0.0
  %2239 = vmatpush1.msra.mxu0 0.0
  %2240 = vmatprep.subr.mxu0 0.0
  %2241 = vmatpush1.msra.mxu0 0.0
  %2242 = vmatprep.subr.mxu0 0.0
  %2243 = vmatpush1.msra.mxu0 0.0
  %2244 = vmatprep.subr.mxu0 0.0
  %2245 = vmatpush1.msra.mxu0 0.0
  %2246 = vmatprep.subr.mxu0 0.0
  %2247 = vmatpush1.msra.mxu0 0.0
  %2248 = vmatprep.subr.mxu0 0.0
  %2249 = vmatpush1.msra.mxu0 0.0
  %2250 = vmatprep.subr.mxu0 0.0
  %2251 = vmatpush1.msra.mxu0 0.0
  %2252 = vmatprep.subr.mxu0 0.0
  %2253 = vmatpush1.msra.mxu0 0.0
  %2254 = vmatprep.subr.mxu0 0.0
  %2255 = vmatpush1.msra.mxu0 0.0
  %2256 = vmatprep.subr.mxu0 0.0
  %2257 = vmatpush1.msra.mxu0 0.0
  %2258 = vmatprep.subr.mxu0 0.0
  %2259 = vmatpush1.msra.mxu0 0.0
  %2260 = vmatprep.subr.mxu0 0.0
  %2261 = vmatpush1.msra.mxu0 0.0
  %2262 = vmatprep.subr.mxu0 0.0
  %2263 = vmatpush1.msra.mxu0 0.0
  %2264 = vmatprep.subr.mxu0 0.0
  %2265 = vmatpush1.msra.mxu0 0.0
  %2266 = vmatprep.subr.mxu0 0.0
  %2267 = vmatpush1.msra.mxu0 0.0
  %2268 = vmatprep.subr.mxu0 0.0
  %2269 = vmatpush1.msra.mxu0 0.0
  %2270 = vmatprep.subr.mxu0 0.0
  %2271 = vmatpush1.msra.mxu0 0.0
  %2272 = vmatprep.subr.mxu0 0.0
  %2273 = vmatpush1.msra.mxu0 0.0
  %2274 = vmatprep.subr.mxu0 0.0
  %2275 = vmatpush1.msra.mxu0 0.0
  %2276 = vmatprep.subr.mxu0 0.0
  %2277 = vmatpush1.msra.mxu0 0.0
  %2278 = vmatprep.subr.mxu0 0.0
  %2279 = vmatpush1.msra.mxu0 0.0
  %2280 = vmatprep.subr.mxu0 0.0
  %2281 = vmatpush1.msra.mxu0 0.0
  %2282 = vmatprep.subr.mxu0 0.0
  %2283 = vmatpush1.msra.mxu0 0.0
  %2284 = vmatprep.subr.mxu0 0.0
  %2285 = vmatpush1.msra.mxu0 0.0
  %2286 = vmatprep.subr.mxu0 0.0
  %2287 = vmatpush1.msra.mxu0 0.0
  %2288 = vmatprep.subr.mxu0 0.0
  %2289 = vmatpush1.msra.mxu0 0.0
  %2290 = vmatprep.subr.mxu0 0.0
  %2291 = vmatpush1.msra.mxu0 0.0
  %2292 = vmatprep.subr.mxu0 0.0
  %2293 = vmatpush1.msra.mxu0 0.0
  %2294 = vmatprep.subr.mxu0 0.0
  %2295 = vmatpush1.msra.mxu0 0.0
  %2296 = vmatprep.mubr.f32.mxu0 0.0
  %2297 = vmatmul.mubr.f32.gmra.mrb[0].mxu0 %v2160
  %v2298 = vpop.f32.mrb[0].mxu0
  %v2299 = vadd.f32 0.0, %v2298
  %v2300 = vpop.f32.mrb[0].mxu0
  %2301 = vdwg.mxu0
  %2302 = vmatprep.subr.mxu0 0.0
  %2303 = vmatpush1.msra.mxu0 %v372
  %2304 = vmatprep.subr.mxu0 0.0
  %2305 = vmatpush1.msra.mxu0 %v373
  %2306 = vmatprep.subr.mxu0 0.0
  %2307 = vmatpush1.msra.mxu0 0.0
  %2308 = vmatprep.subr.mxu0 0.0
  %2309 = vmatpush1.msra.mxu0 0.0
  %2310 = vmatprep.subr.mxu0 0.0
  %2311 = vmatpush1.msra.mxu0 0.0
  %2312 = vmatprep.subr.mxu0 0.0
  %2313 = vmatpush1.msra.mxu0 0.0
  %2314 = vmatprep.subr.mxu0 0.0
  %2315 = vmatpush1.msra.mxu0 0.0
  %2316 = vmatprep.subr.mxu0 0.0
  %2317 = vmatpush1.msra.mxu0 0.0
  %2318 = vmatprep.subr.mxu0 0.0
  %2319 = vmatpush1.msra.mxu0 0.0
  %2320 = vmatprep.subr.mxu0 0.0
  %2321 = vmatpush1.msra.mxu0 0.0
  %2322 = vmatprep.subr.mxu0 0.0
  %2323 = vmatpush1.msra.mxu0 0.0
  %2324 = vmatprep.subr.mxu0 0.0
  %2325 = vmatpush1.msra.mxu0 0.0
  %2326 = vmatprep.subr.mxu0 0.0
  %2327 = vmatpush1.msra.mxu0 0.0
  %2328 = vmatprep.subr.mxu0 0.0
  %2329 = vmatpush1.msra.mxu0 0.0
  %2330 = vmatprep.subr.mxu0 0.0
  %2331 = vmatpush1.msra.mxu0 0.0
  %2332 = vmatprep.subr.mxu0 0.0
  %2333 = vmatpush1.msra.mxu0 0.0
  %2334 = vmatprep.subr.mxu0 0.0
  %2335 = vmatpush1.msra.mxu0 0.0
  %2336 = vmatprep.subr.mxu0 0.0
  %2337 = vmatpush1.msra.mxu0 0.0
  %2338 = vmatprep.subr.mxu0 0.0
  %2339 = vmatpush1.msra.mxu0 0.0
  %2340 = vmatprep.subr.mxu0 0.0
  %2341 = vmatpush1.msra.mxu0 0.0
  %2342 = vmatprep.subr.mxu0 0.0
  %2343 = vmatpush1.msra.mxu0 0.0
  %2344 = vmatprep.subr.mxu0 0.0
  %2345 = vmatpush1.msra.mxu0 0.0
  %2346 = vmatprep.subr.mxu0 0.0
  %2347 = vmatpush1.msra.mxu0 0.0
  %2348 = vmatprep.subr.mxu0 0.0
  %2349 = vmatpush1.msra.mxu0 0.0
  %2350 = vmatprep.subr.mxu0 0.0
  %2351 = vmatpush1.msra.mxu0 0.0
  %2352 = vmatprep.subr.mxu0 0.0
  %2353 = vmatpush1.msra.mxu0 0.0
  %2354 = vmatprep.subr.mxu0 0.0
  %2355 = vmatpush1.msra.mxu0 0.0
  %2356 = vmatprep.subr.mxu0 0.0
  %2357 = vmatpush1.msra.mxu0 0.0
  %2358 = vmatprep.subr.mxu0 0.0
  %2359 = vmatpush1.msra.mxu0 0.0
  %2360 = vmatprep.subr.mxu0 0.0
  %2361 = vmatpush1.msra.mxu0 0.0
  %2362 = vmatprep.subr.mxu0 0.0
  %2363 = vmatpush1.msra.mxu0 0.0
  %2364 = vmatprep.subr.mxu0 0.0
  %2365 = vmatpush1.msra.mxu0 0.0
  %2366 = vmatprep.mubr.f32.mxu0 0.0
  %2367 = vmatmul.mubr.f32.gmra.mrb[0].mxu0 %v2160
  %v2368 = vpop.f32.mrb[0].mxu0
  %v2369 = vadd.f32 %v782, %v2368
  %v2370 = vpop.f32.mrb[0].mxu0
  %2371 = vdwg.mxu0
  %v2372 = vadd.f32 %v2156, %v2229
  %v2373 = vxor.u32 %v2372, 2147483648
  %v2374 = vmul.f32 %v2373, 1.442695
  %v2375 = vpow.pop %v2374
  %v2376 = vadd.f32 %v2375, 1.0
  %v2377 = vrcp.pop %v2376
  %v2378 = vmul.f32 1.0, %v2377
  %v2379 = vadd.f32 %v2157, %v2299
  %v2380 = vxor.u32 %v2379, 2147483648
  %v2381 = vmul.f32 %v2380, 1.442695
  %v2382 = vpow.pop %v2381
  %v2383 = vadd.f32 %v2382, 1.0
  %v2384 = vrcp.pop %v2383
  %v2385 = vmul.f32 1.0, %v2384
  %v2386 = vmul.f32 %v2378, %v2369
  %v2387 = vadd.f32 %v2158, %v2386
  %v2388 = vtanh.pop %v2387
  %v2389 = vsub.f32 1.0, %v2385
  %v2390 = vmul.f32 %v2389, %v2388
  %v2391 = vmul.f32 %v2385, %v1886
  %v2392 = vadd.f32 %v2390, %v2391
  %v2393 = vld [vmem:[%s2 + $0x10] sm:$0xf]
  %2395 = vset.pattern.permute.xlu0 0
  %2396 = vperm.xlu0 %2395, %v2393
  %v2397 = vpop.permute.xlu0 %2396
  %v2399 = vmul.f32 %v2392, %v2397
  %v2400 = vsub.f32 1.0, %v2393
  %v2401 = vmul.f32 %v2400, -1000000.0
  %2403 = vset.pattern.permute.xlu0 0
  %2404 = vperm.xlu0 %2403, %v2401
  %v2405 = vpop.permute.xlu0 %2404
  %v2407 = vadd.f32 %v2399, %v2405
  %v2408 = vmax.f32 %v1902, %v2407
  %v2409 = vld [vmem:[#allocation2 + $0x10] sm:$0xf]
  %v2410 = vld [vmem:[#allocation3 + $0x10] sm:$0xf]
  %v2411 = vld [vmem:[#allocation4 + $0x10] sm:$0xf]
  %v2413 = vsel %vm281, %v2139, 0
  %2415 = vmatprep.subr.mxu0 0.0
  %2416 = vmatpush1.msra.mxu0 %v362
  %2417 = vmatprep.subr.mxu0 0.0
  %2418 = vmatpush1.msra.mxu0 %v363
  %2419 = vmatprep.subr.mxu0 0.0
  %2420 = vmatpush1.msra.mxu0 0.0
  %2421 = vmatprep.subr.mxu0 0.0
  %2422 = vmatpush1.msra.mxu0 0.0
  %2423 = vmatprep.subr.mxu0 0.0
  %2424 = vmatpush1.msra.mxu0 0.0
  %2425 = vmatprep.subr.mxu0 0.0
  %2426 = vmatpush1.msra.mxu0 0.0
  %2427 = vmatprep.subr.mxu0 0.0
  %2428 = vmatpush1.msra.mxu0 0.0
  %2429 = vmatprep.subr.mxu0 0.0
  %2430 = vmatpush1.msra.mxu0 0.0
  %2431 = vmatprep.subr.mxu0 0.0
  %2432 = vmatpush1.msra.mxu0 0.0
  %2433 = vmatprep.subr.mxu0 0.0
  %2434 = vmatpush1.msra.mxu0 0.0
  %2435 = vmatprep.subr.mxu0 0.0
  %2436 = vmatpush1.msra.mxu0 0.0
  %2437 = vmatprep.subr.mxu0 0.0
  %2438 = vmatpush1.msra.mxu0 0.0
  %2439 = vmatprep.subr.mxu0 0.0
  %2440 = vmatpush1.msra.mxu0 0.0
  %2441 = vmatprep.subr.mxu0 0.0
  %2442 = vmatpush1.msra.mxu0 0.0
  %2443 = vmatprep.subr.mxu0 0.0
  %2444 = vmatpush1.msra.mxu0 0.0
  %2445 = vmatprep.subr.mxu0 0.0
  %2446 = vmatpush1.msra.mxu0 0.0
  %2447 = vmatprep.subr.mxu0 0.0
  %2448 = vmatpush1.msra.mxu0 0.0
  %2449 = vmatprep.subr.mxu0 0.0
  %2450 = vmatpush1.msra.mxu0 0.0
  %2451 = vmatprep.subr.mxu0 0.0
  %2452 = vmatpush1.msra.mxu0 0.0
  %2453 = vmatprep.subr.mxu0 0.0
  %2454 = vmatpush1.msra.mxu0 0.0
  %2455 = vmatprep.subr.mxu0 0.0
  %2456 = vmatpush1.msra.mxu0 0.0
  %2457 = vmatprep.subr.mxu0 0.0
  %2458 = vmatpush1.msra.mxu0 0.0
  %2459 = vmatprep.subr.mxu0 0.0
  %2460 = vmatpush1.msra.mxu0 0.0
  %2461 = vmatprep.subr.mxu0 0.0
  %2462 = vmatpush1.msra.mxu0 0.0
  %2463 = vmatprep.subr.mxu0 0.0
  %2464 = vmatpush1.msra.mxu0 0.0
  %2465 = vmatprep.subr.mxu0 0.0
  %2466 = vmatpush1.msra.mxu0 0.0
  %2467 = vmatprep.subr.mxu0 0.0
  %2468 = vmatpush1.msra.mxu0 0.0
  %2469 = vmatprep.subr.mxu0 0.0
  %2470 = vmatpush1.msra.mxu0 0.0
  %2471 = vmatprep.subr.mxu0 0.0
  %2472 = vmatpush1.msra.mxu0 0.0
  %2473 = vmatprep.subr.mxu0 0.0
  %2474 = vmatpush1.msra.mxu0 0.0
  %2475 = vmatprep.subr.mxu0 0.0
  %2476 = vmatpush1.msra.mxu0 0.0
  %2477 = vmatprep.subr.mxu0 0.0
  %2478 = vmatpush1.msra.mxu0 0.0
  %2479 = vmatprep.mubr.f32.mxu0 0.0
  %2480 = vmatmul.mubr.f32.gmra.mrb[0].mxu0 %v2413
  %v2481 = vpop.f32.mrb[0].mxu0
  %v2482 = vadd.f32 0.0, %v2481
  %v2483 = vpop.f32.mrb[0].mxu0
  %2484 = vdwg.mxu0
  %2485 = vmatprep.subr.mxu0 0.0
  %2486 = vmatpush1.msra.mxu0 %v364
  %2487 = vmatprep.subr.mxu0 0.0
  %2488 = vmatpush1.msra.mxu0 %v365
  %2489 = vmatprep.subr.mxu0 0.0
  %2490 = vmatpush1.msra.mxu0 0.0
  %2491 = vmatprep.subr.mxu0 0.0
  %2492 = vmatpush1.msra.mxu0 0.0
  %2493 = vmatprep.subr.mxu0 0.0
  %2494 = vmatpush1.msra.mxu0 0.0
  %2495 = vmatprep.subr.mxu0 0.0
  %2496 = vmatpush1.msra.mxu0 0.0
  %2497 = vmatprep.subr.mxu0 0.0
  %2498 = vmatpush1.msra.mxu0 0.0
  %2499 = vmatprep.subr.mxu0 0.0
  %2500 = vmatpush1.msra.mxu0 0.0
  %2501 = vmatprep.subr.mxu0 0.0
  %2502 = vmatpush1.msra.mxu0 0.0
  %2503 = vmatprep.subr.mxu0 0.0
  %2504 = vmatpush1.msra.mxu0 0.0
  %2505 = vmatprep.subr.mxu0 0.0
  %2506 = vmatpush1.msra.mxu0 0.0
  %2507 = vmatprep.subr.mxu0 0.0
  %2508 = vmatpush1.msra.mxu0 0.0
  %2509 = vmatprep.subr.mxu0 0.0
  %2510 = vmatpush1.msra.mxu0 0.0
  %2511 = vmatprep.subr.mxu0 0.0
  %2512 = vmatpush1.msra.mxu0 0.0
  %2513 = vmatprep.subr.mxu0 0.0
  %2514 = vmatpush1.msra.mxu0 0.0
  %2515 = vmatprep.subr.mxu0 0.0
  %2516 = vmatpush1.msra.mxu0 0.0
  %2517 = vmatprep.subr.mxu0 0.0
  %2518 = vmatpush1.msra.mxu0 0.0
  %2519 = vmatprep.subr.mxu0 0.0
  %2520 = vmatpush1.msra.mxu0 0.0
  %2521 = vmatprep.subr.mxu0 0.0
  %2522 = vmatpush1.msra.mxu0 0.0
  %2523 = vmatprep.subr.mxu0 0.0
  %2524 = vmatpush1.msra.mxu0 0.0
  %2525 = vmatprep.subr.mxu0 0.0
  %2526 = vmatpush1.msra.mxu0 0.0
  %2527 = vmatprep.subr.mxu0 0.0
  %2528 = vmatpush1.msra.mxu0 0.0
  %2529 = vmatprep.subr.mxu0 0.0
  %2530 = vmatpush1.msra.mxu0 0.0
  %2531 = vmatprep.subr.mxu0 0.0
  %2532 = vmatpush1.msra.mxu0 0.0
  %2533 = vmatprep.subr.mxu0 0.0
  %2534 = vmatpush1.msra.mxu0 0.0
  %2535 = vmatprep.subr.mxu0 0.0
  %2536 = vmatpush1.msra.mxu0 0.0
  %2537 = vmatprep.subr.mxu0 0.0
  %2538 = vmatpush1.msra.mxu0 0.0
  %2539 = vmatprep.subr.mxu0 0.0
  %2540 = vmatpush1.msra.mxu0 0.0
  %2541 = vmatprep.subr.mxu0 0.0
  %2542 = vmatpush1.msra.mxu0 0.0
  %2543 = vmatprep.subr.mxu0 0.0
  %2544 = vmatpush1.msra.mxu0 0.0
  %2545 = vmatprep.subr.mxu0 0.0
  %2546 = vmatpush1.msra.mxu0 0.0
  %2547 = vmatprep.subr.mxu0 0.0
  %2548 = vmatpush1.msra.mxu0 0.0
  %2549 = vmatprep.mubr.f32.mxu0 0.0
  %2550 = vmatmul.mubr.f32.gmra.mrb[0].mxu0 %v2413
  %v2551 = vpop.f32.mrb[0].mxu0
  %v2552 = vadd.f32 0.0, %v2551
  %v2553 = vpop.f32.mrb[0].mxu0
  %2554 = vdwg.mxu0
  %2555 = vmatprep.subr.mxu0 0.0
  %2556 = vmatpush1.msra.mxu0 %v366
  %2557 = vmatprep.subr.mxu0 0.0
  %2558 = vmatpush1.msra.mxu0 %v367
  %2559 = vmatprep.subr.mxu0 0.0
  %2560 = vmatpush1.msra.mxu0 0.0
  %2561 = vmatprep.subr.mxu0 0.0
  %2562 = vmatpush1.msra.mxu0 0.0
  %2563 = vmatprep.subr.mxu0 0.0
  %2564 = vmatpush1.msra.mxu0 0.0
  %2565 = vmatprep.subr.mxu0 0.0
  %2566 = vmatpush1.msra.mxu0 0.0
  %2567 = vmatprep.subr.mxu0 0.0
  %2568 = vmatpush1.msra.mxu0 0.0
  %2569 = vmatprep.subr.mxu0 0.0
  %2570 = vmatpush1.msra.mxu0 0.0
  %2571 = vmatprep.subr.mxu0 0.0
  %2572 = vmatpush1.msra.mxu0 0.0
  %2573 = vmatprep.subr.mxu0 0.0
  %2574 = vmatpush1.msra.mxu0 0.0
  %2575 = vmatprep.subr.mxu0 0.0
  %2576 = vmatpush1.msra.mxu0 0.0
  %2577 = vmatprep.subr.mxu0 0.0
  %2578 = vmatpush1.msra.mxu0 0.0
  %2579 = vmatprep.subr.mxu0 0.0
  %2580 = vmatpush1.msra.mxu0 0.0
  %2581 = vmatprep.subr.mxu0 0.0
  %2582 = vmatpush1.msra.mxu0 0.0
  %2583 = vmatprep.subr.mxu0 0.0
  %2584 = vmatpush1.msra.mxu0 0.0
  %2585 = vmatprep.subr.mxu0 0.0
  %2586 = vmatpush1.msra.mxu0 0.0
  %2587 = vmatprep.subr.mxu0 0.0
  %2588 = vmatpush1.msra.mxu0 0.0
  %2589 = vmatprep.subr.mxu0 0.0
  %2590 = vmatpush1.msra.mxu0 0.0
  %2591 = vmatprep.subr.mxu0 0.0
  %2592 = vmatpush1.msra.mxu0 0.0
  %2593 = vmatprep.subr.mxu0 0.0
  %2594 = vmatpush1.msra.mxu0 0.0
  %2595 = vmatprep.subr.mxu0 0.0
  %2596 = vmatpush1.msra.mxu0 0.0
  %2597 = vmatprep.subr.mxu0 0.0
  %2598 = vmatpush1.msra.mxu0 0.0
  %2599 = vmatprep.subr.mxu0 0.0
  %2600 = vmatpush1.msra.mxu0 0.0
  %2601 = vmatprep.subr.mxu0 0.0
  %2602 = vmatpush1.msra.mxu0 0.0
  %2603 = vmatprep.subr.mxu0 0.0
  %2604 = vmatpush1.msra.mxu0 0.0
  %2605 = vmatprep.subr.mxu0 0.0
  %2606 = vmatpush1.msra.mxu0 0.0
  %2607 = vmatprep.subr.mxu0 0.0
  %2608 = vmatpush1.msra.mxu0 0.0
  %2609 = vmatprep.subr.mxu0 0.0
  %2610 = vmatpush1.msra.mxu0 0.0
  %2611 = vmatprep.subr.mxu0 0.0
  %2612 = vmatpush1.msra.mxu0 0.0
  %2613 = vmatprep.subr.mxu0 0.0
  %2614 = vmatpush1.msra.mxu0 0.0
  %2615 = vmatprep.subr.mxu0 0.0
  %2616 = vmatpush1.msra.mxu0 0.0
  %2617 = vmatprep.subr.mxu0 0.0
  %2618 = vmatpush1.msra.mxu0 0.0
  %2619 = vmatprep.mubr.f32.mxu0 0.0
  %2620 = vmatmul.mubr.f32.gmra.mrb[0].mxu0 %v2413
  %v2621 = vpop.f32.mrb[0].mxu0
  %v2622 = vadd.f32 %v526, %v2621
  %v2623 = vpop.f32.mrb[0].mxu0
  %2624 = vdwg.mxu0
  %v2625 = vadd.f32 %v2409, %v2482
  %v2626 = vxor.u32 %v2625, 2147483648
  %v2627 = vmul.f32 %v2626, 1.442695
  %v2628 = vpow.pop %v2627
  %v2629 = vadd.f32 %v2628, 1.0
  %v2630 = vrcp.pop %v2629
  %v2631 = vmul.f32 1.0, %v2630
  %v2632 = vadd.f32 %v2410, %v2552
  %v2633 = vxor.u32 %v2632, 2147483648
  %v2634 = vmul.f32 %v2633, 1.442695
  %v2635 = vpow.pop %v2634
  %v2636 = vadd.f32 %v2635, 1.0
  %v2637 = vrcp.pop %v2636
  %v2638 = vmul.f32 1.0, %v2637
  %v2639 = vmul.f32 %v2631, %v2622
  %v2640 = vadd.f32 %v2411, %v2639
  %v2641 = vtanh.pop %v2640
  %v2642 = vsub.f32 1.0, %v2638
  %v2643 = vmul.f32 %v2642, %v2641
  %v2644 = vmul.f32 %v2638, %v2139
  %v2645 = vadd.f32 %v2643, %v2644
  %v2646 = vmul.f32 %v2645, %v2397
  %v2647 = vadd.f32 %v2646, %v2405
  %v2648 = vmax.f32 %v2155, %v2647
  %v2649 = vld [vmem:[#allocation5 + $0x10] sm:$0xf]
  %v2650 = vld [vmem:[#allocation6 + $0x10] sm:$0xf]
  %v2651 = vld [vmem:[#allocation7 + $0x10] sm:$0xf]
  %v2653 = vsel %vm281, %v2392, 0
  %2655 = vmatprep.subr.mxu0 0.0
  %2656 = vmatpush1.msra.mxu0 %v368
  %2657 = vmatprep.subr.mxu0 0.0
  %2658 = vmatpush1.msra.mxu0 %v369
  %2659 = vmatprep.subr.mxu0 0.0
  %2660 = vmatpush1.msra.mxu0 0.0
  %2661 = vmatprep.subr.mxu0 0.0
  %2662 = vmatpush1.msra.mxu0 0.0
  %2663 = vmatprep.subr.mxu0 0.0
  %2664 = vmatpush1.msra.mxu0 0.0
  %2665 = vmatprep.subr.mxu0 0.0
  %2666 = vmatpush1.msra.mxu0 0.0
  %2667 = vmatprep.subr.mxu0 0.0
  %2668 = vmatpush1.msra.mxu0 0.0
  %2669 = vmatprep.subr.mxu0 0.0
  %2670 = vmatpush1.msra.mxu0 0.0
  %2671 = vmatprep.subr.mxu0 0.0
  %2672 = vmatpush1.msra.mxu0 0.0
  %2673 = vmatprep.subr.mxu0 0.0
  %2674 = vmatpush1.msra.mxu0 0.0
  %2675 = vmatprep.subr.mxu0 0.0
  %2676 = vmatpush1.msra.mxu0 0.0
  %2677 = vmatprep.subr.mxu0 0.0
  %2678 = vmatpush1.msra.mxu0 0.0
  %2679 = vmatprep.subr.mxu0 0.0
  %2680 = vmatpush1.msra.mxu0 0.0
  %2681 = vmatprep.subr.mxu0 0.0
  %2682 = vmatpush1.msra.mxu0 0.0
  %2683 = vmatprep.subr.mxu0 0.0
  %2684 = vmatpush1.msra.mxu0 0.0
  %2685 = vmatprep.subr.mxu0 0.0
  %2686 = vmatpush1.msra.mxu0 0.0
  %2687 = vmatprep.subr.mxu0 0.0
  %2688 = vmatpush1.msra.mxu0 0.0
  %2689 = vmatprep.subr.mxu0 0.0
  %2690 = vmatpush1.msra.mxu0 0.0
  %2691 = vmatprep.subr.mxu0 0.0
  %2692 = vmatpush1.msra.mxu0 0.0
  %2693 = vmatprep.subr.mxu0 0.0
  %2694 = vmatpush1.msra.mxu0 0.0
  %2695 = vmatprep.subr.mxu0 0.0
  %2696 = vmatpush1.msra.mxu0 0.0
  %2697 = vmatprep.subr.mxu0 0.0
  %2698 = vmatpush1.msra.mxu0 0.0
  %2699 = vmatprep.subr.mxu0 0.0
  %2700 = vmatpush1.msra.mxu0 0.0
  %2701 = vmatprep.subr.mxu0 0.0
  %2702 = vmatpush1.msra.mxu0 0.0
  %2703 = vmatprep.subr.mxu0 0.0
  %2704 = vmatpush1.msra.mxu0 0.0
  %2705 = vmatprep.subr.mxu0 0.0
  %2706 = vmatpush1.msra.mxu0 0.0
  %2707 = vmatprep.subr.mxu0 0.0
  %2708 = vmatpush1.msra.mxu0 0.0
  %2709 = vmatprep.subr.mxu0 0.0
  %2710 = vmatpush1.msra.mxu0 0.0
  %2711 = vmatprep.subr.mxu0 0.0
  %2712 = vmatpush1.msra.mxu0 0.0
  %2713 = vmatprep.subr.mxu0 0.0
  %2714 = vmatpush1.msra.mxu0 0.0
  %2715 = vmatprep.subr.mxu0 0.0
  %2716 = vmatpush1.msra.mxu0 0.0
  %2717 = vmatprep.subr.mxu0 0.0
  %2718 = vmatpush1.msra.mxu0 0.0
  %2719 = vmatprep.mubr.f32.mxu0 0.0
  %2720 = vmatmul.mubr.f32.gmra.mrb[0].mxu0 %v2653
  %v2721 = vpop.f32.mrb[0].mxu0
  %v2722 = vadd.f32 0.0, %v2721
  %v2723 = vpop.f32.mrb[0].mxu0
  %2724 = vdwg.mxu0
  %2725 = vmatprep.subr.mxu0 0.0
  %2726 = vmatpush1.msra.mxu0 %v370
  %2727 = vmatprep.subr.mxu0 0.0
  %2728 = vmatpush1.msra.mxu0 %v371
  %2729 = vmatprep.subr.mxu0 0.0
  %2730 = vmatpush1.msra.mxu0 0.0
  %2731 = vmatprep.subr.mxu0 0.0
  %2732 = vmatpush1.msra.mxu0 0.0
  %2733 = vmatprep.subr.mxu0 0.0
  %2734 = vmatpush1.msra.mxu0 0.0
  %2735 = vmatprep.subr.mxu0 0.0
  %2736 = vmatpush1.msra.mxu0 0.0
  %2737 = vmatprep.subr.mxu0 0.0
  %2738 = vmatpush1.msra.mxu0 0.0
  %2739 = vmatprep.subr.mxu0 0.0
  %2740 = vmatpush1.msra.mxu0 0.0
  %2741 = vmatprep.subr.mxu0 0.0
  %2742 = vmatpush1.msra.mxu0 0.0
  %2743 = vmatprep.subr.mxu0 0.0
  %2744 = vmatpush1.msra.mxu0 0.0
  %2745 = vmatprep.subr.mxu0 0.0
  %2746 = vmatpush1.msra.mxu0 0.0
  %2747 = vmatprep.subr.mxu0 0.0
  %2748 = vmatpush1.msra.mxu0 0.0
  %2749 = vmatprep.subr.mxu0 0.0
  %2750 = vmatpush1.msra.mxu0 0.0
  %2751 = vmatprep.subr.mxu0 0.0
  %2752 = vmatpush1.msra.mxu0 0.0
  %2753 = vmatprep.subr.mxu0 0.0
  %2754 = vmatpush1.msra.mxu0 0.0
  %2755 = vmatprep.subr.mxu0 0.0
  %2756 = vmatpush1.msra.mxu0 0.0
  %2757 = vmatprep.subr.mxu0 0.0
  %2758 = vmatpush1.msra.mxu0 0.0
  %2759 = vmatprep.subr.mxu0 0.0
  %2760 = vmatpush1.msra.mxu0 0.0
  %2761 = vmatprep.subr.mxu0 0.0
  %2762 = vmatpush1.msra.mxu0 0.0
  %2763 = vmatprep.subr.mxu0 0.0
  %2764 = vmatpush1.msra.mxu0 0.0
  %2765 = vmatprep.subr.mxu0 0.0
  %2766 = vmatpush1.msra.mxu0 0.0
  %2767 = vmatprep.subr.mxu0 0.0
  %2768 = vmatpush1.msra.mxu0 0.0
  %2769 = vmatprep.subr.mxu0 0.0
  %2770 = vmatpush1.msra.mxu0 0.0
  %2771 = vmatprep.subr.mxu0 0.0
  %2772 = vmatpush1.msra.mxu0 0.0
  %2773 = vmatprep.subr.mxu0 0.0
  %2774 = vmatpush1.msra.mxu0 0.0
  %2775 = vmatprep.subr.mxu0 0.0
  %2776 = vmatpush1.msra.mxu0 0.0
  %2777 = vmatprep.subr.mxu0 0.0
  %2778 = vmatpush1.msra.mxu0 0.0
  %2779 = vmatprep.subr.mxu0 0.0
  %2780 = vmatpush1.msra.mxu0 0.0
  %2781 = vmatprep.subr.mxu0 0.0
  %2782 = vmatpush1.msra.mxu0 0.0
  %2783 = vmatprep.subr.mxu0 0.0
  %2784 = vmatpush1.msra.mxu0 0.0
  %2785 = vmatprep.subr.mxu0 0.0
  %2786 = vmatpush1.msra.mxu0 0.0
  %2787 = vmatprep.subr.mxu0 0.0
  %2788 = vmatpush1.msra.mxu0 0.0
  %2789 = vmatprep.mubr.f32.mxu0 0.0
  %2790 = vmatmul.mubr.f32.gmra.mrb[0].mxu0 %v2653
  %v2791 = vpop.f32.mrb[0].mxu0
  %v2792 = vadd.f32 0.0, %v2791
  %v2793 = vpop.f32.mrb[0].mxu0
  %2794 = vdwg.mxu0
  %2795 = vmatprep.subr.mxu0 0.0
  %2796 = vmatpush1.msra.mxu0 %v372
  %2797 = vmatprep.subr.mxu0 0.0
  %2798 = vmatpush1.msra.mxu0 %v373
  %2799 = vmatprep.subr.mxu0 0.0
  %2800 = vmatpush1.msra.mxu0 0.0
  %2801 = vmatprep.subr.mxu0 0.0
  %2802 = vmatpush1.msra.mxu0 0.0
  %2803 = vmatprep.subr.mxu0 0.0
  %2804 = vmatpush1.msra.mxu0 0.0
  %2805 = vmatprep.subr.mxu0 0.0
  %2806 = vmatpush1.msra.mxu0 0.0
  %2807 = vmatprep.subr.mxu0 0.0
  %2808 = vmatpush1.msra.mxu0 0.0
  %2809 = vmatprep.subr.mxu0 0.0
  %2810 = vmatpush1.msra.mxu0 0.0
  %2811 = vmatprep.subr.mxu0 0.0
  %2812 = vmatpush1.msra.mxu0 0.0
  %2813 = vmatprep.subr.mxu0 0.0
  %2814 = vmatpush1.msra.mxu0 0.0
  %2815 = vmatprep.subr.mxu0 0.0
  %2816 = vmatpush1.msra.mxu0 0.0
  %2817 = vmatprep.subr.mxu0 0.0
  %2818 = vmatpush1.msra.mxu0 0.0
  %2819 = vmatprep.subr.mxu0 0.0
  %2820 = vmatpush1.msra.mxu0 0.0
  %2821 = vmatprep.subr.mxu0 0.0
  %2822 = vmatpush1.msra.mxu0 0.0
  %2823 = vmatprep.subr.mxu0 0.0
  %2824 = vmatpush1.msra.mxu0 0.0
  %2825 = vmatprep.subr.mxu0 0.0
  %2826 = vmatpush1.msra.mxu0 0.0
  %2827 = vmatprep.subr.mxu0 0.0
  %2828 = vmatpush1.msra.mxu0 0.0
  %2829 = vmatprep.subr.mxu0 0.0
  %2830 = vmatpush1.msra.mxu0 0.0
  %2831 = vmatprep.subr.mxu0 0.0
  %2832 = vmatpush1.msra.mxu0 0.0
  %2833 = vmatprep.subr.mxu0 0.0
  %2834 = vmatpush1.msra.mxu0 0.0
  %2835 = vmatprep.subr.mxu0 0.0
  %2836 = vmatpush1.msra.mxu0 0.0
  %2837 = vmatprep.subr.mxu0 0.0
  %2838 = vmatpush1.msra.mxu0 0.0
  %2839 = vmatprep.subr.mxu0 0.0
  %2840 = vmatpush1.msra.mxu0 0.0
  %2841 = vmatprep.subr.mxu0 0.0
  %2842 = vmatpush1.msra.mxu0 0.0
  %2843 = vmatprep.subr.mxu0 0.0
  %2844 = vmatpush1.msra.mxu0 0.0
  %2845 = vmatprep.subr.mxu0 0.0
  %2846 = vmatpush1.msra.mxu0 0.0
  %2847 = vmatprep.subr.mxu0 0.0
  %2848 = vmatpush1.msra.mxu0 0.0
  %2849 = vmatprep.subr.mxu0 0.0
  %2850 = vmatpush1.msra.mxu0 0.0
  %2851 = vmatprep.subr.mxu0 0.0
  %2852 = vmatpush1.msra.mxu0 0.0
  %2853 = vmatprep.subr.mxu0 0.0
  %2854 = vmatpush1.msra.mxu0 0.0
  %2855 = vmatprep.subr.mxu0 0.0
  %2856 = vmatpush1.msra.mxu0 0.0
  %2857 = vmatprep.subr.mxu0 0.0
  %2858 = vmatpush1.msra.mxu0 0.0
  %2859 = vmatprep.mubr.f32.mxu0 0.0
  %2860 = vmatmul.mubr.f32.gmra.mrb[0].mxu0 %v2653
  %v2861 = vpop.f32.mrb[0].mxu0
  %v2862 = vadd.f32 %v782, %v2861
  %v2863 = vpop.f32.mrb[0].mxu0
  %2864 = vdwg.mxu0
  %v2865 = vadd.f32 %v2649, %v2722
  %v2866 = vxor.u32 %v2865, 2147483648
  %v2867 = vmul.f32 %v2866, 1.442695
  %v2868 = vpow.pop %v2867
  %v2869 = vadd.f32 %v2868, 1.0
  %v2870 = vrcp.pop %v2869
  %v2871 = vmul.f32 1.0, %v2870
  %v2872 = vadd.f32 %v2650, %v2792
  %v2873 = vxor.u32 %v2872, 2147483648
  %v2874 = vmul.f32 %v2873, 1.442695
  %v2875 = vpow.pop %v2874
  %v2876 = vadd.f32 %v2875, 1.0
  %v2877 = vrcp.pop %v2876
  %v2878 = vmul.f32 1.0, %v2877
  %v2879 = vmul.f32 %v2871, %v2862
  %v2880 = vadd.f32 %v2651, %v2879
  %v2881 = vtanh.pop %v2880
  %v2882 = vsub.f32 1.0, %v2878
  %v2883 = vmul.f32 %v2882, %v2881
  %v2884 = vmul.f32 %v2878, %v2392
  %v2885 = vadd.f32 %v2883, %v2884
  %v2886 = vmul.f32 %v2885, %v2144
  %v2887 = vadd.f32 %v2886, %v2152
  %v2888 = vmax.f32 %v2408, %v2887
  %v2889 = vld [vmem:[#allocation2 + $0x14] sm:$0xf]
  %v2890 = vld [vmem:[#allocation3 + $0x14] sm:$0xf]
  %v2891 = vld [vmem:[#allocation4 + $0x14] sm:$0xf]
  %v2893 = vsel %vm281, %v2645, 0
  %2895 = vmatprep.subr.mxu0 0.0
  %2896 = vmatpush1.msra.mxu0 %v362
  %2897 = vmatprep.subr.mxu0 0.0
  %2898 = vmatpush1.msra.mxu0 %v363
  %2899 = vmatprep.subr.mxu0 0.0
  %2900 = vmatpush1.msra.mxu0 0.0
  %2901 = vmatprep.subr.mxu0 0.0
  %2902 = vmatpush1.msra.mxu0 0.0
  %2903 = vmatprep.subr.mxu0 0.0
  %2904 = vmatpush1.msra.mxu0 0.0
  %2905 = vmatprep.subr.mxu0 0.0
  %2906 = vmatpush1.msra.mxu0 0.0
  %2907 = vmatprep.subr.mxu0 0.0
  %2908 = vmatpush1.msra.mxu0 0.0
  %2909 = vmatprep.subr.mxu0 0.0
  %2910 = vmatpush1.msra.mxu0 0.0
  %2911 = vmatprep.subr.mxu0 0.0
  %2912 = vmatpush1.msra.mxu0 0.0
  %2913 = vmatprep.subr.mxu0 0.0
  %2914 = vmatpush1.msra.mxu0 0.0
  %2915 = vmatprep.subr.mxu0 0.0
  %2916 = vmatpush1.msra.mxu0 0.0
  %2917 = vmatprep.subr.mxu0 0.0
  %2918 = vmatpush1.msra.mxu0 0.0
  %2919 = vmatprep.subr.mxu0 0.0
  %2920 = vmatpush1.msra.mxu0 0.0
  %2921 = vmatprep.subr.mxu0 0.0
  %2922 = vmatpush1.msra.mxu0 0.0
  %2923 = vmatprep.subr.mxu0 0.0
  %2924 = vmatpush1.msra.mxu0 0.0
  %2925 = vmatprep.subr.mxu0 0.0
  %2926 = vmatpush1.msra.mxu0 0.0
  %2927 = vmatprep.subr.mxu0 0.0
  %2928 = vmatpush1.msra.mxu0 0.0
  %2929 = vmatprep.subr.mxu0 0.0
  %2930 = vmatpush1.msra.mxu0 0.0
  %2931 = vmatprep.subr.mxu0 0.0
  %2932 = vmatpush1.msra.mxu0 0.0
  %2933 = vmatprep.subr.mxu0 0.0
  %2934 = vmatpush1.msra.mxu0 0.0
  %2935 = vmatprep.subr.mxu0 0.0
  %2936 = vmatpush1.msra.mxu0 0.0
  %2937 = vmatprep.subr.mxu0 0.0
  %2938 = vmatpush1.msra.mxu0 0.0
  %2939 = vmatprep.subr.mxu0 0.0
  %2940 = vmatpush1.msra.mxu0 0.0
  %2941 = vmatprep.subr.mxu0 0.0
  %2942 = vmatpush1.msra.mxu0 0.0
  %2943 = vmatprep.subr.mxu0 0.0
  %2944 = vmatpush1.msra.mxu0 0.0
  %2945 = vmatprep.subr.mxu0 0.0
  %2946 = vmatpush1.msra.mxu0 0.0
  %2947 = vmatprep.subr.mxu0 0.0
  %2948 = vmatpush1.msra.mxu0 0.0
  %2949 = vmatprep.subr.mxu0 0.0
  %2950 = vmatpush1.msra.mxu0 0.0
  %2951 = vmatprep.subr.mxu0 0.0
  %2952 = vmatpush1.msra.mxu0 0.0
  %2953 = vmatprep.subr.mxu0 0.0
  %2954 = vmatpush1.msra.mxu0 0.0
  %2955 = vmatprep.subr.mxu0 0.0
  %2956 = vmatpush1.msra.mxu0 0.0
  %2957 = vmatprep.subr.mxu0 0.0
  %2958 = vmatpush1.msra.mxu0 0.0
  %2959 = vmatprep.mubr.f32.mxu0 0.0
  %2960 = vmatmul.mubr.f32.gmra.mrb[0].mxu0 %v2893
  %v2961 = vpop.f32.mrb[0].mxu0
  %v2962 = vadd.f32 0.0, %v2961
  %v2963 = vpop.f32.mrb[0].mxu0
  %2964 = vdwg.mxu0
  %2965 = vmatprep.subr.mxu0 0.0
  %2966 = vmatpush1.msra.mxu0 %v364
  %2967 = vmatprep.subr.mxu0 0.0
  %2968 = vmatpush1.msra.mxu0 %v365
  %2969 = vmatprep.subr.mxu0 0.0
  %2970 = vmatpush1.msra.mxu0 0.0
  %2971 = vmatprep.subr.mxu0 0.0
  %2972 = vmatpush1.msra.mxu0 0.0
  %2973 = vmatprep.subr.mxu0 0.0
  %2974 = vmatpush1.msra.mxu0 0.0
  %2975 = vmatprep.subr.mxu0 0.0
  %2976 = vmatpush1.msra.mxu0 0.0
  %2977 = vmatprep.subr.mxu0 0.0
  %2978 = vmatpush1.msra.mxu0 0.0
  %2979 = vmatprep.subr.mxu0 0.0
  %2980 = vmatpush1.msra.mxu0 0.0
  %2981 = vmatprep.subr.mxu0 0.0
  %2982 = vmatpush1.msra.mxu0 0.0
  %2983 = vmatprep.subr.mxu0 0.0
  %2984 = vmatpush1.msra.mxu0 0.0
  %2985 = vmatprep.subr.mxu0 0.0
  %2986 = vmatpush1.msra.mxu0 0.0
  %2987 = vmatprep.subr.mxu0 0.0
  %2988 = vmatpush1.msra.mxu0 0.0
  %2989 = vmatprep.subr.mxu0 0.0
  %2990 = vmatpush1.msra.mxu0 0.0
  %2991 = vmatprep.subr.mxu0 0.0
  %2992 = vmatpush1.msra.mxu0 0.0
  %2993 = vmatprep.subr.mxu0 0.0
  %2994 = vmatpush1.msra.mxu0 0.0
  %2995 = vmatprep.subr.mxu0 0.0
  %2996 = vmatpush1.msra.mxu0 0.0
  %2997 = vmatprep.subr.mxu0 0.0
  %2998 = vmatpush1.msra.mxu0 0.0
  %2999 = vmatprep.subr.mxu0 0.0
  %3000 = vmatpush1.msra.mxu0 0.0
  %3001 = vmatprep.subr.mxu0 0.0
  %3002 = vmatpush1.msra.mxu0 0.0
  %3003 = vmatprep.subr.mxu0 0.0
  %3004 = vmatpush1.msra.mxu0 0.0
  %3005 = vmatprep.subr.mxu0 0.0
  %3006 = vmatpush1.msra.mxu0 0.0
  %3007 = vmatprep.subr.mxu0 0.0
  %3008 = vmatpush1.msra.mxu0 0.0
  %3009 = vmatprep.subr.mxu0 0.0
  %3010 = vmatpush1.msra.mxu0 0.0
  %3011 = vmatprep.subr.mxu0 0.0
  %3012 = vmatpush1.msra.mxu0 0.0
  %3013 = vmatprep.subr.mxu0 0.0
  %3014 = vmatpush1.msra.mxu0 0.0
  %3015 = vmatprep.subr.mxu0 0.0
  %3016 = vmatpush1.msra.mxu0 0.0
  %3017 = vmatprep.subr.mxu0 0.0
  %3018 = vmatpush1.msra.mxu0 0.0
  %3019 = vmatprep.subr.mxu0 0.0
  %3020 = vmatpush1.msra.mxu0 0.0
  %3021 = vmatprep.subr.mxu0 0.0
  %3022 = vmatpush1.msra.mxu0 0.0
  %3023 = vmatprep.subr.mxu0 0.0
  %3024 = vmatpush1.msra.mxu0 0.0
  %3025 = vmatprep.subr.mxu0 0.0
  %3026 = vmatpush1.msra.mxu0 0.0
  %3027 = vmatprep.subr.mxu0 0.0
  %3028 = vmatpush1.msra.mxu0 0.0
  %3029 = vmatprep.mubr.f32.mxu0 0.0
  %3030 = vmatmul.mubr.f32.gmra.mrb[0].mxu0 %v2893
  %v3031 = vpop.f32.mrb[0].mxu0
  %v3032 = vadd.f32 0.0, %v3031
  %v3033 = vpop.f32.mrb[0].mxu0
  %3034 = vdwg.mxu0
  %3035 = vmatprep.subr.mxu0 0.0
  %3036 = vmatpush1.msra.mxu0 %v366
  %3037 = vmatprep.subr.mxu0 0.0
  %3038 = vmatpush1.msra.mxu0 %v367
  %3039 = vmatprep.subr.mxu0 0.0
  %3040 = vmatpush1.msra.mxu0 0.0
  %3041 = vmatprep.subr.mxu0 0.0
  %3042 = vmatpush1.msra.mxu0 0.0
  %3043 = vmatprep.subr.mxu0 0.0
  %3044 = vmatpush1.msra.mxu0 0.0
  %3045 = vmatprep.subr.mxu0 0.0
  %3046 = vmatpush1.msra.mxu0 0.0
  %3047 = vmatprep.subr.mxu0 0.0
  %3048 = vmatpush1.msra.mxu0 0.0
  %3049 = vmatprep.subr.mxu0 0.0
  %3050 = vmatpush1.msra.mxu0 0.0
  %3051 = vmatprep.subr.mxu0 0.0
  %3052 = vmatpush1.msra.mxu0 0.0
  %3053 = vmatprep.subr.mxu0 0.0
  %3054 = vmatpush1.msra.mxu0 0.0
  %3055 = vmatprep.subr.mxu0 0.0
  %3056 = vmatpush1.msra.mxu0 0.0
  %3057 = vmatprep.subr.mxu0 0.0
  %3058 = vmatpush1.msra.mxu0 0.0
  %3059 = vmatprep.subr.mxu0 0.0
  %3060 = vmatpush1.msra.mxu0 0.0
  %3061 = vmatprep.subr.mxu0 0.0
  %3062 = vmatpush1.msra.mxu0 0.0
  %3063 = vmatprep.subr.mxu0 0.0
  %3064 = vmatpush1.msra.mxu0 0.0
  %3065 = vmatprep.subr.mxu0 0.0
  %3066 = vmatpush1.msra.mxu0 0.0
  %3067 = vmatprep.subr.mxu0 0.0
  %3068 = vmatpush1.msra.mxu0 0.0
  %3069 = vmatprep.subr.mxu0 0.0
  %3070 = vmatpush1.msra.mxu0 0.0
  %3071 = vmatprep.subr.mxu0 0.0
  %3072 = vmatpush1.msra.mxu0 0.0
  %3073 = vmatprep.subr.mxu0 0.0
  %3074 = vmatpush1.msra.mxu0 0.0
  %3075 = vmatprep.subr.mxu0 0.0
  %3076 = vmatpush1.msra.mxu0 0.0
  %3077 = vmatprep.subr.mxu0 0.0
  %3078 = vmatpush1.msra.mxu0 0.0
  %3079 = vmatprep.subr.mxu0 0.0
  %3080 = vmatpush1.msra.mxu0 0.0
  %3081 = vmatprep.subr.mxu0 0.0
  %3082 = vmatpush1.msra.mxu0 0.0
  %3083 = vmatprep.subr.mxu0 0.0
  %3084 = vmatpush1.msra.mxu0 0.0
  %3085 = vmatprep.subr.mxu0 0.0
  %3086 = vmatpush1.msra.mxu0 0.0
  %3087 = vmatprep.subr.mxu0 0.0
  %3088 = vmatpush1.msra.mxu0 0.0
  %3089 = vmatprep.subr.mxu0 0.0
  %3090 = vmatpush1.msra.mxu0 0.0
  %3091 = vmatprep.subr.mxu0 0.0
  %3092 = vmatpush1.msra.mxu0 0.0
  %3093 = vmatprep.subr.mxu0 0.0
  %3094 = vmatpush1.msra.mxu0 0.0
  %3095 = vmatprep.subr.mxu0 0.0
  %3096 = vmatpush1.msra.mxu0 0.0
  %3097 = vmatprep.subr.mxu0 0.0
  %3098 = vmatpush1.msra.mxu0 0.0
  %3099 = vmatprep.mubr.f32.mxu0 0.0
  %3100 = vmatmul.mubr.f32.gmra.mrb[0].mxu0 %v2893
  %v3101 = vpop.f32.mrb[0].mxu0
  %v3102 = vadd.f32 %v526, %v3101
  %v3103 = vpop.f32.mrb[0].mxu0
  %3104 = vdwg.mxu0
  %v3105 = vadd.f32 %v2889, %v2962
  %v3106 = vxor.u32 %v3105, 2147483648
  %v3107 = vmul.f32 %v3106, 1.442695
  %v3108 = vpow.pop %v3107
  %v3109 = vadd.f32 %v3108, 1.0
  %v3110 = vrcp.pop %v3109
  %v3111 = vmul.f32 1.0, %v3110
  %v3112 = vadd.f32 %v2890, %v3032
  %v3113 = vxor.u32 %v3112, 2147483648
  %v3114 = vmul.f32 %v3113, 1.442695
  %v3115 = vpow.pop %v3114
  %v3116 = vadd.f32 %v3115, 1.0
  %v3117 = vrcp.pop %v3116
  %v3118 = vmul.f32 1.0, %v3117
  %v3119 = vmul.f32 %v3111, %v3102
  %v3120 = vadd.f32 %v2891, %v3119
  %v3121 = vtanh.pop %v3120
  %v3122 = vsub.f32 1.0, %v3118
  %v3123 = vmul.f32 %v3122, %v3121
  %v3124 = vmul.f32 %v3118, %v2645
  %v3125 = vadd.f32 %v3123, %v3124
  %v3126 = vmul.f32 %v3125, %v1891
  %v3127 = vadd.f32 %v3126, %v1899
  %v3128 = vmax.f32 %v2648, %v3127
  %v3129 = vld [vmem:[#allocation5 + $0x14] sm:$0xf]
  %v3130 = vld [vmem:[#allocation6 + $0x14] sm:$0xf]
  %v3131 = vld [vmem:[#allocation7 + $0x14] sm:$0xf]
  %v3133 = vsel %vm281, %v2885, 0
  %3135 = vmatprep.subr.mxu0 0.0
  %3136 = vmatpush1.msra.mxu0 %v368
  %3137 = vmatprep.subr.mxu0 0.0
  %3138 = vmatpush1.msra.mxu0 %v369
  %3139 = vmatprep.subr.mxu0 0.0
  %3140 = vmatpush1.msra.mxu0 0.0
  %3141 = vmatprep.subr.mxu0 0.0
  %3142 = vmatpush1.msra.mxu0 0.0
  %3143 = vmatprep.subr.mxu0 0.0
  %3144 = vmatpush1.msra.mxu0 0.0
  %3145 = vmatprep.subr.mxu0 0.0
  %3146 = vmatpush1.msra.mxu0 0.0
  %3147 = vmatprep.subr.mxu0 0.0
  %3148 = vmatpush1.msra.mxu0 0.0
  %3149 = vmatprep.subr.mxu0 0.0
  %3150 = vmatpush1.msra.mxu0 0.0
  %3151 = vmatprep.subr.mxu0 0.0
  %3152 = vmatpush1.msra.mxu0 0.0
  %3153 = vmatprep.subr.mxu0 0.0
  %3154 = vmatpush1.msra.mxu0 0.0
  %3155 = vmatprep.subr.mxu0 0.0
  %3156 = vmatpush1.msra.mxu0 0.0
  %3157 = vmatprep.subr.mxu0 0.0
  %3158 = vmatpush1.msra.mxu0 0.0
  %3159 = vmatprep.subr.mxu0 0.0
  %3160 = vmatpush1.msra.mxu0 0.0
  %3161 = vmatprep.subr.mxu0 0.0
  %3162 = vmatpush1.msra.mxu0 0.0
  %3163 = vmatprep.subr.mxu0 0.0
  %3164 = vmatpush1.msra.mxu0 0.0
  %3165 = vmatprep.subr.mxu0 0.0
  %3166 = vmatpush1.msra.mxu0 0.0
  %3167 = vmatprep.subr.mxu0 0.0
  %3168 = vmatpush1.msra.mxu0 0.0
  %3169 = vmatprep.subr.mxu0 0.0
  %3170 = vmatpush1.msra.mxu0 0.0
  %3171 = vmatprep.subr.mxu0 0.0
  %3172 = vmatpush1.msra.mxu0 0.0
  %3173 = vmatprep.subr.mxu0 0.0
  %3174 = vmatpush1.msra.mxu0 0.0
  %3175 = vmatprep.subr.mxu0 0.0
  %3176 = vmatpush1.msra.mxu0 0.0
  %3177 = vmatprep.subr.mxu0 0.0
  %3178 = vmatpush1.msra.mxu0 0.0
  %3179 = vmatprep.subr.mxu0 0.0
  %3180 = vmatpush1.msra.mxu0 0.0
  %3181 = vmatprep.subr.mxu0 0.0
  %3182 = vmatpush1.msra.mxu0 0.0
  %3183 = vmatprep.subr.mxu0 0.0
  %3184 = vmatpush1.msra.mxu0 0.0
  %3185 = vmatprep.subr.mxu0 0.0
  %3186 = vmatpush1.msra.mxu0 0.0
  %3187 = vmatprep.subr.mxu0 0.0
  %3188 = vmatpush1.msra.mxu0 0.0
  %3189 = vmatprep.subr.mxu0 0.0
  %3190 = vmatpush1.msra.mxu0 0.0
  %3191 = vmatprep.subr.mxu0 0.0
  %3192 = vmatpush1.msra.mxu0 0.0
  %3193 = vmatprep.subr.mxu0 0.0
  %3194 = vmatpush1.msra.mxu0 0.0
  %3195 = vmatprep.subr.mxu0 0.0
  %3196 = vmatpush1.msra.mxu0 0.0
  %3197 = vmatprep.subr.mxu0 0.0
  %3198 = vmatpush1.msra.mxu0 0.0
  %3199 = vmatprep.mubr.f32.mxu0 0.0
  %3200 = vmatmul.mubr.f32.gmra.mrb[0].mxu0 %v3133
  %v3201 = vpop.f32.mrb[0].mxu0
  %v3202 = vadd.f32 0.0, %v3201
  %v3203 = vpop.f32.mrb[0].mxu0
  %3204 = vdwg.mxu0
  %3205 = vmatprep.subr.mxu0 0.0
  %3206 = vmatpush1.msra.mxu0 %v370
  %3207 = vmatprep.subr.mxu0 0.0
  %3208 = vmatpush1.msra.mxu0 %v371
  %3209 = vmatprep.subr.mxu0 0.0
  %3210 = vmatpush1.msra.mxu0 0.0
  %3211 = vmatprep.subr.mxu0 0.0
  %3212 = vmatpush1.msra.mxu0 0.0
  %3213 = vmatprep.subr.mxu0 0.0
  %3214 = vmatpush1.msra.mxu0 0.0
  %3215 = vmatprep.subr.mxu0 0.0
  %3216 = vmatpush1.msra.mxu0 0.0
  %3217 = vmatprep.subr.mxu0 0.0
  %3218 = vmatpush1.msra.mxu0 0.0
  %3219 = vmatprep.subr.mxu0 0.0
  %3220 = vmatpush1.msra.mxu0 0.0
  %3221 = vmatprep.subr.mxu0 0.0
  %3222 = vmatpush1.msra.mxu0 0.0
  %3223 = vmatprep.subr.mxu0 0.0
  %3224 = vmatpush1.msra.mxu0 0.0
  %3225 = vmatprep.subr.mxu0 0.0
  %3226 = vmatpush1.msra.mxu0 0.0
  %3227 = vmatprep.subr.mxu0 0.0
  %3228 = vmatpush1.msra.mxu0 0.0
  %3229 = vmatprep.subr.mxu0 0.0
  %3230 = vmatpush1.msra.mxu0 0.0
  %3231 = vmatprep.subr.mxu0 0.0
  %3232 = vmatpush1.msra.mxu0 0.0
  %3233 = vmatprep.subr.mxu0 0.0
  %3234 = vmatpush1.msra.mxu0 0.0
  %3235 = vmatprep.subr.mxu0 0.0
  %3236 = vmatpush1.msra.mxu0 0.0
  %3237 = vmatprep.subr.mxu0 0.0
  %3238 = vmatpush1.msra.mxu0 0.0
  %3239 = vmatprep.subr.mxu0 0.0
  %3240 = vmatpush1.msra.mxu0 0.0
  %3241 = vmatprep.subr.mxu0 0.0
  %3242 = vmatpush1.msra.mxu0 0.0
  %3243 = vmatprep.subr.mxu0 0.0
  %3244 = vmatpush1.msra.mxu0 0.0
  %3245 = vmatprep.subr.mxu0 0.0
  %3246 = vmatpush1.msra.mxu0 0.0
  %3247 = vmatprep.subr.mxu0 0.0
  %3248 = vmatpush1.msra.mxu0 0.0
  %3249 = vmatprep.subr.mxu0 0.0
  %3250 = vmatpush1.msra.mxu0 0.0
  %3251 = vmatprep.subr.mxu0 0.0
  %3252 = vmatpush1.msra.mxu0 0.0
  %3253 = vmatprep.subr.mxu0 0.0
  %3254 = vmatpush1.msra.mxu0 0.0
  %3255 = vmatprep.subr.mxu0 0.0
  %3256 = vmatpush1.msra.mxu0 0.0
  %3257 = vmatprep.subr.mxu0 0.0
  %3258 = vmatpush1.msra.mxu0 0.0
  %3259 = vmatprep.subr.mxu0 0.0
  %3260 = vmatpush1.msra.mxu0 0.0
  %3261 = vmatprep.subr.mxu0 0.0
  %3262 = vmatpush1.msra.mxu0 0.0
  %3263 = vmatprep.subr.mxu0 0.0
  %3264 = vmatpush1.msra.mxu0 0.0
  %3265 = vmatprep.subr.mxu0 0.0
  %3266 = vmatpush1.msra.mxu0 0.0
  %3267 = vmatprep.subr.mxu0 0.0
  %3268 = vmatpush1.msra.mxu0 0.0
  %3269 = vmatprep.mubr.f32.mxu0 0.0
  %3270 = vmatmul.mubr.f32.gmra.mrb[0].mxu0 %v3133
  %v3271 = vpop.f32.mrb[0].mxu0
  %v3272 = vadd.f32 0.0, %v3271
  %v3273 = vpop.f32.mrb[0].mxu0
  %3274 = vdwg.mxu0
  %3275 = vmatprep.subr.mxu0 0.0
  %3276 = vmatpush1.msra.mxu0 %v372
  %3277 = vmatprep.subr.mxu0 0.0
  %3278 = vmatpush1.msra.mxu0 %v373
  %3279 = vmatprep.subr.mxu0 0.0
  %3280 = vmatpush1.msra.mxu0 0.0
  %3281 = vmatprep.subr.mxu0 0.0
  %3282 = vmatpush1.msra.mxu0 0.0
  %3283 = vmatprep.subr.mxu0 0.0
  %3284 = vmatpush1.msra.mxu0 0.0
  %3285 = vmatprep.subr.mxu0 0.0
  %3286 = vmatpush1.msra.mxu0 0.0
  %3287 = vmatprep.subr.mxu0 0.0
  %3288 = vmatpush1.msra.mxu0 0.0
  %3289 = vmatprep.subr.mxu0 0.0
  %3290 = vmatpush1.msra.mxu0 0.0
  %3291 = vmatprep.subr.mxu0 0.0
  %3292 = vmatpush1.msra.mxu0 0.0
  %3293 = vmatprep.subr.mxu0 0.0
  %3294 = vmatpush1.msra.mxu0 0.0
  %3295 = vmatprep.subr.mxu0 0.0
  %3296 = vmatpush1.msra.mxu0 0.0
  %3297 = vmatprep.subr.mxu0 0.0
  %3298 = vmatpush1.msra.mxu0 0.0
  %3299 = vmatprep.subr.mxu0 0.0
  %3300 = vmatpush1.msra.mxu0 0.0
  %3301 = vmatprep.subr.mxu0 0.0
  %3302 = vmatpush1.msra.mxu0 0.0
  %3303 = vmatprep.subr.mxu0 0.0
  %3304 = vmatpush1.msra.mxu0 0.0
  %3305 = vmatprep.subr.mxu0 0.0
  %3306 = vmatpush1.msra.mxu0 0.0
  %3307 = vmatprep.subr.mxu0 0.0
  %3308 = vmatpush1.msra.mxu0 0.0
  %3309 = vmatprep.subr.mxu0 0.0
  %3310 = vmatpush1.msra.mxu0 0.0
  %3311 = vmatprep.subr.mxu0 0.0
  %3312 = vmatpush1.msra.mxu0 0.0
  %3313 = vmatprep.subr.mxu0 0.0
  %3314 = vmatpush1.msra.mxu0 0.0
  %3315 = vmatprep.subr.mxu0 0.0
  %3316 = vmatpush1.msra.mxu0 0.0
  %3317 = vmatprep.subr.mxu0 0.0
  %3318 = vmatpush1.msra.mxu0 0.0
  %3319 = vmatprep.subr.mxu0 0.0
  %3320 = vmatpush1.msra.mxu0 0.0
  %3321 = vmatprep.subr.mxu0 0.0
  %3322 = vmatpush1.msra.mxu0 0.0
  %3323 = vmatprep.subr.mxu0 0.0
  %3324 = vmatpush1.msra.mxu0 0.0
  %3325 = vmatprep.subr.mxu0 0.0
  %3326 = vmatpush1.msra.mxu0 0.0
  %3327 = vmatprep.subr.mxu0 0.0
  %3328 = vmatpush1.msra.mxu0 0.0
  %3329 = vmatprep.subr.mxu0 0.0
  %3330 = vmatpush1.msra.mxu0 0.0
  %3331 = vmatprep.subr.mxu0 0.0
  %3332 = vmatpush1.msra.mxu0 0.0
  %3333 = vmatprep.subr.mxu0 0.0
  %3334 = vmatpush1.msra.mxu0 0.0
  %3335 = vmatprep.subr.mxu0 0.0
  %3336 = vmatpush1.msra.mxu0 0.0
  %3337 = vmatprep.subr.mxu0 0.0
  %3338 = vmatpush1.msra.mxu0 0.0
  %3339 = vmatprep.mubr.f32.mxu0 0.0
  %3340 = vmatmul.mubr.f32.gmra.mrb[0].mxu0 %v3133
  %v3341 = vpop.f32.mrb[0].mxu0
  %v3342 = vadd.f32 %v782, %v3341
  %v3343 = vpop.f32.mrb[0].mxu0
  %3344 = vdwg.mxu0
  %v3345 = vadd.f32 %v3129, %v3202
  %v3346 = vxor.u32 %v3345, 2147483648
  %v3347 = vmul.f32 %v3346, 1.442695
  %v3348 = vpow.pop %v3347
  %v3349 = vadd.f32 %v3348, 1.0
  %v3350 = vrcp.pop %v3349
  %v3351 = vmul.f32 1.0, %v3350
  %v3352 = vadd.f32 %v3130, %v3272
  %v3353 = vxor.u32 %v3352, 2147483648
  %v3354 = vmul.f32 %v3353, 1.442695
  %v3355 = vpow.pop %v3354
  %v3356 = vadd.f32 %v3355, 1.0
  %v3357 = vrcp.pop %v3356
  %v3358 = vmul.f32 1.0, %v3357
  %v3359 = vmul.f32 %v3351, %v3342
  %v3360 = vadd.f32 %v3131, %v3359
  %v3361 = vtanh.pop %v3360
  %v3362 = vsub.f32 1.0, %v3358
  %v3363 = vmul.f32 %v3362, %v3361
  %v3364 = vmul.f32 %v3358, %v2885
  %v3365 = vadd.f32 %v3363, %v3364
  %v3366 = vmul.f32 %v3365, %v1638
  %v3367 = vadd.f32 %v3366, %v1646
  %v3368 = vmax.f32 %v2888, %v3367
  %v3369 = vld [vmem:[#allocation2 + $0x18] sm:$0xf]
  %v3370 = vld [vmem:[#allocation3 + $0x18] sm:$0xf]
  %v3371 = vld [vmem:[#allocation4 + $0x18] sm:$0xf]
  %v3373 = vsel %vm281, %v3125, 0
  %3375 = vmatprep.subr.mxu0 0.0
  %3376 = vmatpush1.msra.mxu0 %v362
  %3377 = vmatprep.subr.mxu0 0.0
  %3378 = vmatpush1.msra.mxu0 %v363
  %3379 = vmatprep.subr.mxu0 0.0
  %3380 = vmatpush1.msra.mxu0 0.0
  %3381 = vmatprep.subr.mxu0 0.0
  %3382 = vmatpush1.msra.mxu0 0.0
  %3383 = vmatprep.subr.mxu0 0.0
  %3384 = vmatpush1.msra.mxu0 0.0
  %3385 = vmatprep.subr.mxu0 0.0
  %3386 = vmatpush1.msra.mxu0 0.0
  %3387 = vmatprep.subr.mxu0 0.0
  %3388 = vmatpush1.msra.mxu0 0.0
  %3389 = vmatprep.subr.mxu0 0.0
  %3390 = vmatpush1.msra.mxu0 0.0
  %3391 = vmatprep.subr.mxu0 0.0
  %3392 = vmatpush1.msra.mxu0 0.0
  %3393 = vmatprep.subr.mxu0 0.0
  %3394 = vmatpush1.msra.mxu0 0.0
  %3395 = vmatprep.subr.mxu0 0.0
  %3396 = vmatpush1.msra.mxu0 0.0
  %3397 = vmatprep.subr.mxu0 0.0
  %3398 = vmatpush1.msra.mxu0 0.0
  %3399 = vmatprep.subr.mxu0 0.0
  %3400 = vmatpush1.msra.mxu0 0.0
  %3401 = vmatprep.subr.mxu0 0.0
  %3402 = vmatpush1.msra.mxu0 0.0
  %3403 = vmatprep.subr.mxu0 0.0
  %3404 = vmatpush1.msra.mxu0 0.0
  %3405 = vmatprep.subr.mxu0 0.0
  %3406 = vmatpush1.msra.mxu0 0.0
  %3407 = vmatprep.subr.mxu0 0.0
  %3408 = vmatpush1.msra.mxu0 0.0
  %3409 = vmatprep.subr.mxu0 0.0
  %3410 = vmatpush1.msra.mxu0 0.0
  %3411 = vmatprep.subr.mxu0 0.0
  %3412 = vmatpush1.msra.mxu0 0.0
  %3413 = vmatprep.subr.mxu0 0.0
  %3414 = vmatpush1.msra.mxu0 0.0
  %3415 = vmatprep.subr.mxu0 0.0
  %3416 = vmatpush1.msra.mxu0 0.0
  %3417 = vmatprep.subr.mxu0 0.0
  %3418 = vmatpush1.msra.mxu0 0.0
  %3419 = vmatprep.subr.mxu0 0.0
  %3420 = vmatpush1.msra.mxu0 0.0
  %3421 = vmatprep.subr.mxu0 0.0
  %3422 = vmatpush1.msra.mxu0 0.0
  %3423 = vmatprep.subr.mxu0 0.0
  %3424 = vmatpush1.msra.mxu0 0.0
  %3425 = vmatprep.subr.mxu0 0.0
  %3426 = vmatpush1.msra.mxu0 0.0
  %3427 = vmatprep.subr.mxu0 0.0
  %3428 = vmatpush1.msra.mxu0 0.0
  %3429 = vmatprep.subr.mxu0 0.0
  %3430 = vmatpush1.msra.mxu0 0.0
  %3431 = vmatprep.subr.mxu0 0.0
  %3432 = vmatpush1.msra.mxu0 0.0
  %3433 = vmatprep.subr.mxu0 0.0
  %3434 = vmatpush1.msra.mxu0 0.0
  %3435 = vmatprep.subr.mxu0 0.0
  %3436 = vmatpush1.msra.mxu0 0.0
  %3437 = vmatprep.subr.mxu0 0.0
  %3438 = vmatpush1.msra.mxu0 0.0
  %3439 = vmatprep.mubr.f32.mxu0 0.0
  %3440 = vmatmul.mubr.f32.gmra.mrb[0].mxu0 %v3373
  %v3441 = vpop.f32.mrb[0].mxu0
  %v3442 = vadd.f32 0.0, %v3441
  %v3443 = vpop.f32.mrb[0].mxu0
  %3444 = vdwg.mxu0
  %3445 = vmatprep.subr.mxu0 0.0
  %3446 = vmatpush1.msra.mxu0 %v364
  %3447 = vmatprep.subr.mxu0 0.0
  %3448 = vmatpush1.msra.mxu0 %v365
  %3449 = vmatprep.subr.mxu0 0.0
  %3450 = vmatpush1.msra.mxu0 0.0
  %3451 = vmatprep.subr.mxu0 0.0
  %3452 = vmatpush1.msra.mxu0 0.0
  %3453 = vmatprep.subr.mxu0 0.0
  %3454 = vmatpush1.msra.mxu0 0.0
  %3455 = vmatprep.subr.mxu0 0.0
  %3456 = vmatpush1.msra.mxu0 0.0
  %3457 = vmatprep.subr.mxu0 0.0
  %3458 = vmatpush1.msra.mxu0 0.0
  %3459 = vmatprep.subr.mxu0 0.0
  %3460 = vmatpush1.msra.mxu0 0.0
  %3461 = vmatprep.subr.mxu0 0.0
  %3462 = vmatpush1.msra.mxu0 0.0
  %3463 = vmatprep.subr.mxu0 0.0
  %3464 = vmatpush1.msra.mxu0 0.0
  %3465 = vmatprep.subr.mxu0 0.0
  %3466 = vmatpush1.msra.mxu0 0.0
  %3467 = vmatprep.subr.mxu0 0.0
  %3468 = vmatpush1.msra.mxu0 0.0
  %3469 = vmatprep.subr.mxu0 0.0
  %3470 = vmatpush1.msra.mxu0 0.0
  %3471 = vmatprep.subr.mxu0 0.0
  %3472 = vmatpush1.msra.mxu0 0.0
  %3473 = vmatprep.subr.mxu0 0.0
  %3474 = vmatpush1.msra.mxu0 0.0
  %3475 = vmatprep.subr.mxu0 0.0
  %3476 = vmatpush1.msra.mxu0 0.0
  %3477 = vmatprep.subr.mxu0 0.0
  %3478 = vmatpush1.msra.mxu0 0.0
  %3479 = vmatprep.subr.mxu0 0.0
  %3480 = vmatpush1.msra.mxu0 0.0
  %3481 = vmatprep.subr.mxu0 0.0
  %3482 = vmatpush1.msra.mxu0 0.0
  %3483 = vmatprep.subr.mxu0 0.0
  %3484 = vmatpush1.msra.mxu0 0.0
  %3485 = vmatprep.subr.mxu0 0.0
  %3486 = vmatpush1.msra.mxu0 0.0
  %3487 = vmatprep.subr.mxu0 0.0
  %3488 = vmatpush1.msra.mxu0 0.0
  %3489 = vmatprep.subr.mxu0 0.0
  %3490 = vmatpush1.msra.mxu0 0.0
  %3491 = vmatprep.subr.mxu0 0.0
  %3492 = vmatpush1.msra.mxu0 0.0
  %3493 = vmatprep.subr.mxu0 0.0
  %3494 = vmatpush1.msra.mxu0 0.0
  %3495 = vmatprep.subr.mxu0 0.0
  %3496 = vmatpush1.msra.mxu0 0.0
  %3497 = vmatprep.subr.mxu0 0.0
  %3498 = vmatpush1.msra.mxu0 0.0
  %3499 = vmatprep.subr.mxu0 0.0
  %3500 = vmatpush1.msra.mxu0 0.0
  %3501 = vmatprep.subr.mxu0 0.0
  %3502 = vmatpush1.msra.mxu0 0.0
  %3503 = vmatprep.subr.mxu0 0.0
  %3504 = vmatpush1.msra.mxu0 0.0
  %3505 = vmatprep.subr.mxu0 0.0
  %3506 = vmatpush1.msra.mxu0 0.0
  %3507 = vmatprep.subr.mxu0 0.0
  %3508 = vmatpush1.msra.mxu0 0.0
  %3509 = vmatprep.mubr.f32.mxu0 0.0
  %3510 = vmatmul.mubr.f32.gmra.mrb[0].mxu0 %v3373
  %v3511 = vpop.f32.mrb[0].mxu0
  %v3512 = vadd.f32 0.0, %v3511
  %v3513 = vpop.f32.mrb[0].mxu0
  %3514 = vdwg.mxu0
  %3515 = vmatprep.subr.mxu0 0.0
  %3516 = vmatpush1.msra.mxu0 %v366
  %3517 = vmatprep.subr.mxu0 0.0
  %3518 = vmatpush1.msra.mxu0 %v367
  %3519 = vmatprep.subr.mxu0 0.0
  %3520 = vmatpush1.msra.mxu0 0.0
  %3521 = vmatprep.subr.mxu0 0.0
  %3522 = vmatpush1.msra.mxu0 0.0
  %3523 = vmatprep.subr.mxu0 0.0
  %3524 = vmatpush1.msra.mxu0 0.0
  %3525 = vmatprep.subr.mxu0 0.0
  %3526 = vmatpush1.msra.mxu0 0.0
  %3527 = vmatprep.subr.mxu0 0.0
  %3528 = vmatpush1.msra.mxu0 0.0
  %3529 = vmatprep.subr.mxu0 0.0
  %3530 = vmatpush1.msra.mxu0 0.0
  %3531 = vmatprep.subr.mxu0 0.0
  %3532 = vmatpush1.msra.mxu0 0.0
  %3533 = vmatprep.subr.mxu0 0.0
  %3534 = vmatpush1.msra.mxu0 0.0
  %3535 = vmatprep.subr.mxu0 0.0
  %3536 = vmatpush1.msra.mxu0 0.0
  %3537 = vmatprep.subr.mxu0 0.0
  %3538 = vmatpush1.msra.mxu0 0.0
  %3539 = vmatprep.subr.mxu0 0.0
  %3540 = vmatpush1.msra.mxu0 0.0
  %3541 = vmatprep.subr.mxu0 0.0
  %3542 = vmatpush1.msra.mxu0 0.0
  %3543 = vmatprep.subr.mxu0 0.0
  %3544 = vmatpush1.msra.mxu0 0.0
  %3545 = vmatprep.subr.mxu0 0.0
  %3546 = vmatpush1.msra.mxu0 0.0
  %3547 = vmatprep.subr.mxu0 0.0
  %3548 = vmatpush1.msra.mxu0 0.0
  %3549 = vmatprep.subr.mxu0 0.0
  %3550 = vmatpush1.msra.mxu0 0.0
  %3551 = vmatprep.subr.mxu0 0.0
  %3552 = vmatpush1.msra.mxu0 0.0
  %3553 = vmatprep.subr.mxu0 0.0
  %3554 = vmatpush1.msra.mxu0 0.0
  %3555 = vmatprep.subr.mxu0 0.0
  %3556 = vmatpush1.msra.mxu0 0.0
  %3557 = vmatprep.subr.mxu0 0.0
  %3558 = vmatpush1.msra.mxu0 0.0
  %3559 = vmatprep.subr.mxu0 0.0
  %3560 = vmatpush1.msra.mxu0 0.0
  %3561 = vmatprep.subr.mxu0 0.0
  %3562 = vmatpush1.msra.mxu0 0.0
  %3563 = vmatprep.subr.mxu0 0.0
  %3564 = vmatpush1.msra.mxu0 0.0
  %3565 = vmatprep.subr.mxu0 0.0
  %3566 = vmatpush1.msra.mxu0 0.0
  %3567 = vmatprep.subr.mxu0 0.0
  %3568 = vmatpush1.msra.mxu0 0.0
  %3569 = vmatprep.subr.mxu0 0.0
  %3570 = vmatpush1.msra.mxu0 0.0
  %3571 = vmatprep.subr.mxu0 0.0
  %3572 = vmatpush1.msra.mxu0 0.0
  %3573 = vmatprep.subr.mxu0 0.0
  %3574 = vmatpush1.msra.mxu0 0.0
  %3575 = vmatprep.subr.mxu0 0.0
  %3576 = vmatpush1.msra.mxu0 0.0
  %3577 = vmatprep.subr.mxu0 0.0
  %3578 = vmatpush1.msra.mxu0 0.0
  %3579 = vmatprep.mubr.f32.mxu0 0.0
  %3580 = vmatmul.mubr.f32.gmra.mrb[0].mxu0 %v3373
  %v3581 = vpop.f32.mrb[0].mxu0
  %v3582 = vadd.f32 %v526, %v3581
  %v3583 = vpop.f32.mrb[0].mxu0
  %3584 = vdwg.mxu0
  %v3585 = vadd.f32 %v3369, %v3442
  %v3586 = vxor.u32 %v3585, 2147483648
  %v3587 = vmul.f32 %v3586, 1.442695
  %v3588 = vpow.pop %v3587
  %v3589 = vadd.f32 %v3588, 1.0
  %v3590 = vrcp.pop %v3589
  %v3591 = vmul.f32 1.0, %v3590
  %v3592 = vadd.f32 %v3370, %v3512
  %v3593 = vxor.u32 %v3592, 2147483648
  %v3594 = vmul.f32 %v3593, 1.442695
  %v3595 = vpow.pop %v3594
  %v3596 = vadd.f32 %v3595, 1.0
  %v3597 = vrcp.pop %v3596
  %v3598 = vmul.f32 1.0, %v3597
  %v3599 = vmul.f32 %v3591, %v3582
  %v3600 = vadd.f32 %v3371, %v3599
  %v3601 = vtanh.pop %v3600
  %v3602 = vsub.f32 1.0, %v3598
  %v3603 = vmul.f32 %v3602, %v3601
  %v3604 = vmul.f32 %v3598, %v3125
  %v3605 = vadd.f32 %v3603, %v3604
  %v3606 = vmul.f32 %v3605, %v1385
  %v3607 = vadd.f32 %v3606, %v1393
  %v3608 = vmax.f32 %v3128, %v3607
  %v3609 = vld [vmem:[#allocation5 + $0x18] sm:$0xf]
  %v3610 = vld [vmem:[#allocation6 + $0x18] sm:$0xf]
  %v3611 = vld [vmem:[#allocation7 + $0x18] sm:$0xf]
  %v3613 = vsel %vm281, %v3365, 0
  %3615 = vmatprep.subr.mxu0 0.0
  %3616 = vmatpush1.msra.mxu0 %v368
  %3617 = vmatprep.subr.mxu0 0.0
  %3618 = vmatpush1.msra.mxu0 %v369
  %3619 = vmatprep.subr.mxu0 0.0
  %3620 = vmatpush1.msra.mxu0 0.0
  %3621 = vmatprep.subr.mxu0 0.0
  %3622 = vmatpush1.msra.mxu0 0.0
  %3623 = vmatprep.subr.mxu0 0.0
  %3624 = vmatpush1.msra.mxu0 0.0
  %3625 = vmatprep.subr.mxu0 0.0
  %3626 = vmatpush1.msra.mxu0 0.0
  %3627 = vmatprep.subr.mxu0 0.0
  %3628 = vmatpush1.msra.mxu0 0.0
  %3629 = vmatprep.subr.mxu0 0.0
  %3630 = vmatpush1.msra.mxu0 0.0
  %3631 = vmatprep.subr.mxu0 0.0
  %3632 = vmatpush1.msra.mxu0 0.0
  %3633 = vmatprep.subr.mxu0 0.0
  %3634 = vmatpush1.msra.mxu0 0.0
  %3635 = vmatprep.subr.mxu0 0.0
  %3636 = vmatpush1.msra.mxu0 0.0
  %3637 = vmatprep.subr.mxu0 0.0
  %3638 = vmatpush1.msra.mxu0 0.0
  %3639 = vmatprep.subr.mxu0 0.0
  %3640 = vmatpush1.msra.mxu0 0.0
  %3641 = vmatprep.subr.mxu0 0.0
  %3642 = vmatpush1.msra.mxu0 0.0
  %3643 = vmatprep.subr.mxu0 0.0
  %3644 = vmatpush1.msra.mxu0 0.0
  %3645 = vmatprep.subr.mxu0 0.0
  %3646 = vmatpush1.msra.mxu0 0.0
  %3647 = vmatprep.subr.mxu0 0.0
  %3648 = vmatpush1.msra.mxu0 0.0
  %3649 = vmatprep.subr.mxu0 0.0
  %3650 = vmatpush1.msra.mxu0 0.0
  %3651 = vmatprep.subr.mxu0 0.0
  %3652 = vmatpush1.msra.mxu0 0.0
  %3653 = vmatprep.subr.mxu0 0.0
  %3654 = vmatpush1.msra.mxu0 0.0
  %3655 = vmatprep.subr.mxu0 0.0
  %3656 = vmatpush1.msra.mxu0 0.0
  %3657 = vmatprep.subr.mxu0 0.0
  %3658 = vmatpush1.msra.mxu0 0.0
  %3659 = vmatprep.subr.mxu0 0.0
  %3660 = vmatpush1.msra.mxu0 0.0
  %3661 = vmatprep.subr.mxu0 0.0
  %3662 = vmatpush1.msra.mxu0 0.0
  %3663 = vmatprep.subr.mxu0 0.0
  %3664 = vmatpush1.msra.mxu0 0.0
  %3665 = vmatprep.subr.mxu0 0.0
  %3666 = vmatpush1.msra.mxu0 0.0
  %3667 = vmatprep.subr.mxu0 0.0
  %3668 = vmatpush1.msra.mxu0 0.0
  %3669 = vmatprep.subr.mxu0 0.0
  %3670 = vmatpush1.msra.mxu0 0.0
  %3671 = vmatprep.subr.mxu0 0.0
  %3672 = vmatpush1.msra.mxu0 0.0
  %3673 = vmatprep.subr.mxu0 0.0
  %3674 = vmatpush1.msra.mxu0 0.0
  %3675 = vmatprep.subr.mxu0 0.0
  %3676 = vmatpush1.msra.mxu0 0.0
  %3677 = vmatprep.subr.mxu0 0.0
  %3678 = vmatpush1.msra.mxu0 0.0
  %3679 = vmatprep.mubr.f32.mxu0 0.0
  %3680 = vmatmul.mubr.f32.gmra.mrb[0].mxu0 %v3613
  %v3681 = vpop.f32.mrb[0].mxu0
  %v3682 = vadd.f32 0.0, %v3681
  %v3683 = vpop.f32.mrb[0].mxu0
  %3684 = vdwg.mxu0
  %3685 = vmatprep.subr.mxu0 0.0
  %3686 = vmatpush1.msra.mxu0 %v370
  %3687 = vmatprep.subr.mxu0 0.0
  %3688 = vmatpush1.msra.mxu0 %v371
  %3689 = vmatprep.subr.mxu0 0.0
  %3690 = vmatpush1.msra.mxu0 0.0
  %3691 = vmatprep.subr.mxu0 0.0
  %3692 = vmatpush1.msra.mxu0 0.0
  %3693 = vmatprep.subr.mxu0 0.0
  %3694 = vmatpush1.msra.mxu0 0.0
  %3695 = vmatprep.subr.mxu0 0.0
  %3696 = vmatpush1.msra.mxu0 0.0
  %3697 = vmatprep.subr.mxu0 0.0
  %3698 = vmatpush1.msra.mxu0 0.0
  %3699 = vmatprep.subr.mxu0 0.0
  %3700 = vmatpush1.msra.mxu0 0.0
  %3701 = vmatprep.subr.mxu0 0.0
  %3702 = vmatpush1.msra.mxu0 0.0
  %3703 = vmatprep.subr.mxu0 0.0
  %3704 = vmatpush1.msra.mxu0 0.0
  %3705 = vmatprep.subr.mxu0 0.0
  %3706 = vmatpush1.msra.mxu0 0.0
  %3707 = vmatprep.subr.mxu0 0.0
  %3708 = vmatpush1.msra.mxu0 0.0
  %3709 = vmatprep.subr.mxu0 0.0
  %3710 = vmatpush1.msra.mxu0 0.0
  %3711 = vmatprep.subr.mxu0 0.0
  %3712 = vmatpush1.msra.mxu0 0.0
  %3713 = vmatprep.subr.mxu0 0.0
  %3714 = vmatpush1.msra.mxu0 0.0
  %3715 = vmatprep.subr.mxu0 0.0
  %3716 = vmatpush1.msra.mxu0 0.0
  %3717 = vmatprep.subr.mxu0 0.0
  %3718 = vmatpush1.msra.mxu0 0.0
  %3719 = vmatprep.subr.mxu0 0.0
  %3720 = vmatpush1.msra.mxu0 0.0
  %3721 = vmatprep.subr.mxu0 0.0
  %3722 = vmatpush1.msra.mxu0 0.0
  %3723 = vmatprep.subr.mxu0 0.0
  %3724 = vmatpush1.msra.mxu0 0.0
  %3725 = vmatprep.subr.mxu0 0.0
  %3726 = vmatpush1.msra.mxu0 0.0
  %3727 = vmatprep.subr.mxu0 0.0
  %3728 = vmatpush1.msra.mxu0 0.0
  %3729 = vmatprep.subr.mxu0 0.0
  %3730 = vmatpush1.msra.mxu0 0.0
  %3731 = vmatprep.subr.mxu0 0.0
  %3732 = vmatpush1.msra.mxu0 0.0
  %3733 = vmatprep.subr.mxu0 0.0
  %3734 = vmatpush1.msra.mxu0 0.0
  %3735 = vmatprep.subr.mxu0 0.0
  %3736 = vmatpush1.msra.mxu0 0.0
  %3737 = vmatprep.subr.mxu0 0.0
  %3738 = vmatpush1.msra.mxu0 0.0
  %3739 = vmatprep.subr.mxu0 0.0
  %3740 = vmatpush1.msra.mxu0 0.0
  %3741 = vmatprep.subr.mxu0 0.0
  %3742 = vmatpush1.msra.mxu0 0.0
  %3743 = vmatprep.subr.mxu0 0.0
  %3744 = vmatpush1.msra.mxu0 0.0
  %3745 = vmatprep.subr.mxu0 0.0
  %3746 = vmatpush1.msra.mxu0 0.0
  %3747 = vmatprep.subr.mxu0 0.0
  %3748 = vmatpush1.msra.mxu0 0.0
  %3749 = vmatprep.mubr.f32.mxu0 0.0
  %3750 = vmatmul.mubr.f32.gmra.mrb[0].mxu0 %v3613
  %v3751 = vpop.f32.mrb[0].mxu0
  %v3752 = vadd.f32 0.0, %v3751
  %v3753 = vpop.f32.mrb[0].mxu0
  %3754 = vdwg.mxu0
  %3755 = vmatprep.subr.mxu0 0.0
  %3756 = vmatpush1.msra.mxu0 %v372
  %3757 = vmatprep.subr.mxu0 0.0
  %3758 = vmatpush1.msra.mxu0 %v373
  %3759 = vmatprep.subr.mxu0 0.0
  %3760 = vmatpush1.msra.mxu0 0.0
  %3761 = vmatprep.subr.mxu0 0.0
  %3762 = vmatpush1.msra.mxu0 0.0
  %3763 = vmatprep.subr.mxu0 0.0
  %3764 = vmatpush1.msra.mxu0 0.0
  %3765 = vmatprep.subr.mxu0 0.0
  %3766 = vmatpush1.msra.mxu0 0.0
  %3767 = vmatprep.subr.mxu0 0.0
  %3768 = vmatpush1.msra.mxu0 0.0
  %3769 = vmatprep.subr.mxu0 0.0
  %3770 = vmatpush1.msra.mxu0 0.0
  %3771 = vmatprep.subr.mxu0 0.0
  %3772 = vmatpush1.msra.mxu0 0.0
  %3773 = vmatprep.subr.mxu0 0.0
  %3774 = vmatpush1.msra.mxu0 0.0
  %3775 = vmatprep.subr.mxu0 0.0
  %3776 = vmatpush1.msra.mxu0 0.0
  %3777 = vmatprep.subr.mxu0 0.0
  %3778 = vmatpush1.msra.mxu0 0.0
  %3779 = vmatprep.subr.mxu0 0.0
  %3780 = vmatpush1.msra.mxu0 0.0
  %3781 = vmatprep.subr.mxu0 0.0
  %3782 = vmatpush1.msra.mxu0 0.0
  %3783 = vmatprep.subr.mxu0 0.0
  %3784 = vmatpush1.msra.mxu0 0.0
  %3785 = vmatprep.subr.mxu0 0.0
  %3786 = vmatpush1.msra.mxu0 0.0
  %3787 = vmatprep.subr.mxu0 0.0
  %3788 = vmatpush1.msra.mxu0 0.0
  %3789 = vmatprep.subr.mxu0 0.0
  %3790 = vmatpush1.msra.mxu0 0.0
  %3791 = vmatprep.subr.mxu0 0.0
  %3792 = vmatpush1.msra.mxu0 0.0
  %3793 = vmatprep.subr.mxu0 0.0
  %3794 = vmatpush1.msra.mxu0 0.0
  %3795 = vmatprep.subr.mxu0 0.0
  %3796 = vmatpush1.msra.mxu0 0.0
  %3797 = vmatprep.subr.mxu0 0.0
  %3798 = vmatpush1.msra.mxu0 0.0
  %3799 = vmatprep.subr.mxu0 0.0
  %3800 = vmatpush1.msra.mxu0 0.0
  %3801 = vmatprep.subr.mxu0 0.0
  %3802 = vmatpush1.msra.mxu0 0.0
  %3803 = vmatprep.subr.mxu0 0.0
  %3804 = vmatpush1.msra.mxu0 0.0
  %3805 = vmatprep.subr.mxu0 0.0
  %3806 = vmatpush1.msra.mxu0 0.0
  %3807 = vmatprep.subr.mxu0 0.0
  %3808 = vmatpush1.msra.mxu0 0.0
  %3809 = vmatprep.subr.mxu0 0.0
  %3810 = vmatpush1.msra.mxu0 0.0
  %3811 = vmatprep.subr.mxu0 0.0
  %3812 = vmatpush1.msra.mxu0 0.0
  %3813 = vmatprep.subr.mxu0 0.0
  %3814 = vmatpush1.msra.mxu0 0.0
  %3815 = vmatprep.subr.mxu0 0.0
  %3816 = vmatpush1.msra.mxu0 0.0
  %3817 = vmatprep.subr.mxu0 0.0
  %3818 = vmatpush1.msra.mxu0 0.0
  %3819 = vmatprep.mubr.f32.mxu0 0.0
  %3820 = vmatmul.mubr.f32.gmra.mrb[0].mxu0 %v3613
  %v3821 = vpop.f32.mrb[0].mxu0
  %v3822 = vadd.f32 %v782, %v3821
  %v3823 = vpop.f32.mrb[0].mxu0
  %3824 = vdwg.mxu0
  %v3825 = vadd.f32 %v3609, %v3682
  %v3826 = vxor.u32 %v3825, 2147483648
  %v3827 = vmul.f32 %v3826, 1.442695
  %v3828 = vpow.pop %v3827
  %v3829 = vadd.f32 %v3828, 1.0
  %v3830 = vrcp.pop %v3829
  %v3831 = vmul.f32 1.0, %v3830
  %v3832 = vadd.f32 %v3610, %v3752
  %v3833 = vxor.u32 %v3832, 2147483648
  %v3834 = vmul.f32 %v3833, 1.442695
  %v3835 = vpow.pop %v3834
  %v3836 = vadd.f32 %v3835, 1.0
  %v3837 = vrcp.pop %v3836
  %v3838 = vmul.f32 1.0, %v3837
  %v3839 = vmul.f32 %v3831, %v3822
  %v3840 = vadd.f32 %v3611, %v3839
  %v3841 = vtanh.pop %v3840
  %v3842 = vsub.f32 1.0, %v3838
  %v3843 = vmul.f32 %v3842, %v3841
  %v3844 = vmul.f32 %v3838, %v3365
  %v3845 = vadd.f32 %v3843, %v3844
  %v3846 = vmul.f32 %v3845, %v1132
  %v3847 = vadd.f32 %v3846, %v1140
  %v3848 = vmax.f32 %v3368, %v3847
  %v3849 = vld [vmem:[#allocation2 + $0x1c] sm:$0xf]
  %v3850 = vld [vmem:[#allocation3 + $0x1c] sm:$0xf]
  %v3851 = vld [vmem:[#allocation4 + $0x1c] sm:$0xf]
  %v3853 = vsel %vm281, %v3605, 0
  %3855 = vmatprep.subr.mxu0 0.0
  %3856 = vmatpush1.msra.mxu0 %v362
  %3857 = vmatprep.subr.mxu0 0.0
  %3858 = vmatpush1.msra.mxu0 %v363
  %3859 = vmatprep.subr.mxu0 0.0
  %3860 = vmatpush1.msra.mxu0 0.0
  %3861 = vmatprep.subr.mxu0 0.0
  %3862 = vmatpush1.msra.mxu0 0.0
  %3863 = vmatprep.subr.mxu0 0.0
  %3864 = vmatpush1.msra.mxu0 0.0
  %3865 = vmatprep.subr.mxu0 0.0
  %3866 = vmatpush1.msra.mxu0 0.0
  %3867 = vmatprep.subr.mxu0 0.0
  %3868 = vmatpush1.msra.mxu0 0.0
  %3869 = vmatprep.subr.mxu0 0.0
  %3870 = vmatpush1.msra.mxu0 0.0
  %3871 = vmatprep.subr.mxu0 0.0
  %3872 = vmatpush1.msra.mxu0 0.0
  %3873 = vmatprep.subr.mxu0 0.0
  %3874 = vmatpush1.msra.mxu0 0.0
  %3875 = vmatprep.subr.mxu0 0.0
  %3876 = vmatpush1.msra.mxu0 0.0
  %3877 = vmatprep.subr.mxu0 0.0
  %3878 = vmatpush1.msra.mxu0 0.0
  %3879 = vmatprep.subr.mxu0 0.0
  %3880 = vmatpush1.msra.mxu0 0.0
  %3881 = vmatprep.subr.mxu0 0.0
  %3882 = vmatpush1.msra.mxu0 0.0
  %3883 = vmatprep.subr.mxu0 0.0
  %3884 = vmatpush1.msra.mxu0 0.0
  %3885 = vmatprep.subr.mxu0 0.0
  %3886 = vmatpush1.msra.mxu0 0.0
  %3887 = vmatprep.subr.mxu0 0.0
  %3888 = vmatpush1.msra.mxu0 0.0
  %3889 = vmatprep.subr.mxu0 0.0
  %3890 = vmatpush1.msra.mxu0 0.0
  %3891 = vmatprep.subr.mxu0 0.0
  %3892 = vmatpush1.msra.mxu0 0.0
  %3893 = vmatprep.subr.mxu0 0.0
  %3894 = vmatpush1.msra.mxu0 0.0
  %3895 = vmatprep.subr.mxu0 0.0
  %3896 = vmatpush1.msra.mxu0 0.0
  %3897 = vmatprep.subr.mxu0 0.0
  %3898 = vmatpush1.msra.mxu0 0.0
  %3899 = vmatprep.subr.mxu0 0.0
  %3900 = vmatpush1.msra.mxu0 0.0
  %3901 = vmatprep.subr.mxu0 0.0
  %3902 = vmatpush1.msra.mxu0 0.0
  %3903 = vmatprep.subr.mxu0 0.0
  %3904 = vmatpush1.msra.mxu0 0.0
  %3905 = vmatprep.subr.mxu0 0.0
  %3906 = vmatpush1.msra.mxu0 0.0
  %3907 = vmatprep.subr.mxu0 0.0
  %3908 = vmatpush1.msra.mxu0 0.0
  %3909 = vmatprep.subr.mxu0 0.0
  %3910 = vmatpush1.msra.mxu0 0.0
  %3911 = vmatprep.subr.mxu0 0.0
  %3912 = vmatpush1.msra.mxu0 0.0
  %3913 = vmatprep.subr.mxu0 0.0
  %3914 = vmatpush1.msra.mxu0 0.0
  %3915 = vmatprep.subr.mxu0 0.0
  %3916 = vmatpush1.msra.mxu0 0.0
  %3917 = vmatprep.subr.mxu0 0.0
  %3918 = vmatpush1.msra.mxu0 0.0
  %3919 = vmatprep.mubr.f32.mxu0 0.0
  %3920 = vmatmul.mubr.f32.gmra.mrb[0].mxu0 %v3853
  %v3921 = vpop.f32.mrb[0].mxu0
  %v3922 = vadd.f32 0.0, %v3921
  %v3923 = vpop.f32.mrb[0].mxu0
  %3924 = vdwg.mxu0
  %3925 = vmatprep.subr.mxu0 0.0
  %3926 = vmatpush1.msra.mxu0 %v364
  %3927 = vmatprep.subr.mxu0 0.0
  %3928 = vmatpush1.msra.mxu0 %v365
  %3929 = vmatprep.subr.mxu0 0.0
  %3930 = vmatpush1.msra.mxu0 0.0
  %3931 = vmatprep.subr.mxu0 0.0
  %3932 = vmatpush1.msra.mxu0 0.0
  %3933 = vmatprep.subr.mxu0 0.0
  %3934 = vmatpush1.msra.mxu0 0.0
  %3935 = vmatprep.subr.mxu0 0.0
  %3936 = vmatpush1.msra.mxu0 0.0
  %3937 = vmatprep.subr.mxu0 0.0
  %3938 = vmatpush1.msra.mxu0 0.0
  %3939 = vmatprep.subr.mxu0 0.0
  %3940 = vmatpush1.msra.mxu0 0.0
  %3941 = vmatprep.subr.mxu0 0.0
  %3942 = vmatpush1.msra.mxu0 0.0
  %3943 = vmatprep.subr.mxu0 0.0
  %3944 = vmatpush1.msra.mxu0 0.0
  %3945 = vmatprep.subr.mxu0 0.0
  %3946 = vmatpush1.msra.mxu0 0.0
  %3947 = vmatprep.subr.mxu0 0.0
  %3948 = vmatpush1.msra.mxu0 0.0
  %3949 = vmatprep.subr.mxu0 0.0
  %3950 = vmatpush1.msra.mxu0 0.0
  %3951 = vmatprep.subr.mxu0 0.0
  %3952 = vmatpush1.msra.mxu0 0.0
  %3953 = vmatprep.subr.mxu0 0.0
  %3954 = vmatpush1.msra.mxu0 0.0
  %3955 = vmatprep.subr.mxu0 0.0
  %3956 = vmatpush1.msra.mxu0 0.0
  %3957 = vmatprep.subr.mxu0 0.0
  %3958 = vmatpush1.msra.mxu0 0.0
  %3959 = vmatprep.subr.mxu0 0.0
  %3960 = vmatpush1.msra.mxu0 0.0
  %3961 = vmatprep.subr.mxu0 0.0
  %3962 = vmatpush1.msra.mxu0 0.0
  %3963 = vmatprep.subr.mxu0 0.0
  %3964 = vmatpush1.msra.mxu0 0.0
  %3965 = vmatprep.subr.mxu0 0.0
  %3966 = vmatpush1.msra.mxu0 0.0
  %3967 = vmatprep.subr.mxu0 0.0
  %3968 = vmatpush1.msra.mxu0 0.0
  %3969 = vmatprep.subr.mxu0 0.0
  %3970 = vmatpush1.msra.mxu0 0.0
  %3971 = vmatprep.subr.mxu0 0.0
  %3972 = vmatpush1.msra.mxu0 0.0
  %3973 = vmatprep.subr.mxu0 0.0
  %3974 = vmatpush1.msra.mxu0 0.0
  %3975 = vmatprep.subr.mxu0 0.0
  %3976 = vmatpush1.msra.mxu0 0.0
  %3977 = vmatprep.subr.mxu0 0.0
  %3978 = vmatpush1.msra.mxu0 0.0
  %3979 = vmatprep.subr.mxu0 0.0
  %3980 = vmatpush1.msra.mxu0 0.0
  %3981 = vmatprep.subr.mxu0 0.0
  %3982 = vmatpush1.msra.mxu0 0.0
  %3983 = vmatprep.subr.mxu0 0.0
  %3984 = vmatpush1.msra.mxu0 0.0
  %3985 = vmatprep.subr.mxu0 0.0
  %3986 = vmatpush1.msra.mxu0 0.0
  %3987 = vmatprep.subr.mxu0 0.0
  %3988 = vmatpush1.msra.mxu0 0.0
  %3989 = vmatprep.mubr.f32.mxu0 0.0
  %3990 = vmatmul.mubr.f32.gmra.mrb[0].mxu0 %v3853
  %v3991 = vpop.f32.mrb[0].mxu0
  %v3992 = vadd.f32 0.0, %v3991
  %v3993 = vpop.f32.mrb[0].mxu0
  %3994 = vdwg.mxu0
  %3995 = vmatprep.subr.mxu0 0.0
  %3996 = vmatpush1.msra.mxu0 %v366
  %3997 = vmatprep.subr.mxu0 0.0
  %3998 = vmatpush1.msra.mxu0 %v367
  %3999 = vmatprep.subr.mxu0 0.0
  %4000 = vmatpush1.msra.mxu0 0.0
  %4001 = vmatprep.subr.mxu0 0.0
  %4002 = vmatpush1.msra.mxu0 0.0
  %4003 = vmatprep.subr.mxu0 0.0
  %4004 = vmatpush1.msra.mxu0 0.0
  %4005 = vmatprep.subr.mxu0 0.0
  %4006 = vmatpush1.msra.mxu0 0.0
  %4007 = vmatprep.subr.mxu0 0.0
  %4008 = vmatpush1.msra.mxu0 0.0
  %4009 = vmatprep.subr.mxu0 0.0
  %4010 = vmatpush1.msra.mxu0 0.0
  %4011 = vmatprep.subr.mxu0 0.0
  %4012 = vmatpush1.msra.mxu0 0.0
  %4013 = vmatprep.subr.mxu0 0.0
  %4014 = vmatpush1.msra.mxu0 0.0
  %4015 = vmatprep.subr.mxu0 0.0
  %4016 = vmatpush1.msra.mxu0 0.0
  %4017 = vmatprep.subr.mxu0 0.0
  %4018 = vmatpush1.msra.mxu0 0.0
  %4019 = vmatprep.subr.mxu0 0.0
  %4020 = vmatpush1.msra.mxu0 0.0
  %4021 = vmatprep.subr.mxu0 0.0
  %4022 = vmatpush1.msra.mxu0 0.0
  %4023 = vmatprep.subr.mxu0 0.0
  %4024 = vmatpush1.msra.mxu0 0.0
  %4025 = vmatprep.subr.mxu0 0.0
  %4026 = vmatpush1.msra.mxu0 0.0
  %4027 = vmatprep.subr.mxu0 0.0
  %4028 = vmatpush1.msra.mxu0 0.0
  %4029 = vmatprep.subr.mxu0 0.0
  %4030 = vmatpush1.msra.mxu0 0.0
  %4031 = vmatprep.subr.mxu0 0.0
  %4032 = vmatpush1.msra.mxu0 0.0
  %4033 = vmatprep.subr.mxu0 0.0
  %4034 = vmatpush1.msra.mxu0 0.0
  %4035 = vmatprep.subr.mxu0 0.0
  %4036 = vmatpush1.msra.mxu0 0.0
  %4037 = vmatprep.subr.mxu0 0.0
  %4038 = vmatpush1.msra.mxu0 0.0
  %4039 = vmatprep.subr.mxu0 0.0
  %4040 = vmatpush1.msra.mxu0 0.0
  %4041 = vmatprep.subr.mxu0 0.0
  %4042 = vmatpush1.msra.mxu0 0.0
  %4043 = vmatprep.subr.mxu0 0.0
  %4044 = vmatpush1.msra.mxu0 0.0
  %4045 = vmatprep.subr.mxu0 0.0
  %4046 = vmatpush1.msra.mxu0 0.0
  %4047 = vmatprep.subr.mxu0 0.0
  %4048 = vmatpush1.msra.mxu0 0.0
  %4049 = vmatprep.subr.mxu0 0.0
  %4050 = vmatpush1.msra.mxu0 0.0
  %4051 = vmatprep.subr.mxu0 0.0
  %4052 = vmatpush1.msra.mxu0 0.0
  %4053 = vmatprep.subr.mxu0 0.0
  %4054 = vmatpush1.msra.mxu0 0.0
  %4055 = vmatprep.subr.mxu0 0.0
  %4056 = vmatpush1.msra.mxu0 0.0
  %4057 = vmatprep.subr.mxu0 0.0
  %4058 = vmatpush1.msra.mxu0 0.0
  %4059 = vmatprep.mubr.f32.mxu0 0.0
  %4060 = vmatmul.mubr.f32.gmra.mrb[0].mxu0 %v3853
  %v4061 = vpop.f32.mrb[0].mxu0
  %v4062 = vadd.f32 %v526, %v4061
  %v4063 = vpop.f32.mrb[0].mxu0
  %4064 = vdwg.mxu0
  %v4065 = vadd.f32 %v3849, %v3922
  %v4066 = vxor.u32 %v4065, 2147483648
  %v4067 = vmul.f32 %v4066, 1.442695
  %v4068 = vpow.pop %v4067
  %v4069 = vadd.f32 %v4068, 1.0
  %v4070 = vrcp.pop %v4069
  %v4071 = vmul.f32 1.0, %v4070
  %v4072 = vadd.f32 %v3850, %v3992
  %v4073 = vxor.u32 %v4072, 2147483648
  %v4074 = vmul.f32 %v4073, 1.442695
  %v4075 = vpow.pop %v4074
  %v4076 = vadd.f32 %v4075, 1.0
  %v4077 = vrcp.pop %v4076
  %v4078 = vmul.f32 1.0, %v4077
  %v4079 = vmul.f32 %v4071, %v4062
  %v4080 = vadd.f32 %v3851, %v4079
  %v4081 = vtanh.pop %v4080
  %v4082 = vsub.f32 1.0, %v4078
  %v4083 = vmul.f32 %v4082, %v4081
  %v4084 = vmul.f32 %v4078, %v3605
  %v4085 = vadd.f32 %v4083, %v4084
  %v4086 = vmul.f32 %v4085, %v879
  %v4087 = vadd.f32 %v4086, %v887
  %v4088 = vmax.f32 %v3608, %v4087
  %v4089 = vld [vmem:[#allocation5 + $0x1c] sm:$0xf]
  %v4090 = vld [vmem:[#allocation6 + $0x1c] sm:$0xf]
  %v4091 = vld [vmem:[#allocation7 + $0x1c] sm:$0xf]
  %v4093 = vsel %vm281, %v3845, 0
  %4095 = vmatprep.subr.mxu0 0.0
  %4096 = vmatpush1.msra.mxu0 %v368
  %4097 = vmatprep.subr.mxu0 0.0
  %4098 = vmatpush1.msra.mxu0 %v369
  %4099 = vmatprep.subr.mxu0 0.0
  %4100 = vmatpush1.msra.mxu0 0.0
  %4101 = vmatprep.subr.mxu0 0.0
  %4102 = vmatpush1.msra.mxu0 0.0
  %4103 = vmatprep.subr.mxu0 0.0
  %4104 = vmatpush1.msra.mxu0 0.0
  %4105 = vmatprep.subr.mxu0 0.0
  %4106 = vmatpush1.msra.mxu0 0.0
  %4107 = vmatprep.subr.mxu0 0.0
  %4108 = vmatpush1.msra.mxu0 0.0
  %4109 = vmatprep.subr.mxu0 0.0
  %4110 = vmatpush1.msra.mxu0 0.0
  %4111 = vmatprep.subr.mxu0 0.0
  %4112 = vmatpush1.msra.mxu0 0.0
  %4113 = vmatprep.subr.mxu0 0.0
  %4114 = vmatpush1.msra.mxu0 0.0
  %4115 = vmatprep.subr.mxu0 0.0
  %4116 = vmatpush1.msra.mxu0 0.0
  %4117 = vmatprep.subr.mxu0 0.0
  %4118 = vmatpush1.msra.mxu0 0.0
  %4119 = vmatprep.subr.mxu0 0.0
  %4120 = vmatpush1.msra.mxu0 0.0
  %4121 = vmatprep.subr.mxu0 0.0
  %4122 = vmatpush1.msra.mxu0 0.0
  %4123 = vmatprep.subr.mxu0 0.0
  %4124 = vmatpush1.msra.mxu0 0.0
  %4125 = vmatprep.subr.mxu0 0.0
  %4126 = vmatpush1.msra.mxu0 0.0
  %4127 = vmatprep.subr.mxu0 0.0
  %4128 = vmatpush1.msra.mxu0 0.0
  %4129 = vmatprep.subr.mxu0 0.0
  %4130 = vmatpush1.msra.mxu0 0.0
  %4131 = vmatprep.subr.mxu0 0.0
  %4132 = vmatpush1.msra.mxu0 0.0
  %4133 = vmatprep.subr.mxu0 0.0
  %4134 = vmatpush1.msra.mxu0 0.0
  %4135 = vmatprep.subr.mxu0 0.0
  %4136 = vmatpush1.msra.mxu0 0.0
  %4137 = vmatprep.subr.mxu0 0.0
  %4138 = vmatpush1.msra.mxu0 0.0
  %4139 = vmatprep.subr.mxu0 0.0
  %4140 = vmatpush1.msra.mxu0 0.0
  %4141 = vmatprep.subr.mxu0 0.0
  %4142 = vmatpush1.msra.mxu0 0.0
  %4143 = vmatprep.subr.mxu0 0.0
  %4144 = vmatpush1.msra.mxu0 0.0
  %4145 = vmatprep.subr.mxu0 0.0
  %4146 = vmatpush1.msra.mxu0 0.0
  %4147 = vmatprep.subr.mxu0 0.0
  %4148 = vmatpush1.msra.mxu0 0.0
  %4149 = vmatprep.subr.mxu0 0.0
  %4150 = vmatpush1.msra.mxu0 0.0
  %4151 = vmatprep.subr.mxu0 0.0
  %4152 = vmatpush1.msra.mxu0 0.0
  %4153 = vmatprep.subr.mxu0 0.0
  %4154 = vmatpush1.msra.mxu0 0.0
  %4155 = vmatprep.subr.mxu0 0.0
  %4156 = vmatpush1.msra.mxu0 0.0
  %4157 = vmatprep.subr.mxu0 0.0
  %4158 = vmatpush1.msra.mxu0 0.0
  %4159 = vmatprep.mubr.f32.mxu0 0.0
  %4160 = vmatmul.mubr.f32.gmra.mrb[0].mxu0 %v4093
  %v4161 = vpop.f32.mrb[0].mxu0
  %v4162 = vadd.f32 0.0, %v4161
  %v4163 = vpop.f32.mrb[0].mxu0
  %4164 = vdwg.mxu0
  %4165 = vmatprep.subr.mxu0 0.0
  %4166 = vmatpush1.msra.mxu0 %v370
  %4167 = vmatprep.subr.mxu0 0.0
  %4168 = vmatpush1.msra.mxu0 %v371
  %4169 = vmatprep.subr.mxu0 0.0
  %4170 = vmatpush1.msra.mxu0 0.0
  %4171 = vmatprep.subr.mxu0 0.0
  %4172 = vmatpush1.msra.mxu0 0.0
  %4173 = vmatprep.subr.mxu0 0.0
  %4174 = vmatpush1.msra.mxu0 0.0
  %4175 = vmatprep.subr.mxu0 0.0
  %4176 = vmatpush1.msra.mxu0 0.0
  %4177 = vmatprep.subr.mxu0 0.0
  %4178 = vmatpush1.msra.mxu0 0.0
  %4179 = vmatprep.subr.mxu0 0.0
  %4180 = vmatpush1.msra.mxu0 0.0
  %4181 = vmatprep.subr.mxu0 0.0
  %4182 = vmatpush1.msra.mxu0 0.0
  %4183 = vmatprep.subr.mxu0 0.0
  %4184 = vmatpush1.msra.mxu0 0.0
  %4185 = vmatprep.subr.mxu0 0.0
  %4186 = vmatpush1.msra.mxu0 0.0
  %4187 = vmatprep.subr.mxu0 0.0
  %4188 = vmatpush1.msra.mxu0 0.0
  %4189 = vmatprep.subr.mxu0 0.0
  %4190 = vmatpush1.msra.mxu0 0.0
  %4191 = vmatprep.subr.mxu0 0.0
  %4192 = vmatpush1.msra.mxu0 0.0
  %4193 = vmatprep.subr.mxu0 0.0
  %4194 = vmatpush1.msra.mxu0 0.0
  %4195 = vmatprep.subr.mxu0 0.0
  %4196 = vmatpush1.msra.mxu0 0.0
  %4197 = vmatprep.subr.mxu0 0.0
  %4198 = vmatpush1.msra.mxu0 0.0
  %4199 = vmatprep.subr.mxu0 0.0
  %4200 = vmatpush1.msra.mxu0 0.0
  %4201 = vmatprep.subr.mxu0 0.0
  %4202 = vmatpush1.msra.mxu0 0.0
  %4203 = vmatprep.subr.mxu0 0.0
  %4204 = vmatpush1.msra.mxu0 0.0
  %4205 = vmatprep.subr.mxu0 0.0
  %4206 = vmatpush1.msra.mxu0 0.0
  %4207 = vmatprep.subr.mxu0 0.0
  %4208 = vmatpush1.msra.mxu0 0.0
  %4209 = vmatprep.subr.mxu0 0.0
  %4210 = vmatpush1.msra.mxu0 0.0
  %4211 = vmatprep.subr.mxu0 0.0
  %4212 = vmatpush1.msra.mxu0 0.0
  %4213 = vmatprep.subr.mxu0 0.0
  %4214 = vmatpush1.msra.mxu0 0.0
  %4215 = vmatprep.subr.mxu0 0.0
  %4216 = vmatpush1.msra.mxu0 0.0
  %4217 = vmatprep.subr.mxu0 0.0
  %4218 = vmatpush1.msra.mxu0 0.0
  %4219 = vmatprep.subr.mxu0 0.0
  %4220 = vmatpush1.msra.mxu0 0.0
  %4221 = vmatprep.subr.mxu0 0.0
  %4222 = vmatpush1.msra.mxu0 0.0
  %4223 = vmatprep.subr.mxu0 0.0
  %4224 = vmatpush1.msra.mxu0 0.0
  %4225 = vmatprep.subr.mxu0 0.0
  %4226 = vmatpush1.msra.mxu0 0.0
  %4227 = vmatprep.subr.mxu0 0.0
  %4228 = vmatpush1.msra.mxu0 0.0
  %4229 = vmatprep.mubr.f32.mxu0 0.0
  %4230 = vmatmul.mubr.f32.gmra.mrb[0].mxu0 %v4093
  %v4231 = vpop.f32.mrb[0].mxu0
  %v4232 = vadd.f32 0.0, %v4231
  %v4233 = vpop.f32.mrb[0].mxu0
  %4234 = vdwg.mxu0
  %4235 = vmatprep.subr.mxu0 0.0
  %4236 = vmatpush1.msra.mxu0 %v372
  %4237 = vmatprep.subr.mxu0 0.0
  %4238 = vmatpush1.msra.mxu0 %v373
  %4239 = vmatprep.subr.mxu0 0.0
  %4240 = vmatpush1.msra.mxu0 0.0
  %4241 = vmatprep.subr.mxu0 0.0
  %4242 = vmatpush1.msra.mxu0 0.0
  %4243 = vmatprep.subr.mxu0 0.0
  %4244 = vmatpush1.msra.mxu0 0.0
  %4245 = vmatprep.subr.mxu0 0.0
  %4246 = vmatpush1.msra.mxu0 0.0
  %4247 = vmatprep.subr.mxu0 0.0
  %4248 = vmatpush1.msra.mxu0 0.0
  %4249 = vmatprep.subr.mxu0 0.0
  %4250 = vmatpush1.msra.mxu0 0.0
  %4251 = vmatprep.subr.mxu0 0.0
  %4252 = vmatpush1.msra.mxu0 0.0
  %4253 = vmatprep.subr.mxu0 0.0
  %4254 = vmatpush1.msra.mxu0 0.0
  %4255 = vmatprep.subr.mxu0 0.0
  %4256 = vmatpush1.msra.mxu0 0.0
  %4257 = vmatprep.subr.mxu0 0.0
  %4258 = vmatpush1.msra.mxu0 0.0
  %4259 = vmatprep.subr.mxu0 0.0
  %4260 = vmatpush1.msra.mxu0 0.0
  %4261 = vmatprep.subr.mxu0 0.0
  %4262 = vmatpush1.msra.mxu0 0.0
  %4263 = vmatprep.subr.mxu0 0.0
  %4264 = vmatpush1.msra.mxu0 0.0
  %4265 = vmatprep.subr.mxu0 0.0
  %4266 = vmatpush1.msra.mxu0 0.0
  %4267 = vmatprep.subr.mxu0 0.0
  %4268 = vmatpush1.msra.mxu0 0.0
  %4269 = vmatprep.subr.mxu0 0.0
  %4270 = vmatpush1.msra.mxu0 0.0
  %4271 = vmatprep.subr.mxu0 0.0
  %4272 = vmatpush1.msra.mxu0 0.0
  %4273 = vmatprep.subr.mxu0 0.0
  %4274 = vmatpush1.msra.mxu0 0.0
  %4275 = vmatprep.subr.mxu0 0.0
  %4276 = vmatpush1.msra.mxu0 0.0
  %4277 = vmatprep.subr.mxu0 0.0
  %4278 = vmatpush1.msra.mxu0 0.0
  %4279 = vmatprep.subr.mxu0 0.0
  %4280 = vmatpush1.msra.mxu0 0.0
  %4281 = vmatprep.subr.mxu0 0.0
  %4282 = vmatpush1.msra.mxu0 0.0
  %4283 = vmatprep.subr.mxu0 0.0
  %4284 = vmatpush1.msra.mxu0 0.0
  %4285 = vmatprep.subr.mxu0 0.0
  %4286 = vmatpush1.msra.mxu0 0.0
  %4287 = vmatprep.subr.mxu0 0.0
  %4288 = vmatpush1.msra.mxu0 0.0
  %4289 = vmatprep.subr.mxu0 0.0
  %4290 = vmatpush1.msra.mxu0 0.0
  %4291 = vmatprep.subr.mxu0 0.0
  %4292 = vmatpush1.msra.mxu0 0.0
  %4293 = vmatprep.subr.mxu0 0.0
  %4294 = vmatpush1.msra.mxu0 0.0
  %4295 = vmatprep.subr.mxu0 0.0
  %4296 = vmatpush1.msra.mxu0 0.0
  %4297 = vmatprep.subr.mxu0 0.0
  %4298 = vmatpush1.msra.mxu0 0.0
  %4299 = vmatprep.mubr.f32.mxu0 0.0
  %4300 = vmatmul.mubr.f32.gmra.mrb[0].mxu0 %v4093
  %v4301 = vpop.f32.mrb[0].mxu0
  %v4302 = vadd.f32 %v782, %v4301
  %v4303 = vpop.f32.mrb[0].mxu0
  %4304 = vdwg.mxu0
  %v4305 = vadd.f32 %v4089, %v4162
  %v4306 = vxor.u32 %v4305, 2147483648
  %v4307 = vmul.f32 %v4306, 1.442695
  %v4308 = vpow.pop %v4307
  %v4309 = vadd.f32 %v4308, 1.0
  %v4310 = vrcp.pop %v4309
  %v4311 = vmul.f32 1.0, %v4310
  %v4312 = vadd.f32 %v4090, %v4232
  %v4313 = vxor.u32 %v4312, 2147483648
  %v4314 = vmul.f32 %v4313, 1.442695
  %v4315 = vpow.pop %v4314
  %v4316 = vadd.f32 %v4315, 1.0
  %v4317 = vrcp.pop %v4316
  %v4318 = vmul.f32 1.0, %v4317
  %v4319 = vmul.f32 %v4311, %v4302
  %v4320 = vadd.f32 %v4091, %v4319
  %v4321 = vtanh.pop %v4320
  %v4322 = vsub.f32 1.0, %v4318
  %v4323 = vmul.f32 %v4322, %v4321
  %v4324 = vmul.f32 %v4318, %v3845
  %v4325 = vadd.f32 %v4323, %v4324
  %v4326 = vmul.f32 %v4325, %v623
  %v4327 = vadd.f32 %v4326, %v631
  %v4328 = vmax.f32 %v3848, %v4327
  %v4329 = vld [vmem:[%s15] sm:$0xff]
  %v4330 = vld [vmem:[%s15 + $0x8] sm:$0xff]
  %v4331 = vld [vmem:[%s15 + $0x10] sm:$0xff]
  %v4332 = vld [vmem:[%s15 + $0x18] sm:$0xff]
  %v4334 = vsel %vm281, %v4328, 0
  %4336 = vmatprep.subr.mxu0 0.0
  %4337 = vmatpush1.msra.mxu0 %v4331
  %4338 = vmatprep.subr.mxu0 0.0
  %4339 = vmatpush1.msra.mxu0 %v4332
  %4340 = vmatprep.subr.mxu0 0.0
  %4341 = vmatpush1.msra.mxu0 0.0
  %4342 = vmatprep.subr.mxu0 0.0
  %4343 = vmatpush1.msra.mxu0 0.0
  %4344 = vmatprep.subr.mxu0 0.0
  %4345 = vmatpush1.msra.mxu0 0.0
  %4346 = vmatprep.subr.mxu0 0.0
  %4347 = vmatpush1.msra.mxu0 0.0
  %4348 = vmatprep.subr.mxu0 0.0
  %4349 = vmatpush1.msra.mxu0 0.0
  %4350 = vmatprep.subr.mxu0 0.0
  %4351 = vmatpush1.msra.mxu0 0.0
  %4352 = vmatprep.subr.mxu0 0.0
  %4353 = vmatpush1.msra.mxu0 0.0
  %4354 = vmatprep.subr.mxu0 0.0
  %4355 = vmatpush1.msra.mxu0 0.0
  %4356 = vmatprep.subr.mxu0 0.0
  %4357 = vmatpush1.msra.mxu0 0.0
  %4358 = vmatprep.subr.mxu0 0.0
  %4359 = vmatpush1.msra.mxu0 0.0
  %4360 = vmatprep.subr.mxu0 0.0
  %4361 = vmatpush1.msra.mxu0 0.0
  %4362 = vmatprep.subr.mxu0 0.0
  %4363 = vmatpush1.msra.mxu0 0.0
  %4364 = vmatprep.subr.mxu0 0.0
  %4365 = vmatpush1.msra.mxu0 0.0
  %4366 = vmatprep.subr.mxu0 0.0
  %4367 = vmatpush1.msra.mxu0 0.0
  %4368 = vmatprep.subr.mxu0 0.0
  %4369 = vmatpush1.msra.mxu0 0.0
  %4370 = vmatprep.subr.mxu0 0.0
  %4371 = vmatpush1.msra.mxu0 0.0
  %4372 = vmatprep.subr.mxu0 0.0
  %4373 = vmatpush1.msra.mxu0 0.0
  %4374 = vmatprep.subr.mxu0 0.0
  %4375 = vmatpush1.msra.mxu0 0.0
  %4376 = vmatprep.subr.mxu0 0.0
  %4377 = vmatpush1.msra.mxu0 0.0
  %4378 = vmatprep.subr.mxu0 0.0
  %4379 = vmatpush1.msra.mxu0 0.0
  %4380 = vmatprep.subr.mxu0 0.0
  %4381 = vmatpush1.msra.mxu0 0.0
  %4382 = vmatprep.subr.mxu0 0.0
  %4383 = vmatpush1.msra.mxu0 0.0
  %4384 = vmatprep.subr.mxu0 0.0
  %4385 = vmatpush1.msra.mxu0 0.0
  %4386 = vmatprep.subr.mxu0 0.0
  %4387 = vmatpush1.msra.mxu0 0.0
  %4388 = vmatprep.subr.mxu0 0.0
  %4389 = vmatpush1.msra.mxu0 0.0
  %4390 = vmatprep.subr.mxu0 0.0
  %4391 = vmatpush1.msra.mxu0 0.0
  %4392 = vmatprep.subr.mxu0 0.0
  %4393 = vmatpush1.msra.mxu0 0.0
  %4394 = vmatprep.subr.mxu0 0.0
  %4395 = vmatpush1.msra.mxu0 0.0
  %4396 = vmatprep.subr.mxu0 0.0
  %4397 = vmatpush1.msra.mxu0 0.0
  %4398 = vmatprep.subr.mxu0 0.0
  %4399 = vmatpush1.msra.mxu0 0.0
  %4400 = vmatprep.mubr.f32.mxu0 0.0
  %4401 = vmatmul.mubr.f32.gmra.mrb[0].mxu0 %v4334
  %v4402 = vpop.f32.mrb[0].mxu0
  %v4403 = vadd.f32 0.0, %v4402
  %v4404 = vpop.f32.mrb[0].mxu0
  %4405 = vdwg.mxu0
  %v4407 = vsel %vm281, %v4088, 0
  %4409 = vmatprep.subr.mxu0 0.0
  %4410 = vmatpush1.msra.mxu0 %v4329
  %4411 = vmatprep.subr.mxu0 0.0
  %4412 = vmatpush1.msra.mxu0 %v4330
  %4413 = vmatprep.subr.mxu0 0.0
  %4414 = vmatpush1.msra.mxu0 0.0
  %4415 = vmatprep.subr.mxu0 0.0
  %4416 = vmatpush1.msra.mxu0 0.0
  %4417 = vmatprep.subr.mxu0 0.0
  %4418 = vmatpush1.msra.mxu0 0.0
  %4419 = vmatprep.subr.mxu0 0.0
  %4420 = vmatpush1.msra.mxu0 0.0
  %4421 = vmatprep.subr.mxu0 0.0
  %4422 = vmatpush1.msra.mxu0 0.0
  %4423 = vmatprep.subr.mxu0 0.0
  %4424 = vmatpush1.msra.mxu0 0.0
  %4425 = vmatprep.subr.mxu0 0.0
  %4426 = vmatpush1.msra.mxu0 0.0
  %4427 = vmatprep.subr.mxu0 0.0
  %4428 = vmatpush1.msra.mxu0 0.0
  %4429 = vmatprep.subr.mxu0 0.0
  %4430 = vmatpush1.msra.mxu0 0.0
  %4431 = vmatprep.subr.mxu0 0.0
  %4432 = vmatpush1.msra.mxu0 0.0
  %4433 = vmatprep.subr.mxu0 0.0
  %4434 = vmatpush1.msra.mxu0 0.0
  %4435 = vmatprep.subr.mxu0 0.0
  %4436 = vmatpush1.msra.mxu0 0.0
  %4437 = vmatprep.subr.mxu0 0.0
  %4438 = vmatpush1.msra.mxu0 0.0
  %4439 = vmatprep.subr.mxu0 0.0
  %4440 = vmatpush1.msra.mxu0 0.0
  %4441 = vmatprep.subr.mxu0 0.0
  %4442 = vmatpush1.msra.mxu0 0.0
  %4443 = vmatprep.subr.mxu0 0.0
  %4444 = vmatpush1.msra.mxu0 0.0
  %4445 = vmatprep.subr.mxu0 0.0
  %4446 = vmatpush1.msra.mxu0 0.0
  %4447 = vmatprep.subr.mxu0 0.0
  %4448 = vmatpush1.msra.mxu0 0.0
  %4449 = vmatprep.subr.mxu0 0.0
  %4450 = vmatpush1.msra.mxu0 0.0
  %4451 = vmatprep.subr.mxu0 0.0
  %4452 = vmatpush1.msra.mxu0 0.0
  %4453 = vmatprep.subr.mxu0 0.0
  %4454 = vmatpush1.msra.mxu0 0.0
  %4455 = vmatprep.subr.mxu0 0.0
  %4456 = vmatpush1.msra.mxu0 0.0
  %4457 = vmatprep.subr.mxu0 0.0
  %4458 = vmatpush1.msra.mxu0 0.0
  %4459 = vmatprep.subr.mxu0 0.0
  %4460 = vmatpush1.msra.mxu0 0.0
  %4461 = vmatprep.subr.mxu0 0.0
  %4462 = vmatpush1.msra.mxu0 0.0
  %4463 = vmatprep.subr.mxu0 0.0
  %4464 = vmatpush1.msra.mxu0 0.0
  %4465 = vmatprep.subr.mxu0 0.0
  %4466 = vmatpush1.msra.mxu0 0.0
  %4467 = vmatprep.subr.mxu0 0.0
  %4468 = vmatpush1.msra.mxu0 0.0
  %4469 = vmatprep.subr.mxu0 0.0
  %4470 = vmatpush1.msra.mxu0 0.0
  %4471 = vmatprep.subr.mxu0 0.0
  %4472 = vmatpush1.msra.mxu0 0.0
  %4473 = vmatprep.mubr.f32.mxu0 0.0
  %4474 = vmatmul.mubr.f32.gmra.mrb[0].mxu0 %v4407
  %v4475 = vpop.f32.mrb[0].mxu0
  %v4476 = vadd.f32 %v4403, %v4475
  %v4477 = vpop.f32.mrb[0].mxu0
  %4478 = vdwg.mxu0
  %v4479 = vld [vmem:[%s16] sm:$0x1]
  %v4481 = vlaneseq
  %v4482 = vshrl.u32 %v4481, 7
  %v4483 = vsub.s32 0, %v4482
  %v4484 = vrot.slane %v4479, %v4483
  %v4486 = vadd.f32 %v4476, %v4484
  %vm4487 = vcmask 11264
  %4488 = vst.msk [vmem:[%s17] sm:$0xf] %vm4487, %v4486
  // Predicated region
  $region70: #{multi_gen_forward.3} parent=0 // pred_check
    _
  $region71: #{multi_gen_forward.3} parent=0 // pred_check_branch
    %4490 = sbr.rel (0) target = $region73
  $region72: #{multi_gen_forward.3} parent=0 // pred_region
    _
  $region73: #{multi_gen_forward.3} parent=0 // pred_fallthru
    _
  // Predicated region
  $region74: #{multi_gen_forward.3} parent=0 // pred_check
    _
  $region75: #{multi_gen_forward.3} parent=0 // pred_check_branch
    %4492 = sbr.rel (0) target = $region77
  $region76: #{multi_gen_forward.3} parent=0 // pred_region
    _
  $region77: #{multi_gen_forward.3} parent=0 // pred_fallthru
    _

// kernel: multi_gen_forward.2
$region0: #{multi_gen_forward.2}
  #allocation0 [shape = 'u32[]', space=smem, size = 0x4, offset = 0x4, fixed_abs, tag = 'smem constant byte address 0x4 - core index']
  #allocation1 [shape = 'u32[144,128]{1,0:T(1,128)}', space=vmem, size = 0x12000, scoped, tag = 'internal scratch']
  #allocation2 [shape = 'f32[16,32]{1,0:T(8,128)}', space=vmem, size = 0x2000, scoped, tag = 'scratch operand']
  #allocation3 [shape = 'f32[16,32]{1,0:T(8,128)}', space=vmem, size = 0x2000, scoped, tag = 'scratch operand']
  #allocation4 [shape = 'f32[16,32]{1,0:T(8,128)}', space=vmem, size = 0x2000, scoped, tag = 'scratch operand']
  #allocation5 [shape = 'f32[16,32]{1,0:T(8,128)}', space=vmem, size = 0x2000, scoped, tag = 'scratch operand']
  #allocation6 [shape = 'f32[16,32]{1,0:T(8,128)}', space=vmem, size = 0x2000, scoped, tag = 'scratch operand']
  #allocation7 [shape = 'f32[16,32]{1,0:T(8,128)}', space=vmem, size = 0x2000, scoped, tag = 'scratch operand']
  #allocation8 [shape = 'f32[16,32]{1,0:T(8,128)}', space=vmem, size = 0x2000, scoped, tag = 'scratch operand']
  #allocation9 [shape = 'f32[16,32]{1,0:T(8,128)}', space=vmem, size = 0x2000, scoped, tag = 'scratch operand']
  %s0 = inlined_call_operand.vmem [shape: f32[16,32], index: 0, kind: input, shape index: {}]
  %s1 = inlined_call_operand.vmem [shape: f32[16,32], index: 1, kind: input, shape index: {}]
  %s2 = inlined_call_operand.vmem [shape: f32[32,96], index: 2, kind: input, shape index: {}]
  %s3 = inlined_call_operand.vmem [shape: f32[32,96], index: 3, kind: input, shape index: {}]
  %s4 = inlined_call_operand.vmem [shape: f32[1,96], index: 4, kind: input, shape index: {}]
  %s5 = inlined_call_operand.vmem [shape: f32[1,96], index: 5, kind: input, shape index: {}]
  %s6 = inlined_call_operand.vmem [shape: f32[32,32], index: 6, kind: input, shape index: {}]
  %s7 = inlined_call_operand.vmem [shape: f32[32,32], index: 7, kind: input, shape index: {}]
  %s8 = inlined_call_operand.vmem [shape: f32[32,32], index: 8, kind: input, shape index: {}]
  %s9 = inlined_call_operand.vmem [shape: f32[32,32], index: 9, kind: input, shape index: {}]
  %s10 = inlined_call_operand.vmem [shape: f32[32,32], index: 10, kind: input, shape index: {}]
  %s11 = inlined_call_operand.vmem [shape: f32[32,32], index: 11, kind: input, shape index: {}]
  %s12 = inlined_call_operand.vmem [shape: f32[1,32], index: 12, kind: input, shape index: {}]
  %s13 = inlined_call_operand.vmem [shape: f32[1,32], index: 13, kind: input, shape index: {}]
  %s14 = inlined_call_operand.vmem [shape: f32[2,1,32], index: 14, kind: input, shape index: {}]
  %s15 = inlined_call_operand.vmem [shape: f32[2,1,32], index: 15, kind: input, shape index: {}]
  %s16 = inlined_call_operand.vmem [shape: f32[2,32,2], index: 16, kind: input, shape index: {}]
  %s17 = inlined_call_operand.vmem [shape: f32[2,1,2], index: 17, kind: input, shape index: {}]
  %s18 = inlined_call_operand.vmem [shape: f32[2,16,2], index: 18, kind: output, shape index: {}]
  %s19 = sld [smem:[#allocation0]]
  $region82: #{multi_gen_forward.2} parent=0
    _
  %s21 = ssub.s32 1, %s19
  %s22 = scalar_select 0, %s21, %s19
  // Predicated region
  $region2: #{multi_gen_forward.2} parent=0 // pred_check
    _
  $region3: #{multi_gen_forward.2} parent=0 // pred_check_branch
    %24 = sbr.rel (0) target = $region5
  $region4: #{multi_gen_forward.2} parent=0 // pred_region
    _
  $region5: #{multi_gen_forward.2} parent=0 // pred_fallthru
    _
  // Predicated region
  $region6: #{multi_gen_forward.2} parent=0 // pred_check
    _
  $region7: #{multi_gen_forward.2} parent=0 // pred_check_branch
    %26 = sbr.rel (0) target = $region9
  $region8: #{multi_gen_forward.2} parent=0 // pred_region
    _
  $region9: #{multi_gen_forward.2} parent=0 // pred_fallthru
    _
  // Predicated region
  $region10: #{multi_gen_forward.2} parent=0 // pred_check
    _
  $region11: #{multi_gen_forward.2} parent=0 // pred_check_branch
    %28 = sbr.rel (0) target = $region13
  $region12: #{multi_gen_forward.2} parent=0 // pred_region
    _
  $region13: #{multi_gen_forward.2} parent=0 // pred_fallthru
    _
  // Predicated region
  $region14: #{multi_gen_forward.2} parent=0 // pred_check
    _
  $region15: #{multi_gen_forward.2} parent=0 // pred_check_branch
    %30 = sbr.rel (0) target = $region17
  $region16: #{multi_gen_forward.2} parent=0 // pred_region
    _
  $region17: #{multi_gen_forward.2} parent=0 // pred_fallthru
    _
  // Predicated region
  $region18: #{multi_gen_forward.2} parent=0 // pred_check
    _
  $region19: #{multi_gen_forward.2} parent=0 // pred_check_branch
    %32 = sbr.rel (0) target = $region21
  $region20: #{multi_gen_forward.2} parent=0 // pred_region
    _
  $region21: #{multi_gen_forward.2} parent=0 // pred_fallthru
    _
  // Predicated region
  $region22: #{multi_gen_forward.2} parent=0 // pred_check
    _
  $region23: #{multi_gen_forward.2} parent=0 // pred_check_branch
    %34 = sbr.rel (0) target = $region25
  $region24: #{multi_gen_forward.2} parent=0 // pred_region
    _
  $region25: #{multi_gen_forward.2} parent=0 // pred_fallthru
    _
  // Predicated region
  $region26: #{multi_gen_forward.2} parent=0 // pred_check
    _
  $region27: #{multi_gen_forward.2} parent=0 // pred_check_branch
    %36 = sbr.rel (0) target = $region29
  $region28: #{multi_gen_forward.2} parent=0 // pred_region
    _
  $region29: #{multi_gen_forward.2} parent=0 // pred_fallthru
    _
  // Predicated region
  $region30: #{multi_gen_forward.2} parent=0 // pred_check
    _
  $region31: #{multi_gen_forward.2} parent=0 // pred_check_branch
    %38 = sbr.rel (0) target = $region33
  $region32: #{multi_gen_forward.2} parent=0 // pred_region
    _
  $region33: #{multi_gen_forward.2} parent=0 // pred_fallthru
    _
  // Predicated region
  $region34: #{multi_gen_forward.2} parent=0 // pred_check
    _
  $region35: #{multi_gen_forward.2} parent=0 // pred_check_branch
    %40 = sbr.rel (0) target = $region37
  $region36: #{multi_gen_forward.2} parent=0 // pred_region
    _
  $region37: #{multi_gen_forward.2} parent=0 // pred_fallthru
    _
  // Predicated region
  $region38: #{multi_gen_forward.2} parent=0 // pred_check
    _
  $region39: #{multi_gen_forward.2} parent=0 // pred_check_branch
    %42 = sbr.rel (0) target = $region41
  $region40: #{multi_gen_forward.2} parent=0 // pred_region
    _
  $region41: #{multi_gen_forward.2} parent=0 // pred_fallthru
    _
  // Predicated region
  $region42: #{multi_gen_forward.2} parent=0 // pred_check
    _
  $region43: #{multi_gen_forward.2} parent=0 // pred_check_branch
    %44 = sbr.rel (0) target = $region45
  $region44: #{multi_gen_forward.2} parent=0 // pred_region
    _
  $region45: #{multi_gen_forward.2} parent=0 // pred_fallthru
    _
  // Predicated region
  $region46: #{multi_gen_forward.2} parent=0 // pred_check
    _
  $region47: #{multi_gen_forward.2} parent=0 // pred_check_branch
    %46 = sbr.rel (0) target = $region49
  $region48: #{multi_gen_forward.2} parent=0 // pred_region
    _
  $region49: #{multi_gen_forward.2} parent=0 // pred_fallthru
    _
  // Predicated region
  $region50: #{multi_gen_forward.2} parent=0 // pred_check
    _
  $region51: #{multi_gen_forward.2} parent=0 // pred_check_branch
    %48 = sbr.rel (0) target = $region53
  $region52: #{multi_gen_forward.2} parent=0 // pred_region
    _
  $region53: #{multi_gen_forward.2} parent=0 // pred_fallthru
    _
  // Predicated region
  $region54: #{multi_gen_forward.2} parent=0 // pred_check
    _
  $region55: #{multi_gen_forward.2} parent=0 // pred_check_branch
    %50 = sbr.rel (0) target = $region57
  $region56: #{multi_gen_forward.2} parent=0 // pred_region
    _
  $region57: #{multi_gen_forward.2} parent=0 // pred_fallthru
    _
  // Predicated region
  $region58: #{multi_gen_forward.2} parent=0 // pred_check
    _
  $region59: #{multi_gen_forward.2} parent=0 // pred_check_branch
    %52 = sbr.rel (0) target = $region61
  $region60: #{multi_gen_forward.2} parent=0 // pred_region
    _
  $region61: #{multi_gen_forward.2} parent=0 // pred_fallthru
    _
  // Predicated region
  $region62: #{multi_gen_forward.2} parent=0 // pred_check
    _
  $region63: #{multi_gen_forward.2} parent=0 // pred_check_branch
    %54 = sbr.rel (0) target = $region65
  $region64: #{multi_gen_forward.2} parent=0 // pred_region
    _
  $region65: #{multi_gen_forward.2} parent=0 // pred_fallthru
    _
  // Predicated region
  $region66: #{multi_gen_forward.2} parent=0 // pred_check
    _
  $region67: #{multi_gen_forward.2} parent=0 // pred_check_branch
    %56 = sbr.rel (0) target = $region69
  $region68: #{multi_gen_forward.2} parent=0 // pred_region
    _
  $region69: #{multi_gen_forward.2} parent=0 // pred_fallthru
    _
  // Predicated region
  $region70: #{multi_gen_forward.2} parent=0 // pred_check
    _
  $region71: #{multi_gen_forward.2} parent=0 // pred_check_branch
    %58 = sbr.rel (0) target = $region73
  $region72: #{multi_gen_forward.2} parent=0 // pred_region
    _
  $region73: #{multi_gen_forward.2} parent=0 // pred_fallthru
    _
  %v59 = vld [vmem:[%s0] sm:$0xff]
  %v60 = vld [vmem:[%s0 + $0x8] sm:$0xff]
  %v61 = vld [vmem:[%s2] sm:$0xff]
  %v62 = vld [vmem:[%s2 + $0x8] sm:$0xff]
  %v63 = vld [vmem:[%s2 + $0x10] sm:$0xff]
  %v64 = vld [vmem:[%s2 + $0x18] sm:$0xff]
  %v65 = vld [vmem:[%s4] sm:$0x1]
  %v67 = vlaneseq
  %v68 = vshrl.u32 %v67, 7
  %v69 = vsub.s32 0, %v68
  %v70 = vrot.slane %v65, %v69
  %vm72 = vcmask 261120
  %v74 = vsel %vm72, %v59, 0
  %v77 = vsel %vm72, %v60, 0
  %79 = vmatprep.subr.mxu0 0.0
  %80 = vmatpush1.msra.mxu0 %v61
  %81 = vmatprep.subr.mxu0 0.0
  %82 = vmatpush1.msra.mxu0 %v62
  %83 = vmatprep.subr.mxu0 0.0
  %84 = vmatpush1.msra.mxu0 %v63
  %85 = vmatprep.subr.mxu0 0.0
  %86 = vmatpush1.msra.mxu0 %v64
  %87 = vmatprep.subr.mxu0 0.0
  %88 = vmatpush1.msra.mxu0 0.0
  %89 = vmatprep.subr.mxu0 0.0
  %90 = vmatpush1.msra.mxu0 0.0
  %91 = vmatprep.subr.mxu0 0.0
  %92 = vmatpush1.msra.mxu0 0.0
  %93 = vmatprep.subr.mxu0 0.0
  %94 = vmatpush1.msra.mxu0 0.0
  %95 = vmatprep.subr.mxu0 0.0
  %96 = vmatpush1.msra.mxu0 0.0
  %97 = vmatprep.subr.mxu0 0.0
  %98 = vmatpush1.msra.mxu0 0.0
  %99 = vmatprep.subr.mxu0 0.0
  %100 = vmatpush1.msra.mxu0 0.0
  %101 = vmatprep.subr.mxu0 0.0
  %102 = vmatpush1.msra.mxu0 0.0
  %103 = vmatprep.subr.mxu0 0.0
  %104 = vmatpush1.msra.mxu0 0.0
  %105 = vmatprep.subr.mxu0 0.0
  %106 = vmatpush1.msra.mxu0 0.0
  %107 = vmatprep.subr.mxu0 0.0
  %108 = vmatpush1.msra.mxu0 0.0
  %109 = vmatprep.subr.mxu0 0.0
  %110 = vmatpush1.msra.mxu0 0.0
  %111 = vmatprep.subr.mxu0 0.0
  %112 = vmatpush1.msra.mxu0 0.0
  %113 = vmatprep.subr.mxu0 0.0
  %114 = vmatpush1.msra.mxu0 0.0
  %115 = vmatprep.subr.mxu0 0.0
  %116 = vmatpush1.msra.mxu0 0.0
  %117 = vmatprep.subr.mxu0 0.0
  %118 = vmatpush1.msra.mxu0 0.0
  %119 = vmatprep.subr.mxu0 0.0
  %120 = vmatpush1.msra.mxu0 0.0
  %121 = vmatprep.subr.mxu0 0.0
  %122 = vmatpush1.msra.mxu0 0.0
  %123 = vmatprep.subr.mxu0 0.0
  %124 = vmatpush1.msra.mxu0 0.0
  %125 = vmatprep.subr.mxu0 0.0
  %126 = vmatpush1.msra.mxu0 0.0
  %127 = vmatprep.subr.mxu0 0.0
  %128 = vmatpush1.msra.mxu0 0.0
  %129 = vmatprep.subr.mxu0 0.0
  %130 = vmatpush1.msra.mxu0 0.0
  %131 = vmatprep.subr.mxu0 0.0
  %132 = vmatpush1.msra.mxu0 0.0
  %133 = vmatprep.subr.mxu0 0.0
  %134 = vmatpush1.msra.mxu0 0.0
  %135 = vmatprep.subr.mxu0 0.0
  %136 = vmatpush1.msra.mxu0 0.0
  %137 = vmatprep.subr.mxu0 0.0
  %138 = vmatpush1.msra.mxu0 0.0
  %139 = vmatprep.subr.mxu0 0.0
  %140 = vmatpush1.msra.mxu0 0.0
  %141 = vmatprep.subr.mxu0 0.0
  %142 = vmatpush1.msra.mxu0 0.0
  %143 = vmatprep.mubr.f32.mxu0 0.0
  %144 = vmatmul.mubr.f32.gmra.mrb[0].mxu0 %v74
  %v145 = vpop.f32.mrb[0].mxu0
  %v146 = vadd.f32 %v70, %v145
  %v147 = vpop.f32.mrb[0].mxu0
  %148 = vmatprep.mubr.f32.mxu0 0.0
  %149 = vmatmul.mubr.f32.gmra.mrb[0].mxu0 %v77
  %v150 = vpop.f32.mrb[0].mxu0
  %v151 = vadd.f32 %v70, %v150
  %v152 = vpop.f32.mrb[0].mxu0
  %153 = vdwg.mxu0
  %v154 = vld [vmem:[%s1] sm:$0xff]
  %v155 = vld [vmem:[%s1 + $0x8] sm:$0xff]
  %v156 = vld [vmem:[%s3] sm:$0xff]
  %v157 = vld [vmem:[%s3 + $0x8] sm:$0xff]
  %v158 = vld [vmem:[%s3 + $0x10] sm:$0xff]
  %v159 = vld [vmem:[%s3 + $0x18] sm:$0xff]
  %v160 = vld [vmem:[%s5] sm:$0x1]
  %v162 = vlaneseq
  %v163 = vshrl.u32 %v162, 7
  %v164 = vsub.s32 0, %v163
  %v165 = vrot.slane %v160, %v164
  %v168 = vsel %vm72, %v154, 0
  %v171 = vsel %vm72, %v155, 0
  %173 = vmatprep.subr.mxu0 0.0
  %174 = vmatpush1.msra.mxu0 %v156
  %175 = vmatprep.subr.mxu0 0.0
  %176 = vmatpush1.msra.mxu0 %v157
  %177 = vmatprep.subr.mxu0 0.0
  %178 = vmatpush1.msra.mxu0 %v158
  %179 = vmatprep.subr.mxu0 0.0
  %180 = vmatpush1.msra.mxu0 %v159
  %181 = vmatprep.subr.mxu0 0.0
  %182 = vmatpush1.msra.mxu0 0.0
  %183 = vmatprep.subr.mxu0 0.0
  %184 = vmatpush1.msra.mxu0 0.0
  %185 = vmatprep.subr.mxu0 0.0
  %186 = vmatpush1.msra.mxu0 0.0
  %187 = vmatprep.subr.mxu0 0.0
  %188 = vmatpush1.msra.mxu0 0.0
  %189 = vmatprep.subr.mxu0 0.0
  %190 = vmatpush1.msra.mxu0 0.0
  %191 = vmatprep.subr.mxu0 0.0
  %192 = vmatpush1.msra.mxu0 0.0
  %193 = vmatprep.subr.mxu0 0.0
  %194 = vmatpush1.msra.mxu0 0.0
  %195 = vmatprep.subr.mxu0 0.0
  %196 = vmatpush1.msra.mxu0 0.0
  %197 = vmatprep.subr.mxu0 0.0
  %198 = vmatpush1.msra.mxu0 0.0
  %199 = vmatprep.subr.mxu0 0.0
  %200 = vmatpush1.msra.mxu0 0.0
  %201 = vmatprep.subr.mxu0 0.0
  %202 = vmatpush1.msra.mxu0 0.0
  %203 = vmatprep.subr.mxu0 0.0
  %204 = vmatpush1.msra.mxu0 0.0
  %205 = vmatprep.subr.mxu0 0.0
  %206 = vmatpush1.msra.mxu0 0.0
  %207 = vmatprep.subr.mxu0 0.0
  %208 = vmatpush1.msra.mxu0 0.0
  %209 = vmatprep.subr.mxu0 0.0
  %210 = vmatpush1.msra.mxu0 0.0
  %211 = vmatprep.subr.mxu0 0.0
  %212 = vmatpush1.msra.mxu0 0.0
  %213 = vmatprep.subr.mxu0 0.0
  %214 = vmatpush1.msra.mxu0 0.0
  %215 = vmatprep.subr.mxu0 0.0
  %216 = vmatpush1.msra.mxu0 0.0
  %217 = vmatprep.subr.mxu0 0.0
  %218 = vmatpush1.msra.mxu0 0.0
  %219 = vmatprep.subr.mxu0 0.0
  %220 = vmatpush1.msra.mxu0 0.0
  %221 = vmatprep.subr.mxu0 0.0
  %222 = vmatpush1.msra.mxu0 0.0
  %223 = vmatprep.subr.mxu0 0.0
  %224 = vmatpush1.msra.mxu0 0.0
  %225 = vmatprep.subr.mxu0 0.0
  %226 = vmatpush1.msra.mxu0 0.0
  %227 = vmatprep.subr.mxu0 0.0
  %228 = vmatpush1.msra.mxu0 0.0
  %229 = vmatprep.subr.mxu0 0.0
  %230 = vmatpush1.msra.mxu0 0.0
  %231 = vmatprep.subr.mxu0 0.0
  %232 = vmatpush1.msra.mxu0 0.0
  %233 = vmatprep.subr.mxu0 0.0
  %234 = vmatpush1.msra.mxu0 0.0
  %235 = vmatprep.subr.mxu0 0.0
  %236 = vmatpush1.msra.mxu0 0.0
  %237 = vmatprep.mubr.f32.mxu0 0.0
  %238 = vmatmul.mubr.f32.gmra.mrb[0].mxu0 %v168
  %v239 = vpop.f32.mrb[0].mxu0
  %v240 = vadd.f32 %v165, %v239
  %v241 = vpop.f32.mrb[0].mxu0
  %242 = vmatprep.mubr.f32.mxu0 0.0
  %243 = vmatmul.mubr.f32.gmra.mrb[0].mxu0 %v171
  %v244 = vpop.f32.mrb[0].mxu0
  %v245 = vadd.f32 %v165, %v244
  %v246 = vpop.f32.mrb[0].mxu0
  %247 = vdwg.mxu0
  %248 = vst.msk [vmem:[#allocation2] sm:$0xff] %vm72, %v146
  %249 = vst.msk [vmem:[#allocation2 + $0x8] sm:$0xff] %vm72, %v151
  %252 = vrot.lane.b32.xlu0 %v146, 96
  %v253 = vpop.permute.xlu0 %252
  %254 = vrot.lane.b32.xlu0 %v151, 96
  %v255 = vpop.permute.xlu0 %254
  %258 = vst.msk [vmem:[#allocation3] sm:$0xff] %vm72, %v253
  %259 = vst.msk [vmem:[#allocation3 + $0x8] sm:$0xff] %vm72, %v255
  %260 = vrot.lane.b32.xlu0 %v146, 64
  %v261 = vpop.permute.xlu0 %260
  %262 = vrot.lane.b32.xlu0 %v151, 64
  %v263 = vpop.permute.xlu0 %262
  %266 = vst.msk [vmem:[#allocation4] sm:$0xff] %vm72, %v261
  %267 = vst.msk [vmem:[#allocation4 + $0x8] sm:$0xff] %vm72, %v263
  %268 = vst.msk [vmem:[#allocation5] sm:$0xff] %vm72, %v240
  %269 = vst.msk [vmem:[#allocation5 + $0x8] sm:$0xff] %vm72, %v245
  %272 = vrot.lane.b32.xlu0 %v240, 96
  %v273 = vpop.permute.xlu0 %272
  %274 = vrot.lane.b32.xlu0 %v245, 96
  %v275 = vpop.permute.xlu0 %274
  %278 = vst.msk [vmem:[#allocation6] sm:$0xff] %vm72, %v273
  %279 = vst.msk [vmem:[#allocation6 + $0x8] sm:$0xff] %vm72, %v275
  %280 = vrot.lane.b32.xlu0 %v240, 64
  %v281 = vpop.permute.xlu0 %280
  %282 = vrot.lane.b32.xlu0 %v245, 64
  %v283 = vpop.permute.xlu0 %282
  %286 = vst.msk [vmem:[#allocation7] sm:$0xff] %vm72, %v281
  %287 = vst.msk [vmem:[#allocation7 + $0x8] sm:$0xff] %vm72, %v283
  %v288 = vld [vmem:[%s6] sm:$0xff]
  %v289 = vld [vmem:[%s6 + $0x8] sm:$0xff]
  %v290 = vld [vmem:[%s6 + $0x10] sm:$0xff]
  %v291 = vld [vmem:[%s6 + $0x18] sm:$0xff]
  %v292 = vld [vmem:[%s7] sm:$0xff]
  %v293 = vld [vmem:[%s7 + $0x8] sm:$0xff]
  %v294 = vld [vmem:[%s7 + $0x10] sm:$0xff]
  %v295 = vld [vmem:[%s7 + $0x18] sm:$0xff]
  %v296 = vld [vmem:[%s8] sm:$0xff]
  %v297 = vld [vmem:[%s8 + $0x8] sm:$0xff]
  %v298 = vld [vmem:[%s8 + $0x10] sm:$0xff]
  %v299 = vld [vmem:[%s8 + $0x18] sm:$0xff]
  %v300 = vld [vmem:[%s9] sm:$0xff]
  %v301 = vld [vmem:[%s9 + $0x8] sm:$0xff]
  %v302 = vld [vmem:[%s9 + $0x10] sm:$0xff]
  %v303 = vld [vmem:[%s9 + $0x18] sm:$0xff]
  %v304 = vld [vmem:[%s10] sm:$0xff]
  %v305 = vld [vmem:[%s10 + $0x8] sm:$0xff]
  %v306 = vld [vmem:[%s10 + $0x10] sm:$0xff]
  %v307 = vld [vmem:[%s10 + $0x18] sm:$0xff]
  %v308 = vld [vmem:[%s11] sm:$0xff]
  %v309 = vld [vmem:[%s11 + $0x8] sm:$0xff]
  %v310 = vld [vmem:[%s11 + $0x10] sm:$0xff]
  %v311 = vld [vmem:[%s11 + $0x18] sm:$0xff]
  %v312 = vld [vmem:[%s12] sm:$0x1]
  %v313 = vld [vmem:[%s13] sm:$0x1]
  %v314 = vld [vmem:[#allocation2] sm:$0x3]
  %v315 = vld [vmem:[#allocation3] sm:$0x3]
  %v316 = vld [vmem:[#allocation4] sm:$0x3]
  %v318 = vsel %vm72, 0.0, 0
  %320 = vmatprep.subr.mxu0 0.0
  %321 = vmatpush1.msra.mxu0 %v288
  %322 = vmatprep.subr.mxu0 0.0
  %323 = vmatpush1.msra.mxu0 %v289
  %324 = vmatprep.subr.mxu0 0.0
  %325 = vmatpush1.msra.mxu0 %v290
  %326 = vmatprep.subr.mxu0 0.0
  %327 = vmatpush1.msra.mxu0 %v291
  %328 = vmatprep.subr.mxu0 0.0
  %329 = vmatpush1.msra.mxu0 0.0
  %330 = vmatprep.subr.mxu0 0.0
  %331 = vmatpush1.msra.mxu0 0.0
  %332 = vmatprep.subr.mxu0 0.0
  %333 = vmatpush1.msra.mxu0 0.0
  %334 = vmatprep.subr.mxu0 0.0
  %335 = vmatpush1.msra.mxu0 0.0
  %336 = vmatprep.subr.mxu0 0.0
  %337 = vmatpush1.msra.mxu0 0.0
  %338 = vmatprep.subr.mxu0 0.0
  %339 = vmatpush1.msra.mxu0 0.0
  %340 = vmatprep.subr.mxu0 0.0
  %341 = vmatpush1.msra.mxu0 0.0
  %342 = vmatprep.subr.mxu0 0.0
  %343 = vmatpush1.msra.mxu0 0.0
  %344 = vmatprep.subr.mxu0 0.0
  %345 = vmatpush1.msra.mxu0 0.0
  %346 = vmatprep.subr.mxu0 0.0
  %347 = vmatpush1.msra.mxu0 0.0
  %348 = vmatprep.subr.mxu0 0.0
  %349 = vmatpush1.msra.mxu0 0.0
  %350 = vmatprep.subr.mxu0 0.0
  %351 = vmatpush1.msra.mxu0 0.0
  %352 = vmatprep.subr.mxu0 0.0
  %353 = vmatpush1.msra.mxu0 0.0
  %354 = vmatprep.subr.mxu0 0.0
  %355 = vmatpush1.msra.mxu0 0.0
  %356 = vmatprep.subr.mxu0 0.0
  %357 = vmatpush1.msra.mxu0 0.0
  %358 = vmatprep.subr.mxu0 0.0
  %359 = vmatpush1.msra.mxu0 0.0
  %360 = vmatprep.subr.mxu0 0.0
  %361 = vmatpush1.msra.mxu0 0.0
  %362 = vmatprep.subr.mxu0 0.0
  %363 = vmatpush1.msra.mxu0 0.0
  %364 = vmatprep.subr.mxu0 0.0
  %365 = vmatpush1.msra.mxu0 0.0
  %366 = vmatprep.subr.mxu0 0.0
  %367 = vmatpush1.msra.mxu0 0.0
  %368 = vmatprep.subr.mxu0 0.0
  %369 = vmatpush1.msra.mxu0 0.0
  %370 = vmatprep.subr.mxu0 0.0
  %371 = vmatpush1.msra.mxu0 0.0
  %372 = vmatprep.subr.mxu0 0.0
  %373 = vmatpush1.msra.mxu0 0.0
  %374 = vmatprep.subr.mxu0 0.0
  %375 = vmatpush1.msra.mxu0 0.0
  %376 = vmatprep.subr.mxu0 0.0
  %377 = vmatpush1.msra.mxu0 0.0
  %378 = vmatprep.subr.mxu0 0.0
  %379 = vmatpush1.msra.mxu0 0.0
  %380 = vmatprep.subr.mxu0 0.0
  %381 = vmatpush1.msra.mxu0 0.0
  %382 = vmatprep.subr.mxu0 0.0
  %383 = vmatpush1.msra.mxu0 0.0
  %384 = vmatprep.mubr.f32.mxu0 0.0
  %385 = vmatmul.mubr.f32.gmra.mrb[0].mxu0 %v318
  %v386 = vpop.f32.mrb[0].mxu0
  %v387 = vadd.f32 0.0, %v386
  %v388 = vpop.f32.mrb[0].mxu0
  %389 = vdwg.mxu0
  %390 = vmatprep.subr.mxu0 0.0
  %391 = vmatpush1.msra.mxu0 %v292
  %392 = vmatprep.subr.mxu0 0.0
  %393 = vmatpush1.msra.mxu0 %v293
  %394 = vmatprep.subr.mxu0 0.0
  %395 = vmatpush1.msra.mxu0 %v294
  %396 = vmatprep.subr.mxu0 0.0
  %397 = vmatpush1.msra.mxu0 %v295
  %398 = vmatprep.subr.mxu0 0.0
  %399 = vmatpush1.msra.mxu0 0.0
  %400 = vmatprep.subr.mxu0 0.0
  %401 = vmatpush1.msra.mxu0 0.0
  %402 = vmatprep.subr.mxu0 0.0
  %403 = vmatpush1.msra.mxu0 0.0
  %404 = vmatprep.subr.mxu0 0.0
  %405 = vmatpush1.msra.mxu0 0.0
  %406 = vmatprep.subr.mxu0 0.0
  %407 = vmatpush1.msra.mxu0 0.0
  %408 = vmatprep.subr.mxu0 0.0
  %409 = vmatpush1.msra.mxu0 0.0
  %410 = vmatprep.subr.mxu0 0.0
  %411 = vmatpush1.msra.mxu0 0.0
  %412 = vmatprep.subr.mxu0 0.0
  %413 = vmatpush1.msra.mxu0 0.0
  %414 = vmatprep.subr.mxu0 0.0
  %415 = vmatpush1.msra.mxu0 0.0
  %416 = vmatprep.subr.mxu0 0.0
  %417 = vmatpush1.msra.mxu0 0.0
  %418 = vmatprep.subr.mxu0 0.0
  %419 = vmatpush1.msra.mxu0 0.0
  %420 = vmatprep.subr.mxu0 0.0
  %421 = vmatpush1.msra.mxu0 0.0
  %422 = vmatprep.subr.mxu0 0.0
  %423 = vmatpush1.msra.mxu0 0.0
  %424 = vmatprep.subr.mxu0 0.0
  %425 = vmatpush1.msra.mxu0 0.0
  %426 = vmatprep.subr.mxu0 0.0
  %427 = vmatpush1.msra.mxu0 0.0
  %428 = vmatprep.subr.mxu0 0.0
  %429 = vmatpush1.msra.mxu0 0.0
  %430 = vmatprep.subr.mxu0 0.0
  %431 = vmatpush1.msra.mxu0 0.0
  %432 = vmatprep.subr.mxu0 0.0
  %433 = vmatpush1.msra.mxu0 0.0
  %434 = vmatprep.subr.mxu0 0.0
  %435 = vmatpush1.msra.mxu0 0.0
  %436 = vmatprep.subr.mxu0 0.0
  %437 = vmatpush1.msra.mxu0 0.0
  %438 = vmatprep.subr.mxu0 0.0
  %439 = vmatpush1.msra.mxu0 0.0
  %440 = vmatprep.subr.mxu0 0.0
  %441 = vmatpush1.msra.mxu0 0.0
  %442 = vmatprep.subr.mxu0 0.0
  %443 = vmatpush1.msra.mxu0 0.0
  %444 = vmatprep.subr.mxu0 0.0
  %445 = vmatpush1.msra.mxu0 0.0
  %446 = vmatprep.subr.mxu0 0.0
  %447 = vmatpush1.msra.mxu0 0.0
  %448 = vmatprep.subr.mxu0 0.0
  %449 = vmatpush1.msra.mxu0 0.0
  %450 = vmatprep.subr.mxu0 0.0
  %451 = vmatpush1.msra.mxu0 0.0
  %452 = vmatprep.subr.mxu0 0.0
  %453 = vmatpush1.msra.mxu0 0.0
  %454 = vmatprep.mubr.f32.mxu0 0.0
  %455 = vmatmul.mubr.f32.gmra.mrb[0].mxu0 %v318
  %v456 = vpop.f32.mrb[0].mxu0
  %v457 = vadd.f32 0.0, %v456
  %v458 = vpop.f32.mrb[0].mxu0
  %459 = vdwg.mxu0
  %v461 = vlaneseq
  %v462 = vshrl.u32 %v461, 7
  %v463 = vsub.s32 0, %v462
  %v464 = vrot.slane %v312, %v463
  %466 = vmatprep.subr.mxu0 0.0
  %467 = vmatpush1.msra.mxu0 %v296
  %468 = vmatprep.subr.mxu0 0.0
  %469 = vmatpush1.msra.mxu0 %v297
  %470 = vmatprep.subr.mxu0 0.0
  %471 = vmatpush1.msra.mxu0 %v298
  %472 = vmatprep.subr.mxu0 0.0
  %473 = vmatpush1.msra.mxu0 %v299
  %474 = vmatprep.subr.mxu0 0.0
  %475 = vmatpush1.msra.mxu0 0.0
  %476 = vmatprep.subr.mxu0 0.0
  %477 = vmatpush1.msra.mxu0 0.0
  %478 = vmatprep.subr.mxu0 0.0
  %479 = vmatpush1.msra.mxu0 0.0
  %480 = vmatprep.subr.mxu0 0.0
  %481 = vmatpush1.msra.mxu0 0.0
  %482 = vmatprep.subr.mxu0 0.0
  %483 = vmatpush1.msra.mxu0 0.0
  %484 = vmatprep.subr.mxu0 0.0
  %485 = vmatpush1.msra.mxu0 0.0
  %486 = vmatprep.subr.mxu0 0.0
  %487 = vmatpush1.msra.mxu0 0.0
  %488 = vmatprep.subr.mxu0 0.0
  %489 = vmatpush1.msra.mxu0 0.0
  %490 = vmatprep.subr.mxu0 0.0
  %491 = vmatpush1.msra.mxu0 0.0
  %492 = vmatprep.subr.mxu0 0.0
  %493 = vmatpush1.msra.mxu0 0.0
  %494 = vmatprep.subr.mxu0 0.0
  %495 = vmatpush1.msra.mxu0 0.0
  %496 = vmatprep.subr.mxu0 0.0
  %497 = vmatpush1.msra.mxu0 0.0
  %498 = vmatprep.subr.mxu0 0.0
  %499 = vmatpush1.msra.mxu0 0.0
  %500 = vmatprep.subr.mxu0 0.0
  %501 = vmatpush1.msra.mxu0 0.0
  %502 = vmatprep.subr.mxu0 0.0
  %503 = vmatpush1.msra.mxu0 0.0
  %504 = vmatprep.subr.mxu0 0.0
  %505 = vmatpush1.msra.mxu0 0.0
  %506 = vmatprep.subr.mxu0 0.0
  %507 = vmatpush1.msra.mxu0 0.0
  %508 = vmatprep.subr.mxu0 0.0
  %509 = vmatpush1.msra.mxu0 0.0
  %510 = vmatprep.subr.mxu0 0.0
  %511 = vmatpush1.msra.mxu0 0.0
  %512 = vmatprep.subr.mxu0 0.0
  %513 = vmatpush1.msra.mxu0 0.0
  %514 = vmatprep.subr.mxu0 0.0
  %515 = vmatpush1.msra.mxu0 0.0
  %516 = vmatprep.subr.mxu0 0.0
  %517 = vmatpush1.msra.mxu0 0.0
  %518 = vmatprep.subr.mxu0 0.0
  %519 = vmatpush1.msra.mxu0 0.0
  %520 = vmatprep.subr.mxu0 0.0
  %521 = vmatpush1.msra.mxu0 0.0
  %522 = vmatprep.subr.mxu0 0.0
  %523 = vmatpush1.msra.mxu0 0.0
  %524 = vmatprep.subr.mxu0 0.0
  %525 = vmatpush1.msra.mxu0 0.0
  %526 = vmatprep.subr.mxu0 0.0
  %527 = vmatpush1.msra.mxu0 0.0
  %528 = vmatprep.subr.mxu0 0.0
  %529 = vmatpush1.msra.mxu0 0.0
  %530 = vmatprep.mubr.f32.mxu0 0.0
  %531 = vmatmul.mubr.f32.gmra.mrb[0].mxu0 %v318
  %v532 = vpop.f32.mrb[0].mxu0
  %v533 = vadd.f32 %v464, %v532
  %v534 = vpop.f32.mrb[0].mxu0
  %535 = vdwg.mxu0
  %v536 = vadd.f32 %v314, %v387
  %v537 = vxor.u32 %v536, 2147483648
  %v538 = vmul.f32 %v537, 1.442695
  %v539 = vpow.pop %v538
  %v540 = vadd.f32 %v539, 1.0
  %v541 = vrcp.pop %v540
  %v542 = vmul.f32 1.0, %v541
  %v543 = vadd.f32 %v315, %v457
  %v544 = vxor.u32 %v543, 2147483648
  %v545 = vmul.f32 %v544, 1.442695
  %v546 = vpow.pop %v545
  %v547 = vadd.f32 %v546, 1.0
  %v548 = vrcp.pop %v547
  %v549 = vmul.f32 1.0, %v548
  %v550 = vmul.f32 %v542, %v533
  %v551 = vadd.f32 %v316, %v550
  %v552 = vtanh.pop %v551
  %v553 = vsub.f32 1.0, %v549
  %v554 = vmul.f32 %v553, %v552
  %v555 = vmul.f32 %v549, 0.0
  %v556 = vadd.f32 %v554, %v555
  %vm557 = vcmask 254976
  %558 = vst.msk [vmem:[#allocation8] sm:$0x3] %vm557, %v556
  %v559 = vld [vmem:[#allocation5] sm:$0x3]
  %v560 = vld [vmem:[#allocation6] sm:$0x3]
  %v561 = vld [vmem:[#allocation7] sm:$0x3]
  %562 = vmatprep.subr.mxu0 0.0
  %563 = vmatpush1.msra.mxu0 %v300
  %564 = vmatprep.subr.mxu0 0.0
  %565 = vmatpush1.msra.mxu0 %v301
  %566 = vmatprep.subr.mxu0 0.0
  %567 = vmatpush1.msra.mxu0 %v302
  %568 = vmatprep.subr.mxu0 0.0
  %569 = vmatpush1.msra.mxu0 %v303
  %570 = vmatprep.subr.mxu0 0.0
  %571 = vmatpush1.msra.mxu0 0.0
  %572 = vmatprep.subr.mxu0 0.0
  %573 = vmatpush1.msra.mxu0 0.0
  %574 = vmatprep.subr.mxu0 0.0
  %575 = vmatpush1.msra.mxu0 0.0
  %576 = vmatprep.subr.mxu0 0.0
  %577 = vmatpush1.msra.mxu0 0.0
  %578 = vmatprep.subr.mxu0 0.0
  %579 = vmatpush1.msra.mxu0 0.0
  %580 = vmatprep.subr.mxu0 0.0
  %581 = vmatpush1.msra.mxu0 0.0
  %582 = vmatprep.subr.mxu0 0.0
  %583 = vmatpush1.msra.mxu0 0.0
  %584 = vmatprep.subr.mxu0 0.0
  %585 = vmatpush1.msra.mxu0 0.0
  %586 = vmatprep.subr.mxu0 0.0
  %587 = vmatpush1.msra.mxu0 0.0
  %588 = vmatprep.subr.mxu0 0.0
  %589 = vmatpush1.msra.mxu0 0.0
  %590 = vmatprep.subr.mxu0 0.0
  %591 = vmatpush1.msra.mxu0 0.0
  %592 = vmatprep.subr.mxu0 0.0
  %593 = vmatpush1.msra.mxu0 0.0
  %594 = vmatprep.subr.mxu0 0.0
  %595 = vmatpush1.msra.mxu0 0.0
  %596 = vmatprep.subr.mxu0 0.0
  %597 = vmatpush1.msra.mxu0 0.0
  %598 = vmatprep.subr.mxu0 0.0
  %599 = vmatpush1.msra.mxu0 0.0
  %600 = vmatprep.subr.mxu0 0.0
  %601 = vmatpush1.msra.mxu0 0.0
  %602 = vmatprep.subr.mxu0 0.0
  %603 = vmatpush1.msra.mxu0 0.0
  %604 = vmatprep.subr.mxu0 0.0
  %605 = vmatpush1.msra.mxu0 0.0
  %606 = vmatprep.subr.mxu0 0.0
  %607 = vmatpush1.msra.mxu0 0.0
  %608 = vmatprep.subr.mxu0 0.0
  %609 = vmatpush1.msra.mxu0 0.0
  %610 = vmatprep.subr.mxu0 0.0
  %611 = vmatpush1.msra.mxu0 0.0
  %612 = vmatprep.subr.mxu0 0.0
  %613 = vmatpush1.msra.mxu0 0.0
  %614 = vmatprep.subr.mxu0 0.0
  %615 = vmatpush1.msra.mxu0 0.0
  %616 = vmatprep.subr.mxu0 0.0
  %617 = vmatpush1.msra.mxu0 0.0
  %618 = vmatprep.subr.mxu0 0.0
  %619 = vmatpush1.msra.mxu0 0.0
  %620 = vmatprep.subr.mxu0 0.0
  %621 = vmatpush1.msra.mxu0 0.0
  %622 = vmatprep.subr.mxu0 0.0
  %623 = vmatpush1.msra.mxu0 0.0
  %624 = vmatprep.subr.mxu0 0.0
  %625 = vmatpush1.msra.mxu0 0.0
  %626 = vmatprep.mubr.f32.mxu0 0.0
  %627 = vmatmul.mubr.f32.gmra.mrb[0].mxu0 %v318
  %v628 = vpop.f32.mrb[0].mxu0
  %v629 = vadd.f32 0.0, %v628
  %v630 = vpop.f32.mrb[0].mxu0
  %631 = vdwg.mxu0
  %632 = vmatprep.subr.mxu0 0.0
  %633 = vmatpush1.msra.mxu0 %v304
  %634 = vmatprep.subr.mxu0 0.0
  %635 = vmatpush1.msra.mxu0 %v305
  %636 = vmatprep.subr.mxu0 0.0
  %637 = vmatpush1.msra.mxu0 %v306
  %638 = vmatprep.subr.mxu0 0.0
  %639 = vmatpush1.msra.mxu0 %v307
  %640 = vmatprep.subr.mxu0 0.0
  %641 = vmatpush1.msra.mxu0 0.0
  %642 = vmatprep.subr.mxu0 0.0
  %643 = vmatpush1.msra.mxu0 0.0
  %644 = vmatprep.subr.mxu0 0.0
  %645 = vmatpush1.msra.mxu0 0.0
  %646 = vmatprep.subr.mxu0 0.0
  %647 = vmatpush1.msra.mxu0 0.0
  %648 = vmatprep.subr.mxu0 0.0
  %649 = vmatpush1.msra.mxu0 0.0
  %650 = vmatprep.subr.mxu0 0.0
  %651 = vmatpush1.msra.mxu0 0.0
  %652 = vmatprep.subr.mxu0 0.0
  %653 = vmatpush1.msra.mxu0 0.0
  %654 = vmatprep.subr.mxu0 0.0
  %655 = vmatpush1.msra.mxu0 0.0
  %656 = vmatprep.subr.mxu0 0.0
  %657 = vmatpush1.msra.mxu0 0.0
  %658 = vmatprep.subr.mxu0 0.0
  %659 = vmatpush1.msra.mxu0 0.0
  %660 = vmatprep.subr.mxu0 0.0
  %661 = vmatpush1.msra.mxu0 0.0
  %662 = vmatprep.subr.mxu0 0.0
  %663 = vmatpush1.msra.mxu0 0.0
  %664 = vmatprep.subr.mxu0 0.0
  %665 = vmatpush1.msra.mxu0 0.0
  %666 = vmatprep.subr.mxu0 0.0
  %667 = vmatpush1.msra.mxu0 0.0
  %668 = vmatprep.subr.mxu0 0.0
  %669 = vmatpush1.msra.mxu0 0.0
  %670 = vmatprep.subr.mxu0 0.0
  %671 = vmatpush1.msra.mxu0 0.0
  %672 = vmatprep.subr.mxu0 0.0
  %673 = vmatpush1.msra.mxu0 0.0
  %674 = vmatprep.subr.mxu0 0.0
  %675 = vmatpush1.msra.mxu0 0.0
  %676 = vmatprep.subr.mxu0 0.0
  %677 = vmatpush1.msra.mxu0 0.0
  %678 = vmatprep.subr.mxu0 0.0
  %679 = vmatpush1.msra.mxu0 0.0
  %680 = vmatprep.subr.mxu0 0.0
  %681 = vmatpush1.msra.mxu0 0.0
  %682 = vmatprep.subr.mxu0 0.0
  %683 = vmatpush1.msra.mxu0 0.0
  %684 = vmatprep.subr.mxu0 0.0
  %685 = vmatpush1.msra.mxu0 0.0
  %686 = vmatprep.subr.mxu0 0.0
  %687 = vmatpush1.msra.mxu0 0.0
  %688 = vmatprep.subr.mxu0 0.0
  %689 = vmatpush1.msra.mxu0 0.0
  %690 = vmatprep.subr.mxu0 0.0
  %691 = vmatpush1.msra.mxu0 0.0
  %692 = vmatprep.subr.mxu0 0.0
  %693 = vmatpush1.msra.mxu0 0.0
  %694 = vmatprep.subr.mxu0 0.0
  %695 = vmatpush1.msra.mxu0 0.0
  %696 = vmatprep.mubr.f32.mxu0 0.0
  %697 = vmatmul.mubr.f32.gmra.mrb[0].mxu0 %v318
  %v698 = vpop.f32.mrb[0].mxu0
  %v699 = vadd.f32 0.0, %v698
  %v700 = vpop.f32.mrb[0].mxu0
  %701 = vdwg.mxu0
  %v703 = vlaneseq
  %v704 = vshrl.u32 %v703, 7
  %v705 = vsub.s32 0, %v704
  %v706 = vrot.slane %v313, %v705
  %708 = vmatprep.subr.mxu0 0.0
  %709 = vmatpush1.msra.mxu0 %v308
  %710 = vmatprep.subr.mxu0 0.0
  %711 = vmatpush1.msra.mxu0 %v309
  %712 = vmatprep.subr.mxu0 0.0
  %713 = vmatpush1.msra.mxu0 %v310
  %714 = vmatprep.subr.mxu0 0.0
  %715 = vmatpush1.msra.mxu0 %v311
  %716 = vmatprep.subr.mxu0 0.0
  %717 = vmatpush1.msra.mxu0 0.0
  %718 = vmatprep.subr.mxu0 0.0
  %719 = vmatpush1.msra.mxu0 0.0
  %720 = vmatprep.subr.mxu0 0.0
  %721 = vmatpush1.msra.mxu0 0.0
  %722 = vmatprep.subr.mxu0 0.0
  %723 = vmatpush1.msra.mxu0 0.0
  %724 = vmatprep.subr.mxu0 0.0
  %725 = vmatpush1.msra.mxu0 0.0
  %726 = vmatprep.subr.mxu0 0.0
  %727 = vmatpush1.msra.mxu0 0.0
  %728 = vmatprep.subr.mxu0 0.0
  %729 = vmatpush1.msra.mxu0 0.0
  %730 = vmatprep.subr.mxu0 0.0
  %731 = vmatpush1.msra.mxu0 0.0
  %732 = vmatprep.subr.mxu0 0.0
  %733 = vmatpush1.msra.mxu0 0.0
  %734 = vmatprep.subr.mxu0 0.0
  %735 = vmatpush1.msra.mxu0 0.0
  %736 = vmatprep.subr.mxu0 0.0
  %737 = vmatpush1.msra.mxu0 0.0
  %738 = vmatprep.subr.mxu0 0.0
  %739 = vmatpush1.msra.mxu0 0.0
  %740 = vmatprep.subr.mxu0 0.0
  %741 = vmatpush1.msra.mxu0 0.0
  %742 = vmatprep.subr.mxu0 0.0
  %743 = vmatpush1.msra.mxu0 0.0
  %744 = vmatprep.subr.mxu0 0.0
  %745 = vmatpush1.msra.mxu0 0.0
  %746 = vmatprep.subr.mxu0 0.0
  %747 = vmatpush1.msra.mxu0 0.0
  %748 = vmatprep.subr.mxu0 0.0
  %749 = vmatpush1.msra.mxu0 0.0
  %750 = vmatprep.subr.mxu0 0.0
  %751 = vmatpush1.msra.mxu0 0.0
  %752 = vmatprep.subr.mxu0 0.0
  %753 = vmatpush1.msra.mxu0 0.0
  %754 = vmatprep.subr.mxu0 0.0
  %755 = vmatpush1.msra.mxu0 0.0
  %756 = vmatprep.subr.mxu0 0.0
  %757 = vmatpush1.msra.mxu0 0.0
  %758 = vmatprep.subr.mxu0 0.0
  %759 = vmatpush1.msra.mxu0 0.0
  %760 = vmatprep.subr.mxu0 0.0
  %761 = vmatpush1.msra.mxu0 0.0
  %762 = vmatprep.subr.mxu0 0.0
  %763 = vmatpush1.msra.mxu0 0.0
  %764 = vmatprep.subr.mxu0 0.0
  %765 = vmatpush1.msra.mxu0 0.0
  %766 = vmatprep.subr.mxu0 0.0
  %767 = vmatpush1.msra.mxu0 0.0
  %768 = vmatprep.subr.mxu0 0.0
  %769 = vmatpush1.msra.mxu0 0.0
  %770 = vmatprep.subr.mxu0 0.0
  %771 = vmatpush1.msra.mxu0 0.0
  %772 = vmatprep.mubr.f32.mxu0 0.0
  %773 = vmatmul.mubr.f32.gmra.mrb[0].mxu0 %v318
  %v774 = vpop.f32.mrb[0].mxu0
  %v775 = vadd.f32 %v706, %v774
  %v776 = vpop.f32.mrb[0].mxu0
  %777 = vdwg.mxu0
  %v778 = vadd.f32 %v559, %v629
  %v779 = vxor.u32 %v778, 2147483648
  %v780 = vmul.f32 %v779, 1.442695
  %v781 = vpow.pop %v780
  %v782 = vadd.f32 %v781, 1.0
  %v783 = vrcp.pop %v782
  %v784 = vmul.f32 1.0, %v783
  %v785 = vadd.f32 %v560, %v699
  %v786 = vxor.u32 %v785, 2147483648
  %v787 = vmul.f32 %v786, 1.442695
  %v788 = vpow.pop %v787
  %v789 = vadd.f32 %v788, 1.0
  %v790 = vrcp.pop %v789
  %v791 = vmul.f32 1.0, %v790
  %v792 = vmul.f32 %v784, %v775
  %v793 = vadd.f32 %v561, %v792
  %v794 = vtanh.pop %v793
  %v795 = vsub.f32 1.0, %v791
  %v796 = vmul.f32 %v795, %v794
  %v797 = vmul.f32 %v791, 0.0
  %v798 = vadd.f32 %v796, %v797
  %799 = vst.msk [vmem:[#allocation9 + $0xe] sm:$0x3] %vm557, %v798
  %v800 = vld [vmem:[#allocation2 + $0x2] sm:$0x3]
  %v801 = vld [vmem:[#allocation3 + $0x2] sm:$0x3]
  %v802 = vld [vmem:[#allocation4 + $0x2] sm:$0x3]
  %v804 = vsel %vm72, %v556, 0
  %806 = vmatprep.subr.mxu0 0.0
  %807 = vmatpush1.msra.mxu0 %v288
  %808 = vmatprep.subr.mxu0 0.0
  %809 = vmatpush1.msra.mxu0 %v289
  %810 = vmatprep.subr.mxu0 0.0
  %811 = vmatpush1.msra.mxu0 %v290
  %812 = vmatprep.subr.mxu0 0.0
  %813 = vmatpush1.msra.mxu0 %v291
  %814 = vmatprep.subr.mxu0 0.0
  %815 = vmatpush1.msra.mxu0 0.0
  %816 = vmatprep.subr.mxu0 0.0
  %817 = vmatpush1.msra.mxu0 0.0
  %818 = vmatprep.subr.mxu0 0.0
  %819 = vmatpush1.msra.mxu0 0.0
  %820 = vmatprep.subr.mxu0 0.0
  %821 = vmatpush1.msra.mxu0 0.0
  %822 = vmatprep.subr.mxu0 0.0
  %823 = vmatpush1.msra.mxu0 0.0
  %824 = vmatprep.subr.mxu0 0.0
  %825 = vmatpush1.msra.mxu0 0.0
  %826 = vmatprep.subr.mxu0 0.0
  %827 = vmatpush1.msra.mxu0 0.0
  %828 = vmatprep.subr.mxu0 0.0
  %829 = vmatpush1.msra.mxu0 0.0
  %830 = vmatprep.subr.mxu0 0.0
  %831 = vmatpush1.msra.mxu0 0.0
  %832 = vmatprep.subr.mxu0 0.0
  %833 = vmatpush1.msra.mxu0 0.0
  %834 = vmatprep.subr.mxu0 0.0
  %835 = vmatpush1.msra.mxu0 0.0
  %836 = vmatprep.subr.mxu0 0.0
  %837 = vmatpush1.msra.mxu0 0.0
  %838 = vmatprep.subr.mxu0 0.0
  %839 = vmatpush1.msra.mxu0 0.0
  %840 = vmatprep.subr.mxu0 0.0
  %841 = vmatpush1.msra.mxu0 0.0
  %842 = vmatprep.subr.mxu0 0.0
  %843 = vmatpush1.msra.mxu0 0.0
  %844 = vmatprep.subr.mxu0 0.0
  %845 = vmatpush1.msra.mxu0 0.0
  %846 = vmatprep.subr.mxu0 0.0
  %847 = vmatpush1.msra.mxu0 0.0
  %848 = vmatprep.subr.mxu0 0.0
  %849 = vmatpush1.msra.mxu0 0.0
  %850 = vmatprep.subr.mxu0 0.0
  %851 = vmatpush1.msra.mxu0 0.0
  %852 = vmatprep.subr.mxu0 0.0
  %853 = vmatpush1.msra.mxu0 0.0
  %854 = vmatprep.subr.mxu0 0.0
  %855 = vmatpush1.msra.mxu0 0.0
  %856 = vmatprep.subr.mxu0 0.0
  %857 = vmatpush1.msra.mxu0 0.0
  %858 = vmatprep.subr.mxu0 0.0
  %859 = vmatpush1.msra.mxu0 0.0
  %860 = vmatprep.subr.mxu0 0.0
  %861 = vmatpush1.msra.mxu0 0.0
  %862 = vmatprep.subr.mxu0 0.0
  %863 = vmatpush1.msra.mxu0 0.0
  %864 = vmatprep.subr.mxu0 0.0
  %865 = vmatpush1.msra.mxu0 0.0
  %866 = vmatprep.subr.mxu0 0.0
  %867 = vmatpush1.msra.mxu0 0.0
  %868 = vmatprep.subr.mxu0 0.0
  %869 = vmatpush1.msra.mxu0 0.0
  %870 = vmatprep.mubr.f32.mxu0 0.0
  %871 = vmatmul.mubr.f32.gmra.mrb[0].mxu0 %v804
  %v872 = vpop.f32.mrb[0].mxu0
  %v873 = vadd.f32 0.0, %v872
  %v874 = vpop.f32.mrb[0].mxu0
  %875 = vdwg.mxu0
  %876 = vmatprep.subr.mxu0 0.0
  %877 = vmatpush1.msra.mxu0 %v292
  %878 = vmatprep.subr.mxu0 0.0
  %879 = vmatpush1.msra.mxu0 %v293
  %880 = vmatprep.subr.mxu0 0.0
  %881 = vmatpush1.msra.mxu0 %v294
  %882 = vmatprep.subr.mxu0 0.0
  %883 = vmatpush1.msra.mxu0 %v295
  %884 = vmatprep.subr.mxu0 0.0
  %885 = vmatpush1.msra.mxu0 0.0
  %886 = vmatprep.subr.mxu0 0.0
  %887 = vmatpush1.msra.mxu0 0.0
  %888 = vmatprep.subr.mxu0 0.0
  %889 = vmatpush1.msra.mxu0 0.0
  %890 = vmatprep.subr.mxu0 0.0
  %891 = vmatpush1.msra.mxu0 0.0
  %892 = vmatprep.subr.mxu0 0.0
  %893 = vmatpush1.msra.mxu0 0.0
  %894 = vmatprep.subr.mxu0 0.0
  %895 = vmatpush1.msra.mxu0 0.0
  %896 = vmatprep.subr.mxu0 0.0
  %897 = vmatpush1.msra.mxu0 0.0
  %898 = vmatprep.subr.mxu0 0.0
  %899 = vmatpush1.msra.mxu0 0.0
  %900 = vmatprep.subr.mxu0 0.0
  %901 = vmatpush1.msra.mxu0 0.0
  %902 = vmatprep.subr.mxu0 0.0
  %903 = vmatpush1.msra.mxu0 0.0
  %904 = vmatprep.subr.mxu0 0.0
  %905 = vmatpush1.msra.mxu0 0.0
  %906 = vmatprep.subr.mxu0 0.0
  %907 = vmatpush1.msra.mxu0 0.0
  %908 = vmatprep.subr.mxu0 0.0
  %909 = vmatpush1.msra.mxu0 0.0
  %910 = vmatprep.subr.mxu0 0.0
  %911 = vmatpush1.msra.mxu0 0.0
  %912 = vmatprep.subr.mxu0 0.0
  %913 = vmatpush1.msra.mxu0 0.0
  %914 = vmatprep.subr.mxu0 0.0
  %915 = vmatpush1.msra.mxu0 0.0
  %916 = vmatprep.subr.mxu0 0.0
  %917 = vmatpush1.msra.mxu0 0.0
  %918 = vmatprep.subr.mxu0 0.0
  %919 = vmatpush1.msra.mxu0 0.0
  %920 = vmatprep.subr.mxu0 0.0
  %921 = vmatpush1.msra.mxu0 0.0
  %922 = vmatprep.subr.mxu0 0.0
  %923 = vmatpush1.msra.mxu0 0.0
  %924 = vmatprep.subr.mxu0 0.0
  %925 = vmatpush1.msra.mxu0 0.0
  %926 = vmatprep.subr.mxu0 0.0
  %927 = vmatpush1.msra.mxu0 0.0
  %928 = vmatprep.subr.mxu0 0.0
  %929 = vmatpush1.msra.mxu0 0.0
  %930 = vmatprep.subr.mxu0 0.0
  %931 = vmatpush1.msra.mxu0 0.0
  %932 = vmatprep.subr.mxu0 0.0
  %933 = vmatpush1.msra.mxu0 0.0
  %934 = vmatprep.subr.mxu0 0.0
  %935 = vmatpush1.msra.mxu0 0.0
  %936 = vmatprep.subr.mxu0 0.0
  %937 = vmatpush1.msra.mxu0 0.0
  %938 = vmatprep.subr.mxu0 0.0
  %939 = vmatpush1.msra.mxu0 0.0
  %940 = vmatprep.mubr.f32.mxu0 0.0
  %941 = vmatmul.mubr.f32.gmra.mrb[0].mxu0 %v804
  %v942 = vpop.f32.mrb[0].mxu0
  %v943 = vadd.f32 0.0, %v942
  %v944 = vpop.f32.mrb[0].mxu0
  %945 = vdwg.mxu0
  %946 = vmatprep.subr.mxu0 0.0
  %947 = vmatpush1.msra.mxu0 %v296
  %948 = vmatprep.subr.mxu0 0.0
  %949 = vmatpush1.msra.mxu0 %v297
  %950 = vmatprep.subr.mxu0 0.0
  %951 = vmatpush1.msra.mxu0 %v298
  %952 = vmatprep.subr.mxu0 0.0
  %953 = vmatpush1.msra.mxu0 %v299
  %954 = vmatprep.subr.mxu0 0.0
  %955 = vmatpush1.msra.mxu0 0.0
  %956 = vmatprep.subr.mxu0 0.0
  %957 = vmatpush1.msra.mxu0 0.0
  %958 = vmatprep.subr.mxu0 0.0
  %959 = vmatpush1.msra.mxu0 0.0
  %960 = vmatprep.subr.mxu0 0.0
  %961 = vmatpush1.msra.mxu0 0.0
  %962 = vmatprep.subr.mxu0 0.0
  %963 = vmatpush1.msra.mxu0 0.0
  %964 = vmatprep.subr.mxu0 0.0
  %965 = vmatpush1.msra.mxu0 0.0
  %966 = vmatprep.subr.mxu0 0.0
  %967 = vmatpush1.msra.mxu0 0.0
  %968 = vmatprep.subr.mxu0 0.0
  %969 = vmatpush1.msra.mxu0 0.0
  %970 = vmatprep.subr.mxu0 0.0
  %971 = vmatpush1.msra.mxu0 0.0
  %972 = vmatprep.subr.mxu0 0.0
  %973 = vmatpush1.msra.mxu0 0.0
  %974 = vmatprep.subr.mxu0 0.0
  %975 = vmatpush1.msra.mxu0 0.0
  %976 = vmatprep.subr.mxu0 0.0
  %977 = vmatpush1.msra.mxu0 0.0
  %978 = vmatprep.subr.mxu0 0.0
  %979 = vmatpush1.msra.mxu0 0.0
  %980 = vmatprep.subr.mxu0 0.0
  %981 = vmatpush1.msra.mxu0 0.0
  %982 = vmatprep.subr.mxu0 0.0
  %983 = vmatpush1.msra.mxu0 0.0
  %984 = vmatprep.subr.mxu0 0.0
  %985 = vmatpush1.msra.mxu0 0.0
  %986 = vmatprep.subr.mxu0 0.0
  %987 = vmatpush1.msra.mxu0 0.0
  %988 = vmatprep.subr.mxu0 0.0
  %989 = vmatpush1.msra.mxu0 0.0
  %990 = vmatprep.subr.mxu0 0.0
  %991 = vmatpush1.msra.mxu0 0.0
  %992 = vmatprep.subr.mxu0 0.0
  %993 = vmatpush1.msra.mxu0 0.0
  %994 = vmatprep.subr.mxu0 0.0
  %995 = vmatpush1.msra.mxu0 0.0
  %996 = vmatprep.subr.mxu0 0.0
  %997 = vmatpush1.msra.mxu0 0.0
  %998 = vmatprep.subr.mxu0 0.0
  %999 = vmatpush1.msra.mxu0 0.0
  %1000 = vmatprep.subr.mxu0 0.0
  %1001 = vmatpush1.msra.mxu0 0.0
  %1002 = vmatprep.subr.mxu0 0.0
  %1003 = vmatpush1.msra.mxu0 0.0
  %1004 = vmatprep.subr.mxu0 0.0
  %1005 = vmatpush1.msra.mxu0 0.0
  %1006 = vmatprep.subr.mxu0 0.0
  %1007 = vmatpush1.msra.mxu0 0.0
  %1008 = vmatprep.subr.mxu0 0.0
  %1009 = vmatpush1.msra.mxu0 0.0
  %1010 = vmatprep.mubr.f32.mxu0 0.0
  %1011 = vmatmul.mubr.f32.gmra.mrb[0].mxu0 %v804
  %v1012 = vpop.f32.mrb[0].mxu0
  %v1013 = vadd.f32 %v464, %v1012
  %v1014 = vpop.f32.mrb[0].mxu0
  %1015 = vdwg.mxu0
  %v1016 = vadd.f32 %v800, %v873
  %v1017 = vxor.u32 %v1016, 2147483648
  %v1018 = vmul.f32 %v1017, 1.442695
  %v1019 = vpow.pop %v1018
  %v1020 = vadd.f32 %v1019, 1.0
  %v1021 = vrcp.pop %v1020
  %v1022 = vmul.f32 1.0, %v1021
  %v1023 = vadd.f32 %v801, %v943
  %v1024 = vxor.u32 %v1023, 2147483648
  %v1025 = vmul.f32 %v1024, 1.442695
  %v1026 = vpow.pop %v1025
  %v1027 = vadd.f32 %v1026, 1.0
  %v1028 = vrcp.pop %v1027
  %v1029 = vmul.f32 1.0, %v1028
  %v1030 = vmul.f32 %v1022, %v1013
  %v1031 = vadd.f32 %v802, %v1030
  %v1032 = vtanh.pop %v1031
  %v1033 = vsub.f32 1.0, %v1029
  %v1034 = vmul.f32 %v1033, %v1032
  %v1035 = vmul.f32 %v1029, %v556
  %v1036 = vadd.f32 %v1034, %v1035
  %1037 = vst.msk [vmem:[#allocation8 + $0x2] sm:$0x3] %vm557, %v1036
  %v1038 = vld [vmem:[#allocation5 + $0x2] sm:$0x3]
  %v1039 = vld [vmem:[#allocation6 + $0x2] sm:$0x3]
  %v1040 = vld [vmem:[#allocation7 + $0x2] sm:$0x3]
  %v1042 = vsel %vm72, %v798, 0
  %1044 = vmatprep.subr.mxu0 0.0
  %1045 = vmatpush1.msra.mxu0 %v300
  %1046 = vmatprep.subr.mxu0 0.0
  %1047 = vmatpush1.msra.mxu0 %v301
  %1048 = vmatprep.subr.mxu0 0.0
  %1049 = vmatpush1.msra.mxu0 %v302
  %1050 = vmatprep.subr.mxu0 0.0
  %1051 = vmatpush1.msra.mxu0 %v303
  %1052 = vmatprep.subr.mxu0 0.0
  %1053 = vmatpush1.msra.mxu0 0.0
  %1054 = vmatprep.subr.mxu0 0.0
  %1055 = vmatpush1.msra.mxu0 0.0
  %1056 = vmatprep.subr.mxu0 0.0
  %1057 = vmatpush1.msra.mxu0 0.0
  %1058 = vmatprep.subr.mxu0 0.0
  %1059 = vmatpush1.msra.mxu0 0.0
  %1060 = vmatprep.subr.mxu0 0.0
  %1061 = vmatpush1.msra.mxu0 0.0
  %1062 = vmatprep.subr.mxu0 0.0
  %1063 = vmatpush1.msra.mxu0 0.0
  %1064 = vmatprep.subr.mxu0 0.0
  %1065 = vmatpush1.msra.mxu0 0.0
  %1066 = vmatprep.subr.mxu0 0.0
  %1067 = vmatpush1.msra.mxu0 0.0
  %1068 = vmatprep.subr.mxu0 0.0
  %1069 = vmatpush1.msra.mxu0 0.0
  %1070 = vmatprep.subr.mxu0 0.0
  %1071 = vmatpush1.msra.mxu0 0.0
  %1072 = vmatprep.subr.mxu0 0.0
  %1073 = vmatpush1.msra.mxu0 0.0
  %1074 = vmatprep.subr.mxu0 0.0
  %1075 = vmatpush1.msra.mxu0 0.0
  %1076 = vmatprep.subr.mxu0 0.0
  %1077 = vmatpush1.msra.mxu0 0.0
  %1078 = vmatprep.subr.mxu0 0.0
  %1079 = vmatpush1.msra.mxu0 0.0
  %1080 = vmatprep.subr.mxu0 0.0
  %1081 = vmatpush1.msra.mxu0 0.0
  %1082 = vmatprep.subr.mxu0 0.0
  %1083 = vmatpush1.msra.mxu0 0.0
  %1084 = vmatprep.subr.mxu0 0.0
  %1085 = vmatpush1.msra.mxu0 0.0
  %1086 = vmatprep.subr.mxu0 0.0
  %1087 = vmatpush1.msra.mxu0 0.0
  %1088 = vmatprep.subr.mxu0 0.0
  %1089 = vmatpush1.msra.mxu0 0.0
  %1090 = vmatprep.subr.mxu0 0.0
  %1091 = vmatpush1.msra.mxu0 0.0
  %1092 = vmatprep.subr.mxu0 0.0
  %1093 = vmatpush1.msra.mxu0 0.0
  %1094 = vmatprep.subr.mxu0 0.0
  %1095 = vmatpush1.msra.mxu0 0.0
  %1096 = vmatprep.subr.mxu0 0.0
  %1097 = vmatpush1.msra.mxu0 0.0
  %1098 = vmatprep.subr.mxu0 0.0
  %1099 = vmatpush1.msra.mxu0 0.0
  %1100 = vmatprep.subr.mxu0 0.0
  %1101 = vmatpush1.msra.mxu0 0.0
  %1102 = vmatprep.subr.mxu0 0.0
  %1103 = vmatpush1.msra.mxu0 0.0
  %1104 = vmatprep.subr.mxu0 0.0
  %1105 = vmatpush1.msra.mxu0 0.0
  %1106 = vmatprep.subr.mxu0 0.0
  %1107 = vmatpush1.msra.mxu0 0.0
  %1108 = vmatprep.mubr.f32.mxu0 0.0
  %1109 = vmatmul.mubr.f32.gmra.mrb[0].mxu0 %v1042
  %v1110 = vpop.f32.mrb[0].mxu0
  %v1111 = vadd.f32 0.0, %v1110
  %v1112 = vpop.f32.mrb[0].mxu0
  %1113 = vdwg.mxu0
  %1114 = vmatprep.subr.mxu0 0.0
  %1115 = vmatpush1.msra.mxu0 %v304
  %1116 = vmatprep.subr.mxu0 0.0
  %1117 = vmatpush1.msra.mxu0 %v305
  %1118 = vmatprep.subr.mxu0 0.0
  %1119 = vmatpush1.msra.mxu0 %v306
  %1120 = vmatprep.subr.mxu0 0.0
  %1121 = vmatpush1.msra.mxu0 %v307
  %1122 = vmatprep.subr.mxu0 0.0
  %1123 = vmatpush1.msra.mxu0 0.0
  %1124 = vmatprep.subr.mxu0 0.0
  %1125 = vmatpush1.msra.mxu0 0.0
  %1126 = vmatprep.subr.mxu0 0.0
  %1127 = vmatpush1.msra.mxu0 0.0
  %1128 = vmatprep.subr.mxu0 0.0
  %1129 = vmatpush1.msra.mxu0 0.0
  %1130 = vmatprep.subr.mxu0 0.0
  %1131 = vmatpush1.msra.mxu0 0.0
  %1132 = vmatprep.subr.mxu0 0.0
  %1133 = vmatpush1.msra.mxu0 0.0
  %1134 = vmatprep.subr.mxu0 0.0
  %1135 = vmatpush1.msra.mxu0 0.0
  %1136 = vmatprep.subr.mxu0 0.0
  %1137 = vmatpush1.msra.mxu0 0.0
  %1138 = vmatprep.subr.mxu0 0.0
  %1139 = vmatpush1.msra.mxu0 0.0
  %1140 = vmatprep.subr.mxu0 0.0
  %1141 = vmatpush1.msra.mxu0 0.0
  %1142 = vmatprep.subr.mxu0 0.0
  %1143 = vmatpush1.msra.mxu0 0.0
  %1144 = vmatprep.subr.mxu0 0.0
  %1145 = vmatpush1.msra.mxu0 0.0
  %1146 = vmatprep.subr.mxu0 0.0
  %1147 = vmatpush1.msra.mxu0 0.0
  %1148 = vmatprep.subr.mxu0 0.0
  %1149 = vmatpush1.msra.mxu0 0.0
  %1150 = vmatprep.subr.mxu0 0.0
  %1151 = vmatpush1.msra.mxu0 0.0
  %1152 = vmatprep.subr.mxu0 0.0
  %1153 = vmatpush1.msra.mxu0 0.0
  %1154 = vmatprep.subr.mxu0 0.0
  %1155 = vmatpush1.msra.mxu0 0.0
  %1156 = vmatprep.subr.mxu0 0.0
  %1157 = vmatpush1.msra.mxu0 0.0
  %1158 = vmatprep.subr.mxu0 0.0
  %1159 = vmatpush1.msra.mxu0 0.0
  %1160 = vmatprep.subr.mxu0 0.0
  %1161 = vmatpush1.msra.mxu0 0.0
  %1162 = vmatprep.subr.mxu0 0.0
  %1163 = vmatpush1.msra.mxu0 0.0
  %1164 = vmatprep.subr.mxu0 0.0
  %1165 = vmatpush1.msra.mxu0 0.0
  %1166 = vmatprep.subr.mxu0 0.0
  %1167 = vmatpush1.msra.mxu0 0.0
  %1168 = vmatprep.subr.mxu0 0.0
  %1169 = vmatpush1.msra.mxu0 0.0
  %1170 = vmatprep.subr.mxu0 0.0
  %1171 = vmatpush1.msra.mxu0 0.0
  %1172 = vmatprep.subr.mxu0 0.0
  %1173 = vmatpush1.msra.mxu0 0.0
  %1174 = vmatprep.subr.mxu0 0.0
  %1175 = vmatpush1.msra.mxu0 0.0
  %1176 = vmatprep.subr.mxu0 0.0
  %1177 = vmatpush1.msra.mxu0 0.0
  %1178 = vmatprep.mubr.f32.mxu0 0.0
  %1179 = vmatmul.mubr.f32.gmra.mrb[0].mxu0 %v1042
  %v1180 = vpop.f32.mrb[0].mxu0
  %v1181 = vadd.f32 0.0, %v1180
  %v1182 = vpop.f32.mrb[0].mxu0
  %1183 = vdwg.mxu0
  %1184 = vmatprep.subr.mxu0 0.0
  %1185 = vmatpush1.msra.mxu0 %v308
  %1186 = vmatprep.subr.mxu0 0.0
  %1187 = vmatpush1.msra.mxu0 %v309
  %1188 = vmatprep.subr.mxu0 0.0
  %1189 = vmatpush1.msra.mxu0 %v310
  %1190 = vmatprep.subr.mxu0 0.0
  %1191 = vmatpush1.msra.mxu0 %v311
  %1192 = vmatprep.subr.mxu0 0.0
  %1193 = vmatpush1.msra.mxu0 0.0
  %1194 = vmatprep.subr.mxu0 0.0
  %1195 = vmatpush1.msra.mxu0 0.0
  %1196 = vmatprep.subr.mxu0 0.0
  %1197 = vmatpush1.msra.mxu0 0.0
  %1198 = vmatprep.subr.mxu0 0.0
  %1199 = vmatpush1.msra.mxu0 0.0
  %1200 = vmatprep.subr.mxu0 0.0
  %1201 = vmatpush1.msra.mxu0 0.0
  %1202 = vmatprep.subr.mxu0 0.0
  %1203 = vmatpush1.msra.mxu0 0.0
  %1204 = vmatprep.subr.mxu0 0.0
  %1205 = vmatpush1.msra.mxu0 0.0
  %1206 = vmatprep.subr.mxu0 0.0
  %1207 = vmatpush1.msra.mxu0 0.0
  %1208 = vmatprep.subr.mxu0 0.0
  %1209 = vmatpush1.msra.mxu0 0.0
  %1210 = vmatprep.subr.mxu0 0.0
  %1211 = vmatpush1.msra.mxu0 0.0
  %1212 = vmatprep.subr.mxu0 0.0
  %1213 = vmatpush1.msra.mxu0 0.0
  %1214 = vmatprep.subr.mxu0 0.0
  %1215 = vmatpush1.msra.mxu0 0.0
  %1216 = vmatprep.subr.mxu0 0.0
  %1217 = vmatpush1.msra.mxu0 0.0
  %1218 = vmatprep.subr.mxu0 0.0
  %1219 = vmatpush1.msra.mxu0 0.0
  %1220 = vmatprep.subr.mxu0 0.0
  %1221 = vmatpush1.msra.mxu0 0.0
  %1222 = vmatprep.subr.mxu0 0.0
  %1223 = vmatpush1.msra.mxu0 0.0
  %1224 = vmatprep.subr.mxu0 0.0
  %1225 = vmatpush1.msra.mxu0 0.0
  %1226 = vmatprep.subr.mxu0 0.0
  %1227 = vmatpush1.msra.mxu0 0.0
  %1228 = vmatprep.subr.mxu0 0.0
  %1229 = vmatpush1.msra.mxu0 0.0
  %1230 = vmatprep.subr.mxu0 0.0
  %1231 = vmatpush1.msra.mxu0 0.0
  %1232 = vmatprep.subr.mxu0 0.0
  %1233 = vmatpush1.msra.mxu0 0.0
  %1234 = vmatprep.subr.mxu0 0.0
  %1235 = vmatpush1.msra.mxu0 0.0
  %1236 = vmatprep.subr.mxu0 0.0
  %1237 = vmatpush1.msra.mxu0 0.0
  %1238 = vmatprep.subr.mxu0 0.0
  %1239 = vmatpush1.msra.mxu0 0.0
  %1240 = vmatprep.subr.mxu0 0.0
  %1241 = vmatpush1.msra.mxu0 0.0
  %1242 = vmatprep.subr.mxu0 0.0
  %1243 = vmatpush1.msra.mxu0 0.0
  %1244 = vmatprep.subr.mxu0 0.0
  %1245 = vmatpush1.msra.mxu0 0.0
  %1246 = vmatprep.subr.mxu0 0.0
  %1247 = vmatpush1.msra.mxu0 0.0
  %1248 = vmatprep.mubr.f32.mxu0 0.0
  %1249 = vmatmul.mubr.f32.gmra.mrb[0].mxu0 %v1042
  %v1250 = vpop.f32.mrb[0].mxu0
  %v1251 = vadd.f32 %v706, %v1250
  %v1252 = vpop.f32.mrb[0].mxu0
  %1253 = vdwg.mxu0
  %v1254 = vadd.f32 %v1038, %v1111
  %v1255 = vxor.u32 %v1254, 2147483648
  %v1256 = vmul.f32 %v1255, 1.442695
  %v1257 = vpow.pop %v1256
  %v1258 = vadd.f32 %v1257, 1.0
  %v1259 = vrcp.pop %v1258
  %v1260 = vmul.f32 1.0, %v1259
  %v1261 = vadd.f32 %v1039, %v1181
  %v1262 = vxor.u32 %v1261, 2147483648
  %v1263 = vmul.f32 %v1262, 1.442695
  %v1264 = vpow.pop %v1263
  %v1265 = vadd.f32 %v1264, 1.0
  %v1266 = vrcp.pop %v1265
  %v1267 = vmul.f32 1.0, %v1266
  %v1268 = vmul.f32 %v1260, %v1251
  %v1269 = vadd.f32 %v1040, %v1268
  %v1270 = vtanh.pop %v1269
  %v1271 = vsub.f32 1.0, %v1267
  %v1272 = vmul.f32 %v1271, %v1270
  %v1273 = vmul.f32 %v1267, %v798
  %v1274 = vadd.f32 %v1272, %v1273
  %1275 = vst.msk [vmem:[#allocation9 + $0xc] sm:$0x3] %vm557, %v1274
  %v1276 = vld [vmem:[#allocation2 + $0x4] sm:$0x3]
  %v1277 = vld [vmem:[#allocation3 + $0x4] sm:$0x3]
  %v1278 = vld [vmem:[#allocation4 + $0x4] sm:$0x3]
  %v1280 = vsel %vm72, %v1036, 0
  %1282 = vmatprep.subr.mxu0 0.0
  %1283 = vmatpush1.msra.mxu0 %v288
  %1284 = vmatprep.subr.mxu0 0.0
  %1285 = vmatpush1.msra.mxu0 %v289
  %1286 = vmatprep.subr.mxu0 0.0
  %1287 = vmatpush1.msra.mxu0 %v290
  %1288 = vmatprep.subr.mxu0 0.0
  %1289 = vmatpush1.msra.mxu0 %v291
  %1290 = vmatprep.subr.mxu0 0.0
  %1291 = vmatpush1.msra.mxu0 0.0
  %1292 = vmatprep.subr.mxu0 0.0
  %1293 = vmatpush1.msra.mxu0 0.0
  %1294 = vmatprep.subr.mxu0 0.0
  %1295 = vmatpush1.msra.mxu0 0.0
  %1296 = vmatprep.subr.mxu0 0.0
  %1297 = vmatpush1.msra.mxu0 0.0
  %1298 = vmatprep.subr.mxu0 0.0
  %1299 = vmatpush1.msra.mxu0 0.0
  %1300 = vmatprep.subr.mxu0 0.0
  %1301 = vmatpush1.msra.mxu0 0.0
  %1302 = vmatprep.subr.mxu0 0.0
  %1303 = vmatpush1.msra.mxu0 0.0
  %1304 = vmatprep.subr.mxu0 0.0
  %1305 = vmatpush1.msra.mxu0 0.0
  %1306 = vmatprep.subr.mxu0 0.0
  %1307 = vmatpush1.msra.mxu0 0.0
  %1308 = vmatprep.subr.mxu0 0.0
  %1309 = vmatpush1.msra.mxu0 0.0
  %1310 = vmatprep.subr.mxu0 0.0
  %1311 = vmatpush1.msra.mxu0 0.0
  %1312 = vmatprep.subr.mxu0 0.0
  %1313 = vmatpush1.msra.mxu0 0.0
  %1314 = vmatprep.subr.mxu0 0.0
  %1315 = vmatpush1.msra.mxu0 0.0
  %1316 = vmatprep.subr.mxu0 0.0
  %1317 = vmatpush1.msra.mxu0 0.0
  %1318 = vmatprep.subr.mxu0 0.0
  %1319 = vmatpush1.msra.mxu0 0.0
  %1320 = vmatprep.subr.mxu0 0.0
  %1321 = vmatpush1.msra.mxu0 0.0
  %1322 = vmatprep.subr.mxu0 0.0
  %1323 = vmatpush1.msra.mxu0 0.0
  %1324 = vmatprep.subr.mxu0 0.0
  %1325 = vmatpush1.msra.mxu0 0.0
  %1326 = vmatprep.subr.mxu0 0.0
  %1327 = vmatpush1.msra.mxu0 0.0
  %1328 = vmatprep.subr.mxu0 0.0
  %1329 = vmatpush1.msra.mxu0 0.0
  %1330 = vmatprep.subr.mxu0 0.0
  %1331 = vmatpush1.msra.mxu0 0.0
  %1332 = vmatprep.subr.mxu0 0.0
  %1333 = vmatpush1.msra.mxu0 0.0
  %1334 = vmatprep.subr.mxu0 0.0
  %1335 = vmatpush1.msra.mxu0 0.0
  %1336 = vmatprep.subr.mxu0 0.0
  %1337 = vmatpush1.msra.mxu0 0.0
  %1338 = vmatprep.subr.mxu0 0.0
  %1339 = vmatpush1.msra.mxu0 0.0
  %1340 = vmatprep.subr.mxu0 0.0
  %1341 = vmatpush1.msra.mxu0 0.0
  %1342 = vmatprep.subr.mxu0 0.0
  %1343 = vmatpush1.msra.mxu0 0.0
  %1344 = vmatprep.subr.mxu0 0.0
  %1345 = vmatpush1.msra.mxu0 0.0
  %1346 = vmatprep.mubr.f32.mxu0 0.0
  %1347 = vmatmul.mubr.f32.gmra.mrb[0].mxu0 %v1280
  %v1348 = vpop.f32.mrb[0].mxu0
  %v1349 = vadd.f32 0.0, %v1348
  %v1350 = vpop.f32.mrb[0].mxu0
  %1351 = vdwg.mxu0
  %1352 = vmatprep.subr.mxu0 0.0
  %1353 = vmatpush1.msra.mxu0 %v292
  %1354 = vmatprep.subr.mxu0 0.0
  %1355 = vmatpush1.msra.mxu0 %v293
  %1356 = vmatprep.subr.mxu0 0.0
  %1357 = vmatpush1.msra.mxu0 %v294
  %1358 = vmatprep.subr.mxu0 0.0
  %1359 = vmatpush1.msra.mxu0 %v295
  %1360 = vmatprep.subr.mxu0 0.0
  %1361 = vmatpush1.msra.mxu0 0.0
  %1362 = vmatprep.subr.mxu0 0.0
  %1363 = vmatpush1.msra.mxu0 0.0
  %1364 = vmatprep.subr.mxu0 0.0
  %1365 = vmatpush1.msra.mxu0 0.0
  %1366 = vmatprep.subr.mxu0 0.0
  %1367 = vmatpush1.msra.mxu0 0.0
  %1368 = vmatprep.subr.mxu0 0.0
  %1369 = vmatpush1.msra.mxu0 0.0
  %1370 = vmatprep.subr.mxu0 0.0
  %1371 = vmatpush1.msra.mxu0 0.0
  %1372 = vmatprep.subr.mxu0 0.0
  %1373 = vmatpush1.msra.mxu0 0.0
  %1374 = vmatprep.subr.mxu0 0.0
  %1375 = vmatpush1.msra.mxu0 0.0
  %1376 = vmatprep.subr.mxu0 0.0
  %1377 = vmatpush1.msra.mxu0 0.0
  %1378 = vmatprep.subr.mxu0 0.0
  %1379 = vmatpush1.msra.mxu0 0.0
  %1380 = vmatprep.subr.mxu0 0.0
  %1381 = vmatpush1.msra.mxu0 0.0
  %1382 = vmatprep.subr.mxu0 0.0
  %1383 = vmatpush1.msra.mxu0 0.0
  %1384 = vmatprep.subr.mxu0 0.0
  %1385 = vmatpush1.msra.mxu0 0.0
  %1386 = vmatprep.subr.mxu0 0.0
  %1387 = vmatpush1.msra.mxu0 0.0
  %1388 = vmatprep.subr.mxu0 0.0
  %1389 = vmatpush1.msra.mxu0 0.0
  %1390 = vmatprep.subr.mxu0 0.0
  %1391 = vmatpush1.msra.mxu0 0.0
  %1392 = vmatprep.subr.mxu0 0.0
  %1393 = vmatpush1.msra.mxu0 0.0
  %1394 = vmatprep.subr.mxu0 0.0
  %1395 = vmatpush1.msra.mxu0 0.0
  %1396 = vmatprep.subr.mxu0 0.0
  %1397 = vmatpush1.msra.mxu0 0.0
  %1398 = vmatprep.subr.mxu0 0.0
  %1399 = vmatpush1.msra.mxu0 0.0
  %1400 = vmatprep.subr.mxu0 0.0
  %1401 = vmatpush1.msra.mxu0 0.0
  %1402 = vmatprep.subr.mxu0 0.0
  %1403 = vmatpush1.msra.mxu0 0.0
  %1404 = vmatprep.subr.mxu0 0.0
  %1405 = vmatpush1.msra.mxu0 0.0
  %1406 = vmatprep.subr.mxu0 0.0
  %1407 = vmatpush1.msra.mxu0 0.0
  %1408 = vmatprep.subr.mxu0 0.0
  %1409 = vmatpush1.msra.mxu0 0.0
  %1410 = vmatprep.subr.mxu0 0.0
  %1411 = vmatpush1.msra.mxu0 0.0
  %1412 = vmatprep.subr.mxu0 0.0
  %1413 = vmatpush1.msra.mxu0 0.0
  %1414 = vmatprep.subr.mxu0 0.0
  %1415 = vmatpush1.msra.mxu0 0.0
  %1416 = vmatprep.mubr.f32.mxu0 0.0
  %1417 = vmatmul.mubr.f32.gmra.mrb[0].mxu0 %v1280
  %v1418 = vpop.f32.mrb[0].mxu0
  %v1419 = vadd.f32 0.0, %v1418
  %v1420 = vpop.f32.mrb[0].mxu0
  %1421 = vdwg.mxu0
  %1422 = vmatprep.subr.mxu0 0.0
  %1423 = vmatpush1.msra.mxu0 %v296
  %1424 = vmatprep.subr.mxu0 0.0
  %1425 = vmatpush1.msra.mxu0 %v297
  %1426 = vmatprep.subr.mxu0 0.0
  %1427 = vmatpush1.msra.mxu0 %v298
  %1428 = vmatprep.subr.mxu0 0.0
  %1429 = vmatpush1.msra.mxu0 %v299
  %1430 = vmatprep.subr.mxu0 0.0
  %1431 = vmatpush1.msra.mxu0 0.0
  %1432 = vmatprep.subr.mxu0 0.0
  %1433 = vmatpush1.msra.mxu0 0.0
  %1434 = vmatprep.subr.mxu0 0.0
  %1435 = vmatpush1.msra.mxu0 0.0
  %1436 = vmatprep.subr.mxu0 0.0
  %1437 = vmatpush1.msra.mxu0 0.0
  %1438 = vmatprep.subr.mxu0 0.0
  %1439 = vmatpush1.msra.mxu0 0.0
  %1440 = vmatprep.subr.mxu0 0.0
  %1441 = vmatpush1.msra.mxu0 0.0
  %1442 = vmatprep.subr.mxu0 0.0
  %1443 = vmatpush1.msra.mxu0 0.0
  %1444 = vmatprep.subr.mxu0 0.0
  %1445 = vmatpush1.msra.mxu0 0.0
  %1446 = vmatprep.subr.mxu0 0.0
  %1447 = vmatpush1.msra.mxu0 0.0
  %1448 = vmatprep.subr.mxu0 0.0
  %1449 = vmatpush1.msra.mxu0 0.0
  %1450 = vmatprep.subr.mxu0 0.0
  %1451 = vmatpush1.msra.mxu0 0.0
  %1452 = vmatprep.subr.mxu0 0.0
  %1453 = vmatpush1.msra.mxu0 0.0
  %1454 = vmatprep.subr.mxu0 0.0
  %1455 = vmatpush1.msra.mxu0 0.0
  %1456 = vmatprep.subr.mxu0 0.0
  %1457 = vmatpush1.msra.mxu0 0.0
  %1458 = vmatprep.subr.mxu0 0.0
  %1459 = vmatpush1.msra.mxu0 0.0
  %1460 = vmatprep.subr.mxu0 0.0
  %1461 = vmatpush1.msra.mxu0 0.0
  %1462 = vmatprep.subr.mxu0 0.0
  %1463 = vmatpush1.msra.mxu0 0.0
  %1464 = vmatprep.subr.mxu0 0.0
  %1465 = vmatpush1.msra.mxu0 0.0
  %1466 = vmatprep.subr.mxu0 0.0
  %1467 = vmatpush1.msra.mxu0 0.0
  %1468 = vmatprep.subr.mxu0 0.0
  %1469 = vmatpush1.msra.mxu0 0.0
  %1470 = vmatprep.subr.mxu0 0.0
  %1471 = vmatpush1.msra.mxu0 0.0
  %1472 = vmatprep.subr.mxu0 0.0
  %1473 = vmatpush1.msra.mxu0 0.0
  %1474 = vmatprep.subr.mxu0 0.0
  %1475 = vmatpush1.msra.mxu0 0.0
  %1476 = vmatprep.subr.mxu0 0.0
  %1477 = vmatpush1.msra.mxu0 0.0
  %1478 = vmatprep.subr.mxu0 0.0
  %1479 = vmatpush1.msra.mxu0 0.0
  %1480 = vmatprep.subr.mxu0 0.0
  %1481 = vmatpush1.msra.mxu0 0.0
  %1482 = vmatprep.subr.mxu0 0.0
  %1483 = vmatpush1.msra.mxu0 0.0
  %1484 = vmatprep.subr.mxu0 0.0
  %1485 = vmatpush1.msra.mxu0 0.0
  %1486 = vmatprep.mubr.f32.mxu0 0.0
  %1487 = vmatmul.mubr.f32.gmra.mrb[0].mxu0 %v1280
  %v1488 = vpop.f32.mrb[0].mxu0
  %v1489 = vadd.f32 %v464, %v1488
  %v1490 = vpop.f32.mrb[0].mxu0
  %1491 = vdwg.mxu0
  %v1492 = vadd.f32 %v1276, %v1349
  %v1493 = vxor.u32 %v1492, 2147483648
  %v1494 = vmul.f32 %v1493, 1.442695
  %v1495 = vpow.pop %v1494
  %v1496 = vadd.f32 %v1495, 1.0
  %v1497 = vrcp.pop %v1496
  %v1498 = vmul.f32 1.0, %v1497
  %v1499 = vadd.f32 %v1277, %v1419
  %v1500 = vxor.u32 %v1499, 2147483648
  %v1501 = vmul.f32 %v1500, 1.442695
  %v1502 = vpow.pop %v1501
  %v1503 = vadd.f32 %v1502, 1.0
  %v1504 = vrcp.pop %v1503
  %v1505 = vmul.f32 1.0, %v1504
  %v1506 = vmul.f32 %v1498, %v1489
  %v1507 = vadd.f32 %v1278, %v1506
  %v1508 = vtanh.pop %v1507
  %v1509 = vsub.f32 1.0, %v1505
  %v1510 = vmul.f32 %v1509, %v1508
  %v1511 = vmul.f32 %v1505, %v1036
  %v1512 = vadd.f32 %v1510, %v1511
  %1513 = vst.msk [vmem:[#allocation8 + $0x4] sm:$0x3] %vm557, %v1512
  %v1514 = vld [vmem:[#allocation5 + $0x4] sm:$0x3]
  %v1515 = vld [vmem:[#allocation6 + $0x4] sm:$0x3]
  %v1516 = vld [vmem:[#allocation7 + $0x4] sm:$0x3]
  %v1518 = vsel %vm72, %v1274, 0
  %1520 = vmatprep.subr.mxu0 0.0
  %1521 = vmatpush1.msra.mxu0 %v300
  %1522 = vmatprep.subr.mxu0 0.0
  %1523 = vmatpush1.msra.mxu0 %v301
  %1524 = vmatprep.subr.mxu0 0.0
  %1525 = vmatpush1.msra.mxu0 %v302
  %1526 = vmatprep.subr.mxu0 0.0
  %1527 = vmatpush1.msra.mxu0 %v303
  %1528 = vmatprep.subr.mxu0 0.0
  %1529 = vmatpush1.msra.mxu0 0.0
  %1530 = vmatprep.subr.mxu0 0.0
  %1531 = vmatpush1.msra.mxu0 0.0
  %1532 = vmatprep.subr.mxu0 0.0
  %1533 = vmatpush1.msra.mxu0 0.0
  %1534 = vmatprep.subr.mxu0 0.0
  %1535 = vmatpush1.msra.mxu0 0.0
  %1536 = vmatprep.subr.mxu0 0.0
  %1537 = vmatpush1.msra.mxu0 0.0
  %1538 = vmatprep.subr.mxu0 0.0
  %1539 = vmatpush1.msra.mxu0 0.0
  %1540 = vmatprep.subr.mxu0 0.0
  %1541 = vmatpush1.msra.mxu0 0.0
  %1542 = vmatprep.subr.mxu0 0.0
  %1543 = vmatpush1.msra.mxu0 0.0
  %1544 = vmatprep.subr.mxu0 0.0
  %1545 = vmatpush1.msra.mxu0 0.0
  %1546 = vmatprep.subr.mxu0 0.0
  %1547 = vmatpush1.msra.mxu0 0.0
  %1548 = vmatprep.subr.mxu0 0.0
  %1549 = vmatpush1.msra.mxu0 0.0
  %1550 = vmatprep.subr.mxu0 0.0
  %1551 = vmatpush1.msra.mxu0 0.0
  %1552 = vmatprep.subr.mxu0 0.0
  %1553 = vmatpush1.msra.mxu0 0.0
  %1554 = vmatprep.subr.mxu0 0.0
  %1555 = vmatpush1.msra.mxu0 0.0
  %1556 = vmatprep.subr.mxu0 0.0
  %1557 = vmatpush1.msra.mxu0 0.0
  %1558 = vmatprep.subr.mxu0 0.0
  %1559 = vmatpush1.msra.mxu0 0.0
  %1560 = vmatprep.subr.mxu0 0.0
  %1561 = vmatpush1.msra.mxu0 0.0
  %1562 = vmatprep.subr.mxu0 0.0
  %1563 = vmatpush1.msra.mxu0 0.0
  %1564 = vmatprep.subr.mxu0 0.0
  %1565 = vmatpush1.msra.mxu0 0.0
  %1566 = vmatprep.subr.mxu0 0.0
  %1567 = vmatpush1.msra.mxu0 0.0
  %1568 = vmatprep.subr.mxu0 0.0
  %1569 = vmatpush1.msra.mxu0 0.0
  %1570 = vmatprep.subr.mxu0 0.0
  %1571 = vmatpush1.msra.mxu0 0.0
  %1572 = vmatprep.subr.mxu0 0.0
  %1573 = vmatpush1.msra.mxu0 0.0
  %1574 = vmatprep.subr.mxu0 0.0
  %1575 = vmatpush1.msra.mxu0 0.0
  %1576 = vmatprep.subr.mxu0 0.0
  %1577 = vmatpush1.msra.mxu0 0.0
  %1578 = vmatprep.subr.mxu0 0.0
  %1579 = vmatpush1.msra.mxu0 0.0
  %1580 = vmatprep.subr.mxu0 0.0
  %1581 = vmatpush1.msra.mxu0 0.0
  %1582 = vmatprep.subr.mxu0 0.0
  %1583 = vmatpush1.msra.mxu0 0.0
  %1584 = vmatprep.mubr.f32.mxu0 0.0
  %1585 = vmatmul.mubr.f32.gmra.mrb[0].mxu0 %v1518
  %v1586 = vpop.f32.mrb[0].mxu0
  %v1587 = vadd.f32 0.0, %v1586
  %v1588 = vpop.f32.mrb[0].mxu0
  %1589 = vdwg.mxu0
  %1590 = vmatprep.subr.mxu0 0.0
  %1591 = vmatpush1.msra.mxu0 %v304
  %1592 = vmatprep.subr.mxu0 0.0
  %1593 = vmatpush1.msra.mxu0 %v305
  %1594 = vmatprep.subr.mxu0 0.0
  %1595 = vmatpush1.msra.mxu0 %v306
  %1596 = vmatprep.subr.mxu0 0.0
  %1597 = vmatpush1.msra.mxu0 %v307
  %1598 = vmatprep.subr.mxu0 0.0
  %1599 = vmatpush1.msra.mxu0 0.0
  %1600 = vmatprep.subr.mxu0 0.0
  %1601 = vmatpush1.msra.mxu0 0.0
  %1602 = vmatprep.subr.mxu0 0.0
  %1603 = vmatpush1.msra.mxu0 0.0
  %1604 = vmatprep.subr.mxu0 0.0
  %1605 = vmatpush1.msra.mxu0 0.0
  %1606 = vmatprep.subr.mxu0 0.0
  %1607 = vmatpush1.msra.mxu0 0.0
  %1608 = vmatprep.subr.mxu0 0.0
  %1609 = vmatpush1.msra.mxu0 0.0
  %1610 = vmatprep.subr.mxu0 0.0
  %1611 = vmatpush1.msra.mxu0 0.0
  %1612 = vmatprep.subr.mxu0 0.0
  %1613 = vmatpush1.msra.mxu0 0.0
  %1614 = vmatprep.subr.mxu0 0.0
  %1615 = vmatpush1.msra.mxu0 0.0
  %1616 = vmatprep.subr.mxu0 0.0
  %1617 = vmatpush1.msra.mxu0 0.0
  %1618 = vmatprep.subr.mxu0 0.0
  %1619 = vmatpush1.msra.mxu0 0.0
  %1620 = vmatprep.subr.mxu0 0.0
  %1621 = vmatpush1.msra.mxu0 0.0
  %1622 = vmatprep.subr.mxu0 0.0
  %1623 = vmatpush1.msra.mxu0 0.0
  %1624 = vmatprep.subr.mxu0 0.0
  %1625 = vmatpush1.msra.mxu0 0.0
  %1626 = vmatprep.subr.mxu0 0.0
  %1627 = vmatpush1.msra.mxu0 0.0
  %1628 = vmatprep.subr.mxu0 0.0
  %1629 = vmatpush1.msra.mxu0 0.0
  %1630 = vmatprep.subr.mxu0 0.0
  %1631 = vmatpush1.msra.mxu0 0.0
  %1632 = vmatprep.subr.mxu0 0.0
  %1633 = vmatpush1.msra.mxu0 0.0
  %1634 = vmatprep.subr.mxu0 0.0
  %1635 = vmatpush1.msra.mxu0 0.0
  %1636 = vmatprep.subr.mxu0 0.0
  %1637 = vmatpush1.msra.mxu0 0.0
  %1638 = vmatprep.subr.mxu0 0.0
  %1639 = vmatpush1.msra.mxu0 0.0
  %1640 = vmatprep.subr.mxu0 0.0
  %1641 = vmatpush1.msra.mxu0 0.0
  %1642 = vmatprep.subr.mxu0 0.0
  %1643 = vmatpush1.msra.mxu0 0.0
  %1644 = vmatprep.subr.mxu0 0.0
  %1645 = vmatpush1.msra.mxu0 0.0
  %1646 = vmatprep.subr.mxu0 0.0
  %1647 = vmatpush1.msra.mxu0 0.0
  %1648 = vmatprep.subr.mxu0 0.0
  %1649 = vmatpush1.msra.mxu0 0.0
  %1650 = vmatprep.subr.mxu0 0.0
  %1651 = vmatpush1.msra.mxu0 0.0
  %1652 = vmatprep.subr.mxu0 0.0
  %1653 = vmatpush1.msra.mxu0 0.0
  %1654 = vmatprep.mubr.f32.mxu0 0.0
  %1655 = vmatmul.mubr.f32.gmra.mrb[0].mxu0 %v1518
  %v1656 = vpop.f32.mrb[0].mxu0
  %v1657 = vadd.f32 0.0, %v1656
  %v1658 = vpop.f32.mrb[0].mxu0
  %1659 = vdwg.mxu0
  %1660 = vmatprep.subr.mxu0 0.0
  %1661 = vmatpush1.msra.mxu0 %v308
  %1662 = vmatprep.subr.mxu0 0.0
  %1663 = vmatpush1.msra.mxu0 %v309
  %1664 = vmatprep.subr.mxu0 0.0
  %1665 = vmatpush1.msra.mxu0 %v310
  %1666 = vmatprep.subr.mxu0 0.0
  %1667 = vmatpush1.msra.mxu0 %v311
  %1668 = vmatprep.subr.mxu0 0.0
  %1669 = vmatpush1.msra.mxu0 0.0
  %1670 = vmatprep.subr.mxu0 0.0
  %1671 = vmatpush1.msra.mxu0 0.0
  %1672 = vmatprep.subr.mxu0 0.0
  %1673 = vmatpush1.msra.mxu0 0.0
  %1674 = vmatprep.subr.mxu0 0.0
  %1675 = vmatpush1.msra.mxu0 0.0
  %1676 = vmatprep.subr.mxu0 0.0
  %1677 = vmatpush1.msra.mxu0 0.0
  %1678 = vmatprep.subr.mxu0 0.0
  %1679 = vmatpush1.msra.mxu0 0.0
  %1680 = vmatprep.subr.mxu0 0.0
  %1681 = vmatpush1.msra.mxu0 0.0
  %1682 = vmatprep.subr.mxu0 0.0
  %1683 = vmatpush1.msra.mxu0 0.0
  %1684 = vmatprep.subr.mxu0 0.0
  %1685 = vmatpush1.msra.mxu0 0.0
  %1686 = vmatprep.subr.mxu0 0.0
  %1687 = vmatpush1.msra.mxu0 0.0
  %1688 = vmatprep.subr.mxu0 0.0
  %1689 = vmatpush1.msra.mxu0 0.0
  %1690 = vmatprep.subr.mxu0 0.0
  %1691 = vmatpush1.msra.mxu0 0.0
  %1692 = vmatprep.subr.mxu0 0.0
  %1693 = vmatpush1.msra.mxu0 0.0
  %1694 = vmatprep.subr.mxu0 0.0
  %1695 = vmatpush1.msra.mxu0 0.0
  %1696 = vmatprep.subr.mxu0 0.0
  %1697 = vmatpush1.msra.mxu0 0.0
  %1698 = vmatprep.subr.mxu0 0.0
  %1699 = vmatpush1.msra.mxu0 0.0
  %1700 = vmatprep.subr.mxu0 0.0
  %1701 = vmatpush1.msra.mxu0 0.0
  %1702 = vmatprep.subr.mxu0 0.0
  %1703 = vmatpush1.msra.mxu0 0.0
  %1704 = vmatprep.subr.mxu0 0.0
  %1705 = vmatpush1.msra.mxu0 0.0
  %1706 = vmatprep.subr.mxu0 0.0
  %1707 = vmatpush1.msra.mxu0 0.0
  %1708 = vmatprep.subr.mxu0 0.0
  %1709 = vmatpush1.msra.mxu0 0.0
  %1710 = vmatprep.subr.mxu0 0.0
  %1711 = vmatpush1.msra.mxu0 0.0
  %1712 = vmatprep.subr.mxu0 0.0
  %1713 = vmatpush1.msra.mxu0 0.0
  %1714 = vmatprep.subr.mxu0 0.0
  %1715 = vmatpush1.msra.mxu0 0.0
  %1716 = vmatprep.subr.mxu0 0.0
  %1717 = vmatpush1.msra.mxu0 0.0
  %1718 = vmatprep.subr.mxu0 0.0
  %1719 = vmatpush1.msra.mxu0 0.0
  %1720 = vmatprep.subr.mxu0 0.0
  %1721 = vmatpush1.msra.mxu0 0.0
  %1722 = vmatprep.subr.mxu0 0.0
  %1723 = vmatpush1.msra.mxu0 0.0
  %1724 = vmatprep.mubr.f32.mxu0 0.0
  %1725 = vmatmul.mubr.f32.gmra.mrb[0].mxu0 %v1518
  %v1726 = vpop.f32.mrb[0].mxu0
  %v1727 = vadd.f32 %v706, %v1726
  %v1728 = vpop.f32.mrb[0].mxu0
  %1729 = vdwg.mxu0
  %v1730 = vadd.f32 %v1514, %v1587
  %v1731 = vxor.u32 %v1730, 2147483648
  %v1732 = vmul.f32 %v1731, 1.442695
  %v1733 = vpow.pop %v1732
  %v1734 = vadd.f32 %v1733, 1.0
  %v1735 = vrcp.pop %v1734
  %v1736 = vmul.f32 1.0, %v1735
  %v1737 = vadd.f32 %v1515, %v1657
  %v1738 = vxor.u32 %v1737, 2147483648
  %v1739 = vmul.f32 %v1738, 1.442695
  %v1740 = vpow.pop %v1739
  %v1741 = vadd.f32 %v1740, 1.0
  %v1742 = vrcp.pop %v1741
  %v1743 = vmul.f32 1.0, %v1742
  %v1744 = vmul.f32 %v1736, %v1727
  %v1745 = vadd.f32 %v1516, %v1744
  %v1746 = vtanh.pop %v1745
  %v1747 = vsub.f32 1.0, %v1743
  %v1748 = vmul.f32 %v1747, %v1746
  %v1749 = vmul.f32 %v1743, %v1274
  %v1750 = vadd.f32 %v1748, %v1749
  %1751 = vst.msk [vmem:[#allocation9 + $0xa] sm:$0x3] %vm557, %v1750
  %v1752 = vld [vmem:[#allocation2 + $0x6] sm:$0x3]
  %v1753 = vld [vmem:[#allocation3 + $0x6] sm:$0x3]
  %v1754 = vld [vmem:[#allocation4 + $0x6] sm:$0x3]
  %v1756 = vsel %vm72, %v1512, 0
  %1758 = vmatprep.subr.mxu0 0.0
  %1759 = vmatpush1.msra.mxu0 %v288
  %1760 = vmatprep.subr.mxu0 0.0
  %1761 = vmatpush1.msra.mxu0 %v289
  %1762 = vmatprep.subr.mxu0 0.0
  %1763 = vmatpush1.msra.mxu0 %v290
  %1764 = vmatprep.subr.mxu0 0.0
  %1765 = vmatpush1.msra.mxu0 %v291
  %1766 = vmatprep.subr.mxu0 0.0
  %1767 = vmatpush1.msra.mxu0 0.0
  %1768 = vmatprep.subr.mxu0 0.0
  %1769 = vmatpush1.msra.mxu0 0.0
  %1770 = vmatprep.subr.mxu0 0.0
  %1771 = vmatpush1.msra.mxu0 0.0
  %1772 = vmatprep.subr.mxu0 0.0
  %1773 = vmatpush1.msra.mxu0 0.0
  %1774 = vmatprep.subr.mxu0 0.0
  %1775 = vmatpush1.msra.mxu0 0.0
  %1776 = vmatprep.subr.mxu0 0.0
  %1777 = vmatpush1.msra.mxu0 0.0
  %1778 = vmatprep.subr.mxu0 0.0
  %1779 = vmatpush1.msra.mxu0 0.0
  %1780 = vmatprep.subr.mxu0 0.0
  %1781 = vmatpush1.msra.mxu0 0.0
  %1782 = vmatprep.subr.mxu0 0.0
  %1783 = vmatpush1.msra.mxu0 0.0
  %1784 = vmatprep.subr.mxu0 0.0
  %1785 = vmatpush1.msra.mxu0 0.0
  %1786 = vmatprep.subr.mxu0 0.0
  %1787 = vmatpush1.msra.mxu0 0.0
  %1788 = vmatprep.subr.mxu0 0.0
  %1789 = vmatpush1.msra.mxu0 0.0
  %1790 = vmatprep.subr.mxu0 0.0
  %1791 = vmatpush1.msra.mxu0 0.0
  %1792 = vmatprep.subr.mxu0 0.0
  %1793 = vmatpush1.msra.mxu0 0.0
  %1794 = vmatprep.subr.mxu0 0.0
  %1795 = vmatpush1.msra.mxu0 0.0
  %1796 = vmatprep.subr.mxu0 0.0
  %1797 = vmatpush1.msra.mxu0 0.0
  %1798 = vmatprep.subr.mxu0 0.0
  %1799 = vmatpush1.msra.mxu0 0.0
  %1800 = vmatprep.subr.mxu0 0.0
  %1801 = vmatpush1.msra.mxu0 0.0
  %1802 = vmatprep.subr.mxu0 0.0
  %1803 = vmatpush1.msra.mxu0 0.0
  %1804 = vmatprep.subr.mxu0 0.0
  %1805 = vmatpush1.msra.mxu0 0.0
  %1806 = vmatprep.subr.mxu0 0.0
  %1807 = vmatpush1.msra.mxu0 0.0
  %1808 = vmatprep.subr.mxu0 0.0
  %1809 = vmatpush1.msra.mxu0 0.0
  %1810 = vmatprep.subr.mxu0 0.0
  %1811 = vmatpush1.msra.mxu0 0.0
  %1812 = vmatprep.subr.mxu0 0.0
  %1813 = vmatpush1.msra.mxu0 0.0
  %1814 = vmatprep.subr.mxu0 0.0
  %1815 = vmatpush1.msra.mxu0 0.0
  %1816 = vmatprep.subr.mxu0 0.0
  %1817 = vmatpush1.msra.mxu0 0.0
  %1818 = vmatprep.subr.mxu0 0.0
  %1819 = vmatpush1.msra.mxu0 0.0
  %1820 = vmatprep.subr.mxu0 0.0
  %1821 = vmatpush1.msra.mxu0 0.0
  %1822 = vmatprep.mubr.f32.mxu0 0.0
  %1823 = vmatmul.mubr.f32.gmra.mrb[0].mxu0 %v1756
  %v1824 = vpop.f32.mrb[0].mxu0
  %v1825 = vadd.f32 0.0, %v1824
  %v1826 = vpop.f32.mrb[0].mxu0
  %1827 = vdwg.mxu0
  %1828 = vmatprep.subr.mxu0 0.0
  %1829 = vmatpush1.msra.mxu0 %v292
  %1830 = vmatprep.subr.mxu0 0.0
  %1831 = vmatpush1.msra.mxu0 %v293
  %1832 = vmatprep.subr.mxu0 0.0
  %1833 = vmatpush1.msra.mxu0 %v294
  %1834 = vmatprep.subr.mxu0 0.0
  %1835 = vmatpush1.msra.mxu0 %v295
  %1836 = vmatprep.subr.mxu0 0.0
  %1837 = vmatpush1.msra.mxu0 0.0
  %1838 = vmatprep.subr.mxu0 0.0
  %1839 = vmatpush1.msra.mxu0 0.0
  %1840 = vmatprep.subr.mxu0 0.0
  %1841 = vmatpush1.msra.mxu0 0.0
  %1842 = vmatprep.subr.mxu0 0.0
  %1843 = vmatpush1.msra.mxu0 0.0
  %1844 = vmatprep.subr.mxu0 0.0
  %1845 = vmatpush1.msra.mxu0 0.0
  %1846 = vmatprep.subr.mxu0 0.0
  %1847 = vmatpush1.msra.mxu0 0.0
  %1848 = vmatprep.subr.mxu0 0.0
  %1849 = vmatpush1.msra.mxu0 0.0
  %1850 = vmatprep.subr.mxu0 0.0
  %1851 = vmatpush1.msra.mxu0 0.0
  %1852 = vmatprep.subr.mxu0 0.0
  %1853 = vmatpush1.msra.mxu0 0.0
  %1854 = vmatprep.subr.mxu0 0.0
  %1855 = vmatpush1.msra.mxu0 0.0
  %1856 = vmatprep.subr.mxu0 0.0
  %1857 = vmatpush1.msra.mxu0 0.0
  %1858 = vmatprep.subr.mxu0 0.0
  %1859 = vmatpush1.msra.mxu0 0.0
  %1860 = vmatprep.subr.mxu0 0.0
  %1861 = vmatpush1.msra.mxu0 0.0
  %1862 = vmatprep.subr.mxu0 0.0
  %1863 = vmatpush1.msra.mxu0 0.0
  %1864 = vmatprep.subr.mxu0 0.0
  %1865 = vmatpush1.msra.mxu0 0.0
  %1866 = vmatprep.subr.mxu0 0.0
  %1867 = vmatpush1.msra.mxu0 0.0
  %1868 = vmatprep.subr.mxu0 0.0
  %1869 = vmatpush1.msra.mxu0 0.0
  %1870 = vmatprep.subr.mxu0 0.0
  %1871 = vmatpush1.msra.mxu0 0.0
  %1872 = vmatprep.subr.mxu0 0.0
  %1873 = vmatpush1.msra.mxu0 0.0
  %1874 = vmatprep.subr.mxu0 0.0
  %1875 = vmatpush1.msra.mxu0 0.0
  %1876 = vmatprep.subr.mxu0 0.0
  %1877 = vmatpush1.msra.mxu0 0.0
  %1878 = vmatprep.subr.mxu0 0.0
  %1879 = vmatpush1.msra.mxu0 0.0
  %1880 = vmatprep.subr.mxu0 0.0
  %1881 = vmatpush1.msra.mxu0 0.0
  %1882 = vmatprep.subr.mxu0 0.0
  %1883 = vmatpush1.msra.mxu0 0.0
  %1884 = vmatprep.subr.mxu0 0.0
  %1885 = vmatpush1.msra.mxu0 0.0
  %1886 = vmatprep.subr.mxu0 0.0
  %1887 = vmatpush1.msra.mxu0 0.0
  %1888 = vmatprep.subr.mxu0 0.0
  %1889 = vmatpush1.msra.mxu0 0.0
  %1890 = vmatprep.subr.mxu0 0.0
  %1891 = vmatpush1.msra.mxu0 0.0
  %1892 = vmatprep.mubr.f32.mxu0 0.0
  %1893 = vmatmul.mubr.f32.gmra.mrb[0].mxu0 %v1756
  %v1894 = vpop.f32.mrb[0].mxu0
  %v1895 = vadd.f32 0.0, %v1894
  %v1896 = vpop.f32.mrb[0].mxu0
  %1897 = vdwg.mxu0
  %1898 = vmatprep.subr.mxu0 0.0
  %1899 = vmatpush1.msra.mxu0 %v296
  %1900 = vmatprep.subr.mxu0 0.0
  %1901 = vmatpush1.msra.mxu0 %v297
  %1902 = vmatprep.subr.mxu0 0.0
  %1903 = vmatpush1.msra.mxu0 %v298
  %1904 = vmatprep.subr.mxu0 0.0
  %1905 = vmatpush1.msra.mxu0 %v299
  %1906 = vmatprep.subr.mxu0 0.0
  %1907 = vmatpush1.msra.mxu0 0.0
  %1908 = vmatprep.subr.mxu0 0.0
  %1909 = vmatpush1.msra.mxu0 0.0
  %1910 = vmatprep.subr.mxu0 0.0
  %1911 = vmatpush1.msra.mxu0 0.0
  %1912 = vmatprep.subr.mxu0 0.0
  %1913 = vmatpush1.msra.mxu0 0.0
  %1914 = vmatprep.subr.mxu0 0.0
  %1915 = vmatpush1.msra.mxu0 0.0
  %1916 = vmatprep.subr.mxu0 0.0
  %1917 = vmatpush1.msra.mxu0 0.0
  %1918 = vmatprep.subr.mxu0 0.0
  %1919 = vmatpush1.msra.mxu0 0.0
  %1920 = vmatprep.subr.mxu0 0.0
  %1921 = vmatpush1.msra.mxu0 0.0
  %1922 = vmatprep.subr.mxu0 0.0
  %1923 = vmatpush1.msra.mxu0 0.0
  %1924 = vmatprep.subr.mxu0 0.0
  %1925 = vmatpush1.msra.mxu0 0.0
  %1926 = vmatprep.subr.mxu0 0.0
  %1927 = vmatpush1.msra.mxu0 0.0
  %1928 = vmatprep.subr.mxu0 0.0
  %1929 = vmatpush1.msra.mxu0 0.0
  %1930 = vmatprep.subr.mxu0 0.0
  %1931 = vmatpush1.msra.mxu0 0.0
  %1932 = vmatprep.subr.mxu0 0.0
  %1933 = vmatpush1.msra.mxu0 0.0
  %1934 = vmatprep.subr.mxu0 0.0
  %1935 = vmatpush1.msra.mxu0 0.0
  %1936 = vmatprep.subr.mxu0 0.0
  %1937 = vmatpush1.msra.mxu0 0.0
  %1938 = vmatprep.subr.mxu0 0.0
  %1939 = vmatpush1.msra.mxu0 0.0
  %1940 = vmatprep.subr.mxu0 0.0
  %1941 = vmatpush1.msra.mxu0 0.0
  %1942 = vmatprep.subr.mxu0 0.0
  %1943 = vmatpush1.msra.mxu0 0.0
  %1944 = vmatprep.subr.mxu0 0.0
  %1945 = vmatpush1.msra.mxu0 0.0
  %1946 = vmatprep.subr.mxu0 0.0
  %1947 = vmatpush1.msra.mxu0 0.0
  %1948 = vmatprep.subr.mxu0 0.0
  %1949 = vmatpush1.msra.mxu0 0.0
  %1950 = vmatprep.subr.mxu0 0.0
  %1951 = vmatpush1.msra.mxu0 0.0
  %1952 = vmatprep.subr.mxu0 0.0
  %1953 = vmatpush1.msra.mxu0 0.0
  %1954 = vmatprep.subr.mxu0 0.0
  %1955 = vmatpush1.msra.mxu0 0.0
  %1956 = vmatprep.subr.mxu0 0.0
  %1957 = vmatpush1.msra.mxu0 0.0
  %1958 = vmatprep.subr.mxu0 0.0
  %1959 = vmatpush1.msra.mxu0 0.0
  %1960 = vmatprep.subr.mxu0 0.0
  %1961 = vmatpush1.msra.mxu0 0.0
  %1962 = vmatprep.mubr.f32.mxu0 0.0
  %1963 = vmatmul.mubr.f32.gmra.mrb[0].mxu0 %v1756
  %v1964 = vpop.f32.mrb[0].mxu0
  %v1965 = vadd.f32 %v464, %v1964
  %v1966 = vpop.f32.mrb[0].mxu0
  %1967 = vdwg.mxu0
  %v1968 = vadd.f32 %v1752, %v1825
  %v1969 = vxor.u32 %v1968, 2147483648
  %v1970 = vmul.f32 %v1969, 1.442695
  %v1971 = vpow.pop %v1970
  %v1972 = vadd.f32 %v1971, 1.0
  %v1973 = vrcp.pop %v1972
  %v1974 = vmul.f32 1.0, %v1973
  %v1975 = vadd.f32 %v1753, %v1895
  %v1976 = vxor.u32 %v1975, 2147483648
  %v1977 = vmul.f32 %v1976, 1.442695
  %v1978 = vpow.pop %v1977
  %v1979 = vadd.f32 %v1978, 1.0
  %v1980 = vrcp.pop %v1979
  %v1981 = vmul.f32 1.0, %v1980
  %v1982 = vmul.f32 %v1974, %v1965
  %v1983 = vadd.f32 %v1754, %v1982
  %v1984 = vtanh.pop %v1983
  %v1985 = vsub.f32 1.0, %v1981
  %v1986 = vmul.f32 %v1985, %v1984
  %v1987 = vmul.f32 %v1981, %v1512
  %v1988 = vadd.f32 %v1986, %v1987
  %1989 = vst.msk [vmem:[#allocation8 + $0x6] sm:$0x3] %vm557, %v1988
  %v1990 = vld [vmem:[#allocation5 + $0x6] sm:$0x3]
  %v1991 = vld [vmem:[#allocation6 + $0x6] sm:$0x3]
  %v1992 = vld [vmem:[#allocation7 + $0x6] sm:$0x3]
  %v1994 = vsel %vm72, %v1750, 0
  %1996 = vmatprep.subr.mxu0 0.0
  %1997 = vmatpush1.msra.mxu0 %v300
  %1998 = vmatprep.subr.mxu0 0.0
  %1999 = vmatpush1.msra.mxu0 %v301
  %2000 = vmatprep.subr.mxu0 0.0
  %2001 = vmatpush1.msra.mxu0 %v302
  %2002 = vmatprep.subr.mxu0 0.0
  %2003 = vmatpush1.msra.mxu0 %v303
  %2004 = vmatprep.subr.mxu0 0.0
  %2005 = vmatpush1.msra.mxu0 0.0
  %2006 = vmatprep.subr.mxu0 0.0
  %2007 = vmatpush1.msra.mxu0 0.0
  %2008 = vmatprep.subr.mxu0 0.0
  %2009 = vmatpush1.msra.mxu0 0.0
  %2010 = vmatprep.subr.mxu0 0.0
  %2011 = vmatpush1.msra.mxu0 0.0
  %2012 = vmatprep.subr.mxu0 0.0
  %2013 = vmatpush1.msra.mxu0 0.0
  %2014 = vmatprep.subr.mxu0 0.0
  %2015 = vmatpush1.msra.mxu0 0.0
  %2016 = vmatprep.subr.mxu0 0.0
  %2017 = vmatpush1.msra.mxu0 0.0
  %2018 = vmatprep.subr.mxu0 0.0
  %2019 = vmatpush1.msra.mxu0 0.0
  %2020 = vmatprep.subr.mxu0 0.0
  %2021 = vmatpush1.msra.mxu0 0.0
  %2022 = vmatprep.subr.mxu0 0.0
  %2023 = vmatpush1.msra.mxu0 0.0
  %2024 = vmatprep.subr.mxu0 0.0
  %2025 = vmatpush1.msra.mxu0 0.0
  %2026 = vmatprep.subr.mxu0 0.0
  %2027 = vmatpush1.msra.mxu0 0.0
  %2028 = vmatprep.subr.mxu0 0.0
  %2029 = vmatpush1.msra.mxu0 0.0
  %2030 = vmatprep.subr.mxu0 0.0
  %2031 = vmatpush1.msra.mxu0 0.0
  %2032 = vmatprep.subr.mxu0 0.0
  %2033 = vmatpush1.msra.mxu0 0.0
  %2034 = vmatprep.subr.mxu0 0.0
  %2035 = vmatpush1.msra.mxu0 0.0
  %2036 = vmatprep.subr.mxu0 0.0
  %2037 = vmatpush1.msra.mxu0 0.0
  %2038 = vmatprep.subr.mxu0 0.0
  %2039 = vmatpush1.msra.mxu0 0.0
  %2040 = vmatprep.subr.mxu0 0.0
  %2041 = vmatpush1.msra.mxu0 0.0
  %2042 = vmatprep.subr.mxu0 0.0
  %2043 = vmatpush1.msra.mxu0 0.0
  %2044 = vmatprep.subr.mxu0 0.0
  %2045 = vmatpush1.msra.mxu0 0.0
  %2046 = vmatprep.subr.mxu0 0.0
  %2047 = vmatpush1.msra.mxu0 0.0
  %2048 = vmatprep.subr.mxu0 0.0
  %2049 = vmatpush1.msra.mxu0 0.0
  %2050 = vmatprep.subr.mxu0 0.0
  %2051 = vmatpush1.msra.mxu0 0.0
  %2052 = vmatprep.subr.mxu0 0.0
  %2053 = vmatpush1.msra.mxu0 0.0
  %2054 = vmatprep.subr.mxu0 0.0
  %2055 = vmatpush1.msra.mxu0 0.0
  %2056 = vmatprep.subr.mxu0 0.0
  %2057 = vmatpush1.msra.mxu0 0.0
  %2058 = vmatprep.subr.mxu0 0.0
  %2059 = vmatpush1.msra.mxu0 0.0
  %2060 = vmatprep.mubr.f32.mxu0 0.0
  %2061 = vmatmul.mubr.f32.gmra.mrb[0].mxu0 %v1994
  %v2062 = vpop.f32.mrb[0].mxu0
  %v2063 = vadd.f32 0.0, %v2062
  %v2064 = vpop.f32.mrb[0].mxu0
  %2065 = vdwg.mxu0
  %2066 = vmatprep.subr.mxu0 0.0
  %2067 = vmatpush1.msra.mxu0 %v304
  %2068 = vmatprep.subr.mxu0 0.0
  %2069 = vmatpush1.msra.mxu0 %v305
  %2070 = vmatprep.subr.mxu0 0.0
  %2071 = vmatpush1.msra.mxu0 %v306
  %2072 = vmatprep.subr.mxu0 0.0
  %2073 = vmatpush1.msra.mxu0 %v307
  %2074 = vmatprep.subr.mxu0 0.0
  %2075 = vmatpush1.msra.mxu0 0.0
  %2076 = vmatprep.subr.mxu0 0.0
  %2077 = vmatpush1.msra.mxu0 0.0
  %2078 = vmatprep.subr.mxu0 0.0
  %2079 = vmatpush1.msra.mxu0 0.0
  %2080 = vmatprep.subr.mxu0 0.0
  %2081 = vmatpush1.msra.mxu0 0.0
  %2082 = vmatprep.subr.mxu0 0.0
  %2083 = vmatpush1.msra.mxu0 0.0
  %2084 = vmatprep.subr.mxu0 0.0
  %2085 = vmatpush1.msra.mxu0 0.0
  %2086 = vmatprep.subr.mxu0 0.0
  %2087 = vmatpush1.msra.mxu0 0.0
  %2088 = vmatprep.subr.mxu0 0.0
  %2089 = vmatpush1.msra.mxu0 0.0
  %2090 = vmatprep.subr.mxu0 0.0
  %2091 = vmatpush1.msra.mxu0 0.0
  %2092 = vmatprep.subr.mxu0 0.0
  %2093 = vmatpush1.msra.mxu0 0.0
  %2094 = vmatprep.subr.mxu0 0.0
  %2095 = vmatpush1.msra.mxu0 0.0
  %2096 = vmatprep.subr.mxu0 0.0
  %2097 = vmatpush1.msra.mxu0 0.0
  %2098 = vmatprep.subr.mxu0 0.0
  %2099 = vmatpush1.msra.mxu0 0.0
  %2100 = vmatprep.subr.mxu0 0.0
  %2101 = vmatpush1.msra.mxu0 0.0
  %2102 = vmatprep.subr.mxu0 0.0
  %2103 = vmatpush1.msra.mxu0 0.0
  %2104 = vmatprep.subr.mxu0 0.0
  %2105 = vmatpush1.msra.mxu0 0.0
  %2106 = vmatprep.subr.mxu0 0.0
  %2107 = vmatpush1.msra.mxu0 0.0
  %2108 = vmatprep.subr.mxu0 0.0
  %2109 = vmatpush1.msra.mxu0 0.0
  %2110 = vmatprep.subr.mxu0 0.0
  %2111 = vmatpush1.msra.mxu0 0.0
  %2112 = vmatprep.subr.mxu0 0.0
  %2113 = vmatpush1.msra.mxu0 0.0
  %2114 = vmatprep.subr.mxu0 0.0
  %2115 = vmatpush1.msra.mxu0 0.0
  %2116 = vmatprep.subr.mxu0 0.0
  %2117 = vmatpush1.msra.mxu0 0.0
  %2118 = vmatprep.subr.mxu0 0.0
  %2119 = vmatpush1.msra.mxu0 0.0
  %2120 = vmatprep.subr.mxu0 0.0
  %2121 = vmatpush1.msra.mxu0 0.0
  %2122 = vmatprep.subr.mxu0 0.0
  %2123 = vmatpush1.msra.mxu0 0.0
  %2124 = vmatprep.subr.mxu0 0.0
  %2125 = vmatpush1.msra.mxu0 0.0
  %2126 = vmatprep.subr.mxu0 0.0
  %2127 = vmatpush1.msra.mxu0 0.0
  %2128 = vmatprep.subr.mxu0 0.0
  %2129 = vmatpush1.msra.mxu0 0.0
  %2130 = vmatprep.mubr.f32.mxu0 0.0
  %2131 = vmatmul.mubr.f32.gmra.mrb[0].mxu0 %v1994
  %v2132 = vpop.f32.mrb[0].mxu0
  %v2133 = vadd.f32 0.0, %v2132
  %v2134 = vpop.f32.mrb[0].mxu0
  %2135 = vdwg.mxu0
  %2136 = vmatprep.subr.mxu0 0.0
  %2137 = vmatpush1.msra.mxu0 %v308
  %2138 = vmatprep.subr.mxu0 0.0
  %2139 = vmatpush1.msra.mxu0 %v309
  %2140 = vmatprep.subr.mxu0 0.0
  %2141 = vmatpush1.msra.mxu0 %v310
  %2142 = vmatprep.subr.mxu0 0.0
  %2143 = vmatpush1.msra.mxu0 %v311
  %2144 = vmatprep.subr.mxu0 0.0
  %2145 = vmatpush1.msra.mxu0 0.0
  %2146 = vmatprep.subr.mxu0 0.0
  %2147 = vmatpush1.msra.mxu0 0.0
  %2148 = vmatprep.subr.mxu0 0.0
  %2149 = vmatpush1.msra.mxu0 0.0
  %2150 = vmatprep.subr.mxu0 0.0
  %2151 = vmatpush1.msra.mxu0 0.0
  %2152 = vmatprep.subr.mxu0 0.0
  %2153 = vmatpush1.msra.mxu0 0.0
  %2154 = vmatprep.subr.mxu0 0.0
  %2155 = vmatpush1.msra.mxu0 0.0
  %2156 = vmatprep.subr.mxu0 0.0
  %2157 = vmatpush1.msra.mxu0 0.0
  %2158 = vmatprep.subr.mxu0 0.0
  %2159 = vmatpush1.msra.mxu0 0.0
  %2160 = vmatprep.subr.mxu0 0.0
  %2161 = vmatpush1.msra.mxu0 0.0
  %2162 = vmatprep.subr.mxu0 0.0
  %2163 = vmatpush1.msra.mxu0 0.0
  %2164 = vmatprep.subr.mxu0 0.0
  %2165 = vmatpush1.msra.mxu0 0.0
  %2166 = vmatprep.subr.mxu0 0.0
  %2167 = vmatpush1.msra.mxu0 0.0
  %2168 = vmatprep.subr.mxu0 0.0
  %2169 = vmatpush1.msra.mxu0 0.0
  %2170 = vmatprep.subr.mxu0 0.0
  %2171 = vmatpush1.msra.mxu0 0.0
  %2172 = vmatprep.subr.mxu0 0.0
  %2173 = vmatpush1.msra.mxu0 0.0
  %2174 = vmatprep.subr.mxu0 0.0
  %2175 = vmatpush1.msra.mxu0 0.0
  %2176 = vmatprep.subr.mxu0 0.0
  %2177 = vmatpush1.msra.mxu0 0.0
  %2178 = vmatprep.subr.mxu0 0.0
  %2179 = vmatpush1.msra.mxu0 0.0
  %2180 = vmatprep.subr.mxu0 0.0
  %2181 = vmatpush1.msra.mxu0 0.0
  %2182 = vmatprep.subr.mxu0 0.0
  %2183 = vmatpush1.msra.mxu0 0.0
  %2184 = vmatprep.subr.mxu0 0.0
  %2185 = vmatpush1.msra.mxu0 0.0
  %2186 = vmatprep.subr.mxu0 0.0
  %2187 = vmatpush1.msra.mxu0 0.0
  %2188 = vmatprep.subr.mxu0 0.0
  %2189 = vmatpush1.msra.mxu0 0.0
  %2190 = vmatprep.subr.mxu0 0.0
  %2191 = vmatpush1.msra.mxu0 0.0
  %2192 = vmatprep.subr.mxu0 0.0
  %2193 = vmatpush1.msra.mxu0 0.0
  %2194 = vmatprep.subr.mxu0 0.0
  %2195 = vmatpush1.msra.mxu0 0.0
  %2196 = vmatprep.subr.mxu0 0.0
  %2197 = vmatpush1.msra.mxu0 0.0
  %2198 = vmatprep.subr.mxu0 0.0
  %2199 = vmatpush1.msra.mxu0 0.0
  %2200 = vmatprep.mubr.f32.mxu0 0.0
  %2201 = vmatmul.mubr.f32.gmra.mrb[0].mxu0 %v1994
  %v2202 = vpop.f32.mrb[0].mxu0
  %v2203 = vadd.f32 %v706, %v2202
  %v2204 = vpop.f32.mrb[0].mxu0
  %2205 = vdwg.mxu0
  %v2206 = vadd.f32 %v1990, %v2063
  %v2207 = vxor.u32 %v2206, 2147483648
  %v2208 = vmul.f32 %v2207, 1.442695
  %v2209 = vpow.pop %v2208
  %v2210 = vadd.f32 %v2209, 1.0
  %v2211 = vrcp.pop %v2210
  %v2212 = vmul.f32 1.0, %v2211
  %v2213 = vadd.f32 %v1991, %v2133
  %v2214 = vxor.u32 %v2213, 2147483648
  %v2215 = vmul.f32 %v2214, 1.442695
  %v2216 = vpow.pop %v2215
  %v2217 = vadd.f32 %v2216, 1.0
  %v2218 = vrcp.pop %v2217
  %v2219 = vmul.f32 1.0, %v2218
  %v2220 = vmul.f32 %v2212, %v2203
  %v2221 = vadd.f32 %v1992, %v2220
  %v2222 = vtanh.pop %v2221
  %v2223 = vsub.f32 1.0, %v2219
  %v2224 = vmul.f32 %v2223, %v2222
  %v2225 = vmul.f32 %v2219, %v1750
  %v2226 = vadd.f32 %v2224, %v2225
  %2227 = vst.msk [vmem:[#allocation9 + $0x8] sm:$0x3] %vm557, %v2226
  %v2228 = vld [vmem:[#allocation2 + $0x8] sm:$0x3]
  %v2229 = vld [vmem:[#allocation3 + $0x8] sm:$0x3]
  %v2230 = vld [vmem:[#allocation4 + $0x8] sm:$0x3]
  %v2232 = vsel %vm72, %v1988, 0
  %2234 = vmatprep.subr.mxu0 0.0
  %2235 = vmatpush1.msra.mxu0 %v288
  %2236 = vmatprep.subr.mxu0 0.0
  %2237 = vmatpush1.msra.mxu0 %v289
  %2238 = vmatprep.subr.mxu0 0.0
  %2239 = vmatpush1.msra.mxu0 %v290
  %2240 = vmatprep.subr.mxu0 0.0
  %2241 = vmatpush1.msra.mxu0 %v291
  %2242 = vmatprep.subr.mxu0 0.0
  %2243 = vmatpush1.msra.mxu0 0.0
  %2244 = vmatprep.subr.mxu0 0.0
  %2245 = vmatpush1.msra.mxu0 0.0
  %2246 = vmatprep.subr.mxu0 0.0
  %2247 = vmatpush1.msra.mxu0 0.0
  %2248 = vmatprep.subr.mxu0 0.0
  %2249 = vmatpush1.msra.mxu0 0.0
  %2250 = vmatprep.subr.mxu0 0.0
  %2251 = vmatpush1.msra.mxu0 0.0
  %2252 = vmatprep.subr.mxu0 0.0
  %2253 = vmatpush1.msra.mxu0 0.0
  %2254 = vmatprep.subr.mxu0 0.0
  %2255 = vmatpush1.msra.mxu0 0.0
  %2256 = vmatprep.subr.mxu0 0.0
  %2257 = vmatpush1.msra.mxu0 0.0
  %2258 = vmatprep.subr.mxu0 0.0
  %2259 = vmatpush1.msra.mxu0 0.0
  %2260 = vmatprep.subr.mxu0 0.0
  %2261 = vmatpush1.msra.mxu0 0.0
  %2262 = vmatprep.subr.mxu0 0.0
  %2263 = vmatpush1.msra.mxu0 0.0
  %2264 = vmatprep.subr.mxu0 0.0
  %2265 = vmatpush1.msra.mxu0 0.0
  %2266 = vmatprep.subr.mxu0 0.0
  %2267 = vmatpush1.msra.mxu0 0.0
  %2268 = vmatprep.subr.mxu0 0.0
  %2269 = vmatpush1.msra.mxu0 0.0
  %2270 = vmatprep.subr.mxu0 0.0
  %2271 = vmatpush1.msra.mxu0 0.0
  %2272 = vmatprep.subr.mxu0 0.0
  %2273 = vmatpush1.msra.mxu0 0.0
  %2274 = vmatprep.subr.mxu0 0.0
  %2275 = vmatpush1.msra.mxu0 0.0
  %2276 = vmatprep.subr.mxu0 0.0
  %2277 = vmatpush1.msra.mxu0 0.0
  %2278 = vmatprep.subr.mxu0 0.0
  %2279 = vmatpush1.msra.mxu0 0.0
  %2280 = vmatprep.subr.mxu0 0.0
  %2281 = vmatpush1.msra.mxu0 0.0
  %2282 = vmatprep.subr.mxu0 0.0
  %2283 = vmatpush1.msra.mxu0 0.0
  %2284 = vmatprep.subr.mxu0 0.0
  %2285 = vmatpush1.msra.mxu0 0.0
  %2286 = vmatprep.subr.mxu0 0.0
  %2287 = vmatpush1.msra.mxu0 0.0
  %2288 = vmatprep.subr.mxu0 0.0
  %2289 = vmatpush1.msra.mxu0 0.0
  %2290 = vmatprep.subr.mxu0 0.0
  %2291 = vmatpush1.msra.mxu0 0.0
  %2292 = vmatprep.subr.mxu0 0.0
  %2293 = vmatpush1.msra.mxu0 0.0
  %2294 = vmatprep.subr.mxu0 0.0
  %2295 = vmatpush1.msra.mxu0 0.0
  %2296 = vmatprep.subr.mxu0 0.0
  %2297 = vmatpush1.msra.mxu0 0.0
  %2298 = vmatprep.mubr.f32.mxu0 0.0
  %2299 = vmatmul.mubr.f32.gmra.mrb[0].mxu0 %v2232
  %v2300 = vpop.f32.mrb[0].mxu0
  %v2301 = vadd.f32 0.0, %v2300
  %v2302 = vpop.f32.mrb[0].mxu0
  %2303 = vdwg.mxu0
  %2304 = vmatprep.subr.mxu0 0.0
  %2305 = vmatpush1.msra.mxu0 %v292
  %2306 = vmatprep.subr.mxu0 0.0
  %2307 = vmatpush1.msra.mxu0 %v293
  %2308 = vmatprep.subr.mxu0 0.0
  %2309 = vmatpush1.msra.mxu0 %v294
  %2310 = vmatprep.subr.mxu0 0.0
  %2311 = vmatpush1.msra.mxu0 %v295
  %2312 = vmatprep.subr.mxu0 0.0
  %2313 = vmatpush1.msra.mxu0 0.0
  %2314 = vmatprep.subr.mxu0 0.0
  %2315 = vmatpush1.msra.mxu0 0.0
  %2316 = vmatprep.subr.mxu0 0.0
  %2317 = vmatpush1.msra.mxu0 0.0
  %2318 = vmatprep.subr.mxu0 0.0
  %2319 = vmatpush1.msra.mxu0 0.0
  %2320 = vmatprep.subr.mxu0 0.0
  %2321 = vmatpush1.msra.mxu0 0.0
  %2322 = vmatprep.subr.mxu0 0.0
  %2323 = vmatpush1.msra.mxu0 0.0
  %2324 = vmatprep.subr.mxu0 0.0
  %2325 = vmatpush1.msra.mxu0 0.0
  %2326 = vmatprep.subr.mxu0 0.0
  %2327 = vmatpush1.msra.mxu0 0.0
  %2328 = vmatprep.subr.mxu0 0.0
  %2329 = vmatpush1.msra.mxu0 0.0
  %2330 = vmatprep.subr.mxu0 0.0
  %2331 = vmatpush1.msra.mxu0 0.0
  %2332 = vmatprep.subr.mxu0 0.0
  %2333 = vmatpush1.msra.mxu0 0.0
  %2334 = vmatprep.subr.mxu0 0.0
  %2335 = vmatpush1.msra.mxu0 0.0
  %2336 = vmatprep.subr.mxu0 0.0
  %2337 = vmatpush1.msra.mxu0 0.0
  %2338 = vmatprep.subr.mxu0 0.0
  %2339 = vmatpush1.msra.mxu0 0.0
  %2340 = vmatprep.subr.mxu0 0.0
  %2341 = vmatpush1.msra.mxu0 0.0
  %2342 = vmatprep.subr.mxu0 0.0
  %2343 = vmatpush1.msra.mxu0 0.0
  %2344 = vmatprep.subr.mxu0 0.0
  %2345 = vmatpush1.msra.mxu0 0.0
  %2346 = vmatprep.subr.mxu0 0.0
  %2347 = vmatpush1.msra.mxu0 0.0
  %2348 = vmatprep.subr.mxu0 0.0
  %2349 = vmatpush1.msra.mxu0 0.0
  %2350 = vmatprep.subr.mxu0 0.0
  %2351 = vmatpush1.msra.mxu0 0.0
  %2352 = vmatprep.subr.mxu0 0.0
  %2353 = vmatpush1.msra.mxu0 0.0
  %2354 = vmatprep.subr.mxu0 0.0
  %2355 = vmatpush1.msra.mxu0 0.0
  %2356 = vmatprep.subr.mxu0 0.0
  %2357 = vmatpush1.msra.mxu0 0.0
  %2358 = vmatprep.subr.mxu0 0.0
  %2359 = vmatpush1.msra.mxu0 0.0
  %2360 = vmatprep.subr.mxu0 0.0
  %2361 = vmatpush1.msra.mxu0 0.0
  %2362 = vmatprep.subr.mxu0 0.0
  %2363 = vmatpush1.msra.mxu0 0.0
  %2364 = vmatprep.subr.mxu0 0.0
  %2365 = vmatpush1.msra.mxu0 0.0
  %2366 = vmatprep.subr.mxu0 0.0
  %2367 = vmatpush1.msra.mxu0 0.0
  %2368 = vmatprep.mubr.f32.mxu0 0.0
  %2369 = vmatmul.mubr.f32.gmra.mrb[0].mxu0 %v2232
  %v2370 = vpop.f32.mrb[0].mxu0
  %v2371 = vadd.f32 0.0, %v2370
  %v2372 = vpop.f32.mrb[0].mxu0
  %2373 = vdwg.mxu0
  %2374 = vmatprep.subr.mxu0 0.0
  %2375 = vmatpush1.msra.mxu0 %v296
  %2376 = vmatprep.subr.mxu0 0.0
  %2377 = vmatpush1.msra.mxu0 %v297
  %2378 = vmatprep.subr.mxu0 0.0
  %2379 = vmatpush1.msra.mxu0 %v298
  %2380 = vmatprep.subr.mxu0 0.0
  %2381 = vmatpush1.msra.mxu0 %v299
  %2382 = vmatprep.subr.mxu0 0.0
  %2383 = vmatpush1.msra.mxu0 0.0
  %2384 = vmatprep.subr.mxu0 0.0
  %2385 = vmatpush1.msra.mxu0 0.0
  %2386 = vmatprep.subr.mxu0 0.0
  %2387 = vmatpush1.msra.mxu0 0.0
  %2388 = vmatprep.subr.mxu0 0.0
  %2389 = vmatpush1.msra.mxu0 0.0
  %2390 = vmatprep.subr.mxu0 0.0
  %2391 = vmatpush1.msra.mxu0 0.0
  %2392 = vmatprep.subr.mxu0 0.0
  %2393 = vmatpush1.msra.mxu0 0.0
  %2394 = vmatprep.subr.mxu0 0.0
  %2395 = vmatpush1.msra.mxu0 0.0
  %2396 = vmatprep.subr.mxu0 0.0
  %2397 = vmatpush1.msra.mxu0 0.0
  %2398 = vmatprep.subr.mxu0 0.0
  %2399 = vmatpush1.msra.mxu0 0.0
  %2400 = vmatprep.subr.mxu0 0.0
  %2401 = vmatpush1.msra.mxu0 0.0
  %2402 = vmatprep.subr.mxu0 0.0
  %2403 = vmatpush1.msra.mxu0 0.0
  %2404 = vmatprep.subr.mxu0 0.0
  %2405 = vmatpush1.msra.mxu0 0.0
  %2406 = vmatprep.subr.mxu0 0.0
  %2407 = vmatpush1.msra.mxu0 0.0
  %2408 = vmatprep.subr.mxu0 0.0
  %2409 = vmatpush1.msra.mxu0 0.0
  %2410 = vmatprep.subr.mxu0 0.0
  %2411 = vmatpush1.msra.mxu0 0.0
  %2412 = vmatprep.subr.mxu0 0.0
  %2413 = vmatpush1.msra.mxu0 0.0
  %2414 = vmatprep.subr.mxu0 0.0
  %2415 = vmatpush1.msra.mxu0 0.0
  %2416 = vmatprep.subr.mxu0 0.0
  %2417 = vmatpush1.msra.mxu0 0.0
  %2418 = vmatprep.subr.mxu0 0.0
  %2419 = vmatpush1.msra.mxu0 0.0
  %2420 = vmatprep.subr.mxu0 0.0
  %2421 = vmatpush1.msra.mxu0 0.0
  %2422 = vmatprep.subr.mxu0 0.0
  %2423 = vmatpush1.msra.mxu0 0.0
  %2424 = vmatprep.subr.mxu0 0.0
  %2425 = vmatpush1.msra.mxu0 0.0
  %2426 = vmatprep.subr.mxu0 0.0
  %2427 = vmatpush1.msra.mxu0 0.0
  %2428 = vmatprep.subr.mxu0 0.0
  %2429 = vmatpush1.msra.mxu0 0.0
  %2430 = vmatprep.subr.mxu0 0.0
  %2431 = vmatpush1.msra.mxu0 0.0
  %2432 = vmatprep.subr.mxu0 0.0
  %2433 = vmatpush1.msra.mxu0 0.0
  %2434 = vmatprep.subr.mxu0 0.0
  %2435 = vmatpush1.msra.mxu0 0.0
  %2436 = vmatprep.subr.mxu0 0.0
  %2437 = vmatpush1.msra.mxu0 0.0
  %2438 = vmatprep.mubr.f32.mxu0 0.0
  %2439 = vmatmul.mubr.f32.gmra.mrb[0].mxu0 %v2232
  %v2440 = vpop.f32.mrb[0].mxu0
  %v2441 = vadd.f32 %v464, %v2440
  %v2442 = vpop.f32.mrb[0].mxu0
  %2443 = vdwg.mxu0
  %v2444 = vadd.f32 %v2228, %v2301
  %v2445 = vxor.u32 %v2444, 2147483648
  %v2446 = vmul.f32 %v2445, 1.442695
  %v2447 = vpow.pop %v2446
  %v2448 = vadd.f32 %v2447, 1.0
  %v2449 = vrcp.pop %v2448
  %v2450 = vmul.f32 1.0, %v2449
  %v2451 = vadd.f32 %v2229, %v2371
  %v2452 = vxor.u32 %v2451, 2147483648
  %v2453 = vmul.f32 %v2452, 1.442695
  %v2454 = vpow.pop %v2453
  %v2455 = vadd.f32 %v2454, 1.0
  %v2456 = vrcp.pop %v2455
  %v2457 = vmul.f32 1.0, %v2456
  %v2458 = vmul.f32 %v2450, %v2441
  %v2459 = vadd.f32 %v2230, %v2458
  %v2460 = vtanh.pop %v2459
  %v2461 = vsub.f32 1.0, %v2457
  %v2462 = vmul.f32 %v2461, %v2460
  %v2463 = vmul.f32 %v2457, %v1988
  %v2464 = vadd.f32 %v2462, %v2463
  %2465 = vst.msk [vmem:[#allocation8 + $0x8] sm:$0x3] %vm557, %v2464
  %v2466 = vld [vmem:[#allocation5 + $0x8] sm:$0x3]
  %v2467 = vld [vmem:[#allocation6 + $0x8] sm:$0x3]
  %v2468 = vld [vmem:[#allocation7 + $0x8] sm:$0x3]
  %v2470 = vsel %vm72, %v2226, 0
  %2472 = vmatprep.subr.mxu0 0.0
  %2473 = vmatpush1.msra.mxu0 %v300
  %2474 = vmatprep.subr.mxu0 0.0
  %2475 = vmatpush1.msra.mxu0 %v301
  %2476 = vmatprep.subr.mxu0 0.0
  %2477 = vmatpush1.msra.mxu0 %v302
  %2478 = vmatprep.subr.mxu0 0.0
  %2479 = vmatpush1.msra.mxu0 %v303
  %2480 = vmatprep.subr.mxu0 0.0
  %2481 = vmatpush1.msra.mxu0 0.0
  %2482 = vmatprep.subr.mxu0 0.0
  %2483 = vmatpush1.msra.mxu0 0.0
  %2484 = vmatprep.subr.mxu0 0.0
  %2485 = vmatpush1.msra.mxu0 0.0
  %2486 = vmatprep.subr.mxu0 0.0
  %2487 = vmatpush1.msra.mxu0 0.0
  %2488 = vmatprep.subr.mxu0 0.0
  %2489 = vmatpush1.msra.mxu0 0.0
  %2490 = vmatprep.subr.mxu0 0.0
  %2491 = vmatpush1.msra.mxu0 0.0
  %2492 = vmatprep.subr.mxu0 0.0
  %2493 = vmatpush1.msra.mxu0 0.0
  %2494 = vmatprep.subr.mxu0 0.0
  %2495 = vmatpush1.msra.mxu0 0.0
  %2496 = vmatprep.subr.mxu0 0.0
  %2497 = vmatpush1.msra.mxu0 0.0
  %2498 = vmatprep.subr.mxu0 0.0
  %2499 = vmatpush1.msra.mxu0 0.0
  %2500 = vmatprep.subr.mxu0 0.0
  %2501 = vmatpush1.msra.mxu0 0.0
  %2502 = vmatprep.subr.mxu0 0.0
  %2503 = vmatpush1.msra.mxu0 0.0
  %2504 = vmatprep.subr.mxu0 0.0
  %2505 = vmatpush1.msra.mxu0 0.0
  %2506 = vmatprep.subr.mxu0 0.0
  %2507 = vmatpush1.msra.mxu0 0.0
  %2508 = vmatprep.subr.mxu0 0.0
  %2509 = vmatpush1.msra.mxu0 0.0
  %2510 = vmatprep.subr.mxu0 0.0
  %2511 = vmatpush1.msra.mxu0 0.0
  %2512 = vmatprep.subr.mxu0 0.0
  %2513 = vmatpush1.msra.mxu0 0.0
  %2514 = vmatprep.subr.mxu0 0.0
  %2515 = vmatpush1.msra.mxu0 0.0
  %2516 = vmatprep.subr.mxu0 0.0
  %2517 = vmatpush1.msra.mxu0 0.0
  %2518 = vmatprep.subr.mxu0 0.0
  %2519 = vmatpush1.msra.mxu0 0.0
  %2520 = vmatprep.subr.mxu0 0.0
  %2521 = vmatpush1.msra.mxu0 0.0
  %2522 = vmatprep.subr.mxu0 0.0
  %2523 = vmatpush1.msra.mxu0 0.0
  %2524 = vmatprep.subr.mxu0 0.0
  %2525 = vmatpush1.msra.mxu0 0.0
  %2526 = vmatprep.subr.mxu0 0.0
  %2527 = vmatpush1.msra.mxu0 0.0
  %2528 = vmatprep.subr.mxu0 0.0
  %2529 = vmatpush1.msra.mxu0 0.0
  %2530 = vmatprep.subr.mxu0 0.0
  %2531 = vmatpush1.msra.mxu0 0.0
  %2532 = vmatprep.subr.mxu0 0.0
  %2533 = vmatpush1.msra.mxu0 0.0
  %2534 = vmatprep.subr.mxu0 0.0
  %2535 = vmatpush1.msra.mxu0 0.0
  %2536 = vmatprep.mubr.f32.mxu0 0.0
  %2537 = vmatmul.mubr.f32.gmra.mrb[0].mxu0 %v2470
  %v2538 = vpop.f32.mrb[0].mxu0
  %v2539 = vadd.f32 0.0, %v2538
  %v2540 = vpop.f32.mrb[0].mxu0
  %2541 = vdwg.mxu0
  %2542 = vmatprep.subr.mxu0 0.0
  %2543 = vmatpush1.msra.mxu0 %v304
  %2544 = vmatprep.subr.mxu0 0.0
  %2545 = vmatpush1.msra.mxu0 %v305
  %2546 = vmatprep.subr.mxu0 0.0
  %2547 = vmatpush1.msra.mxu0 %v306
  %2548 = vmatprep.subr.mxu0 0.0
  %2549 = vmatpush1.msra.mxu0 %v307
  %2550 = vmatprep.subr.mxu0 0.0
  %2551 = vmatpush1.msra.mxu0 0.0
  %2552 = vmatprep.subr.mxu0 0.0
  %2553 = vmatpush1.msra.mxu0 0.0
  %2554 = vmatprep.subr.mxu0 0.0
  %2555 = vmatpush1.msra.mxu0 0.0
  %2556 = vmatprep.subr.mxu0 0.0
  %2557 = vmatpush1.msra.mxu0 0.0
  %2558 = vmatprep.subr.mxu0 0.0
  %2559 = vmatpush1.msra.mxu0 0.0
  %2560 = vmatprep.subr.mxu0 0.0
  %2561 = vmatpush1.msra.mxu0 0.0
  %2562 = vmatprep.subr.mxu0 0.0
  %2563 = vmatpush1.msra.mxu0 0.0
  %2564 = vmatprep.subr.mxu0 0.0
  %2565 = vmatpush1.msra.mxu0 0.0
  %2566 = vmatprep.subr.mxu0 0.0
  %2567 = vmatpush1.msra.mxu0 0.0
  %2568 = vmatprep.subr.mxu0 0.0
  %2569 = vmatpush1.msra.mxu0 0.0
  %2570 = vmatprep.subr.mxu0 0.0
  %2571 = vmatpush1.msra.mxu0 0.0
  %2572 = vmatprep.subr.mxu0 0.0
  %2573 = vmatpush1.msra.mxu0 0.0
  %2574 = vmatprep.subr.mxu0 0.0
  %2575 = vmatpush1.msra.mxu0 0.0
  %2576 = vmatprep.subr.mxu0 0.0
  %2577 = vmatpush1.msra.mxu0 0.0
  %2578 = vmatprep.subr.mxu0 0.0
  %2579 = vmatpush1.msra.mxu0 0.0
  %2580 = vmatprep.subr.mxu0 0.0
  %2581 = vmatpush1.msra.mxu0 0.0
  %2582 = vmatprep.subr.mxu0 0.0
  %2583 = vmatpush1.msra.mxu0 0.0
  %2584 = vmatprep.subr.mxu0 0.0
  %2585 = vmatpush1.msra.mxu0 0.0
  %2586 = vmatprep.subr.mxu0 0.0
  %2587 = vmatpush1.msra.mxu0 0.0
  %2588 = vmatprep.subr.mxu0 0.0
  %2589 = vmatpush1.msra.mxu0 0.0
  %2590 = vmatprep.subr.mxu0 0.0
  %2591 = vmatpush1.msra.mxu0 0.0
  %2592 = vmatprep.subr.mxu0 0.0
  %2593 = vmatpush1.msra.mxu0 0.0
  %2594 = vmatprep.subr.mxu0 0.0
  %2595 = vmatpush1.msra.mxu0 0.0
  %2596 = vmatprep.subr.mxu0 0.0
  %2597 = vmatpush1.msra.mxu0 0.0
  %2598 = vmatprep.subr.mxu0 0.0
  %2599 = vmatpush1.msra.mxu0 0.0
  %2600 = vmatprep.subr.mxu0 0.0
  %2601 = vmatpush1.msra.mxu0 0.0
  %2602 = vmatprep.subr.mxu0 0.0
  %2603 = vmatpush1.msra.mxu0 0.0
  %2604 = vmatprep.subr.mxu0 0.0
  %2605 = vmatpush1.msra.mxu0 0.0
  %2606 = vmatprep.mubr.f32.mxu0 0.0
  %2607 = vmatmul.mubr.f32.gmra.mrb[0].mxu0 %v2470
  %v2608 = vpop.f32.mrb[0].mxu0
  %v2609 = vadd.f32 0.0, %v2608
  %v2610 = vpop.f32.mrb[0].mxu0
  %2611 = vdwg.mxu0
  %2612 = vmatprep.subr.mxu0 0.0
  %2613 = vmatpush1.msra.mxu0 %v308
  %2614 = vmatprep.subr.mxu0 0.0
  %2615 = vmatpush1.msra.mxu0 %v309
  %2616 = vmatprep.subr.mxu0 0.0
  %2617 = vmatpush1.msra.mxu0 %v310
  %2618 = vmatprep.subr.mxu0 0.0
  %2619 = vmatpush1.msra.mxu0 %v311
  %2620 = vmatprep.subr.mxu0 0.0
  %2621 = vmatpush1.msra.mxu0 0.0
  %2622 = vmatprep.subr.mxu0 0.0
  %2623 = vmatpush1.msra.mxu0 0.0
  %2624 = vmatprep.subr.mxu0 0.0
  %2625 = vmatpush1.msra.mxu0 0.0
  %2626 = vmatprep.subr.mxu0 0.0
  %2627 = vmatpush1.msra.mxu0 0.0
  %2628 = vmatprep.subr.mxu0 0.0
  %2629 = vmatpush1.msra.mxu0 0.0
  %2630 = vmatprep.subr.mxu0 0.0
  %2631 = vmatpush1.msra.mxu0 0.0
  %2632 = vmatprep.subr.mxu0 0.0
  %2633 = vmatpush1.msra.mxu0 0.0
  %2634 = vmatprep.subr.mxu0 0.0
  %2635 = vmatpush1.msra.mxu0 0.0
  %2636 = vmatprep.subr.mxu0 0.0
  %2637 = vmatpush1.msra.mxu0 0.0
  %2638 = vmatprep.subr.mxu0 0.0
  %2639 = vmatpush1.msra.mxu0 0.0
  %2640 = vmatprep.subr.mxu0 0.0
  %2641 = vmatpush1.msra.mxu0 0.0
  %2642 = vmatprep.subr.mxu0 0.0
  %2643 = vmatpush1.msra.mxu0 0.0
  %2644 = vmatprep.subr.mxu0 0.0
  %2645 = vmatpush1.msra.mxu0 0.0
  %2646 = vmatprep.subr.mxu0 0.0
  %2647 = vmatpush1.msra.mxu0 0.0
  %2648 = vmatprep.subr.mxu0 0.0
  %2649 = vmatpush1.msra.mxu0 0.0
  %2650 = vmatprep.subr.mxu0 0.0
  %2651 = vmatpush1.msra.mxu0 0.0
  %2652 = vmatprep.subr.mxu0 0.0
  %2653 = vmatpush1.msra.mxu0 0.0
  %2654 = vmatprep.subr.mxu0 0.0
  %2655 = vmatpush1.msra.mxu0 0.0
  %2656 = vmatprep.subr.mxu0 0.0
  %2657 = vmatpush1.msra.mxu0 0.0
  %2658 = vmatprep.subr.mxu0 0.0
  %2659 = vmatpush1.msra.mxu0 0.0
  %2660 = vmatprep.subr.mxu0 0.0
  %2661 = vmatpush1.msra.mxu0 0.0
  %2662 = vmatprep.subr.mxu0 0.0
  %2663 = vmatpush1.msra.mxu0 0.0
  %2664 = vmatprep.subr.mxu0 0.0
  %2665 = vmatpush1.msra.mxu0 0.0
  %2666 = vmatprep.subr.mxu0 0.0
  %2667 = vmatpush1.msra.mxu0 0.0
  %2668 = vmatprep.subr.mxu0 0.0
  %2669 = vmatpush1.msra.mxu0 0.0
  %2670 = vmatprep.subr.mxu0 0.0
  %2671 = vmatpush1.msra.mxu0 0.0
  %2672 = vmatprep.subr.mxu0 0.0
  %2673 = vmatpush1.msra.mxu0 0.0
  %2674 = vmatprep.subr.mxu0 0.0
  %2675 = vmatpush1.msra.mxu0 0.0
  %2676 = vmatprep.mubr.f32.mxu0 0.0
  %2677 = vmatmul.mubr.f32.gmra.mrb[0].mxu0 %v2470
  %v2678 = vpop.f32.mrb[0].mxu0
  %v2679 = vadd.f32 %v706, %v2678
  %v2680 = vpop.f32.mrb[0].mxu0
  %2681 = vdwg.mxu0
  %v2682 = vadd.f32 %v2466, %v2539
  %v2683 = vxor.u32 %v2682, 2147483648
  %v2684 = vmul.f32 %v2683, 1.442695
  %v2685 = vpow.pop %v2684
  %v2686 = vadd.f32 %v2685, 1.0
  %v2687 = vrcp.pop %v2686
  %v2688 = vmul.f32 1.0, %v2687
  %v2689 = vadd.f32 %v2467, %v2609
  %v2690 = vxor.u32 %v2689, 2147483648
  %v2691 = vmul.f32 %v2690, 1.442695
  %v2692 = vpow.pop %v2691
  %v2693 = vadd.f32 %v2692, 1.0
  %v2694 = vrcp.pop %v2693
  %v2695 = vmul.f32 1.0, %v2694
  %v2696 = vmul.f32 %v2688, %v2679
  %v2697 = vadd.f32 %v2468, %v2696
  %v2698 = vtanh.pop %v2697
  %v2699 = vsub.f32 1.0, %v2695
  %v2700 = vmul.f32 %v2699, %v2698
  %v2701 = vmul.f32 %v2695, %v2226
  %v2702 = vadd.f32 %v2700, %v2701
  %2703 = vst.msk [vmem:[#allocation9 + $0x6] sm:$0x3] %vm557, %v2702
  %v2704 = vld [vmem:[#allocation2 + $0xa] sm:$0x3]
  %v2705 = vld [vmem:[#allocation3 + $0xa] sm:$0x3]
  %v2706 = vld [vmem:[#allocation4 + $0xa] sm:$0x3]
  %v2708 = vsel %vm72, %v2464, 0
  %2710 = vmatprep.subr.mxu0 0.0
  %2711 = vmatpush1.msra.mxu0 %v288
  %2712 = vmatprep.subr.mxu0 0.0
  %2713 = vmatpush1.msra.mxu0 %v289
  %2714 = vmatprep.subr.mxu0 0.0
  %2715 = vmatpush1.msra.mxu0 %v290
  %2716 = vmatprep.subr.mxu0 0.0
  %2717 = vmatpush1.msra.mxu0 %v291
  %2718 = vmatprep.subr.mxu0 0.0
  %2719 = vmatpush1.msra.mxu0 0.0
  %2720 = vmatprep.subr.mxu0 0.0
  %2721 = vmatpush1.msra.mxu0 0.0
  %2722 = vmatprep.subr.mxu0 0.0
  %2723 = vmatpush1.msra.mxu0 0.0
  %2724 = vmatprep.subr.mxu0 0.0
  %2725 = vmatpush1.msra.mxu0 0.0
  %2726 = vmatprep.subr.mxu0 0.0
  %2727 = vmatpush1.msra.mxu0 0.0
  %2728 = vmatprep.subr.mxu0 0.0
  %2729 = vmatpush1.msra.mxu0 0.0
  %2730 = vmatprep.subr.mxu0 0.0
  %2731 = vmatpush1.msra.mxu0 0.0
  %2732 = vmatprep.subr.mxu0 0.0
  %2733 = vmatpush1.msra.mxu0 0.0
  %2734 = vmatprep.subr.mxu0 0.0
  %2735 = vmatpush1.msra.mxu0 0.0
  %2736 = vmatprep.subr.mxu0 0.0
  %2737 = vmatpush1.msra.mxu0 0.0
  %2738 = vmatprep.subr.mxu0 0.0
  %2739 = vmatpush1.msra.mxu0 0.0
  %2740 = vmatprep.subr.mxu0 0.0
  %2741 = vmatpush1.msra.mxu0 0.0
  %2742 = vmatprep.subr.mxu0 0.0
  %2743 = vmatpush1.msra.mxu0 0.0
  %2744 = vmatprep.subr.mxu0 0.0
  %2745 = vmatpush1.msra.mxu0 0.0
  %2746 = vmatprep.subr.mxu0 0.0
  %2747 = vmatpush1.msra.mxu0 0.0
  %2748 = vmatprep.subr.mxu0 0.0
  %2749 = vmatpush1.msra.mxu0 0.0
  %2750 = vmatprep.subr.mxu0 0.0
  %2751 = vmatpush1.msra.mxu0 0.0
  %2752 = vmatprep.subr.mxu0 0.0
  %2753 = vmatpush1.msra.mxu0 0.0
  %2754 = vmatprep.subr.mxu0 0.0
  %2755 = vmatpush1.msra.mxu0 0.0
  %2756 = vmatprep.subr.mxu0 0.0
  %2757 = vmatpush1.msra.mxu0 0.0
  %2758 = vmatprep.subr.mxu0 0.0
  %2759 = vmatpush1.msra.mxu0 0.0
  %2760 = vmatprep.subr.mxu0 0.0
  %2761 = vmatpush1.msra.mxu0 0.0
  %2762 = vmatprep.subr.mxu0 0.0
  %2763 = vmatpush1.msra.mxu0 0.0
  %2764 = vmatprep.subr.mxu0 0.0
  %2765 = vmatpush1.msra.mxu0 0.0
  %2766 = vmatprep.subr.mxu0 0.0
  %2767 = vmatpush1.msra.mxu0 0.0
  %2768 = vmatprep.subr.mxu0 0.0
  %2769 = vmatpush1.msra.mxu0 0.0
  %2770 = vmatprep.subr.mxu0 0.0
  %2771 = vmatpush1.msra.mxu0 0.0
  %2772 = vmatprep.subr.mxu0 0.0
  %2773 = vmatpush1.msra.mxu0 0.0
  %2774 = vmatprep.mubr.f32.mxu0 0.0
  %2775 = vmatmul.mubr.f32.gmra.mrb[0].mxu0 %v2708
  %v2776 = vpop.f32.mrb[0].mxu0
  %v2777 = vadd.f32 0.0, %v2776
  %v2778 = vpop.f32.mrb[0].mxu0
  %2779 = vdwg.mxu0
  %2780 = vmatprep.subr.mxu0 0.0
  %2781 = vmatpush1.msra.mxu0 %v292
  %2782 = vmatprep.subr.mxu0 0.0
  %2783 = vmatpush1.msra.mxu0 %v293
  %2784 = vmatprep.subr.mxu0 0.0
  %2785 = vmatpush1.msra.mxu0 %v294
  %2786 = vmatprep.subr.mxu0 0.0
  %2787 = vmatpush1.msra.mxu0 %v295
  %2788 = vmatprep.subr.mxu0 0.0
  %2789 = vmatpush1.msra.mxu0 0.0
  %2790 = vmatprep.subr.mxu0 0.0
  %2791 = vmatpush1.msra.mxu0 0.0
  %2792 = vmatprep.subr.mxu0 0.0
  %2793 = vmatpush1.msra.mxu0 0.0
  %2794 = vmatprep.subr.mxu0 0.0
  %2795 = vmatpush1.msra.mxu0 0.0
  %2796 = vmatprep.subr.mxu0 0.0
  %2797 = vmatpush1.msra.mxu0 0.0
  %2798 = vmatprep.subr.mxu0 0.0
  %2799 = vmatpush1.msra.mxu0 0.0
  %2800 = vmatprep.subr.mxu0 0.0
  %2801 = vmatpush1.msra.mxu0 0.0
  %2802 = vmatprep.subr.mxu0 0.0
  %2803 = vmatpush1.msra.mxu0 0.0
  %2804 = vmatprep.subr.mxu0 0.0
  %2805 = vmatpush1.msra.mxu0 0.0
  %2806 = vmatprep.subr.mxu0 0.0
  %2807 = vmatpush1.msra.mxu0 0.0
  %2808 = vmatprep.subr.mxu0 0.0
  %2809 = vmatpush1.msra.mxu0 0.0
  %2810 = vmatprep.subr.mxu0 0.0
  %2811 = vmatpush1.msra.mxu0 0.0
  %2812 = vmatprep.subr.mxu0 0.0
  %2813 = vmatpush1.msra.mxu0 0.0
  %2814 = vmatprep.subr.mxu0 0.0
  %2815 = vmatpush1.msra.mxu0 0.0
  %2816 = vmatprep.subr.mxu0 0.0
  %2817 = vmatpush1.msra.mxu0 0.0
  %2818 = vmatprep.subr.mxu0 0.0
  %2819 = vmatpush1.msra.mxu0 0.0
  %2820 = vmatprep.subr.mxu0 0.0
  %2821 = vmatpush1.msra.mxu0 0.0
  %2822 = vmatprep.subr.mxu0 0.0
  %2823 = vmatpush1.msra.mxu0 0.0
  %2824 = vmatprep.subr.mxu0 0.0
  %2825 = vmatpush1.msra.mxu0 0.0
  %2826 = vmatprep.subr.mxu0 0.0
  %2827 = vmatpush1.msra.mxu0 0.0
  %2828 = vmatprep.subr.mxu0 0.0
  %2829 = vmatpush1.msra.mxu0 0.0
  %2830 = vmatprep.subr.mxu0 0.0
  %2831 = vmatpush1.msra.mxu0 0.0
  %2832 = vmatprep.subr.mxu0 0.0
  %2833 = vmatpush1.msra.mxu0 0.0
  %2834 = vmatprep.subr.mxu0 0.0
  %2835 = vmatpush1.msra.mxu0 0.0
  %2836 = vmatprep.subr.mxu0 0.0
  %2837 = vmatpush1.msra.mxu0 0.0
  %2838 = vmatprep.subr.mxu0 0.0
  %2839 = vmatpush1.msra.mxu0 0.0
  %2840 = vmatprep.subr.mxu0 0.0
  %2841 = vmatpush1.msra.mxu0 0.0
  %2842 = vmatprep.subr.mxu0 0.0
  %2843 = vmatpush1.msra.mxu0 0.0
  %2844 = vmatprep.mubr.f32.mxu0 0.0
  %2845 = vmatmul.mubr.f32.gmra.mrb[0].mxu0 %v2708
  %v2846 = vpop.f32.mrb[0].mxu0
  %v2847 = vadd.f32 0.0, %v2846
  %v2848 = vpop.f32.mrb[0].mxu0
  %2849 = vdwg.mxu0
  %2850 = vmatprep.subr.mxu0 0.0
  %2851 = vmatpush1.msra.mxu0 %v296
  %2852 = vmatprep.subr.mxu0 0.0
  %2853 = vmatpush1.msra.mxu0 %v297
  %2854 = vmatprep.subr.mxu0 0.0
  %2855 = vmatpush1.msra.mxu0 %v298
  %2856 = vmatprep.subr.mxu0 0.0
  %2857 = vmatpush1.msra.mxu0 %v299
  %2858 = vmatprep.subr.mxu0 0.0
  %2859 = vmatpush1.msra.mxu0 0.0
  %2860 = vmatprep.subr.mxu0 0.0
  %2861 = vmatpush1.msra.mxu0 0.0
  %2862 = vmatprep.subr.mxu0 0.0
  %2863 = vmatpush1.msra.mxu0 0.0
  %2864 = vmatprep.subr.mxu0 0.0
  %2865 = vmatpush1.msra.mxu0 0.0
  %2866 = vmatprep.subr.mxu0 0.0
  %2867 = vmatpush1.msra.mxu0 0.0
  %2868 = vmatprep.subr.mxu0 0.0
  %2869 = vmatpush1.msra.mxu0 0.0
  %2870 = vmatprep.subr.mxu0 0.0
  %2871 = vmatpush1.msra.mxu0 0.0
  %2872 = vmatprep.subr.mxu0 0.0
  %2873 = vmatpush1.msra.mxu0 0.0
  %2874 = vmatprep.subr.mxu0 0.0
  %2875 = vmatpush1.msra.mxu0 0.0
  %2876 = vmatprep.subr.mxu0 0.0
  %2877 = vmatpush1.msra.mxu0 0.0
  %2878 = vmatprep.subr.mxu0 0.0
  %2879 = vmatpush1.msra.mxu0 0.0
  %2880 = vmatprep.subr.mxu0 0.0
  %2881 = vmatpush1.msra.mxu0 0.0
  %2882 = vmatprep.subr.mxu0 0.0
  %2883 = vmatpush1.msra.mxu0 0.0
  %2884 = vmatprep.subr.mxu0 0.0
  %2885 = vmatpush1.msra.mxu0 0.0
  %2886 = vmatprep.subr.mxu0 0.0
  %2887 = vmatpush1.msra.mxu0 0.0
  %2888 = vmatprep.subr.mxu0 0.0
  %2889 = vmatpush1.msra.mxu0 0.0
  %2890 = vmatprep.subr.mxu0 0.0
  %2891 = vmatpush1.msra.mxu0 0.0
  %2892 = vmatprep.subr.mxu0 0.0
  %2893 = vmatpush1.msra.mxu0 0.0
  %2894 = vmatprep.subr.mxu0 0.0
  %2895 = vmatpush1.msra.mxu0 0.0
  %2896 = vmatprep.subr.mxu0 0.0
  %2897 = vmatpush1.msra.mxu0 0.0
  %2898 = vmatprep.subr.mxu0 0.0
  %2899 = vmatpush1.msra.mxu0 0.0
  %2900 = vmatprep.subr.mxu0 0.0
  %2901 = vmatpush1.msra.mxu0 0.0
  %2902 = vmatprep.subr.mxu0 0.0
  %2903 = vmatpush1.msra.mxu0 0.0
  %2904 = vmatprep.subr.mxu0 0.0
  %2905 = vmatpush1.msra.mxu0 0.0
  %2906 = vmatprep.subr.mxu0 0.0
  %2907 = vmatpush1.msra.mxu0 0.0
  %2908 = vmatprep.subr.mxu0 0.0
  %2909 = vmatpush1.msra.mxu0 0.0
  %2910 = vmatprep.subr.mxu0 0.0
  %2911 = vmatpush1.msra.mxu0 0.0
  %2912 = vmatprep.subr.mxu0 0.0
  %2913 = vmatpush1.msra.mxu0 0.0
  %2914 = vmatprep.mubr.f32.mxu0 0.0
  %2915 = vmatmul.mubr.f32.gmra.mrb[0].mxu0 %v2708
  %v2916 = vpop.f32.mrb[0].mxu0
  %v2917 = vadd.f32 %v464, %v2916
  %v2918 = vpop.f32.mrb[0].mxu0
  %2919 = vdwg.mxu0
  %v2920 = vadd.f32 %v2704, %v2777
  %v2921 = vxor.u32 %v2920, 2147483648
  %v2922 = vmul.f32 %v2921, 1.442695
  %v2923 = vpow.pop %v2922
  %v2924 = vadd.f32 %v2923, 1.0
  %v2925 = vrcp.pop %v2924
  %v2926 = vmul.f32 1.0, %v2925
  %v2927 = vadd.f32 %v2705, %v2847
  %v2928 = vxor.u32 %v2927, 2147483648
  %v2929 = vmul.f32 %v2928, 1.442695
  %v2930 = vpow.pop %v2929
  %v2931 = vadd.f32 %v2930, 1.0
  %v2932 = vrcp.pop %v2931
  %v2933 = vmul.f32 1.0, %v2932
  %v2934 = vmul.f32 %v2926, %v2917
  %v2935 = vadd.f32 %v2706, %v2934
  %v2936 = vtanh.pop %v2935
  %v2937 = vsub.f32 1.0, %v2933
  %v2938 = vmul.f32 %v2937, %v2936
  %v2939 = vmul.f32 %v2933, %v2464
  %v2940 = vadd.f32 %v2938, %v2939
  %2941 = vst.msk [vmem:[#allocation8 + $0xa] sm:$0x3] %vm557, %v2940
  %v2942 = vld [vmem:[#allocation5 + $0xa] sm:$0x3]
  %v2943 = vld [vmem:[#allocation6 + $0xa] sm:$0x3]
  %v2944 = vld [vmem:[#allocation7 + $0xa] sm:$0x3]
  %v2946 = vsel %vm72, %v2702, 0
  %2948 = vmatprep.subr.mxu0 0.0
  %2949 = vmatpush1.msra.mxu0 %v300
  %2950 = vmatprep.subr.mxu0 0.0
  %2951 = vmatpush1.msra.mxu0 %v301
  %2952 = vmatprep.subr.mxu0 0.0
  %2953 = vmatpush1.msra.mxu0 %v302
  %2954 = vmatprep.subr.mxu0 0.0
  %2955 = vmatpush1.msra.mxu0 %v303
  %2956 = vmatprep.subr.mxu0 0.0
  %2957 = vmatpush1.msra.mxu0 0.0
  %2958 = vmatprep.subr.mxu0 0.0
  %2959 = vmatpush1.msra.mxu0 0.0
  %2960 = vmatprep.subr.mxu0 0.0
  %2961 = vmatpush1.msra.mxu0 0.0
  %2962 = vmatprep.subr.mxu0 0.0
  %2963 = vmatpush1.msra.mxu0 0.0
  %2964 = vmatprep.subr.mxu0 0.0
  %2965 = vmatpush1.msra.mxu0 0.0
  %2966 = vmatprep.subr.mxu0 0.0
  %2967 = vmatpush1.msra.mxu0 0.0
  %2968 = vmatprep.subr.mxu0 0.0
  %2969 = vmatpush1.msra.mxu0 0.0
  %2970 = vmatprep.subr.mxu0 0.0
  %2971 = vmatpush1.msra.mxu0 0.0
  %2972 = vmatprep.subr.mxu0 0.0
  %2973 = vmatpush1.msra.mxu0 0.0
  %2974 = vmatprep.subr.mxu0 0.0
  %2975 = vmatpush1.msra.mxu0 0.0
  %2976 = vmatprep.subr.mxu0 0.0
  %2977 = vmatpush1.msra.mxu0 0.0
  %2978 = vmatprep.subr.mxu0 0.0
  %2979 = vmatpush1.msra.mxu0 0.0
  %2980 = vmatprep.subr.mxu0 0.0
  %2981 = vmatpush1.msra.mxu0 0.0
  %2982 = vmatprep.subr.mxu0 0.0
  %2983 = vmatpush1.msra.mxu0 0.0
  %2984 = vmatprep.subr.mxu0 0.0
  %2985 = vmatpush1.msra.mxu0 0.0
  %2986 = vmatprep.subr.mxu0 0.0
  %2987 = vmatpush1.msra.mxu0 0.0
  %2988 = vmatprep.subr.mxu0 0.0
  %2989 = vmatpush1.msra.mxu0 0.0
  %2990 = vmatprep.subr.mxu0 0.0
  %2991 = vmatpush1.msra.mxu0 0.0
  %2992 = vmatprep.subr.mxu0 0.0
  %2993 = vmatpush1.msra.mxu0 0.0
  %2994 = vmatprep.subr.mxu0 0.0
  %2995 = vmatpush1.msra.mxu0 0.0
  %2996 = vmatprep.subr.mxu0 0.0
  %2997 = vmatpush1.msra.mxu0 0.0
  %2998 = vmatprep.subr.mxu0 0.0
  %2999 = vmatpush1.msra.mxu0 0.0
  %3000 = vmatprep.subr.mxu0 0.0
  %3001 = vmatpush1.msra.mxu0 0.0
  %3002 = vmatprep.subr.mxu0 0.0
  %3003 = vmatpush1.msra.mxu0 0.0
  %3004 = vmatprep.subr.mxu0 0.0
  %3005 = vmatpush1.msra.mxu0 0.0
  %3006 = vmatprep.subr.mxu0 0.0
  %3007 = vmatpush1.msra.mxu0 0.0
  %3008 = vmatprep.subr.mxu0 0.0
  %3009 = vmatpush1.msra.mxu0 0.0
  %3010 = vmatprep.subr.mxu0 0.0
  %3011 = vmatpush1.msra.mxu0 0.0
  %3012 = vmatprep.mubr.f32.mxu0 0.0
  %3013 = vmatmul.mubr.f32.gmra.mrb[0].mxu0 %v2946
  %v3014 = vpop.f32.mrb[0].mxu0
  %v3015 = vadd.f32 0.0, %v3014
  %v3016 = vpop.f32.mrb[0].mxu0
  %3017 = vdwg.mxu0
  %3018 = vmatprep.subr.mxu0 0.0
  %3019 = vmatpush1.msra.mxu0 %v304
  %3020 = vmatprep.subr.mxu0 0.0
  %3021 = vmatpush1.msra.mxu0 %v305
  %3022 = vmatprep.subr.mxu0 0.0
  %3023 = vmatpush1.msra.mxu0 %v306
  %3024 = vmatprep.subr.mxu0 0.0
  %3025 = vmatpush1.msra.mxu0 %v307
  %3026 = vmatprep.subr.mxu0 0.0
  %3027 = vmatpush1.msra.mxu0 0.0
  %3028 = vmatprep.subr.mxu0 0.0
  %3029 = vmatpush1.msra.mxu0 0.0
  %3030 = vmatprep.subr.mxu0 0.0
  %3031 = vmatpush1.msra.mxu0 0.0
  %3032 = vmatprep.subr.mxu0 0.0
  %3033 = vmatpush1.msra.mxu0 0.0
  %3034 = vmatprep.subr.mxu0 0.0
  %3035 = vmatpush1.msra.mxu0 0.0
  %3036 = vmatprep.subr.mxu0 0.0
  %3037 = vmatpush1.msra.mxu0 0.0
  %3038 = vmatprep.subr.mxu0 0.0
  %3039 = vmatpush1.msra.mxu0 0.0
  %3040 = vmatprep.subr.mxu0 0.0
  %3041 = vmatpush1.msra.mxu0 0.0
  %3042 = vmatprep.subr.mxu0 0.0
  %3043 = vmatpush1.msra.mxu0 0.0
  %3044 = vmatprep.subr.mxu0 0.0
  %3045 = vmatpush1.msra.mxu0 0.0
  %3046 = vmatprep.subr.mxu0 0.0
  %3047 = vmatpush1.msra.mxu0 0.0
  %3048 = vmatprep.subr.mxu0 0.0
  %3049 = vmatpush1.msra.mxu0 0.0
  %3050 = vmatprep.subr.mxu0 0.0
  %3051 = vmatpush1.msra.mxu0 0.0
  %3052 = vmatprep.subr.mxu0 0.0
  %3053 = vmatpush1.msra.mxu0 0.0
  %3054 = vmatprep.subr.mxu0 0.0
  %3055 = vmatpush1.msra.mxu0 0.0
  %3056 = vmatprep.subr.mxu0 0.0
  %3057 = vmatpush1.msra.mxu0 0.0
  %3058 = vmatprep.subr.mxu0 0.0
  %3059 = vmatpush1.msra.mxu0 0.0
  %3060 = vmatprep.subr.mxu0 0.0
  %3061 = vmatpush1.msra.mxu0 0.0
  %3062 = vmatprep.subr.mxu0 0.0
  %3063 = vmatpush1.msra.mxu0 0.0
  %3064 = vmatprep.subr.mxu0 0.0
  %3065 = vmatpush1.msra.mxu0 0.0
  %3066 = vmatprep.subr.mxu0 0.0
  %3067 = vmatpush1.msra.mxu0 0.0
  %3068 = vmatprep.subr.mxu0 0.0
  %3069 = vmatpush1.msra.mxu0 0.0
  %3070 = vmatprep.subr.mxu0 0.0
  %3071 = vmatpush1.msra.mxu0 0.0
  %3072 = vmatprep.subr.mxu0 0.0
  %3073 = vmatpush1.msra.mxu0 0.0
  %3074 = vmatprep.subr.mxu0 0.0
  %3075 = vmatpush1.msra.mxu0 0.0
  %3076 = vmatprep.subr.mxu0 0.0
  %3077 = vmatpush1.msra.mxu0 0.0
  %3078 = vmatprep.subr.mxu0 0.0
  %3079 = vmatpush1.msra.mxu0 0.0
  %3080 = vmatprep.subr.mxu0 0.0
  %3081 = vmatpush1.msra.mxu0 0.0
  %3082 = vmatprep.mubr.f32.mxu0 0.0
  %3083 = vmatmul.mubr.f32.gmra.mrb[0].mxu0 %v2946
  %v3084 = vpop.f32.mrb[0].mxu0
  %v3085 = vadd.f32 0.0, %v3084
  %v3086 = vpop.f32.mrb[0].mxu0
  %3087 = vdwg.mxu0
  %3088 = vmatprep.subr.mxu0 0.0
  %3089 = vmatpush1.msra.mxu0 %v308
  %3090 = vmatprep.subr.mxu0 0.0
  %3091 = vmatpush1.msra.mxu0 %v309
  %3092 = vmatprep.subr.mxu0 0.0
  %3093 = vmatpush1.msra.mxu0 %v310
  %3094 = vmatprep.subr.mxu0 0.0
  %3095 = vmatpush1.msra.mxu0 %v311
  %3096 = vmatprep.subr.mxu0 0.0
  %3097 = vmatpush1.msra.mxu0 0.0
  %3098 = vmatprep.subr.mxu0 0.0
  %3099 = vmatpush1.msra.mxu0 0.0
  %3100 = vmatprep.subr.mxu0 0.0
  %3101 = vmatpush1.msra.mxu0 0.0
  %3102 = vmatprep.subr.mxu0 0.0
  %3103 = vmatpush1.msra.mxu0 0.0
  %3104 = vmatprep.subr.mxu0 0.0
  %3105 = vmatpush1.msra.mxu0 0.0
  %3106 = vmatprep.subr.mxu0 0.0
  %3107 = vmatpush1.msra.mxu0 0.0
  %3108 = vmatprep.subr.mxu0 0.0
  %3109 = vmatpush1.msra.mxu0 0.0
  %3110 = vmatprep.subr.mxu0 0.0
  %3111 = vmatpush1.msra.mxu0 0.0
  %3112 = vmatprep.subr.mxu0 0.0
  %3113 = vmatpush1.msra.mxu0 0.0
  %3114 = vmatprep.subr.mxu0 0.0
  %3115 = vmatpush1.msra.mxu0 0.0
  %3116 = vmatprep.subr.mxu0 0.0
  %3117 = vmatpush1.msra.mxu0 0.0
  %3118 = vmatprep.subr.mxu0 0.0
  %3119 = vmatpush1.msra.mxu0 0.0
  %3120 = vmatprep.subr.mxu0 0.0
  %3121 = vmatpush1.msra.mxu0 0.0
  %3122 = vmatprep.subr.mxu0 0.0
  %3123 = vmatpush1.msra.mxu0 0.0
  %3124 = vmatprep.subr.mxu0 0.0
  %3125 = vmatpush1.msra.mxu0 0.0
  %3126 = vmatprep.subr.mxu0 0.0
  %3127 = vmatpush1.msra.mxu0 0.0
  %3128 = vmatprep.subr.mxu0 0.0
  %3129 = vmatpush1.msra.mxu0 0.0
  %3130 = vmatprep.subr.mxu0 0.0
  %3131 = vmatpush1.msra.mxu0 0.0
  %3132 = vmatprep.subr.mxu0 0.0
  %3133 = vmatpush1.msra.mxu0 0.0
  %3134 = vmatprep.subr.mxu0 0.0
  %3135 = vmatpush1.msra.mxu0 0.0
  %3136 = vmatprep.subr.mxu0 0.0
  %3137 = vmatpush1.msra.mxu0 0.0
  %3138 = vmatprep.subr.mxu0 0.0
  %3139 = vmatpush1.msra.mxu0 0.0
  %3140 = vmatprep.subr.mxu0 0.0
  %3141 = vmatpush1.msra.mxu0 0.0
  %3142 = vmatprep.subr.mxu0 0.0
  %3143 = vmatpush1.msra.mxu0 0.0
  %3144 = vmatprep.subr.mxu0 0.0
  %3145 = vmatpush1.msra.mxu0 0.0
  %3146 = vmatprep.subr.mxu0 0.0
  %3147 = vmatpush1.msra.mxu0 0.0
  %3148 = vmatprep.subr.mxu0 0.0
  %3149 = vmatpush1.msra.mxu0 0.0
  %3150 = vmatprep.subr.mxu0 0.0
  %3151 = vmatpush1.msra.mxu0 0.0
  %3152 = vmatprep.mubr.f32.mxu0 0.0
  %3153 = vmatmul.mubr.f32.gmra.mrb[0].mxu0 %v2946
  %v3154 = vpop.f32.mrb[0].mxu0
  %v3155 = vadd.f32 %v706, %v3154
  %v3156 = vpop.f32.mrb[0].mxu0
  %3157 = vdwg.mxu0
  %v3158 = vadd.f32 %v2942, %v3015
  %v3159 = vxor.u32 %v3158, 2147483648
  %v3160 = vmul.f32 %v3159, 1.442695
  %v3161 = vpow.pop %v3160
  %v3162 = vadd.f32 %v3161, 1.0
  %v3163 = vrcp.pop %v3162
  %v3164 = vmul.f32 1.0, %v3163
  %v3165 = vadd.f32 %v2943, %v3085
  %v3166 = vxor.u32 %v3165, 2147483648
  %v3167 = vmul.f32 %v3166, 1.442695
  %v3168 = vpow.pop %v3167
  %v3169 = vadd.f32 %v3168, 1.0
  %v3170 = vrcp.pop %v3169
  %v3171 = vmul.f32 1.0, %v3170
  %v3172 = vmul.f32 %v3164, %v3155
  %v3173 = vadd.f32 %v2944, %v3172
  %v3174 = vtanh.pop %v3173
  %v3175 = vsub.f32 1.0, %v3171
  %v3176 = vmul.f32 %v3175, %v3174
  %v3177 = vmul.f32 %v3171, %v2702
  %v3178 = vadd.f32 %v3176, %v3177
  %3179 = vst.msk [vmem:[#allocation9 + $0x4] sm:$0x3] %vm557, %v3178
  %v3180 = vld [vmem:[#allocation2 + $0xc] sm:$0x3]
  %v3181 = vld [vmem:[#allocation3 + $0xc] sm:$0x3]
  %v3182 = vld [vmem:[#allocation4 + $0xc] sm:$0x3]
  %v3184 = vsel %vm72, %v2940, 0
  %3186 = vmatprep.subr.mxu0 0.0
  %3187 = vmatpush1.msra.mxu0 %v288
  %3188 = vmatprep.subr.mxu0 0.0
  %3189 = vmatpush1.msra.mxu0 %v289
  %3190 = vmatprep.subr.mxu0 0.0
  %3191 = vmatpush1.msra.mxu0 %v290
  %3192 = vmatprep.subr.mxu0 0.0
  %3193 = vmatpush1.msra.mxu0 %v291
  %3194 = vmatprep.subr.mxu0 0.0
  %3195 = vmatpush1.msra.mxu0 0.0
  %3196 = vmatprep.subr.mxu0 0.0
  %3197 = vmatpush1.msra.mxu0 0.0
  %3198 = vmatprep.subr.mxu0 0.0
  %3199 = vmatpush1.msra.mxu0 0.0
  %3200 = vmatprep.subr.mxu0 0.0
  %3201 = vmatpush1.msra.mxu0 0.0
  %3202 = vmatprep.subr.mxu0 0.0
  %3203 = vmatpush1.msra.mxu0 0.0
  %3204 = vmatprep.subr.mxu0 0.0
  %3205 = vmatpush1.msra.mxu0 0.0
  %3206 = vmatprep.subr.mxu0 0.0
  %3207 = vmatpush1.msra.mxu0 0.0
  %3208 = vmatprep.subr.mxu0 0.0
  %3209 = vmatpush1.msra.mxu0 0.0
  %3210 = vmatprep.subr.mxu0 0.0
  %3211 = vmatpush1.msra.mxu0 0.0
  %3212 = vmatprep.subr.mxu0 0.0
  %3213 = vmatpush1.msra.mxu0 0.0
  %3214 = vmatprep.subr.mxu0 0.0
  %3215 = vmatpush1.msra.mxu0 0.0
  %3216 = vmatprep.subr.mxu0 0.0
  %3217 = vmatpush1.msra.mxu0 0.0
  %3218 = vmatprep.subr.mxu0 0.0
  %3219 = vmatpush1.msra.mxu0 0.0
  %3220 = vmatprep.subr.mxu0 0.0
  %3221 = vmatpush1.msra.mxu0 0.0
  %3222 = vmatprep.subr.mxu0 0.0
  %3223 = vmatpush1.msra.mxu0 0.0
  %3224 = vmatprep.subr.mxu0 0.0
  %3225 = vmatpush1.msra.mxu0 0.0
  %3226 = vmatprep.subr.mxu0 0.0
  %3227 = vmatpush1.msra.mxu0 0.0
  %3228 = vmatprep.subr.mxu0 0.0
  %3229 = vmatpush1.msra.mxu0 0.0
  %3230 = vmatprep.subr.mxu0 0.0
  %3231 = vmatpush1.msra.mxu0 0.0
  %3232 = vmatprep.subr.mxu0 0.0
  %3233 = vmatpush1.msra.mxu0 0.0
  %3234 = vmatprep.subr.mxu0 0.0
  %3235 = vmatpush1.msra.mxu0 0.0
  %3236 = vmatprep.subr.mxu0 0.0
  %3237 = vmatpush1.msra.mxu0 0.0
  %3238 = vmatprep.subr.mxu0 0.0
  %3239 = vmatpush1.msra.mxu0 0.0
  %3240 = vmatprep.subr.mxu0 0.0
  %3241 = vmatpush1.msra.mxu0 0.0
  %3242 = vmatprep.subr.mxu0 0.0
  %3243 = vmatpush1.msra.mxu0 0.0
  %3244 = vmatprep.subr.mxu0 0.0
  %3245 = vmatpush1.msra.mxu0 0.0
  %3246 = vmatprep.subr.mxu0 0.0
  %3247 = vmatpush1.msra.mxu0 0.0
  %3248 = vmatprep.subr.mxu0 0.0
  %3249 = vmatpush1.msra.mxu0 0.0
  %3250 = vmatprep.mubr.f32.mxu0 0.0
  %3251 = vmatmul.mubr.f32.gmra.mrb[0].mxu0 %v3184
  %v3252 = vpop.f32.mrb[0].mxu0
  %v3253 = vadd.f32 0.0, %v3252
  %v3254 = vpop.f32.mrb[0].mxu0
  %3255 = vdwg.mxu0
  %3256 = vmatprep.subr.mxu0 0.0
  %3257 = vmatpush1.msra.mxu0 %v292
  %3258 = vmatprep.subr.mxu0 0.0
  %3259 = vmatpush1.msra.mxu0 %v293
  %3260 = vmatprep.subr.mxu0 0.0
  %3261 = vmatpush1.msra.mxu0 %v294
  %3262 = vmatprep.subr.mxu0 0.0
  %3263 = vmatpush1.msra.mxu0 %v295
  %3264 = vmatprep.subr.mxu0 0.0
  %3265 = vmatpush1.msra.mxu0 0.0
  %3266 = vmatprep.subr.mxu0 0.0
  %3267 = vmatpush1.msra.mxu0 0.0
  %3268 = vmatprep.subr.mxu0 0.0
  %3269 = vmatpush1.msra.mxu0 0.0
  %3270 = vmatprep.subr.mxu0 0.0
  %3271 = vmatpush1.msra.mxu0 0.0
  %3272 = vmatprep.subr.mxu0 0.0
  %3273 = vmatpush1.msra.mxu0 0.0
  %3274 = vmatprep.subr.mxu0 0.0
  %3275 = vmatpush1.msra.mxu0 0.0
  %3276 = vmatprep.subr.mxu0 0.0
  %3277 = vmatpush1.msra.mxu0 0.0
  %3278 = vmatprep.subr.mxu0 0.0
  %3279 = vmatpush1.msra.mxu0 0.0
  %3280 = vmatprep.subr.mxu0 0.0
  %3281 = vmatpush1.msra.mxu0 0.0
  %3282 = vmatprep.subr.mxu0 0.0
  %3283 = vmatpush1.msra.mxu0 0.0
  %3284 = vmatprep.subr.mxu0 0.0
  %3285 = vmatpush1.msra.mxu0 0.0
  %3286 = vmatprep.subr.mxu0 0.0
  %3287 = vmatpush1.msra.mxu0 0.0
  %3288 = vmatprep.subr.mxu0 0.0
  %3289 = vmatpush1.msra.mxu0 0.0
  %3290 = vmatprep.subr.mxu0 0.0
  %3291 = vmatpush1.msra.mxu0 0.0
  %3292 = vmatprep.subr.mxu0 0.0
  %3293 = vmatpush1.msra.mxu0 0.0
  %3294 = vmatprep.subr.mxu0 0.0
  %3295 = vmatpush1.msra.mxu0 0.0
  %3296 = vmatprep.subr.mxu0 0.0
  %3297 = vmatpush1.msra.mxu0 0.0
  %3298 = vmatprep.subr.mxu0 0.0
  %3299 = vmatpush1.msra.mxu0 0.0
  %3300 = vmatprep.subr.mxu0 0.0
  %3301 = vmatpush1.msra.mxu0 0.0
  %3302 = vmatprep.subr.mxu0 0.0
  %3303 = vmatpush1.msra.mxu0 0.0
  %3304 = vmatprep.subr.mxu0 0.0
  %3305 = vmatpush1.msra.mxu0 0.0
  %3306 = vmatprep.subr.mxu0 0.0
  %3307 = vmatpush1.msra.mxu0 0.0
  %3308 = vmatprep.subr.mxu0 0.0
  %3309 = vmatpush1.msra.mxu0 0.0
  %3310 = vmatprep.subr.mxu0 0.0
  %3311 = vmatpush1.msra.mxu0 0.0
  %3312 = vmatprep.subr.mxu0 0.0
  %3313 = vmatpush1.msra.mxu0 0.0
  %3314 = vmatprep.subr.mxu0 0.0
  %3315 = vmatpush1.msra.mxu0 0.0
  %3316 = vmatprep.subr.mxu0 0.0
  %3317 = vmatpush1.msra.mxu0 0.0
  %3318 = vmatprep.subr.mxu0 0.0
  %3319 = vmatpush1.msra.mxu0 0.0
  %3320 = vmatprep.mubr.f32.mxu0 0.0
  %3321 = vmatmul.mubr.f32.gmra.mrb[0].mxu0 %v3184
  %v3322 = vpop.f32.mrb[0].mxu0
  %v3323 = vadd.f32 0.0, %v3322
  %v3324 = vpop.f32.mrb[0].mxu0
  %3325 = vdwg.mxu0
  %3326 = vmatprep.subr.mxu0 0.0
  %3327 = vmatpush1.msra.mxu0 %v296
  %3328 = vmatprep.subr.mxu0 0.0
  %3329 = vmatpush1.msra.mxu0 %v297
  %3330 = vmatprep.subr.mxu0 0.0
  %3331 = vmatpush1.msra.mxu0 %v298
  %3332 = vmatprep.subr.mxu0 0.0
  %3333 = vmatpush1.msra.mxu0 %v299
  %3334 = vmatprep.subr.mxu0 0.0
  %3335 = vmatpush1.msra.mxu0 0.0
  %3336 = vmatprep.subr.mxu0 0.0
  %3337 = vmatpush1.msra.mxu0 0.0
  %3338 = vmatprep.subr.mxu0 0.0
  %3339 = vmatpush1.msra.mxu0 0.0
  %3340 = vmatprep.subr.mxu0 0.0
  %3341 = vmatpush1.msra.mxu0 0.0
  %3342 = vmatprep.subr.mxu0 0.0
  %3343 = vmatpush1.msra.mxu0 0.0
  %3344 = vmatprep.subr.mxu0 0.0
  %3345 = vmatpush1.msra.mxu0 0.0
  %3346 = vmatprep.subr.mxu0 0.0
  %3347 = vmatpush1.msra.mxu0 0.0
  %3348 = vmatprep.subr.mxu0 0.0
  %3349 = vmatpush1.msra.mxu0 0.0
  %3350 = vmatprep.subr.mxu0 0.0
  %3351 = vmatpush1.msra.mxu0 0.0
  %3352 = vmatprep.subr.mxu0 0.0
  %3353 = vmatpush1.msra.mxu0 0.0
  %3354 = vmatprep.subr.mxu0 0.0
  %3355 = vmatpush1.msra.mxu0 0.0
  %3356 = vmatprep.subr.mxu0 0.0
  %3357 = vmatpush1.msra.mxu0 0.0
  %3358 = vmatprep.subr.mxu0 0.0
  %3359 = vmatpush1.msra.mxu0 0.0
  %3360 = vmatprep.subr.mxu0 0.0
  %3361 = vmatpush1.msra.mxu0 0.0
  %3362 = vmatprep.subr.mxu0 0.0
  %3363 = vmatpush1.msra.mxu0 0.0
  %3364 = vmatprep.subr.mxu0 0.0
  %3365 = vmatpush1.msra.mxu0 0.0
  %3366 = vmatprep.subr.mxu0 0.0
  %3367 = vmatpush1.msra.mxu0 0.0
  %3368 = vmatprep.subr.mxu0 0.0
  %3369 = vmatpush1.msra.mxu0 0.0
  %3370 = vmatprep.subr.mxu0 0.0
  %3371 = vmatpush1.msra.mxu0 0.0
  %3372 = vmatprep.subr.mxu0 0.0
  %3373 = vmatpush1.msra.mxu0 0.0
  %3374 = vmatprep.subr.mxu0 0.0
  %3375 = vmatpush1.msra.mxu0 0.0
  %3376 = vmatprep.subr.mxu0 0.0
  %3377 = vmatpush1.msra.mxu0 0.0
  %3378 = vmatprep.subr.mxu0 0.0
  %3379 = vmatpush1.msra.mxu0 0.0
  %3380 = vmatprep.subr.mxu0 0.0
  %3381 = vmatpush1.msra.mxu0 0.0
  %3382 = vmatprep.subr.mxu0 0.0
  %3383 = vmatpush1.msra.mxu0 0.0
  %3384 = vmatprep.subr.mxu0 0.0
  %3385 = vmatpush1.msra.mxu0 0.0
  %3386 = vmatprep.subr.mxu0 0.0
  %3387 = vmatpush1.msra.mxu0 0.0
  %3388 = vmatprep.subr.mxu0 0.0
  %3389 = vmatpush1.msra.mxu0 0.0
  %3390 = vmatprep.mubr.f32.mxu0 0.0
  %3391 = vmatmul.mubr.f32.gmra.mrb[0].mxu0 %v3184
  %v3392 = vpop.f32.mrb[0].mxu0
  %v3393 = vadd.f32 %v464, %v3392
  %v3394 = vpop.f32.mrb[0].mxu0
  %3395 = vdwg.mxu0
  %v3396 = vadd.f32 %v3180, %v3253
  %v3397 = vxor.u32 %v3396, 2147483648
  %v3398 = vmul.f32 %v3397, 1.442695
  %v3399 = vpow.pop %v3398
  %v3400 = vadd.f32 %v3399, 1.0
  %v3401 = vrcp.pop %v3400
  %v3402 = vmul.f32 1.0, %v3401
  %v3403 = vadd.f32 %v3181, %v3323
  %v3404 = vxor.u32 %v3403, 2147483648
  %v3405 = vmul.f32 %v3404, 1.442695
  %v3406 = vpow.pop %v3405
  %v3407 = vadd.f32 %v3406, 1.0
  %v3408 = vrcp.pop %v3407
  %v3409 = vmul.f32 1.0, %v3408
  %v3410 = vmul.f32 %v3402, %v3393
  %v3411 = vadd.f32 %v3182, %v3410
  %v3412 = vtanh.pop %v3411
  %v3413 = vsub.f32 1.0, %v3409
  %v3414 = vmul.f32 %v3413, %v3412
  %v3415 = vmul.f32 %v3409, %v2940
  %v3416 = vadd.f32 %v3414, %v3415
  %3417 = vst.msk [vmem:[#allocation8 + $0xc] sm:$0x3] %vm557, %v3416
  %v3418 = vld [vmem:[#allocation5 + $0xc] sm:$0x3]
  %v3419 = vld [vmem:[#allocation6 + $0xc] sm:$0x3]
  %v3420 = vld [vmem:[#allocation7 + $0xc] sm:$0x3]
  %v3422 = vsel %vm72, %v3178, 0
  %3424 = vmatprep.subr.mxu0 0.0
  %3425 = vmatpush1.msra.mxu0 %v300
  %3426 = vmatprep.subr.mxu0 0.0
  %3427 = vmatpush1.msra.mxu0 %v301
  %3428 = vmatprep.subr.mxu0 0.0
  %3429 = vmatpush1.msra.mxu0 %v302
  %3430 = vmatprep.subr.mxu0 0.0
  %3431 = vmatpush1.msra.mxu0 %v303
  %3432 = vmatprep.subr.mxu0 0.0
  %3433 = vmatpush1.msra.mxu0 0.0
  %3434 = vmatprep.subr.mxu0 0.0
  %3435 = vmatpush1.msra.mxu0 0.0
  %3436 = vmatprep.subr.mxu0 0.0
  %3437 = vmatpush1.msra.mxu0 0.0
  %3438 = vmatprep.subr.mxu0 0.0
  %3439 = vmatpush1.msra.mxu0 0.0
  %3440 = vmatprep.subr.mxu0 0.0
  %3441 = vmatpush1.msra.mxu0 0.0
  %3442 = vmatprep.subr.mxu0 0.0
  %3443 = vmatpush1.msra.mxu0 0.0
  %3444 = vmatprep.subr.mxu0 0.0
  %3445 = vmatpush1.msra.mxu0 0.0
  %3446 = vmatprep.subr.mxu0 0.0
  %3447 = vmatpush1.msra.mxu0 0.0
  %3448 = vmatprep.subr.mxu0 0.0
  %3449 = vmatpush1.msra.mxu0 0.0
  %3450 = vmatprep.subr.mxu0 0.0
  %3451 = vmatpush1.msra.mxu0 0.0
  %3452 = vmatprep.subr.mxu0 0.0
  %3453 = vmatpush1.msra.mxu0 0.0
  %3454 = vmatprep.subr.mxu0 0.0
  %3455 = vmatpush1.msra.mxu0 0.0
  %3456 = vmatprep.subr.mxu0 0.0
  %3457 = vmatpush1.msra.mxu0 0.0
  %3458 = vmatprep.subr.mxu0 0.0
  %3459 = vmatpush1.msra.mxu0 0.0
  %3460 = vmatprep.subr.mxu0 0.0
  %3461 = vmatpush1.msra.mxu0 0.0
  %3462 = vmatprep.subr.mxu0 0.0
  %3463 = vmatpush1.msra.mxu0 0.0
  %3464 = vmatprep.subr.mxu0 0.0
  %3465 = vmatpush1.msra.mxu0 0.0
  %3466 = vmatprep.subr.mxu0 0.0
  %3467 = vmatpush1.msra.mxu0 0.0
  %3468 = vmatprep.subr.mxu0 0.0
  %3469 = vmatpush1.msra.mxu0 0.0
  %3470 = vmatprep.subr.mxu0 0.0
  %3471 = vmatpush1.msra.mxu0 0.0
  %3472 = vmatprep.subr.mxu0 0.0
  %3473 = vmatpush1.msra.mxu0 0.0
  %3474 = vmatprep.subr.mxu0 0.0
  %3475 = vmatpush1.msra.mxu0 0.0
  %3476 = vmatprep.subr.mxu0 0.0
  %3477 = vmatpush1.msra.mxu0 0.0
  %3478 = vmatprep.subr.mxu0 0.0
  %3479 = vmatpush1.msra.mxu0 0.0
  %3480 = vmatprep.subr.mxu0 0.0
  %3481 = vmatpush1.msra.mxu0 0.0
  %3482 = vmatprep.subr.mxu0 0.0
  %3483 = vmatpush1.msra.mxu0 0.0
  %3484 = vmatprep.subr.mxu0 0.0
  %3485 = vmatpush1.msra.mxu0 0.0
  %3486 = vmatprep.subr.mxu0 0.0
  %3487 = vmatpush1.msra.mxu0 0.0
  %3488 = vmatprep.mubr.f32.mxu0 0.0
  %3489 = vmatmul.mubr.f32.gmra.mrb[0].mxu0 %v3422
  %v3490 = vpop.f32.mrb[0].mxu0
  %v3491 = vadd.f32 0.0, %v3490
  %v3492 = vpop.f32.mrb[0].mxu0
  %3493 = vdwg.mxu0
  %3494 = vmatprep.subr.mxu0 0.0
  %3495 = vmatpush1.msra.mxu0 %v304
  %3496 = vmatprep.subr.mxu0 0.0
  %3497 = vmatpush1.msra.mxu0 %v305
  %3498 = vmatprep.subr.mxu0 0.0
  %3499 = vmatpush1.msra.mxu0 %v306
  %3500 = vmatprep.subr.mxu0 0.0
  %3501 = vmatpush1.msra.mxu0 %v307
  %3502 = vmatprep.subr.mxu0 0.0
  %3503 = vmatpush1.msra.mxu0 0.0
  %3504 = vmatprep.subr.mxu0 0.0
  %3505 = vmatpush1.msra.mxu0 0.0
  %3506 = vmatprep.subr.mxu0 0.0
  %3507 = vmatpush1.msra.mxu0 0.0
  %3508 = vmatprep.subr.mxu0 0.0
  %3509 = vmatpush1.msra.mxu0 0.0
  %3510 = vmatprep.subr.mxu0 0.0
  %3511 = vmatpush1.msra.mxu0 0.0
  %3512 = vmatprep.subr.mxu0 0.0
  %3513 = vmatpush1.msra.mxu0 0.0
  %3514 = vmatprep.subr.mxu0 0.0
  %3515 = vmatpush1.msra.mxu0 0.0
  %3516 = vmatprep.subr.mxu0 0.0
  %3517 = vmatpush1.msra.mxu0 0.0
  %3518 = vmatprep.subr.mxu0 0.0
  %3519 = vmatpush1.msra.mxu0 0.0
  %3520 = vmatprep.subr.mxu0 0.0
  %3521 = vmatpush1.msra.mxu0 0.0
  %3522 = vmatprep.subr.mxu0 0.0
  %3523 = vmatpush1.msra.mxu0 0.0
  %3524 = vmatprep.subr.mxu0 0.0
  %3525 = vmatpush1.msra.mxu0 0.0
  %3526 = vmatprep.subr.mxu0 0.0
  %3527 = vmatpush1.msra.mxu0 0.0
  %3528 = vmatprep.subr.mxu0 0.0
  %3529 = vmatpush1.msra.mxu0 0.0
  %3530 = vmatprep.subr.mxu0 0.0
  %3531 = vmatpush1.msra.mxu0 0.0
  %3532 = vmatprep.subr.mxu0 0.0
  %3533 = vmatpush1.msra.mxu0 0.0
  %3534 = vmatprep.subr.mxu0 0.0
  %3535 = vmatpush1.msra.mxu0 0.0
  %3536 = vmatprep.subr.mxu0 0.0
  %3537 = vmatpush1.msra.mxu0 0.0
  %3538 = vmatprep.subr.mxu0 0.0
  %3539 = vmatpush1.msra.mxu0 0.0
  %3540 = vmatprep.subr.mxu0 0.0
  %3541 = vmatpush1.msra.mxu0 0.0
  %3542 = vmatprep.subr.mxu0 0.0
  %3543 = vmatpush1.msra.mxu0 0.0
  %3544 = vmatprep.subr.mxu0 0.0
  %3545 = vmatpush1.msra.mxu0 0.0
  %3546 = vmatprep.subr.mxu0 0.0
  %3547 = vmatpush1.msra.mxu0 0.0
  %3548 = vmatprep.subr.mxu0 0.0
  %3549 = vmatpush1.msra.mxu0 0.0
  %3550 = vmatprep.subr.mxu0 0.0
  %3551 = vmatpush1.msra.mxu0 0.0
  %3552 = vmatprep.subr.mxu0 0.0
  %3553 = vmatpush1.msra.mxu0 0.0
  %3554 = vmatprep.subr.mxu0 0.0
  %3555 = vmatpush1.msra.mxu0 0.0
  %3556 = vmatprep.subr.mxu0 0.0
  %3557 = vmatpush1.msra.mxu0 0.0
  %3558 = vmatprep.mubr.f32.mxu0 0.0
  %3559 = vmatmul.mubr.f32.gmra.mrb[0].mxu0 %v3422
  %v3560 = vpop.f32.mrb[0].mxu0
  %v3561 = vadd.f32 0.0, %v3560
  %v3562 = vpop.f32.mrb[0].mxu0
  %3563 = vdwg.mxu0
  %3564 = vmatprep.subr.mxu0 0.0
  %3565 = vmatpush1.msra.mxu0 %v308
  %3566 = vmatprep.subr.mxu0 0.0
  %3567 = vmatpush1.msra.mxu0 %v309
  %3568 = vmatprep.subr.mxu0 0.0
  %3569 = vmatpush1.msra.mxu0 %v310
  %3570 = vmatprep.subr.mxu0 0.0
  %3571 = vmatpush1.msra.mxu0 %v311
  %3572 = vmatprep.subr.mxu0 0.0
  %3573 = vmatpush1.msra.mxu0 0.0
  %3574 = vmatprep.subr.mxu0 0.0
  %3575 = vmatpush1.msra.mxu0 0.0
  %3576 = vmatprep.subr.mxu0 0.0
  %3577 = vmatpush1.msra.mxu0 0.0
  %3578 = vmatprep.subr.mxu0 0.0
  %3579 = vmatpush1.msra.mxu0 0.0
  %3580 = vmatprep.subr.mxu0 0.0
  %3581 = vmatpush1.msra.mxu0 0.0
  %3582 = vmatprep.subr.mxu0 0.0
  %3583 = vmatpush1.msra.mxu0 0.0
  %3584 = vmatprep.subr.mxu0 0.0
  %3585 = vmatpush1.msra.mxu0 0.0
  %3586 = vmatprep.subr.mxu0 0.0
  %3587 = vmatpush1.msra.mxu0 0.0
  %3588 = vmatprep.subr.mxu0 0.0
  %3589 = vmatpush1.msra.mxu0 0.0
  %3590 = vmatprep.subr.mxu0 0.0
  %3591 = vmatpush1.msra.mxu0 0.0
  %3592 = vmatprep.subr.mxu0 0.0
  %3593 = vmatpush1.msra.mxu0 0.0
  %3594 = vmatprep.subr.mxu0 0.0
  %3595 = vmatpush1.msra.mxu0 0.0
  %3596 = vmatprep.subr.mxu0 0.0
  %3597 = vmatpush1.msra.mxu0 0.0
  %3598 = vmatprep.subr.mxu0 0.0
  %3599 = vmatpush1.msra.mxu0 0.0
  %3600 = vmatprep.subr.mxu0 0.0
  %3601 = vmatpush1.msra.mxu0 0.0
  %3602 = vmatprep.subr.mxu0 0.0
  %3603 = vmatpush1.msra.mxu0 0.0
  %3604 = vmatprep.subr.mxu0 0.0
  %3605 = vmatpush1.msra.mxu0 0.0
  %3606 = vmatprep.subr.mxu0 0.0
  %3607 = vmatpush1.msra.mxu0 0.0
  %3608 = vmatprep.subr.mxu0 0.0
  %3609 = vmatpush1.msra.mxu0 0.0
  %3610 = vmatprep.subr.mxu0 0.0
  %3611 = vmatpush1.msra.mxu0 0.0
  %3612 = vmatprep.subr.mxu0 0.0
  %3613 = vmatpush1.msra.mxu0 0.0
  %3614 = vmatprep.subr.mxu0 0.0
  %3615 = vmatpush1.msra.mxu0 0.0
  %3616 = vmatprep.subr.mxu0 0.0
  %3617 = vmatpush1.msra.mxu0 0.0
  %3618 = vmatprep.subr.mxu0 0.0
  %3619 = vmatpush1.msra.mxu0 0.0
  %3620 = vmatprep.subr.mxu0 0.0
  %3621 = vmatpush1.msra.mxu0 0.0
  %3622 = vmatprep.subr.mxu0 0.0
  %3623 = vmatpush1.msra.mxu0 0.0
  %3624 = vmatprep.subr.mxu0 0.0
  %3625 = vmatpush1.msra.mxu0 0.0
  %3626 = vmatprep.subr.mxu0 0.0
  %3627 = vmatpush1.msra.mxu0 0.0
  %3628 = vmatprep.mubr.f32.mxu0 0.0
  %3629 = vmatmul.mubr.f32.gmra.mrb[0].mxu0 %v3422
  %v3630 = vpop.f32.mrb[0].mxu0
  %v3631 = vadd.f32 %v706, %v3630
  %v3632 = vpop.f32.mrb[0].mxu0
  %3633 = vdwg.mxu0
  %v3634 = vadd.f32 %v3418, %v3491
  %v3635 = vxor.u32 %v3634, 2147483648
  %v3636 = vmul.f32 %v3635, 1.442695
  %v3637 = vpow.pop %v3636
  %v3638 = vadd.f32 %v3637, 1.0
  %v3639 = vrcp.pop %v3638
  %v3640 = vmul.f32 1.0, %v3639
  %v3641 = vadd.f32 %v3419, %v3561
  %v3642 = vxor.u32 %v3641, 2147483648
  %v3643 = vmul.f32 %v3642, 1.442695
  %v3644 = vpow.pop %v3643
  %v3645 = vadd.f32 %v3644, 1.0
  %v3646 = vrcp.pop %v3645
  %v3647 = vmul.f32 1.0, %v3646
  %v3648 = vmul.f32 %v3640, %v3631
  %v3649 = vadd.f32 %v3420, %v3648
  %v3650 = vtanh.pop %v3649
  %v3651 = vsub.f32 1.0, %v3647
  %v3652 = vmul.f32 %v3651, %v3650
  %v3653 = vmul.f32 %v3647, %v3178
  %v3654 = vadd.f32 %v3652, %v3653
  %3655 = vst.msk [vmem:[#allocation9 + $0x2] sm:$0x3] %vm557, %v3654
  %v3656 = vld [vmem:[#allocation2 + $0xe] sm:$0x3]
  %v3657 = vld [vmem:[#allocation3 + $0xe] sm:$0x3]
  %v3658 = vld [vmem:[#allocation4 + $0xe] sm:$0x3]
  %v3660 = vsel %vm72, %v3416, 0
  %3662 = vmatprep.subr.mxu0 0.0
  %3663 = vmatpush1.msra.mxu0 %v288
  %3664 = vmatprep.subr.mxu0 0.0
  %3665 = vmatpush1.msra.mxu0 %v289
  %3666 = vmatprep.subr.mxu0 0.0
  %3667 = vmatpush1.msra.mxu0 %v290
  %3668 = vmatprep.subr.mxu0 0.0
  %3669 = vmatpush1.msra.mxu0 %v291
  %3670 = vmatprep.subr.mxu0 0.0
  %3671 = vmatpush1.msra.mxu0 0.0
  %3672 = vmatprep.subr.mxu0 0.0
  %3673 = vmatpush1.msra.mxu0 0.0
  %3674 = vmatprep.subr.mxu0 0.0
  %3675 = vmatpush1.msra.mxu0 0.0
  %3676 = vmatprep.subr.mxu0 0.0
  %3677 = vmatpush1.msra.mxu0 0.0
  %3678 = vmatprep.subr.mxu0 0.0
  %3679 = vmatpush1.msra.mxu0 0.0
  %3680 = vmatprep.subr.mxu0 0.0
  %3681 = vmatpush1.msra.mxu0 0.0
  %3682 = vmatprep.subr.mxu0 0.0
  %3683 = vmatpush1.msra.mxu0 0.0
  %3684 = vmatprep.subr.mxu0 0.0
  %3685 = vmatpush1.msra.mxu0 0.0
  %3686 = vmatprep.subr.mxu0 0.0
  %3687 = vmatpush1.msra.mxu0 0.0
  %3688 = vmatprep.subr.mxu0 0.0
  %3689 = vmatpush1.msra.mxu0 0.0
  %3690 = vmatprep.subr.mxu0 0.0
  %3691 = vmatpush1.msra.mxu0 0.0
  %3692 = vmatprep.subr.mxu0 0.0
  %3693 = vmatpush1.msra.mxu0 0.0
  %3694 = vmatprep.subr.mxu0 0.0
  %3695 = vmatpush1.msra.mxu0 0.0
  %3696 = vmatprep.subr.mxu0 0.0
  %3697 = vmatpush1.msra.mxu0 0.0
  %3698 = vmatprep.subr.mxu0 0.0
  %3699 = vmatpush1.msra.mxu0 0.0
  %3700 = vmatprep.subr.mxu0 0.0
  %3701 = vmatpush1.msra.mxu0 0.0
  %3702 = vmatprep.subr.mxu0 0.0
  %3703 = vmatpush1.msra.mxu0 0.0
  %3704 = vmatprep.subr.mxu0 0.0
  %3705 = vmatpush1.msra.mxu0 0.0
  %3706 = vmatprep.subr.mxu0 0.0
  %3707 = vmatpush1.msra.mxu0 0.0
  %3708 = vmatprep.subr.mxu0 0.0
  %3709 = vmatpush1.msra.mxu0 0.0
  %3710 = vmatprep.subr.mxu0 0.0
  %3711 = vmatpush1.msra.mxu0 0.0
  %3712 = vmatprep.subr.mxu0 0.0
  %3713 = vmatpush1.msra.mxu0 0.0
  %3714 = vmatprep.subr.mxu0 0.0
  %3715 = vmatpush1.msra.mxu0 0.0
  %3716 = vmatprep.subr.mxu0 0.0
  %3717 = vmatpush1.msra.mxu0 0.0
  %3718 = vmatprep.subr.mxu0 0.0
  %3719 = vmatpush1.msra.mxu0 0.0
  %3720 = vmatprep.subr.mxu0 0.0
  %3721 = vmatpush1.msra.mxu0 0.0
  %3722 = vmatprep.subr.mxu0 0.0
  %3723 = vmatpush1.msra.mxu0 0.0
  %3724 = vmatprep.subr.mxu0 0.0
  %3725 = vmatpush1.msra.mxu0 0.0
  %3726 = vmatprep.mubr.f32.mxu0 0.0
  %3727 = vmatmul.mubr.f32.gmra.mrb[0].mxu0 %v3660
  %v3728 = vpop.f32.mrb[0].mxu0
  %v3729 = vadd.f32 0.0, %v3728
  %v3730 = vpop.f32.mrb[0].mxu0
  %3731 = vdwg.mxu0
  %3732 = vmatprep.subr.mxu0 0.0
  %3733 = vmatpush1.msra.mxu0 %v292
  %3734 = vmatprep.subr.mxu0 0.0
  %3735 = vmatpush1.msra.mxu0 %v293
  %3736 = vmatprep.subr.mxu0 0.0
  %3737 = vmatpush1.msra.mxu0 %v294
  %3738 = vmatprep.subr.mxu0 0.0
  %3739 = vmatpush1.msra.mxu0 %v295
  %3740 = vmatprep.subr.mxu0 0.0
  %3741 = vmatpush1.msra.mxu0 0.0
  %3742 = vmatprep.subr.mxu0 0.0
  %3743 = vmatpush1.msra.mxu0 0.0
  %3744 = vmatprep.subr.mxu0 0.0
  %3745 = vmatpush1.msra.mxu0 0.0
  %3746 = vmatprep.subr.mxu0 0.0
  %3747 = vmatpush1.msra.mxu0 0.0
  %3748 = vmatprep.subr.mxu0 0.0
  %3749 = vmatpush1.msra.mxu0 0.0
  %3750 = vmatprep.subr.mxu0 0.0
  %3751 = vmatpush1.msra.mxu0 0.0
  %3752 = vmatprep.subr.mxu0 0.0
  %3753 = vmatpush1.msra.mxu0 0.0
  %3754 = vmatprep.subr.mxu0 0.0
  %3755 = vmatpush1.msra.mxu0 0.0
  %3756 = vmatprep.subr.mxu0 0.0
  %3757 = vmatpush1.msra.mxu0 0.0
  %3758 = vmatprep.subr.mxu0 0.0
  %3759 = vmatpush1.msra.mxu0 0.0
  %3760 = vmatprep.subr.mxu0 0.0
  %3761 = vmatpush1.msra.mxu0 0.0
  %3762 = vmatprep.subr.mxu0 0.0
  %3763 = vmatpush1.msra.mxu0 0.0
  %3764 = vmatprep.subr.mxu0 0.0
  %3765 = vmatpush1.msra.mxu0 0.0
  %3766 = vmatprep.subr.mxu0 0.0
  %3767 = vmatpush1.msra.mxu0 0.0
  %3768 = vmatprep.subr.mxu0 0.0
  %3769 = vmatpush1.msra.mxu0 0.0
  %3770 = vmatprep.subr.mxu0 0.0
  %3771 = vmatpush1.msra.mxu0 0.0
  %3772 = vmatprep.subr.mxu0 0.0
  %3773 = vmatpush1.msra.mxu0 0.0
  %3774 = vmatprep.subr.mxu0 0.0
  %3775 = vmatpush1.msra.mxu0 0.0
  %3776 = vmatprep.subr.mxu0 0.0
  %3777 = vmatpush1.msra.mxu0 0.0
  %3778 = vmatprep.subr.mxu0 0.0
  %3779 = vmatpush1.msra.mxu0 0.0
  %3780 = vmatprep.subr.mxu0 0.0
  %3781 = vmatpush1.msra.mxu0 0.0
  %3782 = vmatprep.subr.mxu0 0.0
  %3783 = vmatpush1.msra.mxu0 0.0
  %3784 = vmatprep.subr.mxu0 0.0
  %3785 = vmatpush1.msra.mxu0 0.0
  %3786 = vmatprep.subr.mxu0 0.0
  %3787 = vmatpush1.msra.mxu0 0.0
  %3788 = vmatprep.subr.mxu0 0.0
  %3789 = vmatpush1.msra.mxu0 0.0
  %3790 = vmatprep.subr.mxu0 0.0
  %3791 = vmatpush1.msra.mxu0 0.0
  %3792 = vmatprep.subr.mxu0 0.0
  %3793 = vmatpush1.msra.mxu0 0.0
  %3794 = vmatprep.subr.mxu0 0.0
  %3795 = vmatpush1.msra.mxu0 0.0
  %3796 = vmatprep.mubr.f32.mxu0 0.0
  %3797 = vmatmul.mubr.f32.gmra.mrb[0].mxu0 %v3660
  %v3798 = vpop.f32.mrb[0].mxu0
  %v3799 = vadd.f32 0.0, %v3798
  %v3800 = vpop.f32.mrb[0].mxu0
  %3801 = vdwg.mxu0
  %3802 = vmatprep.subr.mxu0 0.0
  %3803 = vmatpush1.msra.mxu0 %v296
  %3804 = vmatprep.subr.mxu0 0.0
  %3805 = vmatpush1.msra.mxu0 %v297
  %3806 = vmatprep.subr.mxu0 0.0
  %3807 = vmatpush1.msra.mxu0 %v298
  %3808 = vmatprep.subr.mxu0 0.0
  %3809 = vmatpush1.msra.mxu0 %v299
  %3810 = vmatprep.subr.mxu0 0.0
  %3811 = vmatpush1.msra.mxu0 0.0
  %3812 = vmatprep.subr.mxu0 0.0
  %3813 = vmatpush1.msra.mxu0 0.0
  %3814 = vmatprep.subr.mxu0 0.0
  %3815 = vmatpush1.msra.mxu0 0.0
  %3816 = vmatprep.subr.mxu0 0.0
  %3817 = vmatpush1.msra.mxu0 0.0
  %3818 = vmatprep.subr.mxu0 0.0
  %3819 = vmatpush1.msra.mxu0 0.0
  %3820 = vmatprep.subr.mxu0 0.0
  %3821 = vmatpush1.msra.mxu0 0.0
  %3822 = vmatprep.subr.mxu0 0.0
  %3823 = vmatpush1.msra.mxu0 0.0
  %3824 = vmatprep.subr.mxu0 0.0
  %3825 = vmatpush1.msra.mxu0 0.0
  %3826 = vmatprep.subr.mxu0 0.0
  %3827 = vmatpush1.msra.mxu0 0.0
  %3828 = vmatprep.subr.mxu0 0.0
  %3829 = vmatpush1.msra.mxu0 0.0
  %3830 = vmatprep.subr.mxu0 0.0
  %3831 = vmatpush1.msra.mxu0 0.0
  %3832 = vmatprep.subr.mxu0 0.0
  %3833 = vmatpush1.msra.mxu0 0.0
  %3834 = vmatprep.subr.mxu0 0.0
  %3835 = vmatpush1.msra.mxu0 0.0
  %3836 = vmatprep.subr.mxu0 0.0
  %3837 = vmatpush1.msra.mxu0 0.0
  %3838 = vmatprep.subr.mxu0 0.0
  %3839 = vmatpush1.msra.mxu0 0.0
  %3840 = vmatprep.subr.mxu0 0.0
  %3841 = vmatpush1.msra.mxu0 0.0
  %3842 = vmatprep.subr.mxu0 0.0
  %3843 = vmatpush1.msra.mxu0 0.0
  %3844 = vmatprep.subr.mxu0 0.0
  %3845 = vmatpush1.msra.mxu0 0.0
  %3846 = vmatprep.subr.mxu0 0.0
  %3847 = vmatpush1.msra.mxu0 0.0
  %3848 = vmatprep.subr.mxu0 0.0
  %3849 = vmatpush1.msra.mxu0 0.0
  %3850 = vmatprep.subr.mxu0 0.0
  %3851 = vmatpush1.msra.mxu0 0.0
  %3852 = vmatprep.subr.mxu0 0.0
  %3853 = vmatpush1.msra.mxu0 0.0
  %3854 = vmatprep.subr.mxu0 0.0
  %3855 = vmatpush1.msra.mxu0 0.0
  %3856 = vmatprep.subr.mxu0 0.0
  %3857 = vmatpush1.msra.mxu0 0.0
  %3858 = vmatprep.subr.mxu0 0.0
  %3859 = vmatpush1.msra.mxu0 0.0
  %3860 = vmatprep.subr.mxu0 0.0
  %3861 = vmatpush1.msra.mxu0 0.0
  %3862 = vmatprep.subr.mxu0 0.0
  %3863 = vmatpush1.msra.mxu0 0.0
  %3864 = vmatprep.subr.mxu0 0.0
  %3865 = vmatpush1.msra.mxu0 0.0
  %3866 = vmatprep.mubr.f32.mxu0 0.0
  %3867 = vmatmul.mubr.f32.gmra.mrb[0].mxu0 %v3660
  %v3868 = vpop.f32.mrb[0].mxu0
  %v3869 = vadd.f32 %v464, %v3868
  %v3870 = vpop.f32.mrb[0].mxu0
  %3871 = vdwg.mxu0
  %v3872 = vadd.f32 %v3656, %v3729
  %v3873 = vxor.u32 %v3872, 2147483648
  %v3874 = vmul.f32 %v3873, 1.442695
  %v3875 = vpow.pop %v3874
  %v3876 = vadd.f32 %v3875, 1.0
  %v3877 = vrcp.pop %v3876
  %v3878 = vmul.f32 1.0, %v3877
  %v3879 = vadd.f32 %v3657, %v3799
  %v3880 = vxor.u32 %v3879, 2147483648
  %v3881 = vmul.f32 %v3880, 1.442695
  %v3882 = vpow.pop %v3881
  %v3883 = vadd.f32 %v3882, 1.0
  %v3884 = vrcp.pop %v3883
  %v3885 = vmul.f32 1.0, %v3884
  %v3886 = vmul.f32 %v3878, %v3869
  %v3887 = vadd.f32 %v3658, %v3886
  %v3888 = vtanh.pop %v3887
  %v3889 = vsub.f32 1.0, %v3885
  %v3890 = vmul.f32 %v3889, %v3888
  %v3891 = vmul.f32 %v3885, %v3416
  %v3892 = vadd.f32 %v3890, %v3891
  %3893 = vst.msk [vmem:[#allocation8 + $0xe] sm:$0x3] %vm557, %v3892
  %v3894 = vld [vmem:[#allocation5 + $0xe] sm:$0x3]
  %v3895 = vld [vmem:[#allocation6 + $0xe] sm:$0x3]
  %v3896 = vld [vmem:[#allocation7 + $0xe] sm:$0x3]
  %v3898 = vsel %vm72, %v3654, 0
  %3900 = vmatprep.subr.mxu0 0.0
  %3901 = vmatpush1.msra.mxu0 %v300
  %3902 = vmatprep.subr.mxu0 0.0
  %3903 = vmatpush1.msra.mxu0 %v301
  %3904 = vmatprep.subr.mxu0 0.0
  %3905 = vmatpush1.msra.mxu0 %v302
  %3906 = vmatprep.subr.mxu0 0.0
  %3907 = vmatpush1.msra.mxu0 %v303
  %3908 = vmatprep.subr.mxu0 0.0
  %3909 = vmatpush1.msra.mxu0 0.0
  %3910 = vmatprep.subr.mxu0 0.0
  %3911 = vmatpush1.msra.mxu0 0.0
  %3912 = vmatprep.subr.mxu0 0.0
  %3913 = vmatpush1.msra.mxu0 0.0
  %3914 = vmatprep.subr.mxu0 0.0
  %3915 = vmatpush1.msra.mxu0 0.0
  %3916 = vmatprep.subr.mxu0 0.0
  %3917 = vmatpush1.msra.mxu0 0.0
  %3918 = vmatprep.subr.mxu0 0.0
  %3919 = vmatpush1.msra.mxu0 0.0
  %3920 = vmatprep.subr.mxu0 0.0
  %3921 = vmatpush1.msra.mxu0 0.0
  %3922 = vmatprep.subr.mxu0 0.0
  %3923 = vmatpush1.msra.mxu0 0.0
  %3924 = vmatprep.subr.mxu0 0.0
  %3925 = vmatpush1.msra.mxu0 0.0
  %3926 = vmatprep.subr.mxu0 0.0
  %3927 = vmatpush1.msra.mxu0 0.0
  %3928 = vmatprep.subr.mxu0 0.0
  %3929 = vmatpush1.msra.mxu0 0.0
  %3930 = vmatprep.subr.mxu0 0.0
  %3931 = vmatpush1.msra.mxu0 0.0
  %3932 = vmatprep.subr.mxu0 0.0
  %3933 = vmatpush1.msra.mxu0 0.0
  %3934 = vmatprep.subr.mxu0 0.0
  %3935 = vmatpush1.msra.mxu0 0.0
  %3936 = vmatprep.subr.mxu0 0.0
  %3937 = vmatpush1.msra.mxu0 0.0
  %3938 = vmatprep.subr.mxu0 0.0
  %3939 = vmatpush1.msra.mxu0 0.0
  %3940 = vmatprep.subr.mxu0 0.0
  %3941 = vmatpush1.msra.mxu0 0.0
  %3942 = vmatprep.subr.mxu0 0.0
  %3943 = vmatpush1.msra.mxu0 0.0
  %3944 = vmatprep.subr.mxu0 0.0
  %3945 = vmatpush1.msra.mxu0 0.0
  %3946 = vmatprep.subr.mxu0 0.0
  %3947 = vmatpush1.msra.mxu0 0.0
  %3948 = vmatprep.subr.mxu0 0.0
  %3949 = vmatpush1.msra.mxu0 0.0
  %3950 = vmatprep.subr.mxu0 0.0
  %3951 = vmatpush1.msra.mxu0 0.0
  %3952 = vmatprep.subr.mxu0 0.0
  %3953 = vmatpush1.msra.mxu0 0.0
  %3954 = vmatprep.subr.mxu0 0.0
  %3955 = vmatpush1.msra.mxu0 0.0
  %3956 = vmatprep.subr.mxu0 0.0
  %3957 = vmatpush1.msra.mxu0 0.0
  %3958 = vmatprep.subr.mxu0 0.0
  %3959 = vmatpush1.msra.mxu0 0.0
  %3960 = vmatprep.subr.mxu0 0.0
  %3961 = vmatpush1.msra.mxu0 0.0
  %3962 = vmatprep.subr.mxu0 0.0
  %3963 = vmatpush1.msra.mxu0 0.0
  %3964 = vmatprep.mubr.f32.mxu0 0.0
  %3965 = vmatmul.mubr.f32.gmra.mrb[0].mxu0 %v3898
  %v3966 = vpop.f32.mrb[0].mxu0
  %v3967 = vadd.f32 0.0, %v3966
  %v3968 = vpop.f32.mrb[0].mxu0
  %3969 = vdwg.mxu0
  %3970 = vmatprep.subr.mxu0 0.0
  %3971 = vmatpush1.msra.mxu0 %v304
  %3972 = vmatprep.subr.mxu0 0.0
  %3973 = vmatpush1.msra.mxu0 %v305
  %3974 = vmatprep.subr.mxu0 0.0
  %3975 = vmatpush1.msra.mxu0 %v306
  %3976 = vmatprep.subr.mxu0 0.0
  %3977 = vmatpush1.msra.mxu0 %v307
  %3978 = vmatprep.subr.mxu0 0.0
  %3979 = vmatpush1.msra.mxu0 0.0
  %3980 = vmatprep.subr.mxu0 0.0
  %3981 = vmatpush1.msra.mxu0 0.0
  %3982 = vmatprep.subr.mxu0 0.0
  %3983 = vmatpush1.msra.mxu0 0.0
  %3984 = vmatprep.subr.mxu0 0.0
  %3985 = vmatpush1.msra.mxu0 0.0
  %3986 = vmatprep.subr.mxu0 0.0
  %3987 = vmatpush1.msra.mxu0 0.0
  %3988 = vmatprep.subr.mxu0 0.0
  %3989 = vmatpush1.msra.mxu0 0.0
  %3990 = vmatprep.subr.mxu0 0.0
  %3991 = vmatpush1.msra.mxu0 0.0
  %3992 = vmatprep.subr.mxu0 0.0
  %3993 = vmatpush1.msra.mxu0 0.0
  %3994 = vmatprep.subr.mxu0 0.0
  %3995 = vmatpush1.msra.mxu0 0.0
  %3996 = vmatprep.subr.mxu0 0.0
  %3997 = vmatpush1.msra.mxu0 0.0
  %3998 = vmatprep.subr.mxu0 0.0
  %3999 = vmatpush1.msra.mxu0 0.0
  %4000 = vmatprep.subr.mxu0 0.0
  %4001 = vmatpush1.msra.mxu0 0.0
  %4002 = vmatprep.subr.mxu0 0.0
  %4003 = vmatpush1.msra.mxu0 0.0
  %4004 = vmatprep.subr.mxu0 0.0
  %4005 = vmatpush1.msra.mxu0 0.0
  %4006 = vmatprep.subr.mxu0 0.0
  %4007 = vmatpush1.msra.mxu0 0.0
  %4008 = vmatprep.subr.mxu0 0.0
  %4009 = vmatpush1.msra.mxu0 0.0
  %4010 = vmatprep.subr.mxu0 0.0
  %4011 = vmatpush1.msra.mxu0 0.0
  %4012 = vmatprep.subr.mxu0 0.0
  %4013 = vmatpush1.msra.mxu0 0.0
  %4014 = vmatprep.subr.mxu0 0.0
  %4015 = vmatpush1.msra.mxu0 0.0
  %4016 = vmatprep.subr.mxu0 0.0
  %4017 = vmatpush1.msra.mxu0 0.0
  %4018 = vmatprep.subr.mxu0 0.0
  %4019 = vmatpush1.msra.mxu0 0.0
  %4020 = vmatprep.subr.mxu0 0.0
  %4021 = vmatpush1.msra.mxu0 0.0
  %4022 = vmatprep.subr.mxu0 0.0
  %4023 = vmatpush1.msra.mxu0 0.0
  %4024 = vmatprep.subr.mxu0 0.0
  %4025 = vmatpush1.msra.mxu0 0.0
  %4026 = vmatprep.subr.mxu0 0.0
  %4027 = vmatpush1.msra.mxu0 0.0
  %4028 = vmatprep.subr.mxu0 0.0
  %4029 = vmatpush1.msra.mxu0 0.0
  %4030 = vmatprep.subr.mxu0 0.0
  %4031 = vmatpush1.msra.mxu0 0.0
  %4032 = vmatprep.subr.mxu0 0.0
  %4033 = vmatpush1.msra.mxu0 0.0
  %4034 = vmatprep.mubr.f32.mxu0 0.0
  %4035 = vmatmul.mubr.f32.gmra.mrb[0].mxu0 %v3898
  %v4036 = vpop.f32.mrb[0].mxu0
  %v4037 = vadd.f32 0.0, %v4036
  %v4038 = vpop.f32.mrb[0].mxu0
  %4039 = vdwg.mxu0
  %4040 = vmatprep.subr.mxu0 0.0
  %4041 = vmatpush1.msra.mxu0 %v308
  %4042 = vmatprep.subr.mxu0 0.0
  %4043 = vmatpush1.msra.mxu0 %v309
  %4044 = vmatprep.subr.mxu0 0.0
  %4045 = vmatpush1.msra.mxu0 %v310
  %4046 = vmatprep.subr.mxu0 0.0
  %4047 = vmatpush1.msra.mxu0 %v311
  %4048 = vmatprep.subr.mxu0 0.0
  %4049 = vmatpush1.msra.mxu0 0.0
  %4050 = vmatprep.subr.mxu0 0.0
  %4051 = vmatpush1.msra.mxu0 0.0
  %4052 = vmatprep.subr.mxu0 0.0
  %4053 = vmatpush1.msra.mxu0 0.0
  %4054 = vmatprep.subr.mxu0 0.0
  %4055 = vmatpush1.msra.mxu0 0.0
  %4056 = vmatprep.subr.mxu0 0.0
  %4057 = vmatpush1.msra.mxu0 0.0
  %4058 = vmatprep.subr.mxu0 0.0
  %4059 = vmatpush1.msra.mxu0 0.0
  %4060 = vmatprep.subr.mxu0 0.0
  %4061 = vmatpush1.msra.mxu0 0.0
  %4062 = vmatprep.subr.mxu0 0.0
  %4063 = vmatpush1.msra.mxu0 0.0
  %4064 = vmatprep.subr.mxu0 0.0
  %4065 = vmatpush1.msra.mxu0 0.0
  %4066 = vmatprep.subr.mxu0 0.0
  %4067 = vmatpush1.msra.mxu0 0.0
  %4068 = vmatprep.subr.mxu0 0.0
  %4069 = vmatpush1.msra.mxu0 0.0
  %4070 = vmatprep.subr.mxu0 0.0
  %4071 = vmatpush1.msra.mxu0 0.0
  %4072 = vmatprep.subr.mxu0 0.0
  %4073 = vmatpush1.msra.mxu0 0.0
  %4074 = vmatprep.subr.mxu0 0.0
  %4075 = vmatpush1.msra.mxu0 0.0
  %4076 = vmatprep.subr.mxu0 0.0
  %4077 = vmatpush1.msra.mxu0 0.0
  %4078 = vmatprep.subr.mxu0 0.0
  %4079 = vmatpush1.msra.mxu0 0.0
  %4080 = vmatprep.subr.mxu0 0.0
  %4081 = vmatpush1.msra.mxu0 0.0
  %4082 = vmatprep.subr.mxu0 0.0
  %4083 = vmatpush1.msra.mxu0 0.0
  %4084 = vmatprep.subr.mxu0 0.0
  %4085 = vmatpush1.msra.mxu0 0.0
  %4086 = vmatprep.subr.mxu0 0.0
  %4087 = vmatpush1.msra.mxu0 0.0
  %4088 = vmatprep.subr.mxu0 0.0
  %4089 = vmatpush1.msra.mxu0 0.0
  %4090 = vmatprep.subr.mxu0 0.0
  %4091 = vmatpush1.msra.mxu0 0.0
  %4092 = vmatprep.subr.mxu0 0.0
  %4093 = vmatpush1.msra.mxu0 0.0
  %4094 = vmatprep.subr.mxu0 0.0
  %4095 = vmatpush1.msra.mxu0 0.0
  %4096 = vmatprep.subr.mxu0 0.0
  %4097 = vmatpush1.msra.mxu0 0.0
  %4098 = vmatprep.subr.mxu0 0.0
  %4099 = vmatpush1.msra.mxu0 0.0
  %4100 = vmatprep.subr.mxu0 0.0
  %4101 = vmatpush1.msra.mxu0 0.0
  %4102 = vmatprep.subr.mxu0 0.0
  %4103 = vmatpush1.msra.mxu0 0.0
  %4104 = vmatprep.mubr.f32.mxu0 0.0
  %4105 = vmatmul.mubr.f32.gmra.mrb[0].mxu0 %v3898
  %v4106 = vpop.f32.mrb[0].mxu0
  %v4107 = vadd.f32 %v706, %v4106
  %v4108 = vpop.f32.mrb[0].mxu0
  %4109 = vdwg.mxu0
  %v4110 = vadd.f32 %v3894, %v3967
  %v4111 = vxor.u32 %v4110, 2147483648
  %v4112 = vmul.f32 %v4111, 1.442695
  %v4113 = vpow.pop %v4112
  %v4114 = vadd.f32 %v4113, 1.0
  %v4115 = vrcp.pop %v4114
  %v4116 = vmul.f32 1.0, %v4115
  %v4117 = vadd.f32 %v3895, %v4037
  %v4118 = vxor.u32 %v4117, 2147483648
  %v4119 = vmul.f32 %v4118, 1.442695
  %v4120 = vpow.pop %v4119
  %v4121 = vadd.f32 %v4120, 1.0
  %v4122 = vrcp.pop %v4121
  %v4123 = vmul.f32 1.0, %v4122
  %v4124 = vmul.f32 %v4116, %v4107
  %v4125 = vadd.f32 %v3896, %v4124
  %v4126 = vtanh.pop %v4125
  %v4127 = vsub.f32 1.0, %v4123
  %v4128 = vmul.f32 %v4127, %v4126
  %v4129 = vmul.f32 %v4123, %v3654
  %v4130 = vadd.f32 %v4128, %v4129
  %4131 = vst.msk [vmem:[#allocation9] sm:$0x3] %vm557, %v4130
  %v4132 = vld [vmem:[#allocation8] sm:$0xff]
  %v4133 = vld [vmem:[#allocation8 + $0x8] sm:$0xff]
  %v4134 = vld [vmem:[#allocation9] sm:$0xff]
  %v4135 = vld [vmem:[#allocation9 + $0x8] sm:$0xff]
  %vm4136 = vcmask 130048
  %v4137 = vsel %vm4136, %v4132, 0.0
  %4138 = vadd.xlane.f32.xlu0 %v4137
  %v4139 = vpop.xlane.xlu0 %4138
  %v4140 = vsel %vm4136, %v4133, 0.0
  %4141 = vadd.xlane.f32.xlu0 %v4140
  %v4142 = vpop.xlane.xlu0 %4141
  %v4143 = vsel %vm4136, %v4134, 0.0
  %4144 = vadd.xlane.f32.xlu0 %v4143
  %v4145 = vpop.xlane.xlu0 %4144
  %v4146 = vsel %vm4136, %v4135, 0.0
  %4147 = vadd.xlane.f32.xlu0 %v4146
  %v4148 = vpop.xlane.xlu0 %4147
  %v4149 = vadd.f32 %v4139, %v4145
  %v4150 = vadd.f32 %v4142, %v4148
  %v4151 = vmul.f32 %v4149, 0.03125
  %v4152 = vmul.f32 %v4150, 0.03125
  %v4153 = vsub.f32 %v4132, %v4151
  %v4154 = vsub.f32 %v4133, %v4152
  %v4155 = vsub.f32 %v4134, %v4151
  %v4156 = vsub.f32 %v4135, %v4152
  %v4157 = vmul.f32 %v4153, %v4153
  %v4158 = vmul.f32 %v4154, %v4154
  %v4159 = vsel %vm4136, %v4157, 0.0
  %4160 = vadd.xlane.f32.xlu0 %v4159
  %v4161 = vpop.xlane.xlu0 %4160
  %v4162 = vsel %vm4136, %v4158, 0.0
  %4163 = vadd.xlane.f32.xlu0 %v4162
  %v4164 = vpop.xlane.xlu0 %4163
  %v4165 = vmul.f32 %v4155, %v4155
  %v4166 = vmul.f32 %v4156, %v4156
  %v4167 = vsel %vm4136, %v4165, 0.0
  %4168 = vadd.xlane.f32.xlu0 %v4167
  %v4169 = vpop.xlane.xlu0 %4168
  %v4170 = vsel %vm4136, %v4166, 0.0
  %4171 = vadd.xlane.f32.xlu0 %v4170
  %v4172 = vpop.xlane.xlu0 %4171
  %v4173 = vadd.f32 %v4161, %v4169
  %v4174 = vadd.f32 %v4164, %v4172
  %v4175 = vmul.f32 %v4173, 0.03125
  %v4176 = vmul.f32 %v4174, 0.03125
  %v4177 = vadd.f32 %v4175, 1e-05
  %v4178 = vadd.f32 %v4176, 1e-05
  %v4179 = vrsqrt.pop %v4177
  %v4180 = vrsqrt.pop %v4178
  %v4181 = vld [vmem:[%s14] sm:$0x1]
  %v4182 = vld [vmem:[%s15] sm:$0x1]
  %v4183 = vld [vmem:[%s16] sm:$0xff]
  %v4184 = vld [vmem:[%s16 + $0x8] sm:$0xff]
  %v4185 = vld [vmem:[%s16 + $0x10] sm:$0xff]
  %v4186 = vld [vmem:[%s16 + $0x18] sm:$0xff]
  %v4187 = vmul.f32 %v4153, %v4179
  %v4188 = vmul.f32 %v4154, %v4180
  %v4190 = vlaneseq
  %v4191 = vshrl.u32 %v4190, 7
  %v4192 = vsub.s32 0, %v4191
  %v4193 = vrot.slane %v4181, %v4192
  %v4195 = vmul.f32 %v4187, %v4193
  %v4196 = vmul.f32 %v4188, %v4193
  %v4198 = vlaneseq
  %v4199 = vshrl.u32 %v4198, 7
  %v4200 = vsub.s32 0, %v4199
  %v4201 = vrot.slane %v4182, %v4200
  %v4203 = vadd.f32 %v4195, %v4201
  %v4204 = vadd.f32 %v4196, %v4201
  %v4205 = vmul.f32 %v4155, %v4179
  %v4206 = vmul.f32 %v4156, %v4180
  %4207 = vrot.lane.b32.xlu0 %v4193, 112
  %v4208 = vpop.permute.xlu0 %4207
  %v4210 = vmul.f32 %v4205, %v4208
  %v4211 = vmul.f32 %v4206, %v4208
  %4212 = vrot.lane.b32.xlu0 %v4201, 112
  %v4213 = vpop.permute.xlu0 %4212
  %v4215 = vadd.f32 %v4210, %v4213
  %v4216 = vadd.f32 %v4211, %v4213
  %v4218 = vsel %vm4136, %v4215, 0
  %v4221 = vsel %vm4136, %v4216, 0
  %4223 = vmatprep.subr.mxu0 0.0
  %4224 = vmatpush1.msra.mxu0 %v4185
  %4225 = vmatprep.subr.mxu0 0.0
  %4226 = vmatpush1.msra.mxu0 %v4186
  %4227 = vmatprep.subr.mxu0 0.0
  %4228 = vmatpush1.msra.mxu0 0.0
  %4229 = vmatprep.subr.mxu0 0.0
  %4230 = vmatpush1.msra.mxu0 0.0
  %4231 = vmatprep.subr.mxu0 0.0
  %4232 = vmatpush1.msra.mxu0 0.0
  %4233 = vmatprep.subr.mxu0 0.0
  %4234 = vmatpush1.msra.mxu0 0.0
  %4235 = vmatprep.subr.mxu0 0.0
  %4236 = vmatpush1.msra.mxu0 0.0
  %4237 = vmatprep.subr.mxu0 0.0
  %4238 = vmatpush1.msra.mxu0 0.0
  %4239 = vmatprep.subr.mxu0 0.0
  %4240 = vmatpush1.msra.mxu0 0.0
  %4241 = vmatprep.subr.mxu0 0.0
  %4242 = vmatpush1.msra.mxu0 0.0
  %4243 = vmatprep.subr.mxu0 0.0
  %4244 = vmatpush1.msra.mxu0 0.0
  %4245 = vmatprep.subr.mxu0 0.0
  %4246 = vmatpush1.msra.mxu0 0.0
  %4247 = vmatprep.subr.mxu0 0.0
  %4248 = vmatpush1.msra.mxu0 0.0
  %4249 = vmatprep.subr.mxu0 0.0
  %4250 = vmatpush1.msra.mxu0 0.0
  %4251 = vmatprep.subr.mxu0 0.0
  %4252 = vmatpush1.msra.mxu0 0.0
  %4253 = vmatprep.subr.mxu0 0.0
  %4254 = vmatpush1.msra.mxu0 0.0
  %4255 = vmatprep.subr.mxu0 0.0
  %4256 = vmatpush1.msra.mxu0 0.0
  %4257 = vmatprep.subr.mxu0 0.0
  %4258 = vmatpush1.msra.mxu0 0.0
  %4259 = vmatprep.subr.mxu0 0.0
  %4260 = vmatpush1.msra.mxu0 0.0
  %4261 = vmatprep.subr.mxu0 0.0
  %4262 = vmatpush1.msra.mxu0 0.0
  %4263 = vmatprep.subr.mxu0 0.0
  %4264 = vmatpush1.msra.mxu0 0.0
  %4265 = vmatprep.subr.mxu0 0.0
  %4266 = vmatpush1.msra.mxu0 0.0
  %4267 = vmatprep.subr.mxu0 0.0
  %4268 = vmatpush1.msra.mxu0 0.0
  %4269 = vmatprep.subr.mxu0 0.0
  %4270 = vmatpush1.msra.mxu0 0.0
  %4271 = vmatprep.subr.mxu0 0.0
  %4272 = vmatpush1.msra.mxu0 0.0
  %4273 = vmatprep.subr.mxu0 0.0
  %4274 = vmatpush1.msra.mxu0 0.0
  %4275 = vmatprep.subr.mxu0 0.0
  %4276 = vmatpush1.msra.mxu0 0.0
  %4277 = vmatprep.subr.mxu0 0.0
  %4278 = vmatpush1.msra.mxu0 0.0
  %4279 = vmatprep.subr.mxu0 0.0
  %4280 = vmatpush1.msra.mxu0 0.0
  %4281 = vmatprep.subr.mxu0 0.0
  %4282 = vmatpush1.msra.mxu0 0.0
  %4283 = vmatprep.subr.mxu0 0.0
  %4284 = vmatpush1.msra.mxu0 0.0
  %4285 = vmatprep.subr.mxu0 0.0
  %4286 = vmatpush1.msra.mxu0 0.0
  %4287 = vmatprep.mubr.f32.mxu0 0.0
  %4288 = vmatmul.mubr.f32.gmra.mrb[0].mxu0 %v4218
  %v4289 = vpop.f32.mrb[0].mxu0
  %v4290 = vadd.f32 0.0, %v4289
  %v4291 = vpop.f32.mrb[0].mxu0
  %4292 = vmatprep.mubr.f32.mxu0 0.0
  %4293 = vmatmul.mubr.f32.gmra.mrb[0].mxu0 %v4221
  %v4294 = vpop.f32.mrb[0].mxu0
  %v4295 = vadd.f32 0.0, %v4294
  %v4296 = vpop.f32.mrb[0].mxu0
  %4297 = vdwg.mxu0
  %v4299 = vsel %vm4136, %v4203, 0
  %v4302 = vsel %vm4136, %v4204, 0
  %4304 = vmatprep.subr.mxu0 0.0
  %4305 = vmatpush1.msra.mxu0 %v4183
  %4306 = vmatprep.subr.mxu0 0.0
  %4307 = vmatpush1.msra.mxu0 %v4184
  %4308 = vmatprep.subr.mxu0 0.0
  %4309 = vmatpush1.msra.mxu0 0.0
  %4310 = vmatprep.subr.mxu0 0.0
  %4311 = vmatpush1.msra.mxu0 0.0
  %4312 = vmatprep.subr.mxu0 0.0
  %4313 = vmatpush1.msra.mxu0 0.0
  %4314 = vmatprep.subr.mxu0 0.0
  %4315 = vmatpush1.msra.mxu0 0.0
  %4316 = vmatprep.subr.mxu0 0.0
  %4317 = vmatpush1.msra.mxu0 0.0
  %4318 = vmatprep.subr.mxu0 0.0
  %4319 = vmatpush1.msra.mxu0 0.0
  %4320 = vmatprep.subr.mxu0 0.0
  %4321 = vmatpush1.msra.mxu0 0.0
  %4322 = vmatprep.subr.mxu0 0.0
  %4323 = vmatpush1.msra.mxu0 0.0
  %4324 = vmatprep.subr.mxu0 0.0
  %4325 = vmatpush1.msra.mxu0 0.0
  %4326 = vmatprep.subr.mxu0 0.0
  %4327 = vmatpush1.msra.mxu0 0.0
  %4328 = vmatprep.subr.mxu0 0.0
  %4329 = vmatpush1.msra.mxu0 0.0
  %4330 = vmatprep.subr.mxu0 0.0
  %4331 = vmatpush1.msra.mxu0 0.0
  %4332 = vmatprep.subr.mxu0 0.0
  %4333 = vmatpush1.msra.mxu0 0.0
  %4334 = vmatprep.subr.mxu0 0.0
  %4335 = vmatpush1.msra.mxu0 0.0
  %4336 = vmatprep.subr.mxu0 0.0
  %4337 = vmatpush1.msra.mxu0 0.0
  %4338 = vmatprep.subr.mxu0 0.0
  %4339 = vmatpush1.msra.mxu0 0.0
  %4340 = vmatprep.subr.mxu0 0.0
  %4341 = vmatpush1.msra.mxu0 0.0
  %4342 = vmatprep.subr.mxu0 0.0
  %4343 = vmatpush1.msra.mxu0 0.0
  %4344 = vmatprep.subr.mxu0 0.0
  %4345 = vmatpush1.msra.mxu0 0.0
  %4346 = vmatprep.subr.mxu0 0.0
  %4347 = vmatpush1.msra.mxu0 0.0
  %4348 = vmatprep.subr.mxu0 0.0
  %4349 = vmatpush1.msra.mxu0 0.0
  %4350 = vmatprep.subr.mxu0 0.0
  %4351 = vmatpush1.msra.mxu0 0.0
  %4352 = vmatprep.subr.mxu0 0.0
  %4353 = vmatpush1.msra.mxu0 0.0
  %4354 = vmatprep.subr.mxu0 0.0
  %4355 = vmatpush1.msra.mxu0 0.0
  %4356 = vmatprep.subr.mxu0 0.0
  %4357 = vmatpush1.msra.mxu0 0.0
  %4358 = vmatprep.subr.mxu0 0.0
  %4359 = vmatpush1.msra.mxu0 0.0
  %4360 = vmatprep.subr.mxu0 0.0
  %4361 = vmatpush1.msra.mxu0 0.0
  %4362 = vmatprep.subr.mxu0 0.0
  %4363 = vmatpush1.msra.mxu0 0.0
  %4364 = vmatprep.subr.mxu0 0.0
  %4365 = vmatpush1.msra.mxu0 0.0
  %4366 = vmatprep.subr.mxu0 0.0
  %4367 = vmatpush1.msra.mxu0 0.0
  %4368 = vmatprep.mubr.f32.mxu0 0.0
  %4369 = vmatmul.mubr.f32.gmra.mrb[0].mxu0 %v4299
  %v4370 = vpop.f32.mrb[0].mxu0
  %v4371 = vadd.f32 %v4290, %v4370
  %v4372 = vpop.f32.mrb[0].mxu0
  %4373 = vmatprep.mubr.f32.mxu0 0.0
  %4374 = vmatmul.mubr.f32.gmra.mrb[0].mxu0 %v4302
  %v4375 = vpop.f32.mrb[0].mxu0
  %v4376 = vadd.f32 %v4295, %v4375
  %v4377 = vpop.f32.mrb[0].mxu0
  %4378 = vdwg.mxu0
  %v4379 = vld [vmem:[%s17] sm:$0x1]
  %v4381 = vlaneseq
  %v4382 = vshrl.u32 %v4381, 7
  %v4383 = vsub.s32 0, %v4382
  %v4384 = vrot.slane %v4379, %v4383
  %v4386 = vadd.f32 %v4371, %v4384
  %v4387 = vadd.f32 %v4376, %v4384
  %vm4388 = vcmask 15360
  %4389 = vst.msk [vmem:[%s18] sm:$0xff] %vm4388, %v4386
  %4390 = vst.msk [vmem:[%s18 + $0x8] sm:$0xff] %vm4388, %v4387
  %v4391 = vld [vmem:[#allocation8] sm:$0xff]
  %v4392 = vld [vmem:[#allocation8 + $0x8] sm:$0xff]
  %v4393 = vld [vmem:[#allocation9] sm:$0xff]
  %v4394 = vld [vmem:[#allocation9 + $0x8] sm:$0xff]
  %4397 = vrot.lane.b32.xlu0 %v4391, 112
  %v4398 = vpop.permute.xlu0 %4397
  %4399 = vrot.lane.b32.xlu0 %v4392, 112
  %v4400 = vpop.permute.xlu0 %4399
  %v4403 = vsel %vm4136, %v4398, 0.0
  %4404 = vadd.xlane.f32.xlu0 %v4403
  %v4405 = vpop.xlane.xlu0 %4404
  %v4406 = vsel %vm4136, %v4400, 0.0
  %4407 = vadd.xlane.f32.xlu0 %v4406
  %v4408 = vpop.xlane.xlu0 %4407
  %4411 = vrot.lane.b32.xlu0 %v4393, 112
  %v4412 = vpop.permute.xlu0 %4411
  %4413 = vrot.lane.b32.xlu0 %v4394, 112
  %v4414 = vpop.permute.xlu0 %4413
  %v4417 = vsel %vm4136, %v4412, 0.0
  %4418 = vadd.xlane.f32.xlu0 %v4417
  %v4419 = vpop.xlane.xlu0 %4418
  %v4420 = vsel %vm4136, %v4414, 0.0
  %4421 = vadd.xlane.f32.xlu0 %v4420
  %v4422 = vpop.xlane.xlu0 %4421
  %v4423 = vadd.f32 %v4405, %v4419
  %v4424 = vadd.f32 %v4408, %v4422
  %v4425 = vmul.f32 %v4423, 0.03125
  %v4426 = vmul.f32 %v4424, 0.03125
  %v4427 = vsub.f32 %v4391, %v4425
  %v4428 = vsub.f32 %v4392, %v4426
  %v4429 = vsub.f32 %v4393, %v4425
  %v4430 = vsub.f32 %v4394, %v4426
  %v4431 = vmul.f32 %v4427, %v4427
  %v4432 = vmul.f32 %v4428, %v4428
  %4435 = vrot.lane.b32.xlu0 %v4431, 112
  %v4436 = vpop.permute.xlu0 %4435
  %4437 = vrot.lane.b32.xlu0 %v4432, 112
  %v4438 = vpop.permute.xlu0 %4437
  %v4441 = vsel %vm4136, %v4436, 0.0
  %4442 = vadd.xlane.f32.xlu0 %v4441
  %v4443 = vpop.xlane.xlu0 %4442
  %v4444 = vsel %vm4136, %v4438, 0.0
  %4445 = vadd.xlane.f32.xlu0 %v4444
  %v4446 = vpop.xlane.xlu0 %4445
  %v4447 = vmul.f32 %v4429, %v4429
  %v4448 = vmul.f32 %v4430, %v4430
  %4451 = vrot.lane.b32.xlu0 %v4447, 112
  %v4452 = vpop.permute.xlu0 %4451
  %4453 = vrot.lane.b32.xlu0 %v4448, 112
  %v4454 = vpop.permute.xlu0 %4453
  %v4457 = vsel %vm4136, %v4452, 0.0
  %4458 = vadd.xlane.f32.xlu0 %v4457
  %v4459 = vpop.xlane.xlu0 %4458
  %v4460 = vsel %vm4136, %v4454, 0.0
  %4461 = vadd.xlane.f32.xlu0 %v4460
  %v4462 = vpop.xlane.xlu0 %4461
  %v4463 = vadd.f32 %v4443, %v4459
  %v4464 = vadd.f32 %v4446, %v4462
  %v4465 = vmul.f32 %v4463, 0.03125
  %v4466 = vmul.f32 %v4464, 0.03125
  %v4467 = vadd.f32 %v4465, 1e-05
  %v4468 = vadd.f32 %v4466, 1e-05
  %v4469 = vrsqrt.pop %v4467
  %v4470 = vrsqrt.pop %v4468
  %s4471 = scalar_lea.vmem %s14, 1
  %v4472 = vld [vmem:[%s4471] sm:$0x1]
  %s4473 = scalar_lea.vmem %s15, 1
  %v4474 = vld [vmem:[%s4473] sm:$0x1]
  %s4475 = scalar_lea.vmem %s16, 32
  %v4476 = vld [vmem:[%s4475] sm:$0xff]
  %v4477 = vld [vmem:[%s4475 + $0x8] sm:$0xff]
  %v4478 = vld [vmem:[%s4475 + $0x10] sm:$0xff]
  %v4479 = vld [vmem:[%s4475 + $0x18] sm:$0xff]
  %v4480 = vmul.f32 %v4427, %v4469
  %v4481 = vmul.f32 %v4428, %v4470
  %v4483 = vlaneseq
  %v4484 = vshrl.u32 %v4483, 7
  %v4485 = vsub.s32 0, %v4484
  %v4486 = vrot.slane %v4472, %v4485
  %4487 = vrot.lane.b32.xlu0 %v4486, 16
  %v4488 = vpop.permute.xlu0 %4487
  %v4490 = vmul.f32 %v4480, %v4488
  %v4491 = vmul.f32 %v4481, %v4488
  %v4493 = vlaneseq
  %v4494 = vshrl.u32 %v4493, 7
  %v4495 = vsub.s32 0, %v4494
  %v4496 = vrot.slane %v4474, %v4495
  %4497 = vrot.lane.b32.xlu0 %v4496, 16
  %v4498 = vpop.permute.xlu0 %4497
  %v4500 = vadd.f32 %v4490, %v4498
  %v4501 = vadd.f32 %v4491, %v4498
  %v4502 = vmul.f32 %v4429, %v4469
  %v4503 = vmul.f32 %v4430, %v4470
  %v4505 = vmul.f32 %v4502, %v4486
  %v4506 = vmul.f32 %v4503, %v4486
  %v4508 = vadd.f32 %v4505, %v4496
  %v4509 = vadd.f32 %v4506, %v4496
  %4512 = vrot.lane.b32.xlu0 %v4508, 112
  %v4513 = vpop.permute.xlu0 %4512
  %4514 = vrot.lane.b32.xlu0 %v4509, 112
  %v4515 = vpop.permute.xlu0 %4514
  %v4516 = vsel %vm4136, %v4513, 0
  %v4518 = vsel %vm4136, %v4515, 0
  %4520 = vmatprep.subr.mxu0 0.0
  %4521 = vmatpush1.msra.mxu0 %v4478
  %4522 = vmatprep.subr.mxu0 0.0
  %4523 = vmatpush1.msra.mxu0 %v4479
  %4524 = vmatprep.subr.mxu0 0.0
  %4525 = vmatpush1.msra.mxu0 0.0
  %4526 = vmatprep.subr.mxu0 0.0
  %4527 = vmatpush1.msra.mxu0 0.0
  %4528 = vmatprep.subr.mxu0 0.0
  %4529 = vmatpush1.msra.mxu0 0.0
  %4530 = vmatprep.subr.mxu0 0.0
  %4531 = vmatpush1.msra.mxu0 0.0
  %4532 = vmatprep.subr.mxu0 0.0
  %4533 = vmatpush1.msra.mxu0 0.0
  %4534 = vmatprep.subr.mxu0 0.0
  %4535 = vmatpush1.msra.mxu0 0.0
  %4536 = vmatprep.subr.mxu0 0.0
  %4537 = vmatpush1.msra.mxu0 0.0
  %4538 = vmatprep.subr.mxu0 0.0
  %4539 = vmatpush1.msra.mxu0 0.0
  %4540 = vmatprep.subr.mxu0 0.0
  %4541 = vmatpush1.msra.mxu0 0.0
  %4542 = vmatprep.subr.mxu0 0.0
  %4543 = vmatpush1.msra.mxu0 0.0
  %4544 = vmatprep.subr.mxu0 0.0
  %4545 = vmatpush1.msra.mxu0 0.0
  %4546 = vmatprep.subr.mxu0 0.0
  %4547 = vmatpush1.msra.mxu0 0.0
  %4548 = vmatprep.subr.mxu0 0.0
  %4549 = vmatpush1.msra.mxu0 0.0
  %4550 = vmatprep.subr.mxu0 0.0
  %4551 = vmatpush1.msra.mxu0 0.0
  %4552 = vmatprep.subr.mxu0 0.0
  %4553 = vmatpush1.msra.mxu0 0.0
  %4554 = vmatprep.subr.mxu0 0.0
  %4555 = vmatpush1.msra.mxu0 0.0
  %4556 = vmatprep.subr.mxu0 0.0
  %4557 = vmatpush1.msra.mxu0 0.0
  %4558 = vmatprep.subr.mxu0 0.0
  %4559 = vmatpush1.msra.mxu0 0.0
  %4560 = vmatprep.subr.mxu0 0.0
  %4561 = vmatpush1.msra.mxu0 0.0
  %4562 = vmatprep.subr.mxu0 0.0
  %4563 = vmatpush1.msra.mxu0 0.0
  %4564 = vmatprep.subr.mxu0 0.0
  %4565 = vmatpush1.msra.mxu0 0.0
  %4566 = vmatprep.subr.mxu0 0.0
  %4567 = vmatpush1.msra.mxu0 0.0
  %4568 = vmatprep.subr.mxu0 0.0
  %4569 = vmatpush1.msra.mxu0 0.0
  %4570 = vmatprep.subr.mxu0 0.0
  %4571 = vmatpush1.msra.mxu0 0.0
  %4572 = vmatprep.subr.mxu0 0.0
  %4573 = vmatpush1.msra.mxu0 0.0
  %4574 = vmatprep.subr.mxu0 0.0
  %4575 = vmatpush1.msra.mxu0 0.0
  %4576 = vmatprep.subr.mxu0 0.0
  %4577 = vmatpush1.msra.mxu0 0.0
  %4578 = vmatprep.subr.mxu0 0.0
  %4579 = vmatpush1.msra.mxu0 0.0
  %4580 = vmatprep.subr.mxu0 0.0
  %4581 = vmatpush1.msra.mxu0 0.0
  %4582 = vmatprep.subr.mxu0 0.0
  %4583 = vmatpush1.msra.mxu0 0.0
  %4584 = vmatprep.mubr.f32.mxu0 0.0
  %4585 = vmatmul.mubr.f32.gmra.mrb[0].mxu0 %v4516
  %v4586 = vpop.f32.mrb[0].mxu0
  %v4587 = vadd.f32 0.0, %v4586
  %v4588 = vpop.f32.mrb[0].mxu0
  %4589 = vmatprep.mubr.f32.mxu0 0.0
  %4590 = vmatmul.mubr.f32.gmra.mrb[0].mxu0 %v4518
  %v4591 = vpop.f32.mrb[0].mxu0
  %v4592 = vadd.f32 0.0, %v4591
  %v4593 = vpop.f32.mrb[0].mxu0
  %4594 = vdwg.mxu0
  %4597 = vrot.lane.b32.xlu0 %v4500, 112
  %v4598 = vpop.permute.xlu0 %4597
  %4599 = vrot.lane.b32.xlu0 %v4501, 112
  %v4600 = vpop.permute.xlu0 %4599
  %v4601 = vsel %vm4136, %v4598, 0
  %v4603 = vsel %vm4136, %v4600, 0
  %4605 = vmatprep.subr.mxu0 0.0
  %4606 = vmatpush1.msra.mxu0 %v4476
  %4607 = vmatprep.subr.mxu0 0.0
  %4608 = vmatpush1.msra.mxu0 %v4477
  %4609 = vmatprep.subr.mxu0 0.0
  %4610 = vmatpush1.msra.mxu0 0.0
  %4611 = vmatprep.subr.mxu0 0.0
  %4612 = vmatpush1.msra.mxu0 0.0
  %4613 = vmatprep.subr.mxu0 0.0
  %4614 = vmatpush1.msra.mxu0 0.0
  %4615 = vmatprep.subr.mxu0 0.0
  %4616 = vmatpush1.msra.mxu0 0.0
  %4617 = vmatprep.subr.mxu0 0.0
  %4618 = vmatpush1.msra.mxu0 0.0
  %4619 = vmatprep.subr.mxu0 0.0
  %4620 = vmatpush1.msra.mxu0 0.0
  %4621 = vmatprep.subr.mxu0 0.0
  %4622 = vmatpush1.msra.mxu0 0.0
  %4623 = vmatprep.subr.mxu0 0.0
  %4624 = vmatpush1.msra.mxu0 0.0
  %4625 = vmatprep.subr.mxu0 0.0
  %4626 = vmatpush1.msra.mxu0 0.0
  %4627 = vmatprep.subr.mxu0 0.0
  %4628 = vmatpush1.msra.mxu0 0.0
  %4629 = vmatprep.subr.mxu0 0.0
  %4630 = vmatpush1.msra.mxu0 0.0
  %4631 = vmatprep.subr.mxu0 0.0
  %4632 = vmatpush1.msra.mxu0 0.0
  %4633 = vmatprep.subr.mxu0 0.0
  %4634 = vmatpush1.msra.mxu0 0.0
  %4635 = vmatprep.subr.mxu0 0.0
  %4636 = vmatpush1.msra.mxu0 0.0
  %4637 = vmatprep.subr.mxu0 0.0
  %4638 = vmatpush1.msra.mxu0 0.0
  %4639 = vmatprep.subr.mxu0 0.0
  %4640 = vmatpush1.msra.mxu0 0.0
  %4641 = vmatprep.subr.mxu0 0.0
  %4642 = vmatpush1.msra.mxu0 0.0
  %4643 = vmatprep.subr.mxu0 0.0
  %4644 = vmatpush1.msra.mxu0 0.0
  %4645 = vmatprep.subr.mxu0 0.0
  %4646 = vmatpush1.msra.mxu0 0.0
  %4647 = vmatprep.subr.mxu0 0.0
  %4648 = vmatpush1.msra.mxu0 0.0
  %4649 = vmatprep.subr.mxu0 0.0
  %4650 = vmatpush1.msra.mxu0 0.0
  %4651 = vmatprep.subr.mxu0 0.0
  %4652 = vmatpush1.msra.mxu0 0.0
  %4653 = vmatprep.subr.mxu0 0.0
  %4654 = vmatpush1.msra.mxu0 0.0
  %4655 = vmatprep.subr.mxu0 0.0
  %4656 = vmatpush1.msra.mxu0 0.0
  %4657 = vmatprep.subr.mxu0 0.0
  %4658 = vmatpush1.msra.mxu0 0.0
  %4659 = vmatprep.subr.mxu0 0.0
  %4660 = vmatpush1.msra.mxu0 0.0
  %4661 = vmatprep.subr.mxu0 0.0
  %4662 = vmatpush1.msra.mxu0 0.0
  %4663 = vmatprep.subr.mxu0 0.0
  %4664 = vmatpush1.msra.mxu0 0.0
  %4665 = vmatprep.subr.mxu0 0.0
  %4666 = vmatpush1.msra.mxu0 0.0
  %4667 = vmatprep.subr.mxu0 0.0
  %4668 = vmatpush1.msra.mxu0 0.0
  %4669 = vmatprep.mubr.f32.mxu0 0.0
  %4670 = vmatmul.mubr.f32.gmra.mrb[0].mxu0 %v4601
  %v4671 = vpop.f32.mrb[0].mxu0
  %v4672 = vadd.f32 %v4587, %v4671
  %v4673 = vpop.f32.mrb[0].mxu0
  %4674 = vmatprep.mubr.f32.mxu0 0.0
  %4675 = vmatmul.mubr.f32.gmra.mrb[0].mxu0 %v4603
  %v4676 = vpop.f32.mrb[0].mxu0
  %v4677 = vadd.f32 %v4592, %v4676
  %v4678 = vpop.f32.mrb[0].mxu0
  %4679 = vdwg.mxu0
  %s4680 = scalar_lea.vmem %s17, 1
  %v4681 = vld [vmem:[%s4680] sm:$0x1]
  %v4683 = vlaneseq
  %v4684 = vshrl.u32 %v4683, 7
  %v4685 = vsub.s32 0, %v4684
  %v4686 = vrot.slane %v4681, %v4685
  %v4688 = vadd.f32 %v4672, %v4686
  %v4689 = vadd.f32 %v4677, %v4686
  %s4690 = scalar_lea.vmem %s18, 16
  %4691 = vst.msk [vmem:[%s4690] sm:$0xff] %vm4388, %v4688
  %4692 = vst.msk [vmem:[%s4690 + $0x8] sm:$0xff] %vm4388, %v4689
  // Predicated region
  $region74: #{multi_gen_forward.2} parent=0 // pred_check
    _
  $region75: #{multi_gen_forward.2} parent=0 // pred_check_branch
    %4694 = sbr.rel (0) target = $region77
  $region76: #{multi_gen_forward.2} parent=0 // pred_region
    _
  $region77: #{multi_gen_forward.2} parent=0 // pred_fallthru
    _
  // Predicated region
  $region78: #{multi_gen_forward.2} parent=0 // pred_check
    _
  $region79: #{multi_gen_forward.2} parent=0 // pred_check_branch
    %4696 = sbr.rel (0) target = $region81
  $region80: #{multi_gen_forward.2} parent=0 // pred_region
    _
  $region81: #{multi_gen_forward.2} parent=0 // pred_fallthru
    _

</llo_original>
